<compile_context>
chip_gen: v7x
topology: tpu7x:2x2x1
jax: 0.10.0
libtpu: 0.0.40
codegen_flags: <defaults>
</compile_context>

<pallas_src>
import functools
import math

import numpy as np
import jax
import jax.numpy as jnp
from jax.experimental import pallas as pl
from jax.experimental.pallas import tpu as pltpu

OUT_DIM = {2: 39, 4: 35, 6: 31}

_FC_BLOCK_N = 8192              # FC output-column tile (multiple of 128)
_VMEM_LIMIT = 32 * 1024 * 1024  # explicit scoped-VMEM limit (safe on v5e/v6e/v7x)

# Tap table for the 4-phase (subpixel) decomposition of
# ConvTranspose2d(k=3, stride=2, output_padding=1):
#   obs[2m+ey, 2n+ex, co] = sum_{(t,dy,dx) in phase(ey,ex)} x_pad1[m+dy, n+dx, :] @ W_t[:, co]
# with t = ky*3 + kx and x_pad1 = x zero-padded by 1;  phase index p = 2*ey + ex.
_PHASE_TAPS = (
    ((8, 0, 0), (6, 0, 1), (2, 1, 0), (0, 1, 1)),   # (ey, ex) = (0, 0)
    ((7, 0, 1), (1, 1, 1)),                         # (0, 1)
    ((5, 1, 0), (3, 1, 1)),                         # (1, 0)
    ((4, 1, 1),),                                   # (1, 1)
)


# ---------------------------------------------------------------------------
# Pallas kernels
# ---------------------------------------------------------------------------
def _fc_kernel(x_ref, w_ref, b_ref, o_ref):
    x = x_ref[...].astype(w_ref.dtype)
    acc = jnp.dot(x, w_ref[...], preferred_element_type=jnp.float32)
    o_ref[...] = jnp.maximum(acc + b_ref[...], 0.0).astype(o_ref.dtype)


def _deconv_s1_kernel(x_ref, w_ref, b_ref, o_ref, pad_ref, *, lp):
    """One stride-1 ConvTranspose2d(3) layer (+bias+ReLU) for one batch element.

    x_ref  : (h_in, w_in*cin)                      unpadded NHWC row-flattened frame
    w_ref  : (3, (wtile+2)*cin, wtile*cout)        banded weights, one per ky tap
    b_ref  : (1, wtile*cout)                       bias tiled across wtile columns
    o_ref  : (h_out, w_out*cout)                   NHWC row-flattened output frame
    pad_ref: (h_pad, w_pad*cin) VMEM scratch       zero-padded frame
    """
    cin, cout = lp["cin"], lp["cout"]
    # zero-pad inside the kernel (no jnp.pad / reshape XLA ops between layers)
    pad_ref[...] = jnp.zeros_like(pad_ref)
    pad_ref[pl.ds(2, lp["h_in"]), pl.ds(2 * cin, lp["w_in"] * cin)] = x_ref[...]
    for col0 in lp["starts"]:                         # static Python loop over groups
        acc = jnp.zeros((lp["h_out"], lp["n"]), jnp.float32)
        for ky in range(3):
            lhs = pad_ref[pl.ds(ky, lp["h_out"]), pl.ds(col0 * cin, lp["k"])]
            acc = acc + jnp.dot(lhs.astype(w_ref.dtype), w_ref[ky],
                                preferred_element_type=jnp.float32)
        o_ref[:, pl.ds(col0 * cout, lp["n"])] = (
            jnp.maximum(acc + b_ref[...], 0.0).astype(o_ref.dtype))


def _deconv_s2_kernel(x_ref, w_ref, b_ref, o_ref, pad_ref, *, lp):
    """Final stride-2 / output_padding=1 ConvTranspose2d(3) (+bias, no ReLU).

    Column-interleaved banded form: the x-parity (ex) is folded into the banded
    weight columns, so output row 2m+ey comes out with columns already in natural
    q = 2n+ex order -> lane-dense stores, no phase gather afterwards.
    o_ref: (2, h_half, w_out*cout) with dims (ey, m, q*cout + co).
    """
    cin, cout = lp["cin"], lp["cout"]
    pad_ref[...] = jnp.zeros_like(pad_ref)
    pad_ref[pl.ds(1, lp["h_in"]), pl.ds(cin, lp["w_in"] * cin)] = x_ref[...]
    for col0 in lp["starts"]:                         # col0 is always even
        n0 = col0 // 2
        lhs0 = pad_ref[pl.ds(0, lp["h_half"]), pl.ds(n0 * cin, lp["k"])].astype(w_ref.dtype)
        lhs1 = pad_ref[pl.ds(1, lp["h_half"]), pl.ds(n0 * cin, lp["k"])].astype(w_ref.dtype)
        for ey in range(2):
            acc = jnp.dot(lhs0, w_ref[2 * ey + 0], preferred_element_type=jnp.float32)
            acc = acc + jnp.dot(lhs1, w_ref[2 * ey + 1], preferred_element_type=jnp.float32)
            o_ref[ey, :, pl.ds(col0 * cout, lp["n"])] = (acc + b_ref[...]).astype(o_ref.dtype)


# ---------------------------------------------------------------------------
# pallas_call wrappers
# ---------------------------------------------------------------------------
def _fc_relu(x, w, b):
    B, F = x.shape
    N = w.shape[1]
    nb = min(N, _FC_BLOCK_N)
    cost = pl.CostEstimate(
        flops=int(2 * B * F * N + B * N), transcendentals=0,
        bytes_accessed=int(x.size * 4 + w.size * w.dtype.itemsize + 4 * N + 4 * B * N))
    return pl.pallas_call(
        _fc_kernel,
        out_shape=jax.ShapeDtypeStruct((B, N), jnp.float32),
        grid=(pl.cdiv(N, nb),),
        in_specs=[pl.BlockSpec((B, F), lambda j: (0, 0)),
                  pl.BlockSpec((F, nb), lambda j: (0, j)),
                  pl.BlockSpec((1, nb), lambda j: (0, j))],
        out_specs=pl.BlockSpec((B, nb), lambda j: (0, j)),
        compiler_params=pltpu.CompilerParams(
            dimension_semantics=("parallel",), vmem_limit_bytes=_VMEM_LIMIT),
        cost_estimate=cost,
    )(x, w, b)


def _deconv_s1_call(x, w, b, lp):
    B = x.shape[0]
    kern = functools.partial(_deconv_s1_kernel, lp=lp)
    cost = pl.CostEstimate(
        flops=int(6 * B * len(lp["starts"]) * lp["h_out"] * lp["k"] * lp["n"]),
        transcendentals=0,
        bytes_accessed=int(x.size * x.dtype.itemsize + w.size * w.dtype.itemsize
                           + 4 * B * lp["h_out"] * lp["w_out"] * lp["cout"]))
    return pl.pallas_call(
        kern,
        out_shape=jax.ShapeDtypeStruct((B, lp["h_out"], lp["w_out"] * lp["cout"]), jnp.float32),
        grid=(B,),
        in_specs=[pl.BlockSpec((None, lp["h_in"], lp["w_in"] * lp["cin"]),
                               lambda bi: (bi, 0, 0)),
                  pl.BlockSpec((3, lp["k"], lp["n"]), lambda bi: (0, 0, 0)),
                  pl.BlockSpec((1, lp["n"]), lambda bi: (0, 0))],
        out_specs=pl.BlockSpec((None, lp["h_out"], lp["w_out"] * lp["cout"]),
                               lambda bi: (bi, 0, 0)),
        scratch_shapes=[pltpu.VMEM((lp["h_pad"], lp["w_pad"] * lp["cin"]), jnp.float32)],
        compiler_params=pltpu.CompilerParams(
            dimension_semantics=("parallel",), vmem_limit_bytes=_VMEM_LIMIT),
        cost_estimate=cost,
    )(x, w, b)


def _deconv_s2_call(x, w, b, lp):
    B = x.shape[0]
    kern = functools.partial(_deconv_s2_kernel, lp=lp)
    cost = pl.CostEstimate(
        flops=int(8 * B * len(lp["starts"]) * lp["h_half"] * lp["k"] * lp["n"]),
        transcendentals=0,
        bytes_accessed=int(x.size * x.dtype.itemsize + w.size * w.dtype.itemsize
                           + 4 * B * 2 * lp["h_half"] * lp["w_out"] * lp["cout"]))
    return pl.pallas_call(
        kern,
        out_shape=jax.ShapeDtypeStruct(
            (B, 2, lp["h_half"], lp["w_out"] * lp["cout"]), jnp.float32),
        grid=(B,),
        in_specs=[pl.BlockSpec((None, lp["h_in"], lp["w_in"] * lp["cin"]),
                               lambda bi: (bi, 0, 0)),
                  pl.BlockSpec((4, lp["k"], lp["n"]), lambda bi: (0, 0, 0)),
                  pl.BlockSpec((1, lp["n"]), lambda bi: (0, 0))],
        out_specs=pl.BlockSpec((None, 2, lp["h_half"], lp["w_out"] * lp["cout"]),
                               lambda bi: (bi, 0, 0, 0)),
        scratch_shapes=[pltpu.VMEM((lp["h_pad"], lp["w_pad"] * lp["cin"]), jnp.float32)],
        compiler_params=pltpu.CompilerParams(
            dimension_semantics=("parallel",), vmem_limit_bytes=_VMEM_LIMIT),
        cost_estimate=cost,
    )(x, w, b)


# ---------------------------------------------------------------------------
# Static plan (geometry, group starts, banded shapes) -- pure Python, closed over by jit
# ---------------------------------------------------------------------------
def _group_starts(total, tile):
    starts = list(range(0, total - tile + 1, tile))
    if starts[-1] + tile < total:
        starts.append(total - tile)   # overlapping last group (writes identical values)
    return tuple(starts)


def build_plan(obs_shape, feature_dim, num_layers=2, num_filters=32):
    od = OUT_DIM[num_layers]
    nf = num_filters
    plan = {"out_dim": od, "nf": nf, "num_layers": num_layers, "feature_dim": feature_dim}
    s1 = []
    hw = od
    for _ in range(num_layers - 1):
        cin = cout = nf
        h_out = hw + 2
        wtile = min(h_out, max(1, -(-256 // cout)))           # lane-dense N ~= 256
        s1.append(dict(h_in=hw, w_in=hw, h_out=h_out, w_out=h_out,
                       cin=cin, cout=cout, wtile=wtile,
                       k=(wtile + 2) * cin, n=wtile * cout,
                       starts=_group_starts(h_out, wtile),
                       h_pad=hw + 4, w_pad=hw + 4))
        hw = h_out
    plan["s1"] = s1
    cin, cout = nf, obs_shape[0]
    w_out = 2 * hw + 2
    wq_min = -(-128 // cout)                                  # lane-dense N >= 128
    wq = min(w_out, 2 * (-(-wq_min // 2)))                    # even group width
    plan["s2"] = dict(h_in=hw, w_in=hw, h_half=hw + 1, w_out=w_out,
                      cin=cin, cout=cout, wq=wq,
                      k=(wq // 2 + 1) * cin, n=wq * cout,
                      starts=_group_starts(w_out, wq),
                      h_pad=hw + 2, w_pad=hw + 2)
    return plan


# ---------------------------------------------------------------------------
# Pack-time weight transforms (PyTorch layout -> banded kernel layout)
# ---------------------------------------------------------------------------
def _band_s1(w_pt, wtile, dtype):
    """w_pt: (cin, cout, 3, 3) ConvTranspose2d weight -> (3, (wtile+2)*cin, wtile*cout)."""
    cin, cout = w_pt.shape[0], w_pt.shape[1]
    wnp = np.asarray(w_pt, np.float32)
    band = np.zeros((3, (wtile + 2) * cin, wtile * cout), np.float32)
    for ky in range(3):
        for j in range(wtile):
            for kx in range(3):
                u = j + kx
                band[ky, u * cin:(u + 1) * cin, j * cout:(j + 1) * cout] += \
                    wnp[:, :, 2 - ky, 2 - kx]            # spatially flipped (valid-conv form)
    return jnp.asarray(band, dtype)


def _band_s2(w_pt, wq, dtype):
    """w_pt: (cin, cout, 3, 3) -> (4, (wq//2+1)*cin, wq*cout), index = 2*ey + dy."""
    cin, cout = w_pt.shape[0], w_pt.shape[1]
    wnp = np.asarray(w_pt, np.float32)
    k = (wq // 2 + 1) * cin
    band = np.zeros((2, 2, k, wq * cout), np.float32)
    for ey in range(2):
        for j in range(wq):
            ex = j % 2
            nloc = j // 2
            for (t, dy, dx) in _PHASE_TAPS[2 * ey + ex]:
                u = nloc + dx
                band[ey, dy, u * cin:(u + 1) * cin, j * cout:(j + 1) * cout] += \
                    wnp[:, :, t // 3, t % 3]
    return jnp.asarray(band.reshape(4, k, wq * cout), dtype)


def init_decoder_params(key, obs_shape, feature_dim, num_layers=2, num_filters=32):
    """Fresh params in PyTorch layout: fc.weight (fc_out, F), ConvT.weight (Cin, Cout, 3, 3)."""
    out_dim = OUT_DIM[num_layers]
    fc_out = num_filters * out_dim * out_dim
    keys = jax.random.split(key, 2 * (num_layers + 1))
    s = 1.0 / math.sqrt(feature_dim)
    params = {
        "fc_w": jax.random.uniform(keys[0], (fc_out, feature_dim), jnp.float32, -s, s),
        "fc_b": jax.random.uniform(keys[1], (fc_out,), jnp.float32, -s, s),
        "deconv_w": [],
        "deconv_b": [],
    }
    for i in range(num_layers):
        cin = num_filters
        cout = num_filters if i < num_layers - 1 else obs_shape[0]
        s = 1.0 / math.sqrt(cin * 9)
        params["deconv_w"].append(
            jax.random.uniform(keys[2 + 2 * i], (cin, cout, 3, 3), jnp.float32, -s, s))
        params["deconv_b"].append(
            jax.random.uniform(keys[3 + 2 * i], (cout,), jnp.float32, -s, s))
    return params


def pack_params(params, plan, *, use_bf16=False):
    """One-time layout transform (init-time, numpy) to the banded kernel layout."""
    od, nf = plan["out_dim"], plan["nf"]
    cdt = jnp.bfloat16 if use_bf16 else jnp.float32
    feat = params["fc_w"].shape[1]
    # fc: (F, fc_out) with columns permuted CHW -> HWC so the FC emits (H, W*C) directly.
    fw = params["fc_w"].T.reshape(feat, nf, od, od).transpose(0, 2, 3, 1).reshape(feat, -1)
    fb = params["fc_b"].reshape(nf, od, od).transpose(1, 2, 0).reshape(1, -1)
    packed = {"fc_w": fw.astype(cdt), "fc_b": fb.astype(jnp.float32), "dw": [], "db": []}
    for i, lp in enumerate(plan["s1"]):
        packed["dw"].append(_band_s1(params["deconv_w"][i], lp["wtile"], cdt))
        packed["db"].append(
            jnp.tile(params["deconv_b"][i], lp["wtile"]).reshape(1, -1).astype(jnp.float32))
    fp = plan["s2"]
    packed["dw"].append(_band_s2(params["deconv_w"][-1], fp["wq"], cdt))
    packed["db"].append(
        jnp.tile(params["deconv_b"][-1], fp["wq"]).reshape(1, -1).astype(jnp.float32))
    return packed


# ---------------------------------------------------------------------------
# Forward
# ---------------------------------------------------------------------------
def decoder_forward(packed, h, *, plan):
    od, nf = plan["out_dim"], plan["nf"]
    B = h.shape[0]

    # fc + relu; columns were pre-permuted, so this reshape is a free contiguous view.
    x = _fc_relu(h, packed["fc_w"], packed["fc_b"]).reshape(B, od, od * nf)

    # stride-1 deconvs + relu; output layout (B, H, W*C) feeds the next layer directly.
    for i, lp in enumerate(plan["s1"]):
        x = _deconv_s1_call(x, packed["dw"][i], packed["db"][i], lp)

    # final stride-2 deconv (no relu); subpixel phases interleaved along lanes in-kernel.
    fp = plan["s2"]
    y = _deconv_s2_call(x, packed["dw"][-1], packed["db"][-1], fp)   # (B, 2, h_half, W*C)
    C = fp["cout"]
    y = y.reshape(B, 2, fp["h_half"], fp["w_out"], C)
    # row interleave (m, ey) -> 2m+ey and NHWC->NCHW on the small final output only.
    obs = jnp.transpose(y, (0, 4, 2, 1, 3)).reshape(B, C, 2 * fp["h_half"], fp["w_out"])
    # TODO(synk): `self.outputs` activation bookkeeping and log()/wandb logging are
    # training-time side effects, not part of the compute graph, and are omitted.
    return obs


# ---------------------------------------------------------------------------
# Pure-JAX reference (PyTorch semantics) for the correctness check
# ---------------------------------------------------------------------------
def decoder_reference(params, h, *, num_layers=2, num_filters=32):
    out_dim = OUT_DIM[num_layers]
    pre = jnp.dot(h, params["fc_w"].T, precision=jax.lax.Precision.HIGHEST) + params["fc_b"]
    x = jnp.maximum(pre, 0.0).reshape(-1, num_filters, out_dim, out_dim)

    def convt(x, w, b, stride, out_pad):
        rhs = jnp.transpose(w[:, :, ::-1, ::-1], (1, 0, 2, 3))        # OIHW, flipped
        pad = (2, 2 + out_pad)
        y = jax.lax.conv_general_dilated(
            x, rhs, window_strides=(1, 1), padding=(pad, pad),
            lhs_dilation=(stride, stride),
            dimension_numbers=("NCHW", "OIHW", "NCHW"),
            precision=jax.lax.Precision.HIGHEST)
        return y + b.reshape(1, -1, 1, 1)

    for i in range(num_layers - 1):
        x = jnp.maximum(convt(x, params["deconv_w"][i], params["deconv_b"][i], 1, 0), 0.0)
    return convt(x, params["deconv_w"][-1], params["deconv_b"][-1], 2, 1)


if __name__ == "__main__":
    key = jax.random.PRNGKey(0)
    obs_shape = (3, 84, 84)      # obs_shape[0] = output channels
    feature_dim = 32
    num_layers = 2               # -> out_dim = 39
    num_filters = 8              # small synthetic setting
    batch = 2

    pkey, hkey = jax.random.split(key)
    params = init_decoder_params(pkey, obs_shape, feature_dim, num_layers, num_filters)
    plan = build_plan(obs_shape, feature_dim, num_layers, num_filters)
    h = jax.random.normal(hkey, (batch, feature_dim), jnp.float32)

    # f32 path (default): tight correctness check against the PyTorch-semantics reference.
    packed = pack_params(params, plan, use_bf16=False)
    fwd = jax.jit(functools.partial(decoder_forward, plan=plan))
    obs = jax.block_until_ready(fwd(packed, h))
    assert obs.shape == (batch, obs_shape[0], 84, 84), obs.shape
    assert bool(jnp.all(jnp.isfinite(obs)))

    ref = decoder_reference(params, h, num_layers=num_layers, num_filters=num_filters)
    max_err = float(jnp.max(jnp.abs(obs - ref)))
    assert bool(jnp.allclose(obs, ref, atol=5e-3, rtol=5e-3)), f"max abs err {max_err}"

    # bf16-operand fast path (weights bf16, f32 accumulation): loose sanity check only.
    packed_bf = pack_params(params, plan, use_bf16=True)
    obs_bf = jax.block_until_ready(
        jax.jit(functools.partial(decoder_forward, plan=plan))(packed_bf, h))
    assert obs_bf.shape == obs.shape
    assert bool(jnp.all(jnp.isfinite(obs_bf)))
    assert bool(jnp.allclose(obs_bf, ref, atol=1e-1, rtol=1e-1))

    print("KERNEL_OK")
</pallas_src>

<mosaic_0001>
module attributes {stable_mosaic.version = 11 : i64} {
  func.func @_fc_kernel(%arg0: i32, %arg1: memref<2x32xf32, #tpu.memory_space<vmem>>, %arg2: memref<32x8192xf32, #tpu.memory_space<vmem>>, %arg3: memref<1x8192xf32, #tpu.memory_space<vmem>>, %arg4: memref<2x8192xf32, #tpu.memory_space<vmem>>) attributes {dimension_semantics = [#tpu.dimension_semantics<parallel>], iteration_bounds = array<i64: 2>, scalar_prefetch = 0 : i64, scratch_operands = 0 : i64, tpu.core_type = #tpu.core_type<tc>, window_params = [{pipeline_mode = #tpu.pipeline_mode<synchronous>, transform_indices = @transform_0, window_bounds = array<i64: 2, 32>}, {transform_indices = @transform_1, window_bounds = array<i64: 32, 8192>}, {transform_indices = @transform_2, window_bounds = array<i64: 1, 8192>}, {transform_indices = @transform_3, window_bounds = array<i64: 2, 8192>}]} {
    %c0 = arith.constant 0 : index
    %c0_0 = arith.constant 0 : index
    %0 = vector.load %arg1[%c0, %c0_0] : memref<2x32xf32, #tpu.memory_space<vmem>>, vector<2x32xf32>
    %c0_1 = arith.constant 0 : index
    %c0_2 = arith.constant 0 : index
    %1 = vector.load %arg2[%c0_1, %c0_2] : memref<32x8192xf32, #tpu.memory_space<vmem>>, vector<32x8192xf32>
    %cst = arith.constant dense<0.000000e+00> : vector<2x8192xf32>
    %2 = tpu.matmul %0, %1, %cst {dimension_numbers = #tpu.dot_dimension_numbers<[1], [0], [0], [1], [0, 0, 1, 1], [], []>} : vector<2x32xf32>, vector<32x8192xf32>, vector<2x8192xf32> -> vector<2x8192xf32>
    %c0_3 = arith.constant 0 : index
    %c0_4 = arith.constant 0 : index
    %3 = vector.load %arg3[%c0_3, %c0_4] : memref<1x8192xf32, #tpu.memory_space<vmem>>, vector<1x8192xf32>
    %4 = vector.broadcast %3 : vector<1x8192xf32> to vector<2x8192xf32>
    %5 = arith.addf %2, %4 : vector<2x8192xf32>
    %cst_5 = arith.constant 0.000000e+00 : f32
    %6 = vector.broadcast %cst_5 : f32 to vector<2x8192xf32>
    %7 = arith.maximumf %5, %6 : vector<2x8192xf32>
    %c0_6 = arith.constant 0 : index
    %c0_7 = arith.constant 0 : index
    %8 = vector.load %arg4[%c0_6, %c0_7] : memref<2x8192xf32, #tpu.memory_space<vmem>>, vector<2x8192xf32>
    tpu.vector_store %arg4[%c0_6, %c0_7], %7 {strides = array<i32>} : memref<2x8192xf32, #tpu.memory_space<vmem>>, vector<2x8192xf32>,
    return
  }
  func.func @transform_0(%arg0: i32) -> (i32, i32) {
    %c0_i32 = arith.constant 0 : i32
    %c0_i32_0 = arith.constant 0 : i32
    %c0_i32_1 = arith.constant 0 : i32
    return %c0_i32, %c0_i32_0 : i32, i32
  }
  func.func @transform_1(%arg0: i32) -> (i32, i32) {
    %c0_i32 = arith.constant 0 : i32
    %c0_i32_0 = arith.constant 0 : i32
    return %c0_i32, %arg0 : i32, i32
  }
  func.func @transform_2(%arg0: i32) -> (i32, i32) {
    %c0_i32 = arith.constant 0 : i32
    %c0_i32_0 = arith.constant 0 : i32
    return %c0_i32, %arg0 : i32, i32
  }
  func.func @transform_3(%arg0: i32) -> (i32, i32) {
    %c0_i32 = arith.constant 0 : i32
    %c0_i32_0 = arith.constant 0 : i32
    return %c0_i32, %arg0 : i32, i32
  }
}

module attributes {stable_mosaic.version = 11 : i64} {
  func.func @_deconv_s1_kernel(%arg0: i32, %arg1: memref<1x39x312xf32, #tpu.memory_space<vmem>>, %arg2: memref<3x272x256xf32, #tpu.memory_space<vmem>>, %arg3: memref<1x256xf32, #tpu.memory_space<vmem>>, %arg4: memref<1x41x328xf32, #tpu.memory_space<vmem>>, %arg5: memref<43x344xf32, #tpu.memory_space<vmem>>) attributes {dimension_semantics = [#tpu.dimension_semantics<parallel>], iteration_bounds = array<i64: 2>, scalar_prefetch = 0 : i64, scratch_operands = 1 : i64, tpu.core_type = #tpu.core_type<tc>, window_params = [{transform_indices = @transform_0, window_bounds = array<i64: 1, 39, 312>}, {pipeline_mode = #tpu.pipeline_mode<synchronous>, transform_indices = @transform_1, window_bounds = array<i64: 3, 272, 256>}, {pipeline_mode = #tpu.pipeline_mode<synchronous>, transform_indices = @transform_2, window_bounds = array<i64: 1, 256>}, {transform_indices = @transform_3, window_bounds = array<i64: 1, 41, 328>}]} {
    %cst = arith.constant 0.000000e+00 : f32
    %0 = vector.broadcast %cst : f32 to vector<43x344xf32>
    %c0 = arith.constant 0 : index
    %c0_0 = arith.constant 0 : index
    %1 = vector.load %arg5[%c0, %c0_0] : memref<43x344xf32, #tpu.memory_space<vmem>>, vector<43x344xf32>
    tpu.vector_store %arg5[%c0, %c0_0], %0 {strides = array<i32>} : memref<43x344xf32, #tpu.memory_space<vmem>>, vector<43x344xf32>,
    %c0_1 = arith.constant 0 : index
    %c0_2 = arith.constant 0 : index
    %c0_3 = arith.constant 0 : index
    %2 = vector.load %arg1[%c0_1, %c0_2, %c0_3] : memref<1x39x312xf32, #tpu.memory_space<vmem>>, vector<1x39x312xf32>
    %3 = vector.shape_cast %2 : vector<1x39x312xf32> to vector<39x312xf32>
    %c2 = arith.constant 2 : index
    %c16 = arith.constant 16 : index
    %4 = vector.load %arg5[%c2, %c16] : memref<43x344xf32, #tpu.memory_space<vmem>>, vector<39x312xf32>
    tpu.vector_store %arg5[%c2, %c16], %3 {strides = array<i32>} : memref<43x344xf32, #tpu.memory_space<vmem>>, vector<39x312xf32>,
    %cst_4 = arith.constant 0.000000e+00 : f32
    %5 = vector.broadcast %cst_4 : f32 to vector<41x256xf32>
    %c0_5 = arith.constant 0 : index
    %c0_6 = arith.constant 0 : index
    %6 = vector.load %arg5[%c0_5, %c0_6] : memref<43x344xf32, #tpu.memory_space<vmem>>, vector<41x272xf32>
    %c0_7 = arith.constant 0 : index
    %c0_8 = arith.constant 0 : index
    %c0_9 = arith.constant 0 : index
    %7 = vector.load %arg2[%c0_7, %c0_8, %c0_9] : memref<3x272x256xf32, #tpu.memory_space<vmem>>, vector<1x272x256xf32>
    %8 = vector.shape_cast %7 : vector<1x272x256xf32> to vector<272x256xf32>
    %cst_10 = arith.constant dense<0.000000e+00> : vector<41x256xf32>
    %9 = tpu.matmul %6, %8, %cst_10 {dimension_numbers = #tpu.dot_dimension_numbers<[1], [0], [0], [1], [0, 0, 1, 1], [], []>} : vector<41x272xf32>, vector<272x256xf32>, vector<41x256xf32> -> vector<41x256xf32>
    %10 = arith.addf %5, %9 : vector<41x256xf32>
    %c1 = arith.constant 1 : index
    %c0_11 = arith.constant 0 : index
    %11 = vector.load %arg5[%c1, %c0_11] : memref<43x344xf32, #tpu.memory_space<vmem>>, vector<41x272xf32>
    %c1_12 = arith.constant 1 : index
    %c0_13 = arith.constant 0 : index
    %c0_14 = arith.constant 0 : index
    %12 = vector.load %arg2[%c1_12, %c0_13, %c0_14] : memref<3x272x256xf32, #tpu.memory_space<vmem>>, vector<1x272x256xf32>
    %13 = vector.shape_cast %12 : vector<1x272x256xf32> to vector<272x256xf32>
    %cst_15 = arith.constant dense<0.000000e+00> : vector<41x256xf32>
    %14 = tpu.matmul %11, %13, %cst_15 {dimension_numbers = #tpu.dot_dimension_numbers<[1], [0], [0], [1], [0, 0, 1, 1], [], []>} : vector<41x272xf32>, vector<272x256xf32>, vector<41x256xf32> -> vector<41x256xf32>
    %15 = arith.addf %10, %14 : vector<41x256xf32>
    %c2_16 = arith.constant 2 : index
    %c0_17 = arith.constant 0 : index
    %16 = vector.load %arg5[%c2_16, %c0_17] : memref<43x344xf32, #tpu.memory_space<vmem>>, vector<41x272xf32>
    %c2_18 = arith.constant 2 : index
    %c0_19 = arith.constant 0 : index
    %c0_20 = arith.constant 0 : index
    %17 = vector.load %arg2[%c2_18, %c0_19, %c0_20] : memref<3x272x256xf32, #tpu.memory_space<vmem>>, vector<1x272x256xf32>
    %18 = vector.shape_cast %17 : vector<1x272x256xf32> to vector<272x256xf32>
    %cst_21 = arith.constant dense<0.000000e+00> : vector<41x256xf32>
    %19 = tpu.matmul %16, %18, %cst_21 {dimension_numbers = #tpu.dot_dimension_numbers<[1], [0], [0], [1], [0, 0, 1, 1], [], []>} : vector<41x272xf32>, vector<272x256xf32>, vector<41x256xf32> -> vector<41x256xf32>
    %20 = arith.addf %15, %19 : vector<41x256xf32>
    %c0_22 = arith.constant 0 : index
    %c0_23 = arith.constant 0 : index
    %21 = vector.load %arg3[%c0_22, %c0_23] : memref<1x256xf32, #tpu.memory_space<vmem>>, vector<1x256xf32>
    %22 = vector.broadcast %21 : vector<1x256xf32> to vector<41x256xf32>
    %23 = arith.addf %20, %22 : vector<41x256xf32>
    %cst_24 = arith.constant 0.000000e+00 : f32
    %24 = vector.broadcast %cst_24 : f32 to vector<41x256xf32>
    %25 = arith.maximumf %23, %24 : vector<41x256xf32>
    %c0_25 = arith.constant 0 : index
    %c0_26 = arith.constant 0 : index
    %c0_27 = arith.constant 0 : index
    %26 = vector.load %arg4[%c0_25, %c0_26, %c0_27] : memref<1x41x328xf32, #tpu.memory_space<vmem>>, vector<1x41x256xf32>
    %27 = vector.shape_cast %26 : vector<1x41x256xf32> to vector<41x256xf32>
    %28 = vector.shape_cast %25 : vector<41x256xf32> to vector<1x41x256xf32>
    tpu.vector_store %arg4[%c0_25, %c0_26, %c0_27], %28 {strides = array<i32>} : memref<1x41x328xf32, #tpu.memory_space<vmem>>, vector<1x41x256xf32>,
    %cst_28 = arith.constant 0.000000e+00 : f32
    %29 = vector.broadcast %cst_28 : f32 to vector<41x256xf32>
    %c0_29 = arith.constant 0 : index
    %c72 = arith.constant 72 : index
    %30 = vector.load %arg5[%c0_29, %c72] : memref<43x344xf32, #tpu.memory_space<vmem>>, vector<41x272xf32>
    %c0_30 = arith.constant 0 : index
    %c0_31 = arith.constant 0 : index
    %c0_32 = arith.constant 0 : index
    %31 = vector.load %arg2[%c0_30, %c0_31, %c0_32] : memref<3x272x256xf32, #tpu.memory_space<vmem>>, vector<1x272x256xf32>
    %32 = vector.shape_cast %31 : vector<1x272x256xf32> to vector<272x256xf32>
    %cst_33 = arith.constant dense<0.000000e+00> : vector<41x256xf32>
    %33 = tpu.matmul %30, %32, %cst_33 {dimension_numbers = #tpu.dot_dimension_numbers<[1], [0], [0], [1], [0, 0, 1, 1], [], []>} : vector<41x272xf32>, vector<272x256xf32>, vector<41x256xf32> -> vector<41x256xf32>
    %34 = arith.addf %29, %33 : vector<41x256xf32>
    %c1_34 = arith.constant 1 : index
    %c72_35 = arith.constant 72 : index
    %35 = vector.load %arg5[%c1_34, %c72_35] : memref<43x344xf32, #tpu.memory_space<vmem>>, vector<41x272xf32>
    %c1_36 = arith.constant 1 : index
    %c0_37 = arith.constant 0 : index
    %c0_38 = arith.constant 0 : index
    %36 = vector.load %arg2[%c1_36, %c0_37, %c0_38] : memref<3x272x256xf32, #tpu.memory_space<vmem>>, vector<1x272x256xf32>
    %37 = vector.shape_cast %36 : vector<1x272x256xf32> to vector<272x256xf32>
    %cst_39 = arith.constant dense<0.000000e+00> : vector<41x256xf32>
    %38 = tpu.matmul %35, %37, %cst_39 {dimension_numbers = #tpu.dot_dimension_numbers<[1], [0], [0], [1], [0, 0, 1, 1], [], []>} : vector<41x272xf32>, vector<272x256xf32>, vector<41x256xf32> -> vector<41x256xf32>
    %39 = arith.addf %34, %38 : vector<41x256xf32>
    %c2_40 = arith.constant 2 : index
    %c72_41 = arith.constant 72 : index
    %40 = vector.load %arg5[%c2_40, %c72_41] : memref<43x344xf32, #tpu.memory_space<vmem>>, vector<41x272xf32>
    %c2_42 = arith.constant 2 : index
    %c0_43 = arith.constant 0 : index
    %c0_44 = arith.constant 0 : index
    %41 = vector.load %arg2[%c2_42, %c0_43, %c0_44] : memref<3x272x256xf32, #tpu.memory_space<vmem>>, vector<1x272x256xf32>
    %42 = vector.shape_cast %41 : vector<1x272x256xf32> to vector<272x256xf32>
    %cst_45 = arith.constant dense<0.000000e+00> : vector<41x256xf32>
    %43 = tpu.matmul %40, %42, %cst_45 {dimension_numbers = #tpu.dot_dimension_numbers<[1], [0], [0], [1], [0, 0, 1, 1], [], []>} : vector<41x272xf32>, vector<272x256xf32>, vector<41x256xf32> -> vector<41x256xf32>
    %44 = arith.addf %39, %43 : vector<41x256xf32>
    %c0_46 = arith.constant 0 : index
    %c0_47 = arith.constant 0 : index
    %45 = vector.load %arg3[%c0_46, %c0_47] : memref<1x256xf32, #tpu.memory_space<vmem>>, vector<1x256xf32>
    %46 = vector.broadcast %45 : vector<1x256xf32> to vector<41x256xf32>
    %47 = arith.addf %44, %46 : vector<41x256xf32>
    %cst_48 = arith.constant 0.000000e+00 : f32
    %48 = vector.broadcast %cst_48 : f32 to vector<41x256xf32>
    %49 = arith.maximumf %47, %48 : vector<41x256xf32>
    %c0_49 = arith.constant 0 : index
    %c0_50 = arith.constant 0 : index
    %c72_51 = arith.constant 72 : index
    %50 = vector.load %arg4[%c0_49, %c0_50, %c72_51] : memref<1x41x328xf32, #tpu.memory_space<vmem>>, vector<1x41x256xf32>
    %51 = vector.shape_cast %50 : vector<1x41x256xf32> to vector<41x256xf32>
    %52 = vector.shape_cast %49 : vector<41x256xf32> to vector<1x41x256xf32>
    tpu.vector_store %arg4[%c0_49, %c0_50, %c72_51], %52 {strides = array<i32>} : memref<1x41x328xf32, #tpu.memory_space<vmem>>, vector<1x41x256xf32>,
    return
  }
  func.func @transform_0(%arg0: i32) -> (i32, i32, i32) {
    %c0_i32 = arith.constant 0 : i32
    %c0_i32_0 = arith.constant 0 : i32
    %c0_i32_1 = arith.constant 0 : i32
    return %arg0, %c0_i32, %c0_i32_0 : i32, i32, i32
  }
  func.func @transform_1(%arg0: i32) -> (i32, i32, i32) {
    %c0_i32 = arith.constant 0 : i32
    %c0_i32_0 = arith.constant 0 : i32
    %c0_i32_1 = arith.constant 0 : i32
    %c0_i32_2 = arith.constant 0 : i32
    return %c0_i32, %c0_i32_0, %c0_i32_1 : i32, i32, i32
  }
  func.func @transform_2(%arg0: i32) -> (i32, i32) {
    %c0_i32 = arith.constant 0 : i32
    %c0_i32_0 = arith.constant 0 : i32
    %c0_i32_1 = arith.constant 0 : i32
    return %c0_i32, %c0_i32_0 : i32, i32
  }
  func.func @transform_3(%arg0: i32) -> (i32, i32, i32) {
    %c0_i32 = arith.constant 0 : i32
    %c0_i32_0 = arith.constant 0 : i32
    %c0_i32_1 = arith.constant 0 : i32
    return %arg0, %c0_i32, %c0_i32_0 : i32, i32, i32
  }
}

module attributes {stable_mosaic.version = 11 : i64} {
  func.func @_deconv_s2_kernel(%arg0: i32, %arg1: memref<1x41x328xf32, #tpu.memory_space<vmem>>, %arg2: memref<4x184x132xf32, #tpu.memory_space<vmem>>, %arg3: memref<1x132xf32, #tpu.memory_space<vmem>>, %arg4: memref<1x2x42x252xf32, #tpu.memory_space<vmem>>, %arg5: memref<43x344xf32, #tpu.memory_space<vmem>>) attributes {dimension_semantics = [#tpu.dimension_semantics<parallel>], iteration_bounds = array<i64: 2>, scalar_prefetch = 0 : i64, scratch_operands = 1 : i64, tpu.core_type = #tpu.core_type<tc>, window_params = [{transform_indices = @transform_0, window_bounds = array<i64: 1, 41, 328>}, {pipeline_mode = #tpu.pipeline_mode<synchronous>, transform_indices = @transform_1, window_bounds = array<i64: 4, 184, 132>}, {pipeline_mode = #tpu.pipeline_mode<synchronous>, transform_indices = @transform_2, window_bounds = array<i64: 1, 132>}, {transform_indices = @transform_3, window_bounds = array<i64: 1, 2, 42, 252>}]} {
    %cst = arith.constant 0.000000e+00 : f32
    %0 = vector.broadcast %cst : f32 to vector<43x344xf32>
    %c0 = arith.constant 0 : index
    %c0_0 = arith.constant 0 : index
    %1 = vector.load %arg5[%c0, %c0_0] : memref<43x344xf32, #tpu.memory_space<vmem>>, vector<43x344xf32>
    tpu.vector_store %arg5[%c0, %c0_0], %0 {strides = array<i32>} : memref<43x344xf32, #tpu.memory_space<vmem>>, vector<43x344xf32>,
    %c0_1 = arith.constant 0 : index
    %c0_2 = arith.constant 0 : index
    %c0_3 = arith.constant 0 : index
    %2 = vector.load %arg1[%c0_1, %c0_2, %c0_3] : memref<1x41x328xf32, #tpu.memory_space<vmem>>, vector<1x41x328xf32>
    %3 = vector.shape_cast %2 : vector<1x41x328xf32> to vector<41x328xf32>
    %c1 = arith.constant 1 : index
    %c8 = arith.constant 8 : index
    %4 = vector.load %arg5[%c1, %c8] : memref<43x344xf32, #tpu.memory_space<vmem>>, vector<41x328xf32>
    tpu.vector_store %arg5[%c1, %c8], %3 {strides = array<i32>} : memref<43x344xf32, #tpu.memory_space<vmem>>, vector<41x328xf32>,
    %c0_4 = arith.constant 0 : index
    %c0_5 = arith.constant 0 : index
    %5 = vector.load %arg5[%c0_4, %c0_5] : memref<43x344xf32, #tpu.memory_space<vmem>>, vector<42x184xf32>
    %c1_6 = arith.constant 1 : index
    %c0_7 = arith.constant 0 : index
    %6 = vector.load %arg5[%c1_6, %c0_7] : memref<43x344xf32, #tpu.memory_space<vmem>>, vector<42x184xf32>
    %c0_8 = arith.constant 0 : index
    %c0_9 = arith.constant 0 : index
    %c0_10 = arith.constant 0 : index
    %7 = vector.load %arg2[%c0_8, %c0_9, %c0_10] : memref<4x184x132xf32, #tpu.memory_space<vmem>>, vector<1x184x132xf32>
    %8 = vector.shape_cast %7 : vector<1x184x132xf32> to vector<184x132xf32>
    %cst_11 = arith.constant dense<0.000000e+00> : vector<42x132xf32>
    %9 = tpu.matmul %5, %8, %cst_11 {dimension_numbers = #tpu.dot_dimension_numbers<[1], [0], [0], [1], [0, 0, 1, 1], [], []>} : vector<42x184xf32>, vector<184x132xf32>, vector<42x132xf32> -> vector<42x132xf32>
    %c1_12 = arith.constant 1 : index
    %c0_13 = arith.constant 0 : index
    %c0_14 = arith.constant 0 : index
    %10 = vector.load %arg2[%c1_12, %c0_13, %c0_14] : memref<4x184x132xf32, #tpu.memory_space<vmem>>, vector<1x184x132xf32>
    %11 = vector.shape_cast %10 : vector<1x184x132xf32> to vector<184x132xf32>
    %cst_15 = arith.constant dense<0.000000e+00> : vector<42x132xf32>
    %12 = tpu.matmul %6, %11, %cst_15 {dimension_numbers = #tpu.dot_dimension_numbers<[1], [0], [0], [1], [0, 0, 1, 1], [], []>} : vector<42x184xf32>, vector<184x132xf32>, vector<42x132xf32> -> vector<42x132xf32>
    %13 = arith.addf %9, %12 : vector<42x132xf32>
    %c0_16 = arith.constant 0 : index
    %c0_17 = arith.constant 0 : index
    %14 = vector.load %arg3[%c0_16, %c0_17] : memref<1x132xf32, #tpu.memory_space<vmem>>, vector<1x132xf32>
    %15 = vector.broadcast %14 : vector<1x132xf32> to vector<42x132xf32>
    %16 = arith.addf %13, %15 : vector<42x132xf32>
    %c0_18 = arith.constant 0 : index
    %c0_19 = arith.constant 0 : index
    %c0_20 = arith.constant 0 : index
    %c0_21 = arith.constant 0 : index
    %17 = vector.load %arg4[%c0_18, %c0_19, %c0_20, %c0_21] : memref<1x2x42x252xf32, #tpu.memory_space<vmem>>, vector<1x1x42x132xf32>
    %18 = vector.shape_cast %17 : vector<1x1x42x132xf32> to vector<42x132xf32>
    %19 = vector.shape_cast %16 : vector<42x132xf32> to vector<1x1x42x132xf32>
    tpu.vector_store %arg4[%c0_18, %c0_19, %c0_20, %c0_21], %19 {strides = array<i32>} : memref<1x2x42x252xf32, #tpu.memory_space<vmem>>, vector<1x1x42x132xf32>,
    %c2 = arith.constant 2 : index
    %c0_22 = arith.constant 0 : index
    %c0_23 = arith.constant 0 : index
    %20 = vector.load %arg2[%c2, %c0_22, %c0_23] : memref<4x184x132xf32, #tpu.memory_space<vmem>>, vector<1x184x132xf32>
    %21 = vector.shape_cast %20 : vector<1x184x132xf32> to vector<184x132xf32>
    %cst_24 = arith.constant dense<0.000000e+00> : vector<42x132xf32>
    %22 = tpu.matmul %5, %21, %cst_24 {dimension_numbers = #tpu.dot_dimension_numbers<[1], [0], [0], [1], [0, 0, 1, 1], [], []>} : vector<42x184xf32>, vector<184x132xf32>, vector<42x132xf32> -> vector<42x132xf32>
    %c3 = arith.constant 3 : index
    %c0_25 = arith.constant 0 : index
    %c0_26 = arith.constant 0 : index
    %23 = vector.load %arg2[%c3, %c0_25, %c0_26] : memref<4x184x132xf32, #tpu.memory_space<vmem>>, vector<1x184x132xf32>
    %24 = vector.shape_cast %23 : vector<1x184x132xf32> to vector<184x132xf32>
    %cst_27 = arith.constant dense<0.000000e+00> : vector<42x132xf32>
    %25 = tpu.matmul %6, %24, %cst_27 {dimension_numbers = #tpu.dot_dimension_numbers<[1], [0], [0], [1], [0, 0, 1, 1], [], []>} : vector<42x184xf32>, vector<184x132xf32>, vector<42x132xf32> -> vector<42x132xf32>
    %26 = arith.addf %22, %25 : vector<42x132xf32>
    %c0_28 = arith.constant 0 : index
    %c0_29 = arith.constant 0 : index
    %27 = vector.load %arg3[%c0_28, %c0_29] : memref<1x132xf32, #tpu.memory_space<vmem>>, vector<1x132xf32>
    %28 = vector.broadcast %27 : vector<1x132xf32> to vector<42x132xf32>
    %29 = arith.addf %26, %28 : vector<42x132xf32>
    %c0_30 = arith.constant 0 : index
    %c1_31 = arith.constant 1 : index
    %c0_32 = arith.constant 0 : index
    %c0_33 = arith.constant 0 : index
    %30 = vector.load %arg4[%c0_30, %c1_31, %c0_32, %c0_33] : memref<1x2x42x252xf32, #tpu.memory_space<vmem>>, vector<1x1x42x132xf32>
    %31 = vector.shape_cast %30 : vector<1x1x42x132xf32> to vector<42x132xf32>
    %32 = vector.shape_cast %29 : vector<42x132xf32> to vector<1x1x42x132xf32>
    tpu.vector_store %arg4[%c0_30, %c1_31, %c0_32, %c0_33], %32 {strides = array<i32>} : memref<1x2x42x252xf32, #tpu.memory_space<vmem>>, vector<1x1x42x132xf32>,
    %c0_34 = arith.constant 0 : index
    %c160 = arith.constant 160 : index
    %33 = vector.load %arg5[%c0_34, %c160] : memref<43x344xf32, #tpu.memory_space<vmem>>, vector<42x184xf32>
    %c1_35 = arith.constant 1 : index
    %c160_36 = arith.constant 160 : index
    %34 = vector.load %arg5[%c1_35, %c160_36] : memref<43x344xf32, #tpu.memory_space<vmem>>, vector<42x184xf32>
    %c0_37 = arith.constant 0 : index
    %c0_38 = arith.constant 0 : index
    %c0_39 = arith.constant 0 : index
    %35 = vector.load %arg2[%c0_37, %c0_38, %c0_39] : memref<4x184x132xf32, #tpu.memory_space<vmem>>, vector<1x184x132xf32>
    %36 = vector.shape_cast %35 : vector<1x184x132xf32> to vector<184x132xf32>
    %cst_40 = arith.constant dense<0.000000e+00> : vector<42x132xf32>
    %37 = tpu.matmul %33, %36, %cst_40 {dimension_numbers = #tpu.dot_dimension_numbers<[1], [0], [0], [1], [0, 0, 1, 1], [], []>} : vector<42x184xf32>, vector<184x132xf32>, vector<42x132xf32> -> vector<42x132xf32>
    %c1_41 = arith.constant 1 : index
    %c0_42 = arith.constant 0 : index
    %c0_43 = arith.constant 0 : index
    %38 = vector.load %arg2[%c1_41, %c0_42, %c0_43] : memref<4x184x132xf32, #tpu.memory_space<vmem>>, vector<1x184x132xf32>
    %39 = vector.shape_cast %38 : vector<1x184x132xf32> to vector<184x132xf32>
    %cst_44 = arith.constant dense<0.000000e+00> : vector<42x132xf32>
    %40 = tpu.matmul %34, %39, %cst_44 {dimension_numbers = #tpu.dot_dimension_numbers<[1], [0], [0], [1], [0, 0, 1, 1], [], []>} : vector<42x184xf32>, vector<184x132xf32>, vector<42x132xf32> -> vector<42x132xf32>
    %41 = arith.addf %37, %40 : vector<42x132xf32>
    %c0_45 = arith.constant 0 : index
    %c0_46 = arith.constant 0 : index
    %42 = vector.load %arg3[%c0_45, %c0_46] : memref<1x132xf32, #tpu.memory_space<vmem>>, vector<1x132xf32>
    %43 = vector.broadcast %42 : vector<1x132xf32> to vector<42x132xf32>
    %44 = arith.addf %41, %43 : vector<42x132xf32>
    %c0_47 = arith.constant 0 : index
    %c0_48 = arith.constant 0 : index
    %c0_49 = arith.constant 0 : index
    %c120 = arith.constant 120 : index
    %45 = vector.load %arg4[%c0_47, %c0_48, %c0_49, %c120] : memref<1x2x42x252xf32, #tpu.memory_space<vmem>>, vector<1x1x42x132xf32>
    %46 = vector.shape_cast %45 : vector<1x1x42x132xf32> to vector<42x132xf32>
    %47 = vector.shape_cast %44 : vector<42x132xf32> to vector<1x1x42x132xf32>
    tpu.vector_store %arg4[%c0_47, %c0_48, %c0_49, %c120], %47 {strides = array<i32>} : memref<1x2x42x252xf32, #tpu.memory_space<vmem>>, vector<1x1x42x132xf32>,
    %c2_50 = arith.constant 2 : index
    %c0_51 = arith.constant 0 : index
    %c0_52 = arith.constant 0 : index
    %48 = vector.load %arg2[%c2_50, %c0_51, %c0_52] : memref<4x184x132xf32, #tpu.memory_space<vmem>>, vector<1x184x132xf32>
    %49 = vector.shape_cast %48 : vector<1x184x132xf32> to vector<184x132xf32>
    %cst_53 = arith.constant dense<0.000000e+00> : vector<42x132xf32>
    %50 = tpu.matmul %33, %49, %cst_53 {dimension_numbers = #tpu.dot_dimension_numbers<[1], [0], [0], [1], [0, 0, 1, 1], [], []>} : vector<42x184xf32>, vector<184x132xf32>, vector<42x132xf32> -> vector<42x132xf32>
    %c3_54 = arith.constant 3 : index
    %c0_55 = arith.constant 0 : index
    %c0_56 = arith.constant 0 : index
    %51 = vector.load %arg2[%c3_54, %c0_55, %c0_56] : memref<4x184x132xf32, #tpu.memory_space<vmem>>, vector<1x184x132xf32>
    %52 = vector.shape_cast %51 : vector<1x184x132xf32> to vector<184x132xf32>
    %cst_57 = arith.constant dense<0.000000e+00> : vector<42x132xf32>
    %53 = tpu.matmul %34, %52, %cst_57 {dimension_numbers = #tpu.dot_dimension_numbers<[1], [0], [0], [1], [0, 0, 1, 1], [], []>} : vector<42x184xf32>, vector<184x132xf32>, vector<42x132xf32> -> vector<42x132xf32>
    %54 = arith.addf %50, %53 : vector<42x132xf32>
    %c0_58 = arith.constant 0 : index
    %c0_59 = arith.constant 0 : index
    %55 = vector.load %arg3[%c0_58, %c0_59] : memref<1x132xf32, #tpu.memory_space<vmem>>, vector<1x132xf32>
    %56 = vector.broadcast %55 : vector<1x132xf32> to vector<42x132xf32>
    %57 = arith.addf %54, %56 : vector<42x132xf32>
    %c0_60 = arith.constant 0 : index
    %c1_61 = arith.constant 1 : index
    %c0_62 = arith.constant 0 : index
    %c120_63 = arith.constant 120 : index
    %58 = vector.load %arg4[%c0_60, %c1_61, %c0_62, %c120_63] : memref<1x2x42x252xf32, #tpu.memory_space<vmem>>, vector<1x1x42x132xf32>
    %59 = vector.shape_cast %58 : vector<1x1x42x132xf32> to vector<42x132xf32>
    %60 = vector.shape_cast %57 : vector<42x132xf32> to vector<1x1x42x132xf32>
    tpu.vector_store %arg4[%c0_60, %c1_61, %c0_62, %c120_63], %60 {strides = array<i32>} : memref<1x2x42x252xf32, #tpu.memory_space<vmem>>, vector<1x1x42x132xf32>,
    return
  }
  func.func @transform_0(%arg0: i32) -> (i32, i32, i32) {
    %c0_i32 = arith.constant 0 : i32
    %c0_i32_0 = arith.constant 0 : i32
    %c0_i32_1 = arith.constant 0 : i32
    return %arg0, %c0_i32, %c0_i32_0 : i32, i32, i32
  }
  func.func @transform_1(%arg0: i32) -> (i32, i32, i32) {
    %c0_i32 = arith.constant 0 : i32
    %c0_i32_0 = arith.constant 0 : i32
    %c0_i32_1 = arith.constant 0 : i32
    %c0_i32_2 = arith.constant 0 : i32
    return %c0_i32, %c0_i32_0, %c0_i32_1 : i32, i32, i32
  }
  func.func @transform_2(%arg0: i32) -> (i32, i32) {
    %c0_i32 = arith.constant 0 : i32
    %c0_i32_0 = arith.constant 0 : i32
    %c0_i32_1 = arith.constant 0 : i32
    return %c0_i32, %c0_i32_0 : i32, i32
  }
  func.func @transform_3(%arg0: i32) -> (i32, i32, i32, i32) {
    %c0_i32 = arith.constant 0 : i32
    %c0_i32_0 = arith.constant 0 : i32
    %c0_i32_1 = arith.constant 0 : i32
    %c0_i32_2 = arith.constant 0 : i32
    return %arg0, %c0_i32, %c0_i32_0, %c0_i32_1 : i32, i32, i32, i32
  }
}

</mosaic_0001>

<llo_original>
// kernel: decoder_forward.3
$region0: #{decoder_forward.3}
  #allocation0 [shape = 'u32[]', space=smem, size = 0x4, offset = 0x4, fixed_abs, tag = 'smem constant byte address 0x4 - core index']
  #allocation1 [shape = 'u32[144,128]{1,0:T(1,128)}', space=vmem, size = 0x12000, scoped, tag = 'internal scratch']
  %s0 = inlined_call_operand.hbm [shape: f32[2,32], index: 0, kind: input, shape index: {}]
  %s1 = inlined_call_operand.hbm [shape: f32[32,12168], index: 1, kind: input, shape index: {}]
  %s2 = inlined_call_operand.hbm [shape: f32[1,12168], index: 2, kind: input, shape index: {}]
  %s3 = inlined_call_operand.vmem [shape: f32[2,12168], index: 3, kind: output, shape index: {}]
  %s4 = sld [smem:[#allocation0]]
  $region119: #{decoder_forward.3} parent=0
    _
  %s6 = ssub.s32 1, %s4
  %s7 = scalar_select 0, %s6, %s4
  $region1: #{decoder_forward.3} parent=0
    #allocation2 [shape = 'u8[1024]{0}', space=vmem, size = 0x400, scoped, tag = 'input window, operand 0, single buffered']
    #allocation3 [shape = 's32[2]{0}', space=sflag, size = 0x8, scoped, tag = 'scoped memory for decoder_forward.3']
    #allocation4 [shape = 'u8[2097152]{0}', space=vmem, size = 0x200000, scoped, tag = 'input window, operand 1']
    #allocation5 [shape = 's32[2]{0}', space=sflag, size = 0x8, scoped, tag = 'scoped memory for decoder_forward.3']
    #allocation6 [shape = 'u8[65536]{0}', space=vmem, size = 0x10000, scoped, tag = 'input window, operand 2']
    #allocation7 [shape = 'u8[131072]{0}', space=vmem, size = 0x20000, scoped, tag = 'output window, operand 0']
    %8 = vsyncpa [#allocation3], 0
    %9 = vsyncpa [#allocation5], 0
    %s10 = scalar_lea.sflag [#allocation5], 1
    %11 = vsyncpa %s10, 0
    loop: start=0, step=1, limit=4
    $region2: #{decoder_forward.3} parent=1 // loop_pre_header
      _
    $region3: #{decoder_forward.3} parent=1 // loop_header
      %s13 = sphi 0, %s17
      %p14 = scmp.ge.s32.totalorder %s13, 4
      %s21 = sphi 0, %s21
      %s23 = sphi 0, %s21
      %s24 = sphi 0, %s23
      %s38 = sphi 0, %s24
      %s44 = sphi 0, %s46
      %s47 = sphi 0, %s44
      %s48 = sphi 0, %s47
      %s64 = sphi 0, %s48
      %s70 = sphi 0, %s72
      %s73 = sphi 0, %s70
      %s74 = sphi 0, %s73
      %s90 = sphi 0, %s74
      %s96 = sphi 0, %s98
      %s99 = sphi 0, %s96
      %s100 = sphi 0, %s99
      %s116 = sphi 0, %s100
    $region4: #{decoder_forward.3} parent=1 // loop_header_branch
      %16 = sbr.rel (%p14) target = $region8
    $region5: #{decoder_forward.3} parent=1 // loop_body
      %s18 = ssub.s32 %s13, 1
      %s19 = ssub.s32 %s13, 2
      %s20 = sadd.s32 %s13, 1
      %s22 = sadd.s32 %s21, 1
      %p25 = scmp.eq.s32.totalorder %s13, 1
      %p26 = scmp.ne.s32.totalorder %s21, %s23
      %p27 = scmp.eq.s32.totalorder %s13, 0
      %p28 = por %p26, %p27
      %p29 = scmp.ne.s32.totalorder %s21, %s23
      %p30 = scmp.eq.s32.totalorder %s18, 1
      %p31 = por %p29, %p30
      %p32 = scmp.ne.s32.totalorder %s23, %s24
      %p33 = scmp.eq.s32.totalorder %s18, 0
      %p34 = por %p32, %p33
      %p35 = scmp.ne.s32.totalorder %s23, %s24
      %p36 = scmp.eq.s32.totalorder %s19, 1
      %p37 = por %p35, %p36
      %p39 = scmp.ne.s32.totalorder %s24, %s38
      %p40 = scmp.eq.s32.totalorder %s19, 0
      %p41 = por %p39, %p40
      %s42 = ssub.s32 %s13, %s20
      %p43 = scmp.eq.s32.totalorder %s42, 0
      %s45 = sadd.s32 %s44, 1
      %s46 = scalar_select %p43, %s44, %s45
      %p49 = pneg %p43
      %p50 = scmp.eq.s32.totalorder %s13, 1
      %p51 = por %p49, %p50
      %p52 = scmp.ne.s32.totalorder %s44, %s47
      %p53 = scmp.eq.s32.totalorder %s13, 0
      %p54 = por %p52, %p53
      %p55 = scmp.ne.s32.totalorder %s44, %s47
      %p56 = scmp.eq.s32.totalorder %s18, 1
      %p57 = por %p55, %p56
      %p58 = scmp.ne.s32.totalorder %s47, %s48
      %p59 = scmp.eq.s32.totalorder %s18, 0
      %p60 = por %p58, %p59
      %p61 = scmp.ne.s32.totalorder %s47, %s48
      %p62 = scmp.eq.s32.totalorder %s19, 1
      %p63 = por %p61, %p62
      %p65 = scmp.ne.s32.totalorder %s48, %s64
      %p66 = scmp.eq.s32.totalorder %s19, 0
      %p67 = por %p65, %p66
      %s68 = ssub.s32 %s13, %s20
      %p69 = scmp.eq.s32.totalorder %s68, 0
      %s71 = sadd.s32 %s70, 1
      %s72 = scalar_select %p69, %s70, %s71
      %p75 = pneg %p69
      %p76 = scmp.eq.s32.totalorder %s13, 1
      %p77 = por %p75, %p76
      %p78 = scmp.ne.s32.totalorder %s70, %s73
      %p79 = scmp.eq.s32.totalorder %s13, 0
      %p80 = por %p78, %p79
      %p81 = scmp.ne.s32.totalorder %s70, %s73
      %p82 = scmp.eq.s32.totalorder %s18, 1
      %p83 = por %p81, %p82
      %p84 = scmp.ne.s32.totalorder %s73, %s74
      %p85 = scmp.eq.s32.totalorder %s18, 0
      %p86 = por %p84, %p85
      %p87 = scmp.ne.s32.totalorder %s73, %s74
      %p88 = scmp.eq.s32.totalorder %s19, 1
      %p89 = por %p87, %p88
      %p91 = scmp.ne.s32.totalorder %s74, %s90
      %p92 = scmp.eq.s32.totalorder %s19, 0
      %p93 = por %p91, %p92
      %s94 = ssub.s32 %s13, %s20
      %p95 = scmp.eq.s32.totalorder %s94, 0
      %s97 = sadd.s32 %s96, 1
      %s98 = scalar_select %p95, %s96, %s97
      %p101 = pneg %p95
      %p102 = scmp.eq.s32.totalorder %s13, 1
      %p103 = por %p101, %p102
      %p104 = scmp.ne.s32.totalorder %s96, %s99
      %p105 = scmp.eq.s32.totalorder %s13, 0
      %p106 = por %p104, %p105
      %p107 = scmp.ne.s32.totalorder %s96, %s99
      %p108 = scmp.eq.s32.totalorder %s18, 1
      %p109 = por %p107, %p108
      %p110 = scmp.ne.s32.totalorder %s99, %s100
      %p111 = scmp.eq.s32.totalorder %s18, 0
      %p112 = por %p110, %p111
      %p113 = scmp.ne.s32.totalorder %s99, %s100
      %p114 = scmp.eq.s32.totalorder %s19, 1
      %p115 = por %p113, %p114
      %p117 = scmp.ne.s32.totalorder %s100, %s116
      %p118 = scmp.eq.s32.totalorder %s19, 0
      %p119 = por %p117, %p118
      %p120 = scmp.le.s32.totalorder 1, %s13
      %p121 = scmp.lt.s32.totalorder %s13, 3
      %p122 = pnand %p120, %p121
      %p123 = pneg %p122
      // Predicated region
      $region9: #{decoder_forward.3} parent=5 // pred_check
        _
      $region10: #{decoder_forward.3} parent=5 // pred_check_branch
        %125 = sbr.rel (%p122) target = $region12
      $region11: #{decoder_forward.3} parent=5 // pred_region
        %s126 = ssub.s32 %s13, 1
        // Predicated region
        $region13: #{decoder_forward.3} parent=11 // pred_check
          %p127 = pneg %p34
        $region14: #{decoder_forward.3} parent=11 // pred_check_branch
          %129 = sbr.rel (%p127) target = $region16
        $region15: #{decoder_forward.3} parent=11 // pred_region
          %s131 = ssub.s32 32, 32
          %132 = vsyncadd [#allocation3], %s131
          %s134 = sshll.u32 [#allocation2], 4
          %s135 = int_to_ptr.vmem [resolvable:$true] %s134
          %137 = dma.hbm_to_vmem [thread:$0]  %s0, 32, %s135, [#allocation3]
        $region16: #{decoder_forward.3} parent=11 // pred_fallthru
          _
      $region12: #{decoder_forward.3} parent=5 // pred_fallthru
        _
      %p138 = scmp.lt.s32.totalorder %s13, 2
      // Predicated region
      $region17: #{decoder_forward.3} parent=5 // pred_check
        %p139 = pneg %p138
      $region18: #{decoder_forward.3} parent=5 // pred_check_branch
        %141 = sbr.rel (%p139) target = $region20
      $region19: #{decoder_forward.3} parent=5 // pred_region
        // Predicated region
        $region21: #{decoder_forward.3} parent=19 // pred_check
          %p142 = pneg %p54
        $region22: #{decoder_forward.3} parent=19 // pred_check_branch
          %144 = sbr.rel (%p142) target = $region24
        $region23: #{decoder_forward.3} parent=19 // pred_region
          %s145 = sand.u32 %s13, 1
          %s146 = scalar_lea.sflag [#allocation5], %s145
          %s147 = sand.u32 %s44, 1
          %s148 = smul.addr %s147, 2048
          %s149 = scalar_lea.vmem [#allocation4], %s148
          %s150 = smul.u32 64, %s13
          %s151 = ssub.s32 96, %s150
          %p152 = scmp.lt.s32.totalorder %s151, 64
          %s153 = scalar_select %p152, %s151, 64
          %s154 = smul.u32 512, %s153
          %s156 = ssub.s32 32768, %s154
          %157 = vsyncadd %s146, %s156
          %p158 = scmp.ne.s32.totalorder 0, %s154
          %s159 = smul.addr %s150, 128
          %s160 = scalar_lea.hbm %s1, %s159
          %s161 = smul.u32 %s153, 8
          %s162 = smul.u32 %s161, 4
          %s163 = sshll.u32 %s149, 4
          %s164 = int_to_ptr.vmem [resolvable:$true] %s163
          %s165 = sshll.u32 %s162, 4
          %169 = dma.hbm_to_vmem [thread:$0]  (%p158), %s160, %s165, %s164, %s146, 12288, 8192, %s161
        $region24: #{decoder_forward.3} parent=19 // pred_fallthru
          _
        // Predicated region
        $region25: #{decoder_forward.3} parent=19 // pred_check
          %p170 = pneg %p80
        $region26: #{decoder_forward.3} parent=19 // pred_check_branch
          %172 = sbr.rel (%p170) target = $region28
        $region27: #{decoder_forward.3} parent=19 // pred_region
          %s173 = sand.u32 %s13, 1
          %s174 = scalar_lea.sflag [#allocation5], %s173
          %s175 = sand.u32 %s70, 1
          %s176 = smul.addr %s175, 64
          %s177 = scalar_lea.vmem [#allocation6], %s176
          %s178 = smul.u32 64, %s13
          %s179 = ssub.s32 96, %s178
          %p180 = scmp.lt.s32.totalorder %s179, 64
          %s181 = scalar_select %p180, %s179, 64
          %s182 = smul.u32 16, %s181
          %s184 = ssub.s32 1024, %s182
          %185 = vsyncadd %s174, %s184
          %p186 = scmp.ne.s32.totalorder 0, %s182
          %s187 = smul.addr %s178, 16
          %s188 = scalar_lea.hbm %s2, %s187
          %s189 = sshll.u32 %s181, 4
          %s190 = sshll.u32 %s177, 4
          %s191 = int_to_ptr.vmem [resolvable:$true] %s190
          %193 = dma.hbm_to_vmem [thread:$0]  (%p186), %s188, %s189, %s191, %s174
        $region28: #{decoder_forward.3} parent=19 // pred_fallthru
          _
      $region20: #{decoder_forward.3} parent=5 // pred_fallthru
        _
      %p194 = scmp.le.s32.totalorder 1, %s13
      %p195 = scmp.lt.s32.totalorder %s13, 3
      %p196 = pnand %p194, %p195
      %p197 = pneg %p196
      // Predicated region
      $region29: #{decoder_forward.3} parent=5 // pred_check
        _
      $region30: #{decoder_forward.3} parent=5 // pred_check_branch
        %199 = sbr.rel (%p196) target = $region32
      $region31: #{decoder_forward.3} parent=5 // pred_region
        %s200 = ssub.s32 %s13, 1
        // Predicated region
        $region33: #{decoder_forward.3} parent=31 // pred_check
          %p201 = pneg %p34
        $region34: #{decoder_forward.3} parent=31 // pred_check_branch
          %203 = sbr.rel (%p201) target = $region36
        $region35: #{decoder_forward.3} parent=31 // pred_region
          %204 = dma.done [#allocation3], 32
        $region36: #{decoder_forward.3} parent=31 // pred_fallthru
          _
        %s205 = sand.u32 %s18, 1
        %s206 = scalar_lea.sflag [#allocation5], %s205
        %s207 = sand.u32 %s47, 1
        %s208 = smul.addr %s207, 2048
        %s209 = scalar_lea.vmem [#allocation4], %s208
        // Predicated region
        $region37: #{decoder_forward.3} parent=31 // pred_check
          %p210 = pneg %p60
        $region38: #{decoder_forward.3} parent=31 // pred_check_branch
          %212 = sbr.rel (%p210) target = $region40
        $region39: #{decoder_forward.3} parent=31 // pred_region
          %213 = dma.done %s206, 32768
        $region40: #{decoder_forward.3} parent=31 // pred_fallthru
          _
        %s214 = sand.u32 %s18, 1
        %s215 = scalar_lea.sflag [#allocation5], %s214
        %s216 = sand.u32 %s73, 1
        %s217 = smul.addr %s216, 64
        %s218 = scalar_lea.vmem [#allocation6], %s217
        // Predicated region
        $region41: #{decoder_forward.3} parent=31 // pred_check
          %p219 = pneg %p86
        $region42: #{decoder_forward.3} parent=31 // pred_check_branch
          %221 = sbr.rel (%p219) target = $region44
        $region43: #{decoder_forward.3} parent=31 // pred_region
          %222 = dma.done %s215, 1024
        $region44: #{decoder_forward.3} parent=31 // pred_fallthru
          _
        %p223 = pneg %p34
        %p224 = pneg %p31
        %s225 = sand.u32 %s18, 1
        %s226 = scalar_lea.sflag [#allocation5], %s225
        %s227 = sand.u32 %s47, 1
        %s228 = smul.addr %s227, 2048
        %s229 = scalar_lea.vmem [#allocation4], %s228
        %p230 = pneg %p60
        %p231 = pneg %p57
        %s232 = sand.u32 %s18, 1
        %s233 = scalar_lea.sflag [#allocation5], %s232
        %s234 = sand.u32 %s73, 1
        %s235 = smul.addr %s234, 64
        %s236 = scalar_lea.vmem [#allocation6], %s235
        %p237 = pneg %p86
        %p238 = pneg %p83
        %p239 = pneg %p112
        %p240 = pneg %p109
        %s241 = sand.u32 %s99, 1
        %s242 = sand.u32 %s99, 1
        %s243 = smul.addr %s242, 128
        %s244 = scalar_lea.vmem [#allocation7], %s243
        %s245 = smul.u32 64, %s18
        %s246 = ssub.s32 96, %s245
        %p247 = scmp.lt.s32.totalorder %s246, 64
        %s248 = scalar_select %p247, %s246, 64
        %s249 = smul.u32 512, %s248
        %s250 = smul.u32 64, %s18
        %s251 = ssub.s32 96, %s250
        %p252 = scmp.lt.s32.totalorder %s251, 64
        %s253 = scalar_select %p252, %s251, 64
        %s254 = smul.u32 16, %s253
        %s255 = smul.u32 64, %s18
        %s256 = ssub.s32 96, %s255
        %p257 = scmp.lt.s32.totalorder %s256, 64
        %s258 = scalar_select %p257, %s256, 64
        %s259 = smul.u32 32, %s258
        %v260 = vld [vmem:[#allocation2] sm:$0x3]
        %v261 = vld [vmem:[%s209] sm:$0xff]
        %v262 = vld [vmem:[%s209 + $0x8] sm:$0xff]
        %v263 = vld [vmem:[%s209 + $0x10] sm:$0xff]
        %v264 = vld [vmem:[%s209 + $0x18] sm:$0xff]
        %v265 = vld [vmem:[%s209 + $0x20] sm:$0xff]
        %v266 = vld [vmem:[%s209 + $0x28] sm:$0xff]
        %v267 = vld [vmem:[%s209 + $0x30] sm:$0xff]
        %v268 = vld [vmem:[%s209 + $0x38] sm:$0xff]
        %v269 = vld [vmem:[%s209 + $0x40] sm:$0xff]
        %v270 = vld [vmem:[%s209 + $0x48] sm:$0xff]
        %v271 = vld [vmem:[%s209 + $0x50] sm:$0xff]
        %v272 = vld [vmem:[%s209 + $0x58] sm:$0xff]
        %v273 = vld [vmem:[%s209 + $0x60] sm:$0xff]
        %v274 = vld [vmem:[%s209 + $0x68] sm:$0xff]
        %v275 = vld [vmem:[%s209 + $0x70] sm:$0xff]
        %v276 = vld [vmem:[%s209 + $0x78] sm:$0xff]
        %v277 = vld [vmem:[%s209 + $0x80] sm:$0xff]
        %v278 = vld [vmem:[%s209 + $0x88] sm:$0xff]
        %v279 = vld [vmem:[%s209 + $0x90] sm:$0xff]
        %v280 = vld [vmem:[%s209 + $0x98] sm:$0xff]
        %v281 = vld [vmem:[%s209 + $0xa0] sm:$0xff]
        %v282 = vld [vmem:[%s209 + $0xa8] sm:$0xff]
        %v283 = vld [vmem:[%s209 + $0xb0] sm:$0xff]
        %v284 = vld [vmem:[%s209 + $0xb8] sm:$0xff]
        %v285 = vld [vmem:[%s209 + $0xc0] sm:$0xff]
        %v286 = vld [vmem:[%s209 + $0xc8] sm:$0xff]
        %v287 = vld [vmem:[%s209 + $0xd0] sm:$0xff]
        %v288 = vld [vmem:[%s209 + $0xd8] sm:$0xff]
        %v289 = vld [vmem:[%s209 + $0xe0] sm:$0xff]
        %v290 = vld [vmem:[%s209 + $0xe8] sm:$0xff]
        %v291 = vld [vmem:[%s209 + $0xf0] sm:$0xff]
        %v292 = vld [vmem:[%s209 + $0xf8] sm:$0xff]
        %v293 = vld [vmem:[%s209 + $0x100] sm:$0xff]
        %v294 = vld [vmem:[%s209 + $0x108] sm:$0xff]
        %v295 = vld [vmem:[%s209 + $0x110] sm:$0xff]
        %v296 = vld [vmem:[%s209 + $0x118] sm:$0xff]
        %v297 = vld [vmem:[%s209 + $0x120] sm:$0xff]
        %v298 = vld [vmem:[%s209 + $0x128] sm:$0xff]
        %v299 = vld [vmem:[%s209 + $0x130] sm:$0xff]
        %v300 = vld [vmem:[%s209 + $0x138] sm:$0xff]
        %v301 = vld [vmem:[%s209 + $0x140] sm:$0xff]
        %v302 = vld [vmem:[%s209 + $0x148] sm:$0xff]
        %v303 = vld [vmem:[%s209 + $0x150] sm:$0xff]
        %v304 = vld [vmem:[%s209 + $0x158] sm:$0xff]
        %v305 = vld [vmem:[%s209 + $0x160] sm:$0xff]
        %v306 = vld [vmem:[%s209 + $0x168] sm:$0xff]
        %v307 = vld [vmem:[%s209 + $0x170] sm:$0xff]
        %v308 = vld [vmem:[%s209 + $0x178] sm:$0xff]
        %v309 = vld [vmem:[%s209 + $0x180] sm:$0xff]
        %v310 = vld [vmem:[%s209 + $0x188] sm:$0xff]
        %v311 = vld [vmem:[%s209 + $0x190] sm:$0xff]
        %v312 = vld [vmem:[%s209 + $0x198] sm:$0xff]
        %v313 = vld [vmem:[%s209 + $0x1a0] sm:$0xff]
        %v314 = vld [vmem:[%s209 + $0x1a8] sm:$0xff]
        %v315 = vld [vmem:[%s209 + $0x1b0] sm:$0xff]
        %v316 = vld [vmem:[%s209 + $0x1b8] sm:$0xff]
        %v317 = vld [vmem:[%s209 + $0x1c0] sm:$0xff]
        %v318 = vld [vmem:[%s209 + $0x1c8] sm:$0xff]
        %v319 = vld [vmem:[%s209 + $0x1d0] sm:$0xff]
        %v320 = vld [vmem:[%s209 + $0x1d8] sm:$0xff]
        %v321 = vld [vmem:[%s209 + $0x1e0] sm:$0xff]
        %v322 = vld [vmem:[%s209 + $0x1e8] sm:$0xff]
        %v323 = vld [vmem:[%s209 + $0x1f0] sm:$0xff]
        %v324 = vld [vmem:[%s209 + $0x1f8] sm:$0xff]
        %v325 = vld [vmem:[%s209 + $0x200] sm:$0xff]
        %v326 = vld [vmem:[%s209 + $0x208] sm:$0xff]
        %v327 = vld [vmem:[%s209 + $0x210] sm:$0xff]
        %v328 = vld [vmem:[%s209 + $0x218] sm:$0xff]
        %v329 = vld [vmem:[%s209 + $0x220] sm:$0xff]
        %v330 = vld [vmem:[%s209 + $0x228] sm:$0xff]
        %v331 = vld [vmem:[%s209 + $0x230] sm:$0xff]
        %v332 = vld [vmem:[%s209 + $0x238] sm:$0xff]
        %v333 = vld [vmem:[%s209 + $0x240] sm:$0xff]
        %v334 = vld [vmem:[%s209 + $0x248] sm:$0xff]
        %v335 = vld [vmem:[%s209 + $0x250] sm:$0xff]
        %v336 = vld [vmem:[%s209 + $0x258] sm:$0xff]
        %v337 = vld [vmem:[%s209 + $0x260] sm:$0xff]
        %v338 = vld [vmem:[%s209 + $0x268] sm:$0xff]
        %v339 = vld [vmem:[%s209 + $0x270] sm:$0xff]
        %v340 = vld [vmem:[%s209 + $0x278] sm:$0xff]
        %v341 = vld [vmem:[%s209 + $0x280] sm:$0xff]
        %v342 = vld [vmem:[%s209 + $0x288] sm:$0xff]
        %v343 = vld [vmem:[%s209 + $0x290] sm:$0xff]
        %v344 = vld [vmem:[%s209 + $0x298] sm:$0xff]
        %v345 = vld [vmem:[%s209 + $0x2a0] sm:$0xff]
        %v346 = vld [vmem:[%s209 + $0x2a8] sm:$0xff]
        %v347 = vld [vmem:[%s209 + $0x2b0] sm:$0xff]
        %v348 = vld [vmem:[%s209 + $0x2b8] sm:$0xff]
        %v349 = vld [vmem:[%s209 + $0x2c0] sm:$0xff]
        %v350 = vld [vmem:[%s209 + $0x2c8] sm:$0xff]
        %v351 = vld [vmem:[%s209 + $0x2d0] sm:$0xff]
        %v352 = vld [vmem:[%s209 + $0x2d8] sm:$0xff]
        %v353 = vld [vmem:[%s209 + $0x2e0] sm:$0xff]
        %v354 = vld [vmem:[%s209 + $0x2e8] sm:$0xff]
        %v355 = vld [vmem:[%s209 + $0x2f0] sm:$0xff]
        %v356 = vld [vmem:[%s209 + $0x2f8] sm:$0xff]
        %v357 = vld [vmem:[%s209 + $0x300] sm:$0xff]
        %v358 = vld [vmem:[%s209 + $0x308] sm:$0xff]
        %v359 = vld [vmem:[%s209 + $0x310] sm:$0xff]
        %v360 = vld [vmem:[%s209 + $0x318] sm:$0xff]
        %v361 = vld [vmem:[%s209 + $0x320] sm:$0xff]
        %v362 = vld [vmem:[%s209 + $0x328] sm:$0xff]
        %v363 = vld [vmem:[%s209 + $0x330] sm:$0xff]
        %v364 = vld [vmem:[%s209 + $0x338] sm:$0xff]
        %v365 = vld [vmem:[%s209 + $0x340] sm:$0xff]
        %v366 = vld [vmem:[%s209 + $0x348] sm:$0xff]
        %v367 = vld [vmem:[%s209 + $0x350] sm:$0xff]
        %v368 = vld [vmem:[%s209 + $0x358] sm:$0xff]
        %v369 = vld [vmem:[%s209 + $0x360] sm:$0xff]
        %v370 = vld [vmem:[%s209 + $0x368] sm:$0xff]
        %v371 = vld [vmem:[%s209 + $0x370] sm:$0xff]
        %v372 = vld [vmem:[%s209 + $0x378] sm:$0xff]
        %v373 = vld [vmem:[%s209 + $0x380] sm:$0xff]
        %v374 = vld [vmem:[%s209 + $0x388] sm:$0xff]
        %v375 = vld [vmem:[%s209 + $0x390] sm:$0xff]
        %v376 = vld [vmem:[%s209 + $0x398] sm:$0xff]
        %v377 = vld [vmem:[%s209 + $0x3a0] sm:$0xff]
        %v378 = vld [vmem:[%s209 + $0x3a8] sm:$0xff]
        %v379 = vld [vmem:[%s209 + $0x3b0] sm:$0xff]
        %v380 = vld [vmem:[%s209 + $0x3b8] sm:$0xff]
        %v381 = vld [vmem:[%s209 + $0x3c0] sm:$0xff]
        %v382 = vld [vmem:[%s209 + $0x3c8] sm:$0xff]
        %v383 = vld [vmem:[%s209 + $0x3d0] sm:$0xff]
        %v384 = vld [vmem:[%s209 + $0x3d8] sm:$0xff]
        %v385 = vld [vmem:[%s209 + $0x3e0] sm:$0xff]
        %v386 = vld [vmem:[%s209 + $0x3e8] sm:$0xff]
        %v387 = vld [vmem:[%s209 + $0x3f0] sm:$0xff]
        %v388 = vld [vmem:[%s209 + $0x3f8] sm:$0xff]
        %v389 = vld [vmem:[%s209 + $0x400] sm:$0xff]
        %v390 = vld [vmem:[%s209 + $0x408] sm:$0xff]
        %v391 = vld [vmem:[%s209 + $0x410] sm:$0xff]
        %v392 = vld [vmem:[%s209 + $0x418] sm:$0xff]
        %v393 = vld [vmem:[%s209 + $0x420] sm:$0xff]
        %v394 = vld [vmem:[%s209 + $0x428] sm:$0xff]
        %v395 = vld [vmem:[%s209 + $0x430] sm:$0xff]
        %v396 = vld [vmem:[%s209 + $0x438] sm:$0xff]
        %v397 = vld [vmem:[%s209 + $0x440] sm:$0xff]
        %v398 = vld [vmem:[%s209 + $0x448] sm:$0xff]
        %v399 = vld [vmem:[%s209 + $0x450] sm:$0xff]
        %v400 = vld [vmem:[%s209 + $0x458] sm:$0xff]
        %v401 = vld [vmem:[%s209 + $0x460] sm:$0xff]
        %v402 = vld [vmem:[%s209 + $0x468] sm:$0xff]
        %v403 = vld [vmem:[%s209 + $0x470] sm:$0xff]
        %v404 = vld [vmem:[%s209 + $0x478] sm:$0xff]
        %v405 = vld [vmem:[%s209 + $0x480] sm:$0xff]
        %v406 = vld [vmem:[%s209 + $0x488] sm:$0xff]
        %v407 = vld [vmem:[%s209 + $0x490] sm:$0xff]
        %v408 = vld [vmem:[%s209 + $0x498] sm:$0xff]
        %v409 = vld [vmem:[%s209 + $0x4a0] sm:$0xff]
        %v410 = vld [vmem:[%s209 + $0x4a8] sm:$0xff]
        %v411 = vld [vmem:[%s209 + $0x4b0] sm:$0xff]
        %v412 = vld [vmem:[%s209 + $0x4b8] sm:$0xff]
        %v413 = vld [vmem:[%s209 + $0x4c0] sm:$0xff]
        %v414 = vld [vmem:[%s209 + $0x4c8] sm:$0xff]
        %v415 = vld [vmem:[%s209 + $0x4d0] sm:$0xff]
        %v416 = vld [vmem:[%s209 + $0x4d8] sm:$0xff]
        %v417 = vld [vmem:[%s209 + $0x4e0] sm:$0xff]
        %v418 = vld [vmem:[%s209 + $0x4e8] sm:$0xff]
        %v419 = vld [vmem:[%s209 + $0x4f0] sm:$0xff]
        %v420 = vld [vmem:[%s209 + $0x4f8] sm:$0xff]
        %v421 = vld [vmem:[%s209 + $0x500] sm:$0xff]
        %v422 = vld [vmem:[%s209 + $0x508] sm:$0xff]
        %v423 = vld [vmem:[%s209 + $0x510] sm:$0xff]
        %v424 = vld [vmem:[%s209 + $0x518] sm:$0xff]
        %v425 = vld [vmem:[%s209 + $0x520] sm:$0xff]
        %v426 = vld [vmem:[%s209 + $0x528] sm:$0xff]
        %v427 = vld [vmem:[%s209 + $0x530] sm:$0xff]
        %v428 = vld [vmem:[%s209 + $0x538] sm:$0xff]
        %v429 = vld [vmem:[%s209 + $0x540] sm:$0xff]
        %v430 = vld [vmem:[%s209 + $0x548] sm:$0xff]
        %v431 = vld [vmem:[%s209 + $0x550] sm:$0xff]
        %v432 = vld [vmem:[%s209 + $0x558] sm:$0xff]
        %v433 = vld [vmem:[%s209 + $0x560] sm:$0xff]
        %v434 = vld [vmem:[%s209 + $0x568] sm:$0xff]
        %v435 = vld [vmem:[%s209 + $0x570] sm:$0xff]
        %v436 = vld [vmem:[%s209 + $0x578] sm:$0xff]
        %v437 = vld [vmem:[%s209 + $0x580] sm:$0xff]
        %v438 = vld [vmem:[%s209 + $0x588] sm:$0xff]
        %v439 = vld [vmem:[%s209 + $0x590] sm:$0xff]
        %v440 = vld [vmem:[%s209 + $0x598] sm:$0xff]
        %v441 = vld [vmem:[%s209 + $0x5a0] sm:$0xff]
        %v442 = vld [vmem:[%s209 + $0x5a8] sm:$0xff]
        %v443 = vld [vmem:[%s209 + $0x5b0] sm:$0xff]
        %v444 = vld [vmem:[%s209 + $0x5b8] sm:$0xff]
        %v445 = vld [vmem:[%s209 + $0x5c0] sm:$0xff]
        %v446 = vld [vmem:[%s209 + $0x5c8] sm:$0xff]
        %v447 = vld [vmem:[%s209 + $0x5d0] sm:$0xff]
        %v448 = vld [vmem:[%s209 + $0x5d8] sm:$0xff]
        %v449 = vld [vmem:[%s209 + $0x5e0] sm:$0xff]
        %v450 = vld [vmem:[%s209 + $0x5e8] sm:$0xff]
        %v451 = vld [vmem:[%s209 + $0x5f0] sm:$0xff]
        %v452 = vld [vmem:[%s209 + $0x5f8] sm:$0xff]
        %v453 = vld [vmem:[%s209 + $0x600] sm:$0xff]
        %v454 = vld [vmem:[%s209 + $0x608] sm:$0xff]
        %v455 = vld [vmem:[%s209 + $0x610] sm:$0xff]
        %v456 = vld [vmem:[%s209 + $0x618] sm:$0xff]
        %v457 = vld [vmem:[%s209 + $0x620] sm:$0xff]
        %v458 = vld [vmem:[%s209 + $0x628] sm:$0xff]
        %v459 = vld [vmem:[%s209 + $0x630] sm:$0xff]
        %v460 = vld [vmem:[%s209 + $0x638] sm:$0xff]
        %v461 = vld [vmem:[%s209 + $0x640] sm:$0xff]
        %v462 = vld [vmem:[%s209 + $0x648] sm:$0xff]
        %v463 = vld [vmem:[%s209 + $0x650] sm:$0xff]
        %v464 = vld [vmem:[%s209 + $0x658] sm:$0xff]
        %v465 = vld [vmem:[%s209 + $0x660] sm:$0xff]
        %v466 = vld [vmem:[%s209 + $0x668] sm:$0xff]
        %v467 = vld [vmem:[%s209 + $0x670] sm:$0xff]
        %v468 = vld [vmem:[%s209 + $0x678] sm:$0xff]
        %v469 = vld [vmem:[%s209 + $0x680] sm:$0xff]
        %v470 = vld [vmem:[%s209 + $0x688] sm:$0xff]
        %v471 = vld [vmem:[%s209 + $0x690] sm:$0xff]
        %v472 = vld [vmem:[%s209 + $0x698] sm:$0xff]
        %v473 = vld [vmem:[%s209 + $0x6a0] sm:$0xff]
        %v474 = vld [vmem:[%s209 + $0x6a8] sm:$0xff]
        %v475 = vld [vmem:[%s209 + $0x6b0] sm:$0xff]
        %v476 = vld [vmem:[%s209 + $0x6b8] sm:$0xff]
        %v477 = vld [vmem:[%s209 + $0x6c0] sm:$0xff]
        %v478 = vld [vmem:[%s209 + $0x6c8] sm:$0xff]
        %v479 = vld [vmem:[%s209 + $0x6d0] sm:$0xff]
        %v480 = vld [vmem:[%s209 + $0x6d8] sm:$0xff]
        %v481 = vld [vmem:[%s209 + $0x6e0] sm:$0xff]
        %v482 = vld [vmem:[%s209 + $0x6e8] sm:$0xff]
        %v483 = vld [vmem:[%s209 + $0x6f0] sm:$0xff]
        %v484 = vld [vmem:[%s209 + $0x6f8] sm:$0xff]
        %v485 = vld [vmem:[%s209 + $0x700] sm:$0xff]
        %v486 = vld [vmem:[%s209 + $0x708] sm:$0xff]
        %v487 = vld [vmem:[%s209 + $0x710] sm:$0xff]
        %v488 = vld [vmem:[%s209 + $0x718] sm:$0xff]
        %v489 = vld [vmem:[%s209 + $0x720] sm:$0xff]
        %v490 = vld [vmem:[%s209 + $0x728] sm:$0xff]
        %v491 = vld [vmem:[%s209 + $0x730] sm:$0xff]
        %v492 = vld [vmem:[%s209 + $0x738] sm:$0xff]
        %v493 = vld [vmem:[%s209 + $0x740] sm:$0xff]
        %v494 = vld [vmem:[%s209 + $0x748] sm:$0xff]
        %v495 = vld [vmem:[%s209 + $0x750] sm:$0xff]
        %v496 = vld [vmem:[%s209 + $0x758] sm:$0xff]
        %v497 = vld [vmem:[%s209 + $0x760] sm:$0xff]
        %v498 = vld [vmem:[%s209 + $0x768] sm:$0xff]
        %v499 = vld [vmem:[%s209 + $0x770] sm:$0xff]
        %v500 = vld [vmem:[%s209 + $0x778] sm:$0xff]
        %v501 = vld [vmem:[%s209 + $0x780] sm:$0xff]
        %v502 = vld [vmem:[%s209 + $0x788] sm:$0xff]
        %v503 = vld [vmem:[%s209 + $0x790] sm:$0xff]
        %v504 = vld [vmem:[%s209 + $0x798] sm:$0xff]
        %v505 = vld [vmem:[%s209 + $0x7a0] sm:$0xff]
        %v506 = vld [vmem:[%s209 + $0x7a8] sm:$0xff]
        %v507 = vld [vmem:[%s209 + $0x7b0] sm:$0xff]
        %v508 = vld [vmem:[%s209 + $0x7b8] sm:$0xff]
        %v509 = vld [vmem:[%s209 + $0x7c0] sm:$0xff]
        %v510 = vld [vmem:[%s209 + $0x7c8] sm:$0xff]
        %v511 = vld [vmem:[%s209 + $0x7d0] sm:$0xff]
        %v512 = vld [vmem:[%s209 + $0x7d8] sm:$0xff]
        %v513 = vld [vmem:[%s209 + $0x7e0] sm:$0xff]
        %v514 = vld [vmem:[%s209 + $0x7e8] sm:$0xff]
        %v515 = vld [vmem:[%s209 + $0x7f0] sm:$0xff]
        %v516 = vld [vmem:[%s209 + $0x7f8] sm:$0xff]
        %v517 = vld [vmem:[%s218] sm:$0xff]
        %v518 = vld [vmem:[%s218 + $0x8] sm:$0xff]
        %v519 = vld [vmem:[%s218 + $0x10] sm:$0xff]
        %v520 = vld [vmem:[%s218 + $0x18] sm:$0xff]
        %v521 = vld [vmem:[%s218 + $0x20] sm:$0xff]
        %v522 = vld [vmem:[%s218 + $0x28] sm:$0xff]
        %v523 = vld [vmem:[%s218 + $0x30] sm:$0xff]
        %v524 = vld [vmem:[%s218 + $0x38] sm:$0xff]
        %v533 = vlaneseq
        %v534 = vshrl.u32 %v533, 7
        %v535 = vsub.s32 0, %v534
        %v536 = vrot.slane %v517, %v535
        %v537 = vlaneseq
        %v538 = vshrl.u32 %v537, 7
        %v539 = vsub.s32 1, %v538
        %v540 = vrot.slane %v517, %v539
        %v541 = vlaneseq
        %v542 = vshrl.u32 %v541, 7
        %v543 = vsub.s32 2, %v542
        %v544 = vrot.slane %v517, %v543
        %v545 = vlaneseq
        %v546 = vshrl.u32 %v545, 7
        %v547 = vsub.s32 3, %v546
        %v548 = vrot.slane %v517, %v547
        %v549 = vlaneseq
        %v550 = vshrl.u32 %v549, 7
        %v551 = vsub.s32 4, %v550
        %v552 = vrot.slane %v517, %v551
        %v553 = vlaneseq
        %v554 = vshrl.u32 %v553, 7
        %v555 = vsub.s32 5, %v554
        %v556 = vrot.slane %v517, %v555
        %v557 = vlaneseq
        %v558 = vshrl.u32 %v557, 7
        %v559 = vsub.s32 6, %v558
        %v560 = vrot.slane %v517, %v559
        %v561 = vlaneseq
        %v562 = vshrl.u32 %v561, 7
        %v563 = vsub.s32 7, %v562
        %v564 = vrot.slane %v517, %v563
        %v565 = vlaneseq
        %v566 = vshrl.u32 %v565, 7
        %v567 = vsub.s32 0, %v566
        %v568 = vrot.slane %v518, %v567
        %v569 = vlaneseq
        %v570 = vshrl.u32 %v569, 7
        %v571 = vsub.s32 1, %v570
        %v572 = vrot.slane %v518, %v571
        %v573 = vlaneseq
        %v574 = vshrl.u32 %v573, 7
        %v575 = vsub.s32 2, %v574
        %v576 = vrot.slane %v518, %v575
        %v577 = vlaneseq
        %v578 = vshrl.u32 %v577, 7
        %v579 = vsub.s32 3, %v578
        %v580 = vrot.slane %v518, %v579
        %v581 = vlaneseq
        %v582 = vshrl.u32 %v581, 7
        %v583 = vsub.s32 4, %v582
        %v584 = vrot.slane %v518, %v583
        %v585 = vlaneseq
        %v586 = vshrl.u32 %v585, 7
        %v587 = vsub.s32 5, %v586
        %v588 = vrot.slane %v518, %v587
        %v589 = vlaneseq
        %v590 = vshrl.u32 %v589, 7
        %v591 = vsub.s32 6, %v590
        %v592 = vrot.slane %v518, %v591
        %v593 = vlaneseq
        %v594 = vshrl.u32 %v593, 7
        %v595 = vsub.s32 7, %v594
        %v596 = vrot.slane %v518, %v595
        %v597 = vlaneseq
        %v598 = vshrl.u32 %v597, 7
        %v599 = vsub.s32 0, %v598
        %v600 = vrot.slane %v519, %v599
        %v601 = vlaneseq
        %v602 = vshrl.u32 %v601, 7
        %v603 = vsub.s32 1, %v602
        %v604 = vrot.slane %v519, %v603
        %v605 = vlaneseq
        %v606 = vshrl.u32 %v605, 7
        %v607 = vsub.s32 2, %v606
        %v608 = vrot.slane %v519, %v607
        %v609 = vlaneseq
        %v610 = vshrl.u32 %v609, 7
        %v611 = vsub.s32 3, %v610
        %v612 = vrot.slane %v519, %v611
        %v613 = vlaneseq
        %v614 = vshrl.u32 %v613, 7
        %v615 = vsub.s32 4, %v614
        %v616 = vrot.slane %v519, %v615
        %v617 = vlaneseq
        %v618 = vshrl.u32 %v617, 7
        %v619 = vsub.s32 5, %v618
        %v620 = vrot.slane %v519, %v619
        %v621 = vlaneseq
        %v622 = vshrl.u32 %v621, 7
        %v623 = vsub.s32 6, %v622
        %v624 = vrot.slane %v519, %v623
        %v625 = vlaneseq
        %v626 = vshrl.u32 %v625, 7
        %v627 = vsub.s32 7, %v626
        %v628 = vrot.slane %v519, %v627
        %v629 = vlaneseq
        %v630 = vshrl.u32 %v629, 7
        %v631 = vsub.s32 0, %v630
        %v632 = vrot.slane %v520, %v631
        %v633 = vlaneseq
        %v634 = vshrl.u32 %v633, 7
        %v635 = vsub.s32 1, %v634
        %v636 = vrot.slane %v520, %v635
        %v637 = vlaneseq
        %v638 = vshrl.u32 %v637, 7
        %v639 = vsub.s32 2, %v638
        %v640 = vrot.slane %v520, %v639
        %v641 = vlaneseq
        %v642 = vshrl.u32 %v641, 7
        %v643 = vsub.s32 3, %v642
        %v644 = vrot.slane %v520, %v643
        %v645 = vlaneseq
        %v646 = vshrl.u32 %v645, 7
        %v647 = vsub.s32 4, %v646
        %v648 = vrot.slane %v520, %v647
        %v649 = vlaneseq
        %v650 = vshrl.u32 %v649, 7
        %v651 = vsub.s32 5, %v650
        %v652 = vrot.slane %v520, %v651
        %v653 = vlaneseq
        %v654 = vshrl.u32 %v653, 7
        %v655 = vsub.s32 6, %v654
        %v656 = vrot.slane %v520, %v655
        %v657 = vlaneseq
        %v658 = vshrl.u32 %v657, 7
        %v659 = vsub.s32 7, %v658
        %v660 = vrot.slane %v520, %v659
        %v661 = vlaneseq
        %v662 = vshrl.u32 %v661, 7
        %v663 = vsub.s32 0, %v662
        %v664 = vrot.slane %v521, %v663
        %v665 = vlaneseq
        %v666 = vshrl.u32 %v665, 7
        %v667 = vsub.s32 1, %v666
        %v668 = vrot.slane %v521, %v667
        %v669 = vlaneseq
        %v670 = vshrl.u32 %v669, 7
        %v671 = vsub.s32 2, %v670
        %v672 = vrot.slane %v521, %v671
        %v673 = vlaneseq
        %v674 = vshrl.u32 %v673, 7
        %v675 = vsub.s32 3, %v674
        %v676 = vrot.slane %v521, %v675
        %v677 = vlaneseq
        %v678 = vshrl.u32 %v677, 7
        %v679 = vsub.s32 4, %v678
        %v680 = vrot.slane %v521, %v679
        %v681 = vlaneseq
        %v682 = vshrl.u32 %v681, 7
        %v683 = vsub.s32 5, %v682
        %v684 = vrot.slane %v521, %v683
        %v685 = vlaneseq
        %v686 = vshrl.u32 %v685, 7
        %v687 = vsub.s32 6, %v686
        %v688 = vrot.slane %v521, %v687
        %v689 = vlaneseq
        %v690 = vshrl.u32 %v689, 7
        %v691 = vsub.s32 7, %v690
        %v692 = vrot.slane %v521, %v691
        %v693 = vlaneseq
        %v694 = vshrl.u32 %v693, 7
        %v695 = vsub.s32 0, %v694
        %v696 = vrot.slane %v522, %v695
        %v697 = vlaneseq
        %v698 = vshrl.u32 %v697, 7
        %v699 = vsub.s32 1, %v698
        %v700 = vrot.slane %v522, %v699
        %v701 = vlaneseq
        %v702 = vshrl.u32 %v701, 7
        %v703 = vsub.s32 2, %v702
        %v704 = vrot.slane %v522, %v703
        %v705 = vlaneseq
        %v706 = vshrl.u32 %v705, 7
        %v707 = vsub.s32 3, %v706
        %v708 = vrot.slane %v522, %v707
        %v709 = vlaneseq
        %v710 = vshrl.u32 %v709, 7
        %v711 = vsub.s32 4, %v710
        %v712 = vrot.slane %v522, %v711
        %v713 = vlaneseq
        %v714 = vshrl.u32 %v713, 7
        %v715 = vsub.s32 5, %v714
        %v716 = vrot.slane %v522, %v715
        %v717 = vlaneseq
        %v718 = vshrl.u32 %v717, 7
        %v719 = vsub.s32 6, %v718
        %v720 = vrot.slane %v522, %v719
        %v721 = vlaneseq
        %v722 = vshrl.u32 %v721, 7
        %v723 = vsub.s32 7, %v722
        %v724 = vrot.slane %v522, %v723
        %v725 = vlaneseq
        %v726 = vshrl.u32 %v725, 7
        %v727 = vsub.s32 0, %v726
        %v728 = vrot.slane %v523, %v727
        %v729 = vlaneseq
        %v730 = vshrl.u32 %v729, 7
        %v731 = vsub.s32 1, %v730
        %v732 = vrot.slane %v523, %v731
        %v733 = vlaneseq
        %v734 = vshrl.u32 %v733, 7
        %v735 = vsub.s32 2, %v734
        %v736 = vrot.slane %v523, %v735
        %v737 = vlaneseq
        %v738 = vshrl.u32 %v737, 7
        %v739 = vsub.s32 3, %v738
        %v740 = vrot.slane %v523, %v739
        %v741 = vlaneseq
        %v742 = vshrl.u32 %v741, 7
        %v743 = vsub.s32 4, %v742
        %v744 = vrot.slane %v523, %v743
        %v745 = vlaneseq
        %v746 = vshrl.u32 %v745, 7
        %v747 = vsub.s32 5, %v746
        %v748 = vrot.slane %v523, %v747
        %v749 = vlaneseq
        %v750 = vshrl.u32 %v749, 7
        %v751 = vsub.s32 6, %v750
        %v752 = vrot.slane %v523, %v751
        %v753 = vlaneseq
        %v754 = vshrl.u32 %v753, 7
        %v755 = vsub.s32 7, %v754
        %v756 = vrot.slane %v523, %v755
        %v757 = vlaneseq
        %v758 = vshrl.u32 %v757, 7
        %v759 = vsub.s32 0, %v758
        %v760 = vrot.slane %v524, %v759
        %v761 = vlaneseq
        %v762 = vshrl.u32 %v761, 7
        %v763 = vsub.s32 1, %v762
        %v764 = vrot.slane %v524, %v763
        %v765 = vlaneseq
        %v766 = vshrl.u32 %v765, 7
        %v767 = vsub.s32 2, %v766
        %v768 = vrot.slane %v524, %v767
        %v769 = vlaneseq
        %v770 = vshrl.u32 %v769, 7
        %v771 = vsub.s32 3, %v770
        %v772 = vrot.slane %v524, %v771
        %v773 = vlaneseq
        %v774 = vshrl.u32 %v773, 7
        %v775 = vsub.s32 4, %v774
        %v776 = vrot.slane %v524, %v775
        %v777 = vlaneseq
        %v778 = vshrl.u32 %v777, 7
        %v779 = vsub.s32 5, %v778
        %v780 = vrot.slane %v524, %v779
        %v781 = vlaneseq
        %v782 = vshrl.u32 %v781, 7
        %v783 = vsub.s32 6, %v782
        %v784 = vrot.slane %v524, %v783
        %v785 = vlaneseq
        %v786 = vshrl.u32 %v785, 7
        %v787 = vsub.s32 7, %v786
        %v788 = vrot.slane %v524, %v787
        %vm853 = vcmask 261120
        %v855 = vsel %vm853, %v260, 0
        %857 = vmatprep.subr.mxu0 %v262
        %858 = vmatpush1.msra.mxu0 %v261
        %859 = vmatprep.subr.mxu0 %v326
        %860 = vmatpush1.msra.mxu0 %v325
        %861 = vmatprep.subr.mxu0 %v390
        %862 = vmatpush1.msra.mxu0 %v389
        %863 = vmatprep.subr.mxu0 %v454
        %864 = vmatpush1.msra.mxu0 %v453
        %865 = vmatprep.subr.mxu0 0.0
        %866 = vmatpush1.msra.mxu0 0.0
        %867 = vmatprep.subr.mxu0 0.0
        %868 = vmatpush1.msra.mxu0 0.0
        %869 = vmatprep.subr.mxu0 0.0
        %870 = vmatpush1.msra.mxu0 0.0
        %871 = vmatprep.subr.mxu0 0.0
        %872 = vmatpush1.msra.mxu0 0.0
        %873 = vmatprep.subr.mxu0 0.0
        %874 = vmatpush1.msra.mxu0 0.0
        %875 = vmatprep.subr.mxu0 0.0
        %876 = vmatpush1.msra.mxu0 0.0
        %877 = vmatprep.subr.mxu0 0.0
        %878 = vmatpush1.msra.mxu0 0.0
        %879 = vmatprep.subr.mxu0 0.0
        %880 = vmatpush1.msra.mxu0 0.0
        %881 = vmatprep.subr.mxu0 0.0
        %882 = vmatpush1.msra.mxu0 0.0
        %883 = vmatprep.subr.mxu0 0.0
        %884 = vmatpush1.msra.mxu0 0.0
        %885 = vmatprep.subr.mxu0 0.0
        %886 = vmatpush1.msra.mxu0 0.0
        %887 = vmatprep.subr.mxu0 0.0
        %888 = vmatpush1.msra.mxu0 0.0
        %889 = vmatprep.subr.mxu0 0.0
        %890 = vmatpush1.msra.mxu0 0.0
        %891 = vmatprep.subr.mxu0 0.0
        %892 = vmatpush1.msra.mxu0 0.0
        %893 = vmatprep.subr.mxu0 0.0
        %894 = vmatpush1.msra.mxu0 0.0
        %895 = vmatprep.subr.mxu0 0.0
        %896 = vmatpush1.msra.mxu0 0.0
        %897 = vmatprep.subr.mxu0 0.0
        %898 = vmatpush1.msra.mxu0 0.0
        %899 = vmatprep.subr.mxu0 0.0
        %900 = vmatpush1.msra.mxu0 0.0
        %901 = vmatprep.subr.mxu0 0.0
        %902 = vmatpush1.msra.mxu0 0.0
        %903 = vmatprep.subr.mxu0 0.0
        %904 = vmatpush1.msra.mxu0 0.0
        %905 = vmatprep.subr.mxu0 0.0
        %906 = vmatpush1.msra.mxu0 0.0
        %907 = vmatprep.subr.mxu0 0.0
        %908 = vmatpush1.msra.mxu0 0.0
        %909 = vmatprep.subr.mxu0 0.0
        %910 = vmatpush1.msra.mxu0 0.0
        %911 = vmatprep.subr.mxu0 0.0
        %912 = vmatpush1.msra.mxu0 0.0
        %913 = vmatprep.subr.mxu0 0.0
        %914 = vmatpush1.msra.mxu0 0.0
        %915 = vmatprep.subr.mxu0 0.0
        %916 = vmatpush1.msra.mxu0 0.0
        %917 = vmatprep.subr.mxu0 0.0
        %918 = vmatpush1.msra.mxu0 0.0
        %919 = vmatprep.subr.mxu0 0.0
        %920 = vmatpush1.msra.mxu0 0.0
        %921 = vmatprep.mubr.f32.mxu0 0.0
        %922 = vmatmul.mubr.f32.gmra.mrb[0].mxu0 %v855
        %v923 = vpop.f32.mrb[0].mxu0
        %v924 = vadd.f32 %v536, %v923
        %v925 = vpop.f32.mrb[0].mxu0
        %v926 = vadd.f32 %v540, %v925
        %927 = vdwg.mxu0
        %928 = vmatprep.subr.mxu0 %v264
        %929 = vmatpush1.msra.mxu0 %v263
        %930 = vmatprep.subr.mxu0 %v328
        %931 = vmatpush1.msra.mxu0 %v327
        %932 = vmatprep.subr.mxu0 %v392
        %933 = vmatpush1.msra.mxu0 %v391
        %934 = vmatprep.subr.mxu0 %v456
        %935 = vmatpush1.msra.mxu0 %v455
        %936 = vmatprep.subr.mxu0 0.0
        %937 = vmatpush1.msra.mxu0 0.0
        %938 = vmatprep.subr.mxu0 0.0
        %939 = vmatpush1.msra.mxu0 0.0
        %940 = vmatprep.subr.mxu0 0.0
        %941 = vmatpush1.msra.mxu0 0.0
        %942 = vmatprep.subr.mxu0 0.0
        %943 = vmatpush1.msra.mxu0 0.0
        %944 = vmatprep.subr.mxu0 0.0
        %945 = vmatpush1.msra.mxu0 0.0
        %946 = vmatprep.subr.mxu0 0.0
        %947 = vmatpush1.msra.mxu0 0.0
        %948 = vmatprep.subr.mxu0 0.0
        %949 = vmatpush1.msra.mxu0 0.0
        %950 = vmatprep.subr.mxu0 0.0
        %951 = vmatpush1.msra.mxu0 0.0
        %952 = vmatprep.subr.mxu0 0.0
        %953 = vmatpush1.msra.mxu0 0.0
        %954 = vmatprep.subr.mxu0 0.0
        %955 = vmatpush1.msra.mxu0 0.0
        %956 = vmatprep.subr.mxu0 0.0
        %957 = vmatpush1.msra.mxu0 0.0
        %958 = vmatprep.subr.mxu0 0.0
        %959 = vmatpush1.msra.mxu0 0.0
        %960 = vmatprep.subr.mxu0 0.0
        %961 = vmatpush1.msra.mxu0 0.0
        %962 = vmatprep.subr.mxu0 0.0
        %963 = vmatpush1.msra.mxu0 0.0
        %964 = vmatprep.subr.mxu0 0.0
        %965 = vmatpush1.msra.mxu0 0.0
        %966 = vmatprep.subr.mxu0 0.0
        %967 = vmatpush1.msra.mxu0 0.0
        %968 = vmatprep.subr.mxu0 0.0
        %969 = vmatpush1.msra.mxu0 0.0
        %970 = vmatprep.subr.mxu0 0.0
        %971 = vmatpush1.msra.mxu0 0.0
        %972 = vmatprep.subr.mxu0 0.0
        %973 = vmatpush1.msra.mxu0 0.0
        %974 = vmatprep.subr.mxu0 0.0
        %975 = vmatpush1.msra.mxu0 0.0
        %976 = vmatprep.subr.mxu0 0.0
        %977 = vmatpush1.msra.mxu0 0.0
        %978 = vmatprep.subr.mxu0 0.0
        %979 = vmatpush1.msra.mxu0 0.0
        %980 = vmatprep.subr.mxu0 0.0
        %981 = vmatpush1.msra.mxu0 0.0
        %982 = vmatprep.subr.mxu0 0.0
        %983 = vmatpush1.msra.mxu0 0.0
        %984 = vmatprep.subr.mxu0 0.0
        %985 = vmatpush1.msra.mxu0 0.0
        %986 = vmatprep.subr.mxu0 0.0
        %987 = vmatpush1.msra.mxu0 0.0
        %988 = vmatprep.subr.mxu0 0.0
        %989 = vmatpush1.msra.mxu0 0.0
        %990 = vmatprep.subr.mxu0 0.0
        %991 = vmatpush1.msra.mxu0 0.0
        %992 = vmatprep.mubr.f32.mxu0 0.0
        %993 = vmatmul.mubr.f32.gmra.mrb[0].mxu0 %v855
        %v994 = vpop.f32.mrb[0].mxu0
        %v995 = vadd.f32 %v544, %v994
        %v996 = vpop.f32.mrb[0].mxu0
        %v997 = vadd.f32 %v548, %v996
        %998 = vdwg.mxu0
        %999 = vmatprep.subr.mxu0 %v266
        %1000 = vmatpush1.msra.mxu0 %v265
        %1001 = vmatprep.subr.mxu0 %v330
        %1002 = vmatpush1.msra.mxu0 %v329
        %1003 = vmatprep.subr.mxu0 %v394
        %1004 = vmatpush1.msra.mxu0 %v393
        %1005 = vmatprep.subr.mxu0 %v458
        %1006 = vmatpush1.msra.mxu0 %v457
        %1007 = vmatprep.subr.mxu0 0.0
        %1008 = vmatpush1.msra.mxu0 0.0
        %1009 = vmatprep.subr.mxu0 0.0
        %1010 = vmatpush1.msra.mxu0 0.0
        %1011 = vmatprep.subr.mxu0 0.0
        %1012 = vmatpush1.msra.mxu0 0.0
        %1013 = vmatprep.subr.mxu0 0.0
        %1014 = vmatpush1.msra.mxu0 0.0
        %1015 = vmatprep.subr.mxu0 0.0
        %1016 = vmatpush1.msra.mxu0 0.0
        %1017 = vmatprep.subr.mxu0 0.0
        %1018 = vmatpush1.msra.mxu0 0.0
        %1019 = vmatprep.subr.mxu0 0.0
        %1020 = vmatpush1.msra.mxu0 0.0
        %1021 = vmatprep.subr.mxu0 0.0
        %1022 = vmatpush1.msra.mxu0 0.0
        %1023 = vmatprep.subr.mxu0 0.0
        %1024 = vmatpush1.msra.mxu0 0.0
        %1025 = vmatprep.subr.mxu0 0.0
        %1026 = vmatpush1.msra.mxu0 0.0
        %1027 = vmatprep.subr.mxu0 0.0
        %1028 = vmatpush1.msra.mxu0 0.0
        %1029 = vmatprep.subr.mxu0 0.0
        %1030 = vmatpush1.msra.mxu0 0.0
        %1031 = vmatprep.subr.mxu0 0.0
        %1032 = vmatpush1.msra.mxu0 0.0
        %1033 = vmatprep.subr.mxu0 0.0
        %1034 = vmatpush1.msra.mxu0 0.0
        %1035 = vmatprep.subr.mxu0 0.0
        %1036 = vmatpush1.msra.mxu0 0.0
        %1037 = vmatprep.subr.mxu0 0.0
        %1038 = vmatpush1.msra.mxu0 0.0
        %1039 = vmatprep.subr.mxu0 0.0
        %1040 = vmatpush1.msra.mxu0 0.0
        %1041 = vmatprep.subr.mxu0 0.0
        %1042 = vmatpush1.msra.mxu0 0.0
        %1043 = vmatprep.subr.mxu0 0.0
        %1044 = vmatpush1.msra.mxu0 0.0
        %1045 = vmatprep.subr.mxu0 0.0
        %1046 = vmatpush1.msra.mxu0 0.0
        %1047 = vmatprep.subr.mxu0 0.0
        %1048 = vmatpush1.msra.mxu0 0.0
        %1049 = vmatprep.subr.mxu0 0.0
        %1050 = vmatpush1.msra.mxu0 0.0
        %1051 = vmatprep.subr.mxu0 0.0
        %1052 = vmatpush1.msra.mxu0 0.0
        %1053 = vmatprep.subr.mxu0 0.0
        %1054 = vmatpush1.msra.mxu0 0.0
        %1055 = vmatprep.subr.mxu0 0.0
        %1056 = vmatpush1.msra.mxu0 0.0
        %1057 = vmatprep.subr.mxu0 0.0
        %1058 = vmatpush1.msra.mxu0 0.0
        %1059 = vmatprep.subr.mxu0 0.0
        %1060 = vmatpush1.msra.mxu0 0.0
        %1061 = vmatprep.subr.mxu0 0.0
        %1062 = vmatpush1.msra.mxu0 0.0
        %1063 = vmatprep.mubr.f32.mxu0 0.0
        %1064 = vmatmul.mubr.f32.gmra.mrb[0].mxu0 %v855
        %v1065 = vpop.f32.mrb[0].mxu0
        %v1066 = vadd.f32 %v552, %v1065
        %v1067 = vpop.f32.mrb[0].mxu0
        %v1068 = vadd.f32 %v556, %v1067
        %1069 = vdwg.mxu0
        %1070 = vmatprep.subr.mxu0 %v268
        %1071 = vmatpush1.msra.mxu0 %v267
        %1072 = vmatprep.subr.mxu0 %v332
        %1073 = vmatpush1.msra.mxu0 %v331
        %1074 = vmatprep.subr.mxu0 %v396
        %1075 = vmatpush1.msra.mxu0 %v395
        %1076 = vmatprep.subr.mxu0 %v460
        %1077 = vmatpush1.msra.mxu0 %v459
        %1078 = vmatprep.subr.mxu0 0.0
        %1079 = vmatpush1.msra.mxu0 0.0
        %1080 = vmatprep.subr.mxu0 0.0
        %1081 = vmatpush1.msra.mxu0 0.0
        %1082 = vmatprep.subr.mxu0 0.0
        %1083 = vmatpush1.msra.mxu0 0.0
        %1084 = vmatprep.subr.mxu0 0.0
        %1085 = vmatpush1.msra.mxu0 0.0
        %1086 = vmatprep.subr.mxu0 0.0
        %1087 = vmatpush1.msra.mxu0 0.0
        %1088 = vmatprep.subr.mxu0 0.0
        %1089 = vmatpush1.msra.mxu0 0.0
        %1090 = vmatprep.subr.mxu0 0.0
        %1091 = vmatpush1.msra.mxu0 0.0
        %1092 = vmatprep.subr.mxu0 0.0
        %1093 = vmatpush1.msra.mxu0 0.0
        %1094 = vmatprep.subr.mxu0 0.0
        %1095 = vmatpush1.msra.mxu0 0.0
        %1096 = vmatprep.subr.mxu0 0.0
        %1097 = vmatpush1.msra.mxu0 0.0
        %1098 = vmatprep.subr.mxu0 0.0
        %1099 = vmatpush1.msra.mxu0 0.0
        %1100 = vmatprep.subr.mxu0 0.0
        %1101 = vmatpush1.msra.mxu0 0.0
        %1102 = vmatprep.subr.mxu0 0.0
        %1103 = vmatpush1.msra.mxu0 0.0
        %1104 = vmatprep.subr.mxu0 0.0
        %1105 = vmatpush1.msra.mxu0 0.0
        %1106 = vmatprep.subr.mxu0 0.0
        %1107 = vmatpush1.msra.mxu0 0.0
        %1108 = vmatprep.subr.mxu0 0.0
        %1109 = vmatpush1.msra.mxu0 0.0
        %1110 = vmatprep.subr.mxu0 0.0
        %1111 = vmatpush1.msra.mxu0 0.0
        %1112 = vmatprep.subr.mxu0 0.0
        %1113 = vmatpush1.msra.mxu0 0.0
        %1114 = vmatprep.subr.mxu0 0.0
        %1115 = vmatpush1.msra.mxu0 0.0
        %1116 = vmatprep.subr.mxu0 0.0
        %1117 = vmatpush1.msra.mxu0 0.0
        %1118 = vmatprep.subr.mxu0 0.0
        %1119 = vmatpush1.msra.mxu0 0.0
        %1120 = vmatprep.subr.mxu0 0.0
        %1121 = vmatpush1.msra.mxu0 0.0
        %1122 = vmatprep.subr.mxu0 0.0
        %1123 = vmatpush1.msra.mxu0 0.0
        %1124 = vmatprep.subr.mxu0 0.0
        %1125 = vmatpush1.msra.mxu0 0.0
        %1126 = vmatprep.subr.mxu0 0.0
        %1127 = vmatpush1.msra.mxu0 0.0
        %1128 = vmatprep.subr.mxu0 0.0
        %1129 = vmatpush1.msra.mxu0 0.0
        %1130 = vmatprep.subr.mxu0 0.0
        %1131 = vmatpush1.msra.mxu0 0.0
        %1132 = vmatprep.subr.mxu0 0.0
        %1133 = vmatpush1.msra.mxu0 0.0
        %1134 = vmatprep.mubr.f32.mxu0 0.0
        %1135 = vmatmul.mubr.f32.gmra.mrb[0].mxu0 %v855
        %v1136 = vpop.f32.mrb[0].mxu0
        %v1137 = vadd.f32 %v560, %v1136
        %v1138 = vpop.f32.mrb[0].mxu0
        %v1139 = vadd.f32 %v564, %v1138
        %1140 = vdwg.mxu0
        %1141 = vmatprep.subr.mxu0 %v270
        %1142 = vmatpush1.msra.mxu0 %v269
        %1143 = vmatprep.subr.mxu0 %v334
        %1144 = vmatpush1.msra.mxu0 %v333
        %1145 = vmatprep.subr.mxu0 %v398
        %1146 = vmatpush1.msra.mxu0 %v397
        %1147 = vmatprep.subr.mxu0 %v462
        %1148 = vmatpush1.msra.mxu0 %v461
        %1149 = vmatprep.subr.mxu0 0.0
        %1150 = vmatpush1.msra.mxu0 0.0
        %1151 = vmatprep.subr.mxu0 0.0
        %1152 = vmatpush1.msra.mxu0 0.0
        %1153 = vmatprep.subr.mxu0 0.0
        %1154 = vmatpush1.msra.mxu0 0.0
        %1155 = vmatprep.subr.mxu0 0.0
        %1156 = vmatpush1.msra.mxu0 0.0
        %1157 = vmatprep.subr.mxu0 0.0
        %1158 = vmatpush1.msra.mxu0 0.0
        %1159 = vmatprep.subr.mxu0 0.0
        %1160 = vmatpush1.msra.mxu0 0.0
        %1161 = vmatprep.subr.mxu0 0.0
        %1162 = vmatpush1.msra.mxu0 0.0
        %1163 = vmatprep.subr.mxu0 0.0
        %1164 = vmatpush1.msra.mxu0 0.0
        %1165 = vmatprep.subr.mxu0 0.0
        %1166 = vmatpush1.msra.mxu0 0.0
        %1167 = vmatprep.subr.mxu0 0.0
        %1168 = vmatpush1.msra.mxu0 0.0
        %1169 = vmatprep.subr.mxu0 0.0
        %1170 = vmatpush1.msra.mxu0 0.0
        %1171 = vmatprep.subr.mxu0 0.0
        %1172 = vmatpush1.msra.mxu0 0.0
        %1173 = vmatprep.subr.mxu0 0.0
        %1174 = vmatpush1.msra.mxu0 0.0
        %1175 = vmatprep.subr.mxu0 0.0
        %1176 = vmatpush1.msra.mxu0 0.0
        %1177 = vmatprep.subr.mxu0 0.0
        %1178 = vmatpush1.msra.mxu0 0.0
        %1179 = vmatprep.subr.mxu0 0.0
        %1180 = vmatpush1.msra.mxu0 0.0
        %1181 = vmatprep.subr.mxu0 0.0
        %1182 = vmatpush1.msra.mxu0 0.0
        %1183 = vmatprep.subr.mxu0 0.0
        %1184 = vmatpush1.msra.mxu0 0.0
        %1185 = vmatprep.subr.mxu0 0.0
        %1186 = vmatpush1.msra.mxu0 0.0
        %1187 = vmatprep.subr.mxu0 0.0
        %1188 = vmatpush1.msra.mxu0 0.0
        %1189 = vmatprep.subr.mxu0 0.0
        %1190 = vmatpush1.msra.mxu0 0.0
        %1191 = vmatprep.subr.mxu0 0.0
        %1192 = vmatpush1.msra.mxu0 0.0
        %1193 = vmatprep.subr.mxu0 0.0
        %1194 = vmatpush1.msra.mxu0 0.0
        %1195 = vmatprep.subr.mxu0 0.0
        %1196 = vmatpush1.msra.mxu0 0.0
        %1197 = vmatprep.subr.mxu0 0.0
        %1198 = vmatpush1.msra.mxu0 0.0
        %1199 = vmatprep.subr.mxu0 0.0
        %1200 = vmatpush1.msra.mxu0 0.0
        %1201 = vmatprep.subr.mxu0 0.0
        %1202 = vmatpush1.msra.mxu0 0.0
        %1203 = vmatprep.subr.mxu0 0.0
        %1204 = vmatpush1.msra.mxu0 0.0
        %1205 = vmatprep.mubr.f32.mxu0 0.0
        %1206 = vmatmul.mubr.f32.gmra.mrb[0].mxu0 %v855
        %v1207 = vpop.f32.mrb[0].mxu0
        %v1208 = vadd.f32 %v568, %v1207
        %v1209 = vpop.f32.mrb[0].mxu0
        %v1210 = vadd.f32 %v572, %v1209
        %1211 = vdwg.mxu0
        %1212 = vmatprep.subr.mxu0 %v272
        %1213 = vmatpush1.msra.mxu0 %v271
        %1214 = vmatprep.subr.mxu0 %v336
        %1215 = vmatpush1.msra.mxu0 %v335
        %1216 = vmatprep.subr.mxu0 %v400
        %1217 = vmatpush1.msra.mxu0 %v399
        %1218 = vmatprep.subr.mxu0 %v464
        %1219 = vmatpush1.msra.mxu0 %v463
        %1220 = vmatprep.subr.mxu0 0.0
        %1221 = vmatpush1.msra.mxu0 0.0
        %1222 = vmatprep.subr.mxu0 0.0
        %1223 = vmatpush1.msra.mxu0 0.0
        %1224 = vmatprep.subr.mxu0 0.0
        %1225 = vmatpush1.msra.mxu0 0.0
        %1226 = vmatprep.subr.mxu0 0.0
        %1227 = vmatpush1.msra.mxu0 0.0
        %1228 = vmatprep.subr.mxu0 0.0
        %1229 = vmatpush1.msra.mxu0 0.0
        %1230 = vmatprep.subr.mxu0 0.0
        %1231 = vmatpush1.msra.mxu0 0.0
        %1232 = vmatprep.subr.mxu0 0.0
        %1233 = vmatpush1.msra.mxu0 0.0
        %1234 = vmatprep.subr.mxu0 0.0
        %1235 = vmatpush1.msra.mxu0 0.0
        %1236 = vmatprep.subr.mxu0 0.0
        %1237 = vmatpush1.msra.mxu0 0.0
        %1238 = vmatprep.subr.mxu0 0.0
        %1239 = vmatpush1.msra.mxu0 0.0
        %1240 = vmatprep.subr.mxu0 0.0
        %1241 = vmatpush1.msra.mxu0 0.0
        %1242 = vmatprep.subr.mxu0 0.0
        %1243 = vmatpush1.msra.mxu0 0.0
        %1244 = vmatprep.subr.mxu0 0.0
        %1245 = vmatpush1.msra.mxu0 0.0
        %1246 = vmatprep.subr.mxu0 0.0
        %1247 = vmatpush1.msra.mxu0 0.0
        %1248 = vmatprep.subr.mxu0 0.0
        %1249 = vmatpush1.msra.mxu0 0.0
        %1250 = vmatprep.subr.mxu0 0.0
        %1251 = vmatpush1.msra.mxu0 0.0
        %1252 = vmatprep.subr.mxu0 0.0
        %1253 = vmatpush1.msra.mxu0 0.0
        %1254 = vmatprep.subr.mxu0 0.0
        %1255 = vmatpush1.msra.mxu0 0.0
        %1256 = vmatprep.subr.mxu0 0.0
        %1257 = vmatpush1.msra.mxu0 0.0
        %1258 = vmatprep.subr.mxu0 0.0
        %1259 = vmatpush1.msra.mxu0 0.0
        %1260 = vmatprep.subr.mxu0 0.0
        %1261 = vmatpush1.msra.mxu0 0.0
        %1262 = vmatprep.subr.mxu0 0.0
        %1263 = vmatpush1.msra.mxu0 0.0
        %1264 = vmatprep.subr.mxu0 0.0
        %1265 = vmatpush1.msra.mxu0 0.0
        %1266 = vmatprep.subr.mxu0 0.0
        %1267 = vmatpush1.msra.mxu0 0.0
        %1268 = vmatprep.subr.mxu0 0.0
        %1269 = vmatpush1.msra.mxu0 0.0
        %1270 = vmatprep.subr.mxu0 0.0
        %1271 = vmatpush1.msra.mxu0 0.0
        %1272 = vmatprep.subr.mxu0 0.0
        %1273 = vmatpush1.msra.mxu0 0.0
        %1274 = vmatprep.subr.mxu0 0.0
        %1275 = vmatpush1.msra.mxu0 0.0
        %1276 = vmatprep.mubr.f32.mxu0 0.0
        %1277 = vmatmul.mubr.f32.gmra.mrb[0].mxu0 %v855
        %v1278 = vpop.f32.mrb[0].mxu0
        %v1279 = vadd.f32 %v576, %v1278
        %v1280 = vpop.f32.mrb[0].mxu0
        %v1281 = vadd.f32 %v580, %v1280
        %1282 = vdwg.mxu0
        %1283 = vmatprep.subr.mxu0 %v274
        %1284 = vmatpush1.msra.mxu0 %v273
        %1285 = vmatprep.subr.mxu0 %v338
        %1286 = vmatpush1.msra.mxu0 %v337
        %1287 = vmatprep.subr.mxu0 %v402
        %1288 = vmatpush1.msra.mxu0 %v401
        %1289 = vmatprep.subr.mxu0 %v466
        %1290 = vmatpush1.msra.mxu0 %v465
        %1291 = vmatprep.subr.mxu0 0.0
        %1292 = vmatpush1.msra.mxu0 0.0
        %1293 = vmatprep.subr.mxu0 0.0
        %1294 = vmatpush1.msra.mxu0 0.0
        %1295 = vmatprep.subr.mxu0 0.0
        %1296 = vmatpush1.msra.mxu0 0.0
        %1297 = vmatprep.subr.mxu0 0.0
        %1298 = vmatpush1.msra.mxu0 0.0
        %1299 = vmatprep.subr.mxu0 0.0
        %1300 = vmatpush1.msra.mxu0 0.0
        %1301 = vmatprep.subr.mxu0 0.0
        %1302 = vmatpush1.msra.mxu0 0.0
        %1303 = vmatprep.subr.mxu0 0.0
        %1304 = vmatpush1.msra.mxu0 0.0
        %1305 = vmatprep.subr.mxu0 0.0
        %1306 = vmatpush1.msra.mxu0 0.0
        %1307 = vmatprep.subr.mxu0 0.0
        %1308 = vmatpush1.msra.mxu0 0.0
        %1309 = vmatprep.subr.mxu0 0.0
        %1310 = vmatpush1.msra.mxu0 0.0
        %1311 = vmatprep.subr.mxu0 0.0
        %1312 = vmatpush1.msra.mxu0 0.0
        %1313 = vmatprep.subr.mxu0 0.0
        %1314 = vmatpush1.msra.mxu0 0.0
        %1315 = vmatprep.subr.mxu0 0.0
        %1316 = vmatpush1.msra.mxu0 0.0
        %1317 = vmatprep.subr.mxu0 0.0
        %1318 = vmatpush1.msra.mxu0 0.0
        %1319 = vmatprep.subr.mxu0 0.0
        %1320 = vmatpush1.msra.mxu0 0.0
        %1321 = vmatprep.subr.mxu0 0.0
        %1322 = vmatpush1.msra.mxu0 0.0
        %1323 = vmatprep.subr.mxu0 0.0
        %1324 = vmatpush1.msra.mxu0 0.0
        %1325 = vmatprep.subr.mxu0 0.0
        %1326 = vmatpush1.msra.mxu0 0.0
        %1327 = vmatprep.subr.mxu0 0.0
        %1328 = vmatpush1.msra.mxu0 0.0
        %1329 = vmatprep.subr.mxu0 0.0
        %1330 = vmatpush1.msra.mxu0 0.0
        %1331 = vmatprep.subr.mxu0 0.0
        %1332 = vmatpush1.msra.mxu0 0.0
        %1333 = vmatprep.subr.mxu0 0.0
        %1334 = vmatpush1.msra.mxu0 0.0
        %1335 = vmatprep.subr.mxu0 0.0
        %1336 = vmatpush1.msra.mxu0 0.0
        %1337 = vmatprep.subr.mxu0 0.0
        %1338 = vmatpush1.msra.mxu0 0.0
        %1339 = vmatprep.subr.mxu0 0.0
        %1340 = vmatpush1.msra.mxu0 0.0
        %1341 = vmatprep.subr.mxu0 0.0
        %1342 = vmatpush1.msra.mxu0 0.0
        %1343 = vmatprep.subr.mxu0 0.0
        %1344 = vmatpush1.msra.mxu0 0.0
        %1345 = vmatprep.subr.mxu0 0.0
        %1346 = vmatpush1.msra.mxu0 0.0
        %1347 = vmatprep.mubr.f32.mxu0 0.0
        %1348 = vmatmul.mubr.f32.gmra.mrb[0].mxu0 %v855
        %v1349 = vpop.f32.mrb[0].mxu0
        %v1350 = vadd.f32 %v584, %v1349
        %v1351 = vpop.f32.mrb[0].mxu0
        %v1352 = vadd.f32 %v588, %v1351
        %1353 = vdwg.mxu0
        %1354 = vmatprep.subr.mxu0 %v276
        %1355 = vmatpush1.msra.mxu0 %v275
        %1356 = vmatprep.subr.mxu0 %v340
        %1357 = vmatpush1.msra.mxu0 %v339
        %1358 = vmatprep.subr.mxu0 %v404
        %1359 = vmatpush1.msra.mxu0 %v403
        %1360 = vmatprep.subr.mxu0 %v468
        %1361 = vmatpush1.msra.mxu0 %v467
        %1362 = vmatprep.subr.mxu0 0.0
        %1363 = vmatpush1.msra.mxu0 0.0
        %1364 = vmatprep.subr.mxu0 0.0
        %1365 = vmatpush1.msra.mxu0 0.0
        %1366 = vmatprep.subr.mxu0 0.0
        %1367 = vmatpush1.msra.mxu0 0.0
        %1368 = vmatprep.subr.mxu0 0.0
        %1369 = vmatpush1.msra.mxu0 0.0
        %1370 = vmatprep.subr.mxu0 0.0
        %1371 = vmatpush1.msra.mxu0 0.0
        %1372 = vmatprep.subr.mxu0 0.0
        %1373 = vmatpush1.msra.mxu0 0.0
        %1374 = vmatprep.subr.mxu0 0.0
        %1375 = vmatpush1.msra.mxu0 0.0
        %1376 = vmatprep.subr.mxu0 0.0
        %1377 = vmatpush1.msra.mxu0 0.0
        %1378 = vmatprep.subr.mxu0 0.0
        %1379 = vmatpush1.msra.mxu0 0.0
        %1380 = vmatprep.subr.mxu0 0.0
        %1381 = vmatpush1.msra.mxu0 0.0
        %1382 = vmatprep.subr.mxu0 0.0
        %1383 = vmatpush1.msra.mxu0 0.0
        %1384 = vmatprep.subr.mxu0 0.0
        %1385 = vmatpush1.msra.mxu0 0.0
        %1386 = vmatprep.subr.mxu0 0.0
        %1387 = vmatpush1.msra.mxu0 0.0
        %1388 = vmatprep.subr.mxu0 0.0
        %1389 = vmatpush1.msra.mxu0 0.0
        %1390 = vmatprep.subr.mxu0 0.0
        %1391 = vmatpush1.msra.mxu0 0.0
        %1392 = vmatprep.subr.mxu0 0.0
        %1393 = vmatpush1.msra.mxu0 0.0
        %1394 = vmatprep.subr.mxu0 0.0
        %1395 = vmatpush1.msra.mxu0 0.0
        %1396 = vmatprep.subr.mxu0 0.0
        %1397 = vmatpush1.msra.mxu0 0.0
        %1398 = vmatprep.subr.mxu0 0.0
        %1399 = vmatpush1.msra.mxu0 0.0
        %1400 = vmatprep.subr.mxu0 0.0
        %1401 = vmatpush1.msra.mxu0 0.0
        %1402 = vmatprep.subr.mxu0 0.0
        %1403 = vmatpush1.msra.mxu0 0.0
        %1404 = vmatprep.subr.mxu0 0.0
        %1405 = vmatpush1.msra.mxu0 0.0
        %1406 = vmatprep.subr.mxu0 0.0
        %1407 = vmatpush1.msra.mxu0 0.0
        %1408 = vmatprep.subr.mxu0 0.0
        %1409 = vmatpush1.msra.mxu0 0.0
        %1410 = vmatprep.subr.mxu0 0.0
        %1411 = vmatpush1.msra.mxu0 0.0
        %1412 = vmatprep.subr.mxu0 0.0
        %1413 = vmatpush1.msra.mxu0 0.0
        %1414 = vmatprep.subr.mxu0 0.0
        %1415 = vmatpush1.msra.mxu0 0.0
        %1416 = vmatprep.subr.mxu0 0.0
        %1417 = vmatpush1.msra.mxu0 0.0
        %1418 = vmatprep.mubr.f32.mxu0 0.0
        %1419 = vmatmul.mubr.f32.gmra.mrb[0].mxu0 %v855
        %v1420 = vpop.f32.mrb[0].mxu0
        %v1421 = vadd.f32 %v592, %v1420
        %v1422 = vpop.f32.mrb[0].mxu0
        %v1423 = vadd.f32 %v596, %v1422
        %1424 = vdwg.mxu0
        %1425 = vmatprep.subr.mxu0 %v278
        %1426 = vmatpush1.msra.mxu0 %v277
        %1427 = vmatprep.subr.mxu0 %v342
        %1428 = vmatpush1.msra.mxu0 %v341
        %1429 = vmatprep.subr.mxu0 %v406
        %1430 = vmatpush1.msra.mxu0 %v405
        %1431 = vmatprep.subr.mxu0 %v470
        %1432 = vmatpush1.msra.mxu0 %v469
        %1433 = vmatprep.subr.mxu0 0.0
        %1434 = vmatpush1.msra.mxu0 0.0
        %1435 = vmatprep.subr.mxu0 0.0
        %1436 = vmatpush1.msra.mxu0 0.0
        %1437 = vmatprep.subr.mxu0 0.0
        %1438 = vmatpush1.msra.mxu0 0.0
        %1439 = vmatprep.subr.mxu0 0.0
        %1440 = vmatpush1.msra.mxu0 0.0
        %1441 = vmatprep.subr.mxu0 0.0
        %1442 = vmatpush1.msra.mxu0 0.0
        %1443 = vmatprep.subr.mxu0 0.0
        %1444 = vmatpush1.msra.mxu0 0.0
        %1445 = vmatprep.subr.mxu0 0.0
        %1446 = vmatpush1.msra.mxu0 0.0
        %1447 = vmatprep.subr.mxu0 0.0
        %1448 = vmatpush1.msra.mxu0 0.0
        %1449 = vmatprep.subr.mxu0 0.0
        %1450 = vmatpush1.msra.mxu0 0.0
        %1451 = vmatprep.subr.mxu0 0.0
        %1452 = vmatpush1.msra.mxu0 0.0
        %1453 = vmatprep.subr.mxu0 0.0
        %1454 = vmatpush1.msra.mxu0 0.0
        %1455 = vmatprep.subr.mxu0 0.0
        %1456 = vmatpush1.msra.mxu0 0.0
        %1457 = vmatprep.subr.mxu0 0.0
        %1458 = vmatpush1.msra.mxu0 0.0
        %1459 = vmatprep.subr.mxu0 0.0
        %1460 = vmatpush1.msra.mxu0 0.0
        %1461 = vmatprep.subr.mxu0 0.0
        %1462 = vmatpush1.msra.mxu0 0.0
        %1463 = vmatprep.subr.mxu0 0.0
        %1464 = vmatpush1.msra.mxu0 0.0
        %1465 = vmatprep.subr.mxu0 0.0
        %1466 = vmatpush1.msra.mxu0 0.0
        %1467 = vmatprep.subr.mxu0 0.0
        %1468 = vmatpush1.msra.mxu0 0.0
        %1469 = vmatprep.subr.mxu0 0.0
        %1470 = vmatpush1.msra.mxu0 0.0
        %1471 = vmatprep.subr.mxu0 0.0
        %1472 = vmatpush1.msra.mxu0 0.0
        %1473 = vmatprep.subr.mxu0 0.0
        %1474 = vmatpush1.msra.mxu0 0.0
        %1475 = vmatprep.subr.mxu0 0.0
        %1476 = vmatpush1.msra.mxu0 0.0
        %1477 = vmatprep.subr.mxu0 0.0
        %1478 = vmatpush1.msra.mxu0 0.0
        %1479 = vmatprep.subr.mxu0 0.0
        %1480 = vmatpush1.msra.mxu0 0.0
        %1481 = vmatprep.subr.mxu0 0.0
        %1482 = vmatpush1.msra.mxu0 0.0
        %1483 = vmatprep.subr.mxu0 0.0
        %1484 = vmatpush1.msra.mxu0 0.0
        %1485 = vmatprep.subr.mxu0 0.0
        %1486 = vmatpush1.msra.mxu0 0.0
        %1487 = vmatprep.subr.mxu0 0.0
        %1488 = vmatpush1.msra.mxu0 0.0
        %1489 = vmatprep.mubr.f32.mxu0 0.0
        %1490 = vmatmul.mubr.f32.gmra.mrb[0].mxu0 %v855
        %v1491 = vpop.f32.mrb[0].mxu0
        %v1492 = vadd.f32 %v600, %v1491
        %v1493 = vpop.f32.mrb[0].mxu0
        %v1494 = vadd.f32 %v604, %v1493
        %1495 = vdwg.mxu0
        %1496 = vmatprep.subr.mxu0 %v280
        %1497 = vmatpush1.msra.mxu0 %v279
        %1498 = vmatprep.subr.mxu0 %v344
        %1499 = vmatpush1.msra.mxu0 %v343
        %1500 = vmatprep.subr.mxu0 %v408
        %1501 = vmatpush1.msra.mxu0 %v407
        %1502 = vmatprep.subr.mxu0 %v472
        %1503 = vmatpush1.msra.mxu0 %v471
        %1504 = vmatprep.subr.mxu0 0.0
        %1505 = vmatpush1.msra.mxu0 0.0
        %1506 = vmatprep.subr.mxu0 0.0
        %1507 = vmatpush1.msra.mxu0 0.0
        %1508 = vmatprep.subr.mxu0 0.0
        %1509 = vmatpush1.msra.mxu0 0.0
        %1510 = vmatprep.subr.mxu0 0.0
        %1511 = vmatpush1.msra.mxu0 0.0
        %1512 = vmatprep.subr.mxu0 0.0
        %1513 = vmatpush1.msra.mxu0 0.0
        %1514 = vmatprep.subr.mxu0 0.0
        %1515 = vmatpush1.msra.mxu0 0.0
        %1516 = vmatprep.subr.mxu0 0.0
        %1517 = vmatpush1.msra.mxu0 0.0
        %1518 = vmatprep.subr.mxu0 0.0
        %1519 = vmatpush1.msra.mxu0 0.0
        %1520 = vmatprep.subr.mxu0 0.0
        %1521 = vmatpush1.msra.mxu0 0.0
        %1522 = vmatprep.subr.mxu0 0.0
        %1523 = vmatpush1.msra.mxu0 0.0
        %1524 = vmatprep.subr.mxu0 0.0
        %1525 = vmatpush1.msra.mxu0 0.0
        %1526 = vmatprep.subr.mxu0 0.0
        %1527 = vmatpush1.msra.mxu0 0.0
        %1528 = vmatprep.subr.mxu0 0.0
        %1529 = vmatpush1.msra.mxu0 0.0
        %1530 = vmatprep.subr.mxu0 0.0
        %1531 = vmatpush1.msra.mxu0 0.0
        %1532 = vmatprep.subr.mxu0 0.0
        %1533 = vmatpush1.msra.mxu0 0.0
        %1534 = vmatprep.subr.mxu0 0.0
        %1535 = vmatpush1.msra.mxu0 0.0
        %1536 = vmatprep.subr.mxu0 0.0
        %1537 = vmatpush1.msra.mxu0 0.0
        %1538 = vmatprep.subr.mxu0 0.0
        %1539 = vmatpush1.msra.mxu0 0.0
        %1540 = vmatprep.subr.mxu0 0.0
        %1541 = vmatpush1.msra.mxu0 0.0
        %1542 = vmatprep.subr.mxu0 0.0
        %1543 = vmatpush1.msra.mxu0 0.0
        %1544 = vmatprep.subr.mxu0 0.0
        %1545 = vmatpush1.msra.mxu0 0.0
        %1546 = vmatprep.subr.mxu0 0.0
        %1547 = vmatpush1.msra.mxu0 0.0
        %1548 = vmatprep.subr.mxu0 0.0
        %1549 = vmatpush1.msra.mxu0 0.0
        %1550 = vmatprep.subr.mxu0 0.0
        %1551 = vmatpush1.msra.mxu0 0.0
        %1552 = vmatprep.subr.mxu0 0.0
        %1553 = vmatpush1.msra.mxu0 0.0
        %1554 = vmatprep.subr.mxu0 0.0
        %1555 = vmatpush1.msra.mxu0 0.0
        %1556 = vmatprep.subr.mxu0 0.0
        %1557 = vmatpush1.msra.mxu0 0.0
        %1558 = vmatprep.subr.mxu0 0.0
        %1559 = vmatpush1.msra.mxu0 0.0
        %1560 = vmatprep.mubr.f32.mxu0 0.0
        %1561 = vmatmul.mubr.f32.gmra.mrb[0].mxu0 %v855
        %v1562 = vpop.f32.mrb[0].mxu0
        %v1563 = vadd.f32 %v608, %v1562
        %v1564 = vpop.f32.mrb[0].mxu0
        %v1565 = vadd.f32 %v612, %v1564
        %1566 = vdwg.mxu0
        %1567 = vmatprep.subr.mxu0 %v282
        %1568 = vmatpush1.msra.mxu0 %v281
        %1569 = vmatprep.subr.mxu0 %v346
        %1570 = vmatpush1.msra.mxu0 %v345
        %1571 = vmatprep.subr.mxu0 %v410
        %1572 = vmatpush1.msra.mxu0 %v409
        %1573 = vmatprep.subr.mxu0 %v474
        %1574 = vmatpush1.msra.mxu0 %v473
        %1575 = vmatprep.subr.mxu0 0.0
        %1576 = vmatpush1.msra.mxu0 0.0
        %1577 = vmatprep.subr.mxu0 0.0
        %1578 = vmatpush1.msra.mxu0 0.0
        %1579 = vmatprep.subr.mxu0 0.0
        %1580 = vmatpush1.msra.mxu0 0.0
        %1581 = vmatprep.subr.mxu0 0.0
        %1582 = vmatpush1.msra.mxu0 0.0
        %1583 = vmatprep.subr.mxu0 0.0
        %1584 = vmatpush1.msra.mxu0 0.0
        %1585 = vmatprep.subr.mxu0 0.0
        %1586 = vmatpush1.msra.mxu0 0.0
        %1587 = vmatprep.subr.mxu0 0.0
        %1588 = vmatpush1.msra.mxu0 0.0
        %1589 = vmatprep.subr.mxu0 0.0
        %1590 = vmatpush1.msra.mxu0 0.0
        %1591 = vmatprep.subr.mxu0 0.0
        %1592 = vmatpush1.msra.mxu0 0.0
        %1593 = vmatprep.subr.mxu0 0.0
        %1594 = vmatpush1.msra.mxu0 0.0
        %1595 = vmatprep.subr.mxu0 0.0
        %1596 = vmatpush1.msra.mxu0 0.0
        %1597 = vmatprep.subr.mxu0 0.0
        %1598 = vmatpush1.msra.mxu0 0.0
        %1599 = vmatprep.subr.mxu0 0.0
        %1600 = vmatpush1.msra.mxu0 0.0
        %1601 = vmatprep.subr.mxu0 0.0
        %1602 = vmatpush1.msra.mxu0 0.0
        %1603 = vmatprep.subr.mxu0 0.0
        %1604 = vmatpush1.msra.mxu0 0.0
        %1605 = vmatprep.subr.mxu0 0.0
        %1606 = vmatpush1.msra.mxu0 0.0
        %1607 = vmatprep.subr.mxu0 0.0
        %1608 = vmatpush1.msra.mxu0 0.0
        %1609 = vmatprep.subr.mxu0 0.0
        %1610 = vmatpush1.msra.mxu0 0.0
        %1611 = vmatprep.subr.mxu0 0.0
        %1612 = vmatpush1.msra.mxu0 0.0
        %1613 = vmatprep.subr.mxu0 0.0
        %1614 = vmatpush1.msra.mxu0 0.0
        %1615 = vmatprep.subr.mxu0 0.0
        %1616 = vmatpush1.msra.mxu0 0.0
        %1617 = vmatprep.subr.mxu0 0.0
        %1618 = vmatpush1.msra.mxu0 0.0
        %1619 = vmatprep.subr.mxu0 0.0
        %1620 = vmatpush1.msra.mxu0 0.0
        %1621 = vmatprep.subr.mxu0 0.0
        %1622 = vmatpush1.msra.mxu0 0.0
        %1623 = vmatprep.subr.mxu0 0.0
        %1624 = vmatpush1.msra.mxu0 0.0
        %1625 = vmatprep.subr.mxu0 0.0
        %1626 = vmatpush1.msra.mxu0 0.0
        %1627 = vmatprep.subr.mxu0 0.0
        %1628 = vmatpush1.msra.mxu0 0.0
        %1629 = vmatprep.subr.mxu0 0.0
        %1630 = vmatpush1.msra.mxu0 0.0
        %1631 = vmatprep.mubr.f32.mxu0 0.0
        %1632 = vmatmul.mubr.f32.gmra.mrb[0].mxu0 %v855
        %v1633 = vpop.f32.mrb[0].mxu0
        %v1634 = vadd.f32 %v616, %v1633
        %v1635 = vpop.f32.mrb[0].mxu0
        %v1636 = vadd.f32 %v620, %v1635
        %1637 = vdwg.mxu0
        %1638 = vmatprep.subr.mxu0 %v284
        %1639 = vmatpush1.msra.mxu0 %v283
        %1640 = vmatprep.subr.mxu0 %v348
        %1641 = vmatpush1.msra.mxu0 %v347
        %1642 = vmatprep.subr.mxu0 %v412
        %1643 = vmatpush1.msra.mxu0 %v411
        %1644 = vmatprep.subr.mxu0 %v476
        %1645 = vmatpush1.msra.mxu0 %v475
        %1646 = vmatprep.subr.mxu0 0.0
        %1647 = vmatpush1.msra.mxu0 0.0
        %1648 = vmatprep.subr.mxu0 0.0
        %1649 = vmatpush1.msra.mxu0 0.0
        %1650 = vmatprep.subr.mxu0 0.0
        %1651 = vmatpush1.msra.mxu0 0.0
        %1652 = vmatprep.subr.mxu0 0.0
        %1653 = vmatpush1.msra.mxu0 0.0
        %1654 = vmatprep.subr.mxu0 0.0
        %1655 = vmatpush1.msra.mxu0 0.0
        %1656 = vmatprep.subr.mxu0 0.0
        %1657 = vmatpush1.msra.mxu0 0.0
        %1658 = vmatprep.subr.mxu0 0.0
        %1659 = vmatpush1.msra.mxu0 0.0
        %1660 = vmatprep.subr.mxu0 0.0
        %1661 = vmatpush1.msra.mxu0 0.0
        %1662 = vmatprep.subr.mxu0 0.0
        %1663 = vmatpush1.msra.mxu0 0.0
        %1664 = vmatprep.subr.mxu0 0.0
        %1665 = vmatpush1.msra.mxu0 0.0
        %1666 = vmatprep.subr.mxu0 0.0
        %1667 = vmatpush1.msra.mxu0 0.0
        %1668 = vmatprep.subr.mxu0 0.0
        %1669 = vmatpush1.msra.mxu0 0.0
        %1670 = vmatprep.subr.mxu0 0.0
        %1671 = vmatpush1.msra.mxu0 0.0
        %1672 = vmatprep.subr.mxu0 0.0
        %1673 = vmatpush1.msra.mxu0 0.0
        %1674 = vmatprep.subr.mxu0 0.0
        %1675 = vmatpush1.msra.mxu0 0.0
        %1676 = vmatprep.subr.mxu0 0.0
        %1677 = vmatpush1.msra.mxu0 0.0
        %1678 = vmatprep.subr.mxu0 0.0
        %1679 = vmatpush1.msra.mxu0 0.0
        %1680 = vmatprep.subr.mxu0 0.0
        %1681 = vmatpush1.msra.mxu0 0.0
        %1682 = vmatprep.subr.mxu0 0.0
        %1683 = vmatpush1.msra.mxu0 0.0
        %1684 = vmatprep.subr.mxu0 0.0
        %1685 = vmatpush1.msra.mxu0 0.0
        %1686 = vmatprep.subr.mxu0 0.0
        %1687 = vmatpush1.msra.mxu0 0.0
        %1688 = vmatprep.subr.mxu0 0.0
        %1689 = vmatpush1.msra.mxu0 0.0
        %1690 = vmatprep.subr.mxu0 0.0
        %1691 = vmatpush1.msra.mxu0 0.0
        %1692 = vmatprep.subr.mxu0 0.0
        %1693 = vmatpush1.msra.mxu0 0.0
        %1694 = vmatprep.subr.mxu0 0.0
        %1695 = vmatpush1.msra.mxu0 0.0
        %1696 = vmatprep.subr.mxu0 0.0
        %1697 = vmatpush1.msra.mxu0 0.0
        %1698 = vmatprep.subr.mxu0 0.0
        %1699 = vmatpush1.msra.mxu0 0.0
        %1700 = vmatprep.subr.mxu0 0.0
        %1701 = vmatpush1.msra.mxu0 0.0
        %1702 = vmatprep.mubr.f32.mxu0 0.0
        %1703 = vmatmul.mubr.f32.gmra.mrb[0].mxu0 %v855
        %v1704 = vpop.f32.mrb[0].mxu0
        %v1705 = vadd.f32 %v624, %v1704
        %v1706 = vpop.f32.mrb[0].mxu0
        %v1707 = vadd.f32 %v628, %v1706
        %1708 = vdwg.mxu0
        %1709 = vmatprep.subr.mxu0 %v286
        %1710 = vmatpush1.msra.mxu0 %v285
        %1711 = vmatprep.subr.mxu0 %v350
        %1712 = vmatpush1.msra.mxu0 %v349
        %1713 = vmatprep.subr.mxu0 %v414
        %1714 = vmatpush1.msra.mxu0 %v413
        %1715 = vmatprep.subr.mxu0 %v478
        %1716 = vmatpush1.msra.mxu0 %v477
        %1717 = vmatprep.subr.mxu0 0.0
        %1718 = vmatpush1.msra.mxu0 0.0
        %1719 = vmatprep.subr.mxu0 0.0
        %1720 = vmatpush1.msra.mxu0 0.0
        %1721 = vmatprep.subr.mxu0 0.0
        %1722 = vmatpush1.msra.mxu0 0.0
        %1723 = vmatprep.subr.mxu0 0.0
        %1724 = vmatpush1.msra.mxu0 0.0
        %1725 = vmatprep.subr.mxu0 0.0
        %1726 = vmatpush1.msra.mxu0 0.0
        %1727 = vmatprep.subr.mxu0 0.0
        %1728 = vmatpush1.msra.mxu0 0.0
        %1729 = vmatprep.subr.mxu0 0.0
        %1730 = vmatpush1.msra.mxu0 0.0
        %1731 = vmatprep.subr.mxu0 0.0
        %1732 = vmatpush1.msra.mxu0 0.0
        %1733 = vmatprep.subr.mxu0 0.0
        %1734 = vmatpush1.msra.mxu0 0.0
        %1735 = vmatprep.subr.mxu0 0.0
        %1736 = vmatpush1.msra.mxu0 0.0
        %1737 = vmatprep.subr.mxu0 0.0
        %1738 = vmatpush1.msra.mxu0 0.0
        %1739 = vmatprep.subr.mxu0 0.0
        %1740 = vmatpush1.msra.mxu0 0.0
        %1741 = vmatprep.subr.mxu0 0.0
        %1742 = vmatpush1.msra.mxu0 0.0
        %1743 = vmatprep.subr.mxu0 0.0
        %1744 = vmatpush1.msra.mxu0 0.0
        %1745 = vmatprep.subr.mxu0 0.0
        %1746 = vmatpush1.msra.mxu0 0.0
        %1747 = vmatprep.subr.mxu0 0.0
        %1748 = vmatpush1.msra.mxu0 0.0
        %1749 = vmatprep.subr.mxu0 0.0
        %1750 = vmatpush1.msra.mxu0 0.0
        %1751 = vmatprep.subr.mxu0 0.0
        %1752 = vmatpush1.msra.mxu0 0.0
        %1753 = vmatprep.subr.mxu0 0.0
        %1754 = vmatpush1.msra.mxu0 0.0
        %1755 = vmatprep.subr.mxu0 0.0
        %1756 = vmatpush1.msra.mxu0 0.0
        %1757 = vmatprep.subr.mxu0 0.0
        %1758 = vmatpush1.msra.mxu0 0.0
        %1759 = vmatprep.subr.mxu0 0.0
        %1760 = vmatpush1.msra.mxu0 0.0
        %1761 = vmatprep.subr.mxu0 0.0
        %1762 = vmatpush1.msra.mxu0 0.0
        %1763 = vmatprep.subr.mxu0 0.0
        %1764 = vmatpush1.msra.mxu0 0.0
        %1765 = vmatprep.subr.mxu0 0.0
        %1766 = vmatpush1.msra.mxu0 0.0
        %1767 = vmatprep.subr.mxu0 0.0
        %1768 = vmatpush1.msra.mxu0 0.0
        %1769 = vmatprep.subr.mxu0 0.0
        %1770 = vmatpush1.msra.mxu0 0.0
        %1771 = vmatprep.subr.mxu0 0.0
        %1772 = vmatpush1.msra.mxu0 0.0
        %1773 = vmatprep.mubr.f32.mxu0 0.0
        %1774 = vmatmul.mubr.f32.gmra.mrb[0].mxu0 %v855
        %v1775 = vpop.f32.mrb[0].mxu0
        %v1776 = vadd.f32 %v632, %v1775
        %v1777 = vpop.f32.mrb[0].mxu0
        %v1778 = vadd.f32 %v636, %v1777
        %1779 = vdwg.mxu0
        %1780 = vmatprep.subr.mxu0 %v288
        %1781 = vmatpush1.msra.mxu0 %v287
        %1782 = vmatprep.subr.mxu0 %v352
        %1783 = vmatpush1.msra.mxu0 %v351
        %1784 = vmatprep.subr.mxu0 %v416
        %1785 = vmatpush1.msra.mxu0 %v415
        %1786 = vmatprep.subr.mxu0 %v480
        %1787 = vmatpush1.msra.mxu0 %v479
        %1788 = vmatprep.subr.mxu0 0.0
        %1789 = vmatpush1.msra.mxu0 0.0
        %1790 = vmatprep.subr.mxu0 0.0
        %1791 = vmatpush1.msra.mxu0 0.0
        %1792 = vmatprep.subr.mxu0 0.0
        %1793 = vmatpush1.msra.mxu0 0.0
        %1794 = vmatprep.subr.mxu0 0.0
        %1795 = vmatpush1.msra.mxu0 0.0
        %1796 = vmatprep.subr.mxu0 0.0
        %1797 = vmatpush1.msra.mxu0 0.0
        %1798 = vmatprep.subr.mxu0 0.0
        %1799 = vmatpush1.msra.mxu0 0.0
        %1800 = vmatprep.subr.mxu0 0.0
        %1801 = vmatpush1.msra.mxu0 0.0
        %1802 = vmatprep.subr.mxu0 0.0
        %1803 = vmatpush1.msra.mxu0 0.0
        %1804 = vmatprep.subr.mxu0 0.0
        %1805 = vmatpush1.msra.mxu0 0.0
        %1806 = vmatprep.subr.mxu0 0.0
        %1807 = vmatpush1.msra.mxu0 0.0
        %1808 = vmatprep.subr.mxu0 0.0
        %1809 = vmatpush1.msra.mxu0 0.0
        %1810 = vmatprep.subr.mxu0 0.0
        %1811 = vmatpush1.msra.mxu0 0.0
        %1812 = vmatprep.subr.mxu0 0.0
        %1813 = vmatpush1.msra.mxu0 0.0
        %1814 = vmatprep.subr.mxu0 0.0
        %1815 = vmatpush1.msra.mxu0 0.0
        %1816 = vmatprep.subr.mxu0 0.0
        %1817 = vmatpush1.msra.mxu0 0.0
        %1818 = vmatprep.subr.mxu0 0.0
        %1819 = vmatpush1.msra.mxu0 0.0
        %1820 = vmatprep.subr.mxu0 0.0
        %1821 = vmatpush1.msra.mxu0 0.0
        %1822 = vmatprep.subr.mxu0 0.0
        %1823 = vmatpush1.msra.mxu0 0.0
        %1824 = vmatprep.subr.mxu0 0.0
        %1825 = vmatpush1.msra.mxu0 0.0
        %1826 = vmatprep.subr.mxu0 0.0
        %1827 = vmatpush1.msra.mxu0 0.0
        %1828 = vmatprep.subr.mxu0 0.0
        %1829 = vmatpush1.msra.mxu0 0.0
        %1830 = vmatprep.subr.mxu0 0.0
        %1831 = vmatpush1.msra.mxu0 0.0
        %1832 = vmatprep.subr.mxu0 0.0
        %1833 = vmatpush1.msra.mxu0 0.0
        %1834 = vmatprep.subr.mxu0 0.0
        %1835 = vmatpush1.msra.mxu0 0.0
        %1836 = vmatprep.subr.mxu0 0.0
        %1837 = vmatpush1.msra.mxu0 0.0
        %1838 = vmatprep.subr.mxu0 0.0
        %1839 = vmatpush1.msra.mxu0 0.0
        %1840 = vmatprep.subr.mxu0 0.0
        %1841 = vmatpush1.msra.mxu0 0.0
        %1842 = vmatprep.subr.mxu0 0.0
        %1843 = vmatpush1.msra.mxu0 0.0
        %1844 = vmatprep.mubr.f32.mxu0 0.0
        %1845 = vmatmul.mubr.f32.gmra.mrb[0].mxu0 %v855
        %v1846 = vpop.f32.mrb[0].mxu0
        %v1847 = vadd.f32 %v640, %v1846
        %v1848 = vpop.f32.mrb[0].mxu0
        %v1849 = vadd.f32 %v644, %v1848
        %1850 = vdwg.mxu0
        %1851 = vmatprep.subr.mxu0 %v290
        %1852 = vmatpush1.msra.mxu0 %v289
        %1853 = vmatprep.subr.mxu0 %v354
        %1854 = vmatpush1.msra.mxu0 %v353
        %1855 = vmatprep.subr.mxu0 %v418
        %1856 = vmatpush1.msra.mxu0 %v417
        %1857 = vmatprep.subr.mxu0 %v482
        %1858 = vmatpush1.msra.mxu0 %v481
        %1859 = vmatprep.subr.mxu0 0.0
        %1860 = vmatpush1.msra.mxu0 0.0
        %1861 = vmatprep.subr.mxu0 0.0
        %1862 = vmatpush1.msra.mxu0 0.0
        %1863 = vmatprep.subr.mxu0 0.0
        %1864 = vmatpush1.msra.mxu0 0.0
        %1865 = vmatprep.subr.mxu0 0.0
        %1866 = vmatpush1.msra.mxu0 0.0
        %1867 = vmatprep.subr.mxu0 0.0
        %1868 = vmatpush1.msra.mxu0 0.0
        %1869 = vmatprep.subr.mxu0 0.0
        %1870 = vmatpush1.msra.mxu0 0.0
        %1871 = vmatprep.subr.mxu0 0.0
        %1872 = vmatpush1.msra.mxu0 0.0
        %1873 = vmatprep.subr.mxu0 0.0
        %1874 = vmatpush1.msra.mxu0 0.0
        %1875 = vmatprep.subr.mxu0 0.0
        %1876 = vmatpush1.msra.mxu0 0.0
        %1877 = vmatprep.subr.mxu0 0.0
        %1878 = vmatpush1.msra.mxu0 0.0
        %1879 = vmatprep.subr.mxu0 0.0
        %1880 = vmatpush1.msra.mxu0 0.0
        %1881 = vmatprep.subr.mxu0 0.0
        %1882 = vmatpush1.msra.mxu0 0.0
        %1883 = vmatprep.subr.mxu0 0.0
        %1884 = vmatpush1.msra.mxu0 0.0
        %1885 = vmatprep.subr.mxu0 0.0
        %1886 = vmatpush1.msra.mxu0 0.0
        %1887 = vmatprep.subr.mxu0 0.0
        %1888 = vmatpush1.msra.mxu0 0.0
        %1889 = vmatprep.subr.mxu0 0.0
        %1890 = vmatpush1.msra.mxu0 0.0
        %1891 = vmatprep.subr.mxu0 0.0
        %1892 = vmatpush1.msra.mxu0 0.0
        %1893 = vmatprep.subr.mxu0 0.0
        %1894 = vmatpush1.msra.mxu0 0.0
        %1895 = vmatprep.subr.mxu0 0.0
        %1896 = vmatpush1.msra.mxu0 0.0
        %1897 = vmatprep.subr.mxu0 0.0
        %1898 = vmatpush1.msra.mxu0 0.0
        %1899 = vmatprep.subr.mxu0 0.0
        %1900 = vmatpush1.msra.mxu0 0.0
        %1901 = vmatprep.subr.mxu0 0.0
        %1902 = vmatpush1.msra.mxu0 0.0
        %1903 = vmatprep.subr.mxu0 0.0
        %1904 = vmatpush1.msra.mxu0 0.0
        %1905 = vmatprep.subr.mxu0 0.0
        %1906 = vmatpush1.msra.mxu0 0.0
        %1907 = vmatprep.subr.mxu0 0.0
        %1908 = vmatpush1.msra.mxu0 0.0
        %1909 = vmatprep.subr.mxu0 0.0
        %1910 = vmatpush1.msra.mxu0 0.0
        %1911 = vmatprep.subr.mxu0 0.0
        %1912 = vmatpush1.msra.mxu0 0.0
        %1913 = vmatprep.subr.mxu0 0.0
        %1914 = vmatpush1.msra.mxu0 0.0
        %1915 = vmatprep.mubr.f32.mxu0 0.0
        %1916 = vmatmul.mubr.f32.gmra.mrb[0].mxu0 %v855
        %v1917 = vpop.f32.mrb[0].mxu0
        %v1918 = vadd.f32 %v648, %v1917
        %v1919 = vpop.f32.mrb[0].mxu0
        %v1920 = vadd.f32 %v652, %v1919
        %1921 = vdwg.mxu0
        %1922 = vmatprep.subr.mxu0 %v292
        %1923 = vmatpush1.msra.mxu0 %v291
        %1924 = vmatprep.subr.mxu0 %v356
        %1925 = vmatpush1.msra.mxu0 %v355
        %1926 = vmatprep.subr.mxu0 %v420
        %1927 = vmatpush1.msra.mxu0 %v419
        %1928 = vmatprep.subr.mxu0 %v484
        %1929 = vmatpush1.msra.mxu0 %v483
        %1930 = vmatprep.subr.mxu0 0.0
        %1931 = vmatpush1.msra.mxu0 0.0
        %1932 = vmatprep.subr.mxu0 0.0
        %1933 = vmatpush1.msra.mxu0 0.0
        %1934 = vmatprep.subr.mxu0 0.0
        %1935 = vmatpush1.msra.mxu0 0.0
        %1936 = vmatprep.subr.mxu0 0.0
        %1937 = vmatpush1.msra.mxu0 0.0
        %1938 = vmatprep.subr.mxu0 0.0
        %1939 = vmatpush1.msra.mxu0 0.0
        %1940 = vmatprep.subr.mxu0 0.0
        %1941 = vmatpush1.msra.mxu0 0.0
        %1942 = vmatprep.subr.mxu0 0.0
        %1943 = vmatpush1.msra.mxu0 0.0
        %1944 = vmatprep.subr.mxu0 0.0
        %1945 = vmatpush1.msra.mxu0 0.0
        %1946 = vmatprep.subr.mxu0 0.0
        %1947 = vmatpush1.msra.mxu0 0.0
        %1948 = vmatprep.subr.mxu0 0.0
        %1949 = vmatpush1.msra.mxu0 0.0
        %1950 = vmatprep.subr.mxu0 0.0
        %1951 = vmatpush1.msra.mxu0 0.0
        %1952 = vmatprep.subr.mxu0 0.0
        %1953 = vmatpush1.msra.mxu0 0.0
        %1954 = vmatprep.subr.mxu0 0.0
        %1955 = vmatpush1.msra.mxu0 0.0
        %1956 = vmatprep.subr.mxu0 0.0
        %1957 = vmatpush1.msra.mxu0 0.0
        %1958 = vmatprep.subr.mxu0 0.0
        %1959 = vmatpush1.msra.mxu0 0.0
        %1960 = vmatprep.subr.mxu0 0.0
        %1961 = vmatpush1.msra.mxu0 0.0
        %1962 = vmatprep.subr.mxu0 0.0
        %1963 = vmatpush1.msra.mxu0 0.0
        %1964 = vmatprep.subr.mxu0 0.0
        %1965 = vmatpush1.msra.mxu0 0.0
        %1966 = vmatprep.subr.mxu0 0.0
        %1967 = vmatpush1.msra.mxu0 0.0
        %1968 = vmatprep.subr.mxu0 0.0
        %1969 = vmatpush1.msra.mxu0 0.0
        %1970 = vmatprep.subr.mxu0 0.0
        %1971 = vmatpush1.msra.mxu0 0.0
        %1972 = vmatprep.subr.mxu0 0.0
        %1973 = vmatpush1.msra.mxu0 0.0
        %1974 = vmatprep.subr.mxu0 0.0
        %1975 = vmatpush1.msra.mxu0 0.0
        %1976 = vmatprep.subr.mxu0 0.0
        %1977 = vmatpush1.msra.mxu0 0.0
        %1978 = vmatprep.subr.mxu0 0.0
        %1979 = vmatpush1.msra.mxu0 0.0
        %1980 = vmatprep.subr.mxu0 0.0
        %1981 = vmatpush1.msra.mxu0 0.0
        %1982 = vmatprep.subr.mxu0 0.0
        %1983 = vmatpush1.msra.mxu0 0.0
        %1984 = vmatprep.subr.mxu0 0.0
        %1985 = vmatpush1.msra.mxu0 0.0
        %1986 = vmatprep.mubr.f32.mxu0 0.0
        %1987 = vmatmul.mubr.f32.gmra.mrb[0].mxu0 %v855
        %v1988 = vpop.f32.mrb[0].mxu0
        %v1989 = vadd.f32 %v656, %v1988
        %v1990 = vpop.f32.mrb[0].mxu0
        %v1991 = vadd.f32 %v660, %v1990
        %1992 = vdwg.mxu0
        %1993 = vmatprep.subr.mxu0 %v294
        %1994 = vmatpush1.msra.mxu0 %v293
        %1995 = vmatprep.subr.mxu0 %v358
        %1996 = vmatpush1.msra.mxu0 %v357
        %1997 = vmatprep.subr.mxu0 %v422
        %1998 = vmatpush1.msra.mxu0 %v421
        %1999 = vmatprep.subr.mxu0 %v486
        %2000 = vmatpush1.msra.mxu0 %v485
        %2001 = vmatprep.subr.mxu0 0.0
        %2002 = vmatpush1.msra.mxu0 0.0
        %2003 = vmatprep.subr.mxu0 0.0
        %2004 = vmatpush1.msra.mxu0 0.0
        %2005 = vmatprep.subr.mxu0 0.0
        %2006 = vmatpush1.msra.mxu0 0.0
        %2007 = vmatprep.subr.mxu0 0.0
        %2008 = vmatpush1.msra.mxu0 0.0
        %2009 = vmatprep.subr.mxu0 0.0
        %2010 = vmatpush1.msra.mxu0 0.0
        %2011 = vmatprep.subr.mxu0 0.0
        %2012 = vmatpush1.msra.mxu0 0.0
        %2013 = vmatprep.subr.mxu0 0.0
        %2014 = vmatpush1.msra.mxu0 0.0
        %2015 = vmatprep.subr.mxu0 0.0
        %2016 = vmatpush1.msra.mxu0 0.0
        %2017 = vmatprep.subr.mxu0 0.0
        %2018 = vmatpush1.msra.mxu0 0.0
        %2019 = vmatprep.subr.mxu0 0.0
        %2020 = vmatpush1.msra.mxu0 0.0
        %2021 = vmatprep.subr.mxu0 0.0
        %2022 = vmatpush1.msra.mxu0 0.0
        %2023 = vmatprep.subr.mxu0 0.0
        %2024 = vmatpush1.msra.mxu0 0.0
        %2025 = vmatprep.subr.mxu0 0.0
        %2026 = vmatpush1.msra.mxu0 0.0
        %2027 = vmatprep.subr.mxu0 0.0
        %2028 = vmatpush1.msra.mxu0 0.0
        %2029 = vmatprep.subr.mxu0 0.0
        %2030 = vmatpush1.msra.mxu0 0.0
        %2031 = vmatprep.subr.mxu0 0.0
        %2032 = vmatpush1.msra.mxu0 0.0
        %2033 = vmatprep.subr.mxu0 0.0
        %2034 = vmatpush1.msra.mxu0 0.0
        %2035 = vmatprep.subr.mxu0 0.0
        %2036 = vmatpush1.msra.mxu0 0.0
        %2037 = vmatprep.subr.mxu0 0.0
        %2038 = vmatpush1.msra.mxu0 0.0
        %2039 = vmatprep.subr.mxu0 0.0
        %2040 = vmatpush1.msra.mxu0 0.0
        %2041 = vmatprep.subr.mxu0 0.0
        %2042 = vmatpush1.msra.mxu0 0.0
        %2043 = vmatprep.subr.mxu0 0.0
        %2044 = vmatpush1.msra.mxu0 0.0
        %2045 = vmatprep.subr.mxu0 0.0
        %2046 = vmatpush1.msra.mxu0 0.0
        %2047 = vmatprep.subr.mxu0 0.0
        %2048 = vmatpush1.msra.mxu0 0.0
        %2049 = vmatprep.subr.mxu0 0.0
        %2050 = vmatpush1.msra.mxu0 0.0
        %2051 = vmatprep.subr.mxu0 0.0
        %2052 = vmatpush1.msra.mxu0 0.0
        %2053 = vmatprep.subr.mxu0 0.0
        %2054 = vmatpush1.msra.mxu0 0.0
        %2055 = vmatprep.subr.mxu0 0.0
        %2056 = vmatpush1.msra.mxu0 0.0
        %2057 = vmatprep.mubr.f32.mxu0 0.0
        %2058 = vmatmul.mubr.f32.gmra.mrb[0].mxu0 %v855
        %v2059 = vpop.f32.mrb[0].mxu0
        %v2060 = vadd.f32 %v664, %v2059
        %v2061 = vpop.f32.mrb[0].mxu0
        %v2062 = vadd.f32 %v668, %v2061
        %2063 = vdwg.mxu0
        %2064 = vmatprep.subr.mxu0 %v296
        %2065 = vmatpush1.msra.mxu0 %v295
        %2066 = vmatprep.subr.mxu0 %v360
        %2067 = vmatpush1.msra.mxu0 %v359
        %2068 = vmatprep.subr.mxu0 %v424
        %2069 = vmatpush1.msra.mxu0 %v423
        %2070 = vmatprep.subr.mxu0 %v488
        %2071 = vmatpush1.msra.mxu0 %v487
        %2072 = vmatprep.subr.mxu0 0.0
        %2073 = vmatpush1.msra.mxu0 0.0
        %2074 = vmatprep.subr.mxu0 0.0
        %2075 = vmatpush1.msra.mxu0 0.0
        %2076 = vmatprep.subr.mxu0 0.0
        %2077 = vmatpush1.msra.mxu0 0.0
        %2078 = vmatprep.subr.mxu0 0.0
        %2079 = vmatpush1.msra.mxu0 0.0
        %2080 = vmatprep.subr.mxu0 0.0
        %2081 = vmatpush1.msra.mxu0 0.0
        %2082 = vmatprep.subr.mxu0 0.0
        %2083 = vmatpush1.msra.mxu0 0.0
        %2084 = vmatprep.subr.mxu0 0.0
        %2085 = vmatpush1.msra.mxu0 0.0
        %2086 = vmatprep.subr.mxu0 0.0
        %2087 = vmatpush1.msra.mxu0 0.0
        %2088 = vmatprep.subr.mxu0 0.0
        %2089 = vmatpush1.msra.mxu0 0.0
        %2090 = vmatprep.subr.mxu0 0.0
        %2091 = vmatpush1.msra.mxu0 0.0
        %2092 = vmatprep.subr.mxu0 0.0
        %2093 = vmatpush1.msra.mxu0 0.0
        %2094 = vmatprep.subr.mxu0 0.0
        %2095 = vmatpush1.msra.mxu0 0.0
        %2096 = vmatprep.subr.mxu0 0.0
        %2097 = vmatpush1.msra.mxu0 0.0
        %2098 = vmatprep.subr.mxu0 0.0
        %2099 = vmatpush1.msra.mxu0 0.0
        %2100 = vmatprep.subr.mxu0 0.0
        %2101 = vmatpush1.msra.mxu0 0.0
        %2102 = vmatprep.subr.mxu0 0.0
        %2103 = vmatpush1.msra.mxu0 0.0
        %2104 = vmatprep.subr.mxu0 0.0
        %2105 = vmatpush1.msra.mxu0 0.0
        %2106 = vmatprep.subr.mxu0 0.0
        %2107 = vmatpush1.msra.mxu0 0.0
        %2108 = vmatprep.subr.mxu0 0.0
        %2109 = vmatpush1.msra.mxu0 0.0
        %2110 = vmatprep.subr.mxu0 0.0
        %2111 = vmatpush1.msra.mxu0 0.0
        %2112 = vmatprep.subr.mxu0 0.0
        %2113 = vmatpush1.msra.mxu0 0.0
        %2114 = vmatprep.subr.mxu0 0.0
        %2115 = vmatpush1.msra.mxu0 0.0
        %2116 = vmatprep.subr.mxu0 0.0
        %2117 = vmatpush1.msra.mxu0 0.0
        %2118 = vmatprep.subr.mxu0 0.0
        %2119 = vmatpush1.msra.mxu0 0.0
        %2120 = vmatprep.subr.mxu0 0.0
        %2121 = vmatpush1.msra.mxu0 0.0
        %2122 = vmatprep.subr.mxu0 0.0
        %2123 = vmatpush1.msra.mxu0 0.0
        %2124 = vmatprep.subr.mxu0 0.0
        %2125 = vmatpush1.msra.mxu0 0.0
        %2126 = vmatprep.subr.mxu0 0.0
        %2127 = vmatpush1.msra.mxu0 0.0
        %2128 = vmatprep.mubr.f32.mxu0 0.0
        %2129 = vmatmul.mubr.f32.gmra.mrb[0].mxu0 %v855
        %v2130 = vpop.f32.mrb[0].mxu0
        %v2131 = vadd.f32 %v672, %v2130
        %v2132 = vpop.f32.mrb[0].mxu0
        %v2133 = vadd.f32 %v676, %v2132
        %2134 = vdwg.mxu0
        %2135 = vmatprep.subr.mxu0 %v298
        %2136 = vmatpush1.msra.mxu0 %v297
        %2137 = vmatprep.subr.mxu0 %v362
        %2138 = vmatpush1.msra.mxu0 %v361
        %2139 = vmatprep.subr.mxu0 %v426
        %2140 = vmatpush1.msra.mxu0 %v425
        %2141 = vmatprep.subr.mxu0 %v490
        %2142 = vmatpush1.msra.mxu0 %v489
        %2143 = vmatprep.subr.mxu0 0.0
        %2144 = vmatpush1.msra.mxu0 0.0
        %2145 = vmatprep.subr.mxu0 0.0
        %2146 = vmatpush1.msra.mxu0 0.0
        %2147 = vmatprep.subr.mxu0 0.0
        %2148 = vmatpush1.msra.mxu0 0.0
        %2149 = vmatprep.subr.mxu0 0.0
        %2150 = vmatpush1.msra.mxu0 0.0
        %2151 = vmatprep.subr.mxu0 0.0
        %2152 = vmatpush1.msra.mxu0 0.0
        %2153 = vmatprep.subr.mxu0 0.0
        %2154 = vmatpush1.msra.mxu0 0.0
        %2155 = vmatprep.subr.mxu0 0.0
        %2156 = vmatpush1.msra.mxu0 0.0
        %2157 = vmatprep.subr.mxu0 0.0
        %2158 = vmatpush1.msra.mxu0 0.0
        %2159 = vmatprep.subr.mxu0 0.0
        %2160 = vmatpush1.msra.mxu0 0.0
        %2161 = vmatprep.subr.mxu0 0.0
        %2162 = vmatpush1.msra.mxu0 0.0
        %2163 = vmatprep.subr.mxu0 0.0
        %2164 = vmatpush1.msra.mxu0 0.0
        %2165 = vmatprep.subr.mxu0 0.0
        %2166 = vmatpush1.msra.mxu0 0.0
        %2167 = vmatprep.subr.mxu0 0.0
        %2168 = vmatpush1.msra.mxu0 0.0
        %2169 = vmatprep.subr.mxu0 0.0
        %2170 = vmatpush1.msra.mxu0 0.0
        %2171 = vmatprep.subr.mxu0 0.0
        %2172 = vmatpush1.msra.mxu0 0.0
        %2173 = vmatprep.subr.mxu0 0.0
        %2174 = vmatpush1.msra.mxu0 0.0
        %2175 = vmatprep.subr.mxu0 0.0
        %2176 = vmatpush1.msra.mxu0 0.0
        %2177 = vmatprep.subr.mxu0 0.0
        %2178 = vmatpush1.msra.mxu0 0.0
        %2179 = vmatprep.subr.mxu0 0.0
        %2180 = vmatpush1.msra.mxu0 0.0
        %2181 = vmatprep.subr.mxu0 0.0
        %2182 = vmatpush1.msra.mxu0 0.0
        %2183 = vmatprep.subr.mxu0 0.0
        %2184 = vmatpush1.msra.mxu0 0.0
        %2185 = vmatprep.subr.mxu0 0.0
        %2186 = vmatpush1.msra.mxu0 0.0
        %2187 = vmatprep.subr.mxu0 0.0
        %2188 = vmatpush1.msra.mxu0 0.0
        %2189 = vmatprep.subr.mxu0 0.0
        %2190 = vmatpush1.msra.mxu0 0.0
        %2191 = vmatprep.subr.mxu0 0.0
        %2192 = vmatpush1.msra.mxu0 0.0
        %2193 = vmatprep.subr.mxu0 0.0
        %2194 = vmatpush1.msra.mxu0 0.0
        %2195 = vmatprep.subr.mxu0 0.0
        %2196 = vmatpush1.msra.mxu0 0.0
        %2197 = vmatprep.subr.mxu0 0.0
        %2198 = vmatpush1.msra.mxu0 0.0
        %2199 = vmatprep.mubr.f32.mxu0 0.0
        %2200 = vmatmul.mubr.f32.gmra.mrb[0].mxu0 %v855
        %v2201 = vpop.f32.mrb[0].mxu0
        %v2202 = vadd.f32 %v680, %v2201
        %v2203 = vpop.f32.mrb[0].mxu0
        %v2204 = vadd.f32 %v684, %v2203
        %2205 = vdwg.mxu0
        %2206 = vmatprep.subr.mxu0 %v300
        %2207 = vmatpush1.msra.mxu0 %v299
        %2208 = vmatprep.subr.mxu0 %v364
        %2209 = vmatpush1.msra.mxu0 %v363
        %2210 = vmatprep.subr.mxu0 %v428
        %2211 = vmatpush1.msra.mxu0 %v427
        %2212 = vmatprep.subr.mxu0 %v492
        %2213 = vmatpush1.msra.mxu0 %v491
        %2214 = vmatprep.subr.mxu0 0.0
        %2215 = vmatpush1.msra.mxu0 0.0
        %2216 = vmatprep.subr.mxu0 0.0
        %2217 = vmatpush1.msra.mxu0 0.0
        %2218 = vmatprep.subr.mxu0 0.0
        %2219 = vmatpush1.msra.mxu0 0.0
        %2220 = vmatprep.subr.mxu0 0.0
        %2221 = vmatpush1.msra.mxu0 0.0
        %2222 = vmatprep.subr.mxu0 0.0
        %2223 = vmatpush1.msra.mxu0 0.0
        %2224 = vmatprep.subr.mxu0 0.0
        %2225 = vmatpush1.msra.mxu0 0.0
        %2226 = vmatprep.subr.mxu0 0.0
        %2227 = vmatpush1.msra.mxu0 0.0
        %2228 = vmatprep.subr.mxu0 0.0
        %2229 = vmatpush1.msra.mxu0 0.0
        %2230 = vmatprep.subr.mxu0 0.0
        %2231 = vmatpush1.msra.mxu0 0.0
        %2232 = vmatprep.subr.mxu0 0.0
        %2233 = vmatpush1.msra.mxu0 0.0
        %2234 = vmatprep.subr.mxu0 0.0
        %2235 = vmatpush1.msra.mxu0 0.0
        %2236 = vmatprep.subr.mxu0 0.0
        %2237 = vmatpush1.msra.mxu0 0.0
        %2238 = vmatprep.subr.mxu0 0.0
        %2239 = vmatpush1.msra.mxu0 0.0
        %2240 = vmatprep.subr.mxu0 0.0
        %2241 = vmatpush1.msra.mxu0 0.0
        %2242 = vmatprep.subr.mxu0 0.0
        %2243 = vmatpush1.msra.mxu0 0.0
        %2244 = vmatprep.subr.mxu0 0.0
        %2245 = vmatpush1.msra.mxu0 0.0
        %2246 = vmatprep.subr.mxu0 0.0
        %2247 = vmatpush1.msra.mxu0 0.0
        %2248 = vmatprep.subr.mxu0 0.0
        %2249 = vmatpush1.msra.mxu0 0.0
        %2250 = vmatprep.subr.mxu0 0.0
        %2251 = vmatpush1.msra.mxu0 0.0
        %2252 = vmatprep.subr.mxu0 0.0
        %2253 = vmatpush1.msra.mxu0 0.0
        %2254 = vmatprep.subr.mxu0 0.0
        %2255 = vmatpush1.msra.mxu0 0.0
        %2256 = vmatprep.subr.mxu0 0.0
        %2257 = vmatpush1.msra.mxu0 0.0
        %2258 = vmatprep.subr.mxu0 0.0
        %2259 = vmatpush1.msra.mxu0 0.0
        %2260 = vmatprep.subr.mxu0 0.0
        %2261 = vmatpush1.msra.mxu0 0.0
        %2262 = vmatprep.subr.mxu0 0.0
        %2263 = vmatpush1.msra.mxu0 0.0
        %2264 = vmatprep.subr.mxu0 0.0
        %2265 = vmatpush1.msra.mxu0 0.0
        %2266 = vmatprep.subr.mxu0 0.0
        %2267 = vmatpush1.msra.mxu0 0.0
        %2268 = vmatprep.subr.mxu0 0.0
        %2269 = vmatpush1.msra.mxu0 0.0
        %2270 = vmatprep.mubr.f32.mxu0 0.0
        %2271 = vmatmul.mubr.f32.gmra.mrb[0].mxu0 %v855
        %v2272 = vpop.f32.mrb[0].mxu0
        %v2273 = vadd.f32 %v688, %v2272
        %v2274 = vpop.f32.mrb[0].mxu0
        %v2275 = vadd.f32 %v692, %v2274
        %2276 = vdwg.mxu0
        %2277 = vmatprep.subr.mxu0 %v302
        %2278 = vmatpush1.msra.mxu0 %v301
        %2279 = vmatprep.subr.mxu0 %v366
        %2280 = vmatpush1.msra.mxu0 %v365
        %2281 = vmatprep.subr.mxu0 %v430
        %2282 = vmatpush1.msra.mxu0 %v429
        %2283 = vmatprep.subr.mxu0 %v494
        %2284 = vmatpush1.msra.mxu0 %v493
        %2285 = vmatprep.subr.mxu0 0.0
        %2286 = vmatpush1.msra.mxu0 0.0
        %2287 = vmatprep.subr.mxu0 0.0
        %2288 = vmatpush1.msra.mxu0 0.0
        %2289 = vmatprep.subr.mxu0 0.0
        %2290 = vmatpush1.msra.mxu0 0.0
        %2291 = vmatprep.subr.mxu0 0.0
        %2292 = vmatpush1.msra.mxu0 0.0
        %2293 = vmatprep.subr.mxu0 0.0
        %2294 = vmatpush1.msra.mxu0 0.0
        %2295 = vmatprep.subr.mxu0 0.0
        %2296 = vmatpush1.msra.mxu0 0.0
        %2297 = vmatprep.subr.mxu0 0.0
        %2298 = vmatpush1.msra.mxu0 0.0
        %2299 = vmatprep.subr.mxu0 0.0
        %2300 = vmatpush1.msra.mxu0 0.0
        %2301 = vmatprep.subr.mxu0 0.0
        %2302 = vmatpush1.msra.mxu0 0.0
        %2303 = vmatprep.subr.mxu0 0.0
        %2304 = vmatpush1.msra.mxu0 0.0
        %2305 = vmatprep.subr.mxu0 0.0
        %2306 = vmatpush1.msra.mxu0 0.0
        %2307 = vmatprep.subr.mxu0 0.0
        %2308 = vmatpush1.msra.mxu0 0.0
        %2309 = vmatprep.subr.mxu0 0.0
        %2310 = vmatpush1.msra.mxu0 0.0
        %2311 = vmatprep.subr.mxu0 0.0
        %2312 = vmatpush1.msra.mxu0 0.0
        %2313 = vmatprep.subr.mxu0 0.0
        %2314 = vmatpush1.msra.mxu0 0.0
        %2315 = vmatprep.subr.mxu0 0.0
        %2316 = vmatpush1.msra.mxu0 0.0
        %2317 = vmatprep.subr.mxu0 0.0
        %2318 = vmatpush1.msra.mxu0 0.0
        %2319 = vmatprep.subr.mxu0 0.0
        %2320 = vmatpush1.msra.mxu0 0.0
        %2321 = vmatprep.subr.mxu0 0.0
        %2322 = vmatpush1.msra.mxu0 0.0
        %2323 = vmatprep.subr.mxu0 0.0
        %2324 = vmatpush1.msra.mxu0 0.0
        %2325 = vmatprep.subr.mxu0 0.0
        %2326 = vmatpush1.msra.mxu0 0.0
        %2327 = vmatprep.subr.mxu0 0.0
        %2328 = vmatpush1.msra.mxu0 0.0
        %2329 = vmatprep.subr.mxu0 0.0
        %2330 = vmatpush1.msra.mxu0 0.0
        %2331 = vmatprep.subr.mxu0 0.0
        %2332 = vmatpush1.msra.mxu0 0.0
        %2333 = vmatprep.subr.mxu0 0.0
        %2334 = vmatpush1.msra.mxu0 0.0
        %2335 = vmatprep.subr.mxu0 0.0
        %2336 = vmatpush1.msra.mxu0 0.0
        %2337 = vmatprep.subr.mxu0 0.0
        %2338 = vmatpush1.msra.mxu0 0.0
        %2339 = vmatprep.subr.mxu0 0.0
        %2340 = vmatpush1.msra.mxu0 0.0
        %2341 = vmatprep.mubr.f32.mxu0 0.0
        %2342 = vmatmul.mubr.f32.gmra.mrb[0].mxu0 %v855
        %v2343 = vpop.f32.mrb[0].mxu0
        %v2344 = vadd.f32 %v696, %v2343
        %v2345 = vpop.f32.mrb[0].mxu0
        %v2346 = vadd.f32 %v700, %v2345
        %2347 = vdwg.mxu0
        %2348 = vmatprep.subr.mxu0 %v304
        %2349 = vmatpush1.msra.mxu0 %v303
        %2350 = vmatprep.subr.mxu0 %v368
        %2351 = vmatpush1.msra.mxu0 %v367
        %2352 = vmatprep.subr.mxu0 %v432
        %2353 = vmatpush1.msra.mxu0 %v431
        %2354 = vmatprep.subr.mxu0 %v496
        %2355 = vmatpush1.msra.mxu0 %v495
        %2356 = vmatprep.subr.mxu0 0.0
        %2357 = vmatpush1.msra.mxu0 0.0
        %2358 = vmatprep.subr.mxu0 0.0
        %2359 = vmatpush1.msra.mxu0 0.0
        %2360 = vmatprep.subr.mxu0 0.0
        %2361 = vmatpush1.msra.mxu0 0.0
        %2362 = vmatprep.subr.mxu0 0.0
        %2363 = vmatpush1.msra.mxu0 0.0
        %2364 = vmatprep.subr.mxu0 0.0
        %2365 = vmatpush1.msra.mxu0 0.0
        %2366 = vmatprep.subr.mxu0 0.0
        %2367 = vmatpush1.msra.mxu0 0.0
        %2368 = vmatprep.subr.mxu0 0.0
        %2369 = vmatpush1.msra.mxu0 0.0
        %2370 = vmatprep.subr.mxu0 0.0
        %2371 = vmatpush1.msra.mxu0 0.0
        %2372 = vmatprep.subr.mxu0 0.0
        %2373 = vmatpush1.msra.mxu0 0.0
        %2374 = vmatprep.subr.mxu0 0.0
        %2375 = vmatpush1.msra.mxu0 0.0
        %2376 = vmatprep.subr.mxu0 0.0
        %2377 = vmatpush1.msra.mxu0 0.0
        %2378 = vmatprep.subr.mxu0 0.0
        %2379 = vmatpush1.msra.mxu0 0.0
        %2380 = vmatprep.subr.mxu0 0.0
        %2381 = vmatpush1.msra.mxu0 0.0
        %2382 = vmatprep.subr.mxu0 0.0
        %2383 = vmatpush1.msra.mxu0 0.0
        %2384 = vmatprep.subr.mxu0 0.0
        %2385 = vmatpush1.msra.mxu0 0.0
        %2386 = vmatprep.subr.mxu0 0.0
        %2387 = vmatpush1.msra.mxu0 0.0
        %2388 = vmatprep.subr.mxu0 0.0
        %2389 = vmatpush1.msra.mxu0 0.0
        %2390 = vmatprep.subr.mxu0 0.0
        %2391 = vmatpush1.msra.mxu0 0.0
        %2392 = vmatprep.subr.mxu0 0.0
        %2393 = vmatpush1.msra.mxu0 0.0
        %2394 = vmatprep.subr.mxu0 0.0
        %2395 = vmatpush1.msra.mxu0 0.0
        %2396 = vmatprep.subr.mxu0 0.0
        %2397 = vmatpush1.msra.mxu0 0.0
        %2398 = vmatprep.subr.mxu0 0.0
        %2399 = vmatpush1.msra.mxu0 0.0
        %2400 = vmatprep.subr.mxu0 0.0
        %2401 = vmatpush1.msra.mxu0 0.0
        %2402 = vmatprep.subr.mxu0 0.0
        %2403 = vmatpush1.msra.mxu0 0.0
        %2404 = vmatprep.subr.mxu0 0.0
        %2405 = vmatpush1.msra.mxu0 0.0
        %2406 = vmatprep.subr.mxu0 0.0
        %2407 = vmatpush1.msra.mxu0 0.0
        %2408 = vmatprep.subr.mxu0 0.0
        %2409 = vmatpush1.msra.mxu0 0.0
        %2410 = vmatprep.subr.mxu0 0.0
        %2411 = vmatpush1.msra.mxu0 0.0
        %2412 = vmatprep.mubr.f32.mxu0 0.0
        %2413 = vmatmul.mubr.f32.gmra.mrb[0].mxu0 %v855
        %v2414 = vpop.f32.mrb[0].mxu0
        %v2415 = vadd.f32 %v704, %v2414
        %v2416 = vpop.f32.mrb[0].mxu0
        %v2417 = vadd.f32 %v708, %v2416
        %2418 = vdwg.mxu0
        %2419 = vmatprep.subr.mxu0 %v306
        %2420 = vmatpush1.msra.mxu0 %v305
        %2421 = vmatprep.subr.mxu0 %v370
        %2422 = vmatpush1.msra.mxu0 %v369
        %2423 = vmatprep.subr.mxu0 %v434
        %2424 = vmatpush1.msra.mxu0 %v433
        %2425 = vmatprep.subr.mxu0 %v498
        %2426 = vmatpush1.msra.mxu0 %v497
        %2427 = vmatprep.subr.mxu0 0.0
        %2428 = vmatpush1.msra.mxu0 0.0
        %2429 = vmatprep.subr.mxu0 0.0
        %2430 = vmatpush1.msra.mxu0 0.0
        %2431 = vmatprep.subr.mxu0 0.0
        %2432 = vmatpush1.msra.mxu0 0.0
        %2433 = vmatprep.subr.mxu0 0.0
        %2434 = vmatpush1.msra.mxu0 0.0
        %2435 = vmatprep.subr.mxu0 0.0
        %2436 = vmatpush1.msra.mxu0 0.0
        %2437 = vmatprep.subr.mxu0 0.0
        %2438 = vmatpush1.msra.mxu0 0.0
        %2439 = vmatprep.subr.mxu0 0.0
        %2440 = vmatpush1.msra.mxu0 0.0
        %2441 = vmatprep.subr.mxu0 0.0
        %2442 = vmatpush1.msra.mxu0 0.0
        %2443 = vmatprep.subr.mxu0 0.0
        %2444 = vmatpush1.msra.mxu0 0.0
        %2445 = vmatprep.subr.mxu0 0.0
        %2446 = vmatpush1.msra.mxu0 0.0
        %2447 = vmatprep.subr.mxu0 0.0
        %2448 = vmatpush1.msra.mxu0 0.0
        %2449 = vmatprep.subr.mxu0 0.0
        %2450 = vmatpush1.msra.mxu0 0.0
        %2451 = vmatprep.subr.mxu0 0.0
        %2452 = vmatpush1.msra.mxu0 0.0
        %2453 = vmatprep.subr.mxu0 0.0
        %2454 = vmatpush1.msra.mxu0 0.0
        %2455 = vmatprep.subr.mxu0 0.0
        %2456 = vmatpush1.msra.mxu0 0.0
        %2457 = vmatprep.subr.mxu0 0.0
        %2458 = vmatpush1.msra.mxu0 0.0
        %2459 = vmatprep.subr.mxu0 0.0
        %2460 = vmatpush1.msra.mxu0 0.0
        %2461 = vmatprep.subr.mxu0 0.0
        %2462 = vmatpush1.msra.mxu0 0.0
        %2463 = vmatprep.subr.mxu0 0.0
        %2464 = vmatpush1.msra.mxu0 0.0
        %2465 = vmatprep.subr.mxu0 0.0
        %2466 = vmatpush1.msra.mxu0 0.0
        %2467 = vmatprep.subr.mxu0 0.0
        %2468 = vmatpush1.msra.mxu0 0.0
        %2469 = vmatprep.subr.mxu0 0.0
        %2470 = vmatpush1.msra.mxu0 0.0
        %2471 = vmatprep.subr.mxu0 0.0
        %2472 = vmatpush1.msra.mxu0 0.0
        %2473 = vmatprep.subr.mxu0 0.0
        %2474 = vmatpush1.msra.mxu0 0.0
        %2475 = vmatprep.subr.mxu0 0.0
        %2476 = vmatpush1.msra.mxu0 0.0
        %2477 = vmatprep.subr.mxu0 0.0
        %2478 = vmatpush1.msra.mxu0 0.0
        %2479 = vmatprep.subr.mxu0 0.0
        %2480 = vmatpush1.msra.mxu0 0.0
        %2481 = vmatprep.subr.mxu0 0.0
        %2482 = vmatpush1.msra.mxu0 0.0
        %2483 = vmatprep.mubr.f32.mxu0 0.0
        %2484 = vmatmul.mubr.f32.gmra.mrb[0].mxu0 %v855
        %v2485 = vpop.f32.mrb[0].mxu0
        %v2486 = vadd.f32 %v712, %v2485
        %v2487 = vpop.f32.mrb[0].mxu0
        %v2488 = vadd.f32 %v716, %v2487
        %2489 = vdwg.mxu0
        %2490 = vmatprep.subr.mxu0 %v308
        %2491 = vmatpush1.msra.mxu0 %v307
        %2492 = vmatprep.subr.mxu0 %v372
        %2493 = vmatpush1.msra.mxu0 %v371
        %2494 = vmatprep.subr.mxu0 %v436
        %2495 = vmatpush1.msra.mxu0 %v435
        %2496 = vmatprep.subr.mxu0 %v500
        %2497 = vmatpush1.msra.mxu0 %v499
        %2498 = vmatprep.subr.mxu0 0.0
        %2499 = vmatpush1.msra.mxu0 0.0
        %2500 = vmatprep.subr.mxu0 0.0
        %2501 = vmatpush1.msra.mxu0 0.0
        %2502 = vmatprep.subr.mxu0 0.0
        %2503 = vmatpush1.msra.mxu0 0.0
        %2504 = vmatprep.subr.mxu0 0.0
        %2505 = vmatpush1.msra.mxu0 0.0
        %2506 = vmatprep.subr.mxu0 0.0
        %2507 = vmatpush1.msra.mxu0 0.0
        %2508 = vmatprep.subr.mxu0 0.0
        %2509 = vmatpush1.msra.mxu0 0.0
        %2510 = vmatprep.subr.mxu0 0.0
        %2511 = vmatpush1.msra.mxu0 0.0
        %2512 = vmatprep.subr.mxu0 0.0
        %2513 = vmatpush1.msra.mxu0 0.0
        %2514 = vmatprep.subr.mxu0 0.0
        %2515 = vmatpush1.msra.mxu0 0.0
        %2516 = vmatprep.subr.mxu0 0.0
        %2517 = vmatpush1.msra.mxu0 0.0
        %2518 = vmatprep.subr.mxu0 0.0
        %2519 = vmatpush1.msra.mxu0 0.0
        %2520 = vmatprep.subr.mxu0 0.0
        %2521 = vmatpush1.msra.mxu0 0.0
        %2522 = vmatprep.subr.mxu0 0.0
        %2523 = vmatpush1.msra.mxu0 0.0
        %2524 = vmatprep.subr.mxu0 0.0
        %2525 = vmatpush1.msra.mxu0 0.0
        %2526 = vmatprep.subr.mxu0 0.0
        %2527 = vmatpush1.msra.mxu0 0.0
        %2528 = vmatprep.subr.mxu0 0.0
        %2529 = vmatpush1.msra.mxu0 0.0
        %2530 = vmatprep.subr.mxu0 0.0
        %2531 = vmatpush1.msra.mxu0 0.0
        %2532 = vmatprep.subr.mxu0 0.0
        %2533 = vmatpush1.msra.mxu0 0.0
        %2534 = vmatprep.subr.mxu0 0.0
        %2535 = vmatpush1.msra.mxu0 0.0
        %2536 = vmatprep.subr.mxu0 0.0
        %2537 = vmatpush1.msra.mxu0 0.0
        %2538 = vmatprep.subr.mxu0 0.0
        %2539 = vmatpush1.msra.mxu0 0.0
        %2540 = vmatprep.subr.mxu0 0.0
        %2541 = vmatpush1.msra.mxu0 0.0
        %2542 = vmatprep.subr.mxu0 0.0
        %2543 = vmatpush1.msra.mxu0 0.0
        %2544 = vmatprep.subr.mxu0 0.0
        %2545 = vmatpush1.msra.mxu0 0.0
        %2546 = vmatprep.subr.mxu0 0.0
        %2547 = vmatpush1.msra.mxu0 0.0
        %2548 = vmatprep.subr.mxu0 0.0
        %2549 = vmatpush1.msra.mxu0 0.0
        %2550 = vmatprep.subr.mxu0 0.0
        %2551 = vmatpush1.msra.mxu0 0.0
        %2552 = vmatprep.subr.mxu0 0.0
        %2553 = vmatpush1.msra.mxu0 0.0
        %2554 = vmatprep.mubr.f32.mxu0 0.0
        %2555 = vmatmul.mubr.f32.gmra.mrb[0].mxu0 %v855
        %v2556 = vpop.f32.mrb[0].mxu0
        %v2557 = vadd.f32 %v720, %v2556
        %v2558 = vpop.f32.mrb[0].mxu0
        %v2559 = vadd.f32 %v724, %v2558
        %2560 = vdwg.mxu0
        %2561 = vmatprep.subr.mxu0 %v310
        %2562 = vmatpush1.msra.mxu0 %v309
        %2563 = vmatprep.subr.mxu0 %v374
        %2564 = vmatpush1.msra.mxu0 %v373
        %2565 = vmatprep.subr.mxu0 %v438
        %2566 = vmatpush1.msra.mxu0 %v437
        %2567 = vmatprep.subr.mxu0 %v502
        %2568 = vmatpush1.msra.mxu0 %v501
        %2569 = vmatprep.subr.mxu0 0.0
        %2570 = vmatpush1.msra.mxu0 0.0
        %2571 = vmatprep.subr.mxu0 0.0
        %2572 = vmatpush1.msra.mxu0 0.0
        %2573 = vmatprep.subr.mxu0 0.0
        %2574 = vmatpush1.msra.mxu0 0.0
        %2575 = vmatprep.subr.mxu0 0.0
        %2576 = vmatpush1.msra.mxu0 0.0
        %2577 = vmatprep.subr.mxu0 0.0
        %2578 = vmatpush1.msra.mxu0 0.0
        %2579 = vmatprep.subr.mxu0 0.0
        %2580 = vmatpush1.msra.mxu0 0.0
        %2581 = vmatprep.subr.mxu0 0.0
        %2582 = vmatpush1.msra.mxu0 0.0
        %2583 = vmatprep.subr.mxu0 0.0
        %2584 = vmatpush1.msra.mxu0 0.0
        %2585 = vmatprep.subr.mxu0 0.0
        %2586 = vmatpush1.msra.mxu0 0.0
        %2587 = vmatprep.subr.mxu0 0.0
        %2588 = vmatpush1.msra.mxu0 0.0
        %2589 = vmatprep.subr.mxu0 0.0
        %2590 = vmatpush1.msra.mxu0 0.0
        %2591 = vmatprep.subr.mxu0 0.0
        %2592 = vmatpush1.msra.mxu0 0.0
        %2593 = vmatprep.subr.mxu0 0.0
        %2594 = vmatpush1.msra.mxu0 0.0
        %2595 = vmatprep.subr.mxu0 0.0
        %2596 = vmatpush1.msra.mxu0 0.0
        %2597 = vmatprep.subr.mxu0 0.0
        %2598 = vmatpush1.msra.mxu0 0.0
        %2599 = vmatprep.subr.mxu0 0.0
        %2600 = vmatpush1.msra.mxu0 0.0
        %2601 = vmatprep.subr.mxu0 0.0
        %2602 = vmatpush1.msra.mxu0 0.0
        %2603 = vmatprep.subr.mxu0 0.0
        %2604 = vmatpush1.msra.mxu0 0.0
        %2605 = vmatprep.subr.mxu0 0.0
        %2606 = vmatpush1.msra.mxu0 0.0
        %2607 = vmatprep.subr.mxu0 0.0
        %2608 = vmatpush1.msra.mxu0 0.0
        %2609 = vmatprep.subr.mxu0 0.0
        %2610 = vmatpush1.msra.mxu0 0.0
        %2611 = vmatprep.subr.mxu0 0.0
        %2612 = vmatpush1.msra.mxu0 0.0
        %2613 = vmatprep.subr.mxu0 0.0
        %2614 = vmatpush1.msra.mxu0 0.0
        %2615 = vmatprep.subr.mxu0 0.0
        %2616 = vmatpush1.msra.mxu0 0.0
        %2617 = vmatprep.subr.mxu0 0.0
        %2618 = vmatpush1.msra.mxu0 0.0
        %2619 = vmatprep.subr.mxu0 0.0
        %2620 = vmatpush1.msra.mxu0 0.0
        %2621 = vmatprep.subr.mxu0 0.0
        %2622 = vmatpush1.msra.mxu0 0.0
        %2623 = vmatprep.subr.mxu0 0.0
        %2624 = vmatpush1.msra.mxu0 0.0
        %2625 = vmatprep.mubr.f32.mxu0 0.0
        %2626 = vmatmul.mubr.f32.gmra.mrb[0].mxu0 %v855
        %v2627 = vpop.f32.mrb[0].mxu0
        %v2628 = vadd.f32 %v728, %v2627
        %v2629 = vpop.f32.mrb[0].mxu0
        %v2630 = vadd.f32 %v732, %v2629
        %2631 = vdwg.mxu0
        %2632 = vmatprep.subr.mxu0 %v312
        %2633 = vmatpush1.msra.mxu0 %v311
        %2634 = vmatprep.subr.mxu0 %v376
        %2635 = vmatpush1.msra.mxu0 %v375
        %2636 = vmatprep.subr.mxu0 %v440
        %2637 = vmatpush1.msra.mxu0 %v439
        %2638 = vmatprep.subr.mxu0 %v504
        %2639 = vmatpush1.msra.mxu0 %v503
        %2640 = vmatprep.subr.mxu0 0.0
        %2641 = vmatpush1.msra.mxu0 0.0
        %2642 = vmatprep.subr.mxu0 0.0
        %2643 = vmatpush1.msra.mxu0 0.0
        %2644 = vmatprep.subr.mxu0 0.0
        %2645 = vmatpush1.msra.mxu0 0.0
        %2646 = vmatprep.subr.mxu0 0.0
        %2647 = vmatpush1.msra.mxu0 0.0
        %2648 = vmatprep.subr.mxu0 0.0
        %2649 = vmatpush1.msra.mxu0 0.0
        %2650 = vmatprep.subr.mxu0 0.0
        %2651 = vmatpush1.msra.mxu0 0.0
        %2652 = vmatprep.subr.mxu0 0.0
        %2653 = vmatpush1.msra.mxu0 0.0
        %2654 = vmatprep.subr.mxu0 0.0
        %2655 = vmatpush1.msra.mxu0 0.0
        %2656 = vmatprep.subr.mxu0 0.0
        %2657 = vmatpush1.msra.mxu0 0.0
        %2658 = vmatprep.subr.mxu0 0.0
        %2659 = vmatpush1.msra.mxu0 0.0
        %2660 = vmatprep.subr.mxu0 0.0
        %2661 = vmatpush1.msra.mxu0 0.0
        %2662 = vmatprep.subr.mxu0 0.0
        %2663 = vmatpush1.msra.mxu0 0.0
        %2664 = vmatprep.subr.mxu0 0.0
        %2665 = vmatpush1.msra.mxu0 0.0
        %2666 = vmatprep.subr.mxu0 0.0
        %2667 = vmatpush1.msra.mxu0 0.0
        %2668 = vmatprep.subr.mxu0 0.0
        %2669 = vmatpush1.msra.mxu0 0.0
        %2670 = vmatprep.subr.mxu0 0.0
        %2671 = vmatpush1.msra.mxu0 0.0
        %2672 = vmatprep.subr.mxu0 0.0
        %2673 = vmatpush1.msra.mxu0 0.0
        %2674 = vmatprep.subr.mxu0 0.0
        %2675 = vmatpush1.msra.mxu0 0.0
        %2676 = vmatprep.subr.mxu0 0.0
        %2677 = vmatpush1.msra.mxu0 0.0
        %2678 = vmatprep.subr.mxu0 0.0
        %2679 = vmatpush1.msra.mxu0 0.0
        %2680 = vmatprep.subr.mxu0 0.0
        %2681 = vmatpush1.msra.mxu0 0.0
        %2682 = vmatprep.subr.mxu0 0.0
        %2683 = vmatpush1.msra.mxu0 0.0
        %2684 = vmatprep.subr.mxu0 0.0
        %2685 = vmatpush1.msra.mxu0 0.0
        %2686 = vmatprep.subr.mxu0 0.0
        %2687 = vmatpush1.msra.mxu0 0.0
        %2688 = vmatprep.subr.mxu0 0.0
        %2689 = vmatpush1.msra.mxu0 0.0
        %2690 = vmatprep.subr.mxu0 0.0
        %2691 = vmatpush1.msra.mxu0 0.0
        %2692 = vmatprep.subr.mxu0 0.0
        %2693 = vmatpush1.msra.mxu0 0.0
        %2694 = vmatprep.subr.mxu0 0.0
        %2695 = vmatpush1.msra.mxu0 0.0
        %2696 = vmatprep.mubr.f32.mxu0 0.0
        %2697 = vmatmul.mubr.f32.gmra.mrb[0].mxu0 %v855
        %v2698 = vpop.f32.mrb[0].mxu0
        %v2699 = vadd.f32 %v736, %v2698
        %v2700 = vpop.f32.mrb[0].mxu0
        %v2701 = vadd.f32 %v740, %v2700
        %2702 = vdwg.mxu0
        %2703 = vmatprep.subr.mxu0 %v314
        %2704 = vmatpush1.msra.mxu0 %v313
        %2705 = vmatprep.subr.mxu0 %v378
        %2706 = vmatpush1.msra.mxu0 %v377
        %2707 = vmatprep.subr.mxu0 %v442
        %2708 = vmatpush1.msra.mxu0 %v441
        %2709 = vmatprep.subr.mxu0 %v506
        %2710 = vmatpush1.msra.mxu0 %v505
        %2711 = vmatprep.subr.mxu0 0.0
        %2712 = vmatpush1.msra.mxu0 0.0
        %2713 = vmatprep.subr.mxu0 0.0
        %2714 = vmatpush1.msra.mxu0 0.0
        %2715 = vmatprep.subr.mxu0 0.0
        %2716 = vmatpush1.msra.mxu0 0.0
        %2717 = vmatprep.subr.mxu0 0.0
        %2718 = vmatpush1.msra.mxu0 0.0
        %2719 = vmatprep.subr.mxu0 0.0
        %2720 = vmatpush1.msra.mxu0 0.0
        %2721 = vmatprep.subr.mxu0 0.0
        %2722 = vmatpush1.msra.mxu0 0.0
        %2723 = vmatprep.subr.mxu0 0.0
        %2724 = vmatpush1.msra.mxu0 0.0
        %2725 = vmatprep.subr.mxu0 0.0
        %2726 = vmatpush1.msra.mxu0 0.0
        %2727 = vmatprep.subr.mxu0 0.0
        %2728 = vmatpush1.msra.mxu0 0.0
        %2729 = vmatprep.subr.mxu0 0.0
        %2730 = vmatpush1.msra.mxu0 0.0
        %2731 = vmatprep.subr.mxu0 0.0
        %2732 = vmatpush1.msra.mxu0 0.0
        %2733 = vmatprep.subr.mxu0 0.0
        %2734 = vmatpush1.msra.mxu0 0.0
        %2735 = vmatprep.subr.mxu0 0.0
        %2736 = vmatpush1.msra.mxu0 0.0
        %2737 = vmatprep.subr.mxu0 0.0
        %2738 = vmatpush1.msra.mxu0 0.0
        %2739 = vmatprep.subr.mxu0 0.0
        %2740 = vmatpush1.msra.mxu0 0.0
        %2741 = vmatprep.subr.mxu0 0.0
        %2742 = vmatpush1.msra.mxu0 0.0
        %2743 = vmatprep.subr.mxu0 0.0
        %2744 = vmatpush1.msra.mxu0 0.0
        %2745 = vmatprep.subr.mxu0 0.0
        %2746 = vmatpush1.msra.mxu0 0.0
        %2747 = vmatprep.subr.mxu0 0.0
        %2748 = vmatpush1.msra.mxu0 0.0
        %2749 = vmatprep.subr.mxu0 0.0
        %2750 = vmatpush1.msra.mxu0 0.0
        %2751 = vmatprep.subr.mxu0 0.0
        %2752 = vmatpush1.msra.mxu0 0.0
        %2753 = vmatprep.subr.mxu0 0.0
        %2754 = vmatpush1.msra.mxu0 0.0
        %2755 = vmatprep.subr.mxu0 0.0
        %2756 = vmatpush1.msra.mxu0 0.0
        %2757 = vmatprep.subr.mxu0 0.0
        %2758 = vmatpush1.msra.mxu0 0.0
        %2759 = vmatprep.subr.mxu0 0.0
        %2760 = vmatpush1.msra.mxu0 0.0
        %2761 = vmatprep.subr.mxu0 0.0
        %2762 = vmatpush1.msra.mxu0 0.0
        %2763 = vmatprep.subr.mxu0 0.0
        %2764 = vmatpush1.msra.mxu0 0.0
        %2765 = vmatprep.subr.mxu0 0.0
        %2766 = vmatpush1.msra.mxu0 0.0
        %2767 = vmatprep.mubr.f32.mxu0 0.0
        %2768 = vmatmul.mubr.f32.gmra.mrb[0].mxu0 %v855
        %v2769 = vpop.f32.mrb[0].mxu0
        %v2770 = vadd.f32 %v744, %v2769
        %v2771 = vpop.f32.mrb[0].mxu0
        %v2772 = vadd.f32 %v748, %v2771
        %2773 = vdwg.mxu0
        %2774 = vmatprep.subr.mxu0 %v316
        %2775 = vmatpush1.msra.mxu0 %v315
        %2776 = vmatprep.subr.mxu0 %v380
        %2777 = vmatpush1.msra.mxu0 %v379
        %2778 = vmatprep.subr.mxu0 %v444
        %2779 = vmatpush1.msra.mxu0 %v443
        %2780 = vmatprep.subr.mxu0 %v508
        %2781 = vmatpush1.msra.mxu0 %v507
        %2782 = vmatprep.subr.mxu0 0.0
        %2783 = vmatpush1.msra.mxu0 0.0
        %2784 = vmatprep.subr.mxu0 0.0
        %2785 = vmatpush1.msra.mxu0 0.0
        %2786 = vmatprep.subr.mxu0 0.0
        %2787 = vmatpush1.msra.mxu0 0.0
        %2788 = vmatprep.subr.mxu0 0.0
        %2789 = vmatpush1.msra.mxu0 0.0
        %2790 = vmatprep.subr.mxu0 0.0
        %2791 = vmatpush1.msra.mxu0 0.0
        %2792 = vmatprep.subr.mxu0 0.0
        %2793 = vmatpush1.msra.mxu0 0.0
        %2794 = vmatprep.subr.mxu0 0.0
        %2795 = vmatpush1.msra.mxu0 0.0
        %2796 = vmatprep.subr.mxu0 0.0
        %2797 = vmatpush1.msra.mxu0 0.0
        %2798 = vmatprep.subr.mxu0 0.0
        %2799 = vmatpush1.msra.mxu0 0.0
        %2800 = vmatprep.subr.mxu0 0.0
        %2801 = vmatpush1.msra.mxu0 0.0
        %2802 = vmatprep.subr.mxu0 0.0
        %2803 = vmatpush1.msra.mxu0 0.0
        %2804 = vmatprep.subr.mxu0 0.0
        %2805 = vmatpush1.msra.mxu0 0.0
        %2806 = vmatprep.subr.mxu0 0.0
        %2807 = vmatpush1.msra.mxu0 0.0
        %2808 = vmatprep.subr.mxu0 0.0
        %2809 = vmatpush1.msra.mxu0 0.0
        %2810 = vmatprep.subr.mxu0 0.0
        %2811 = vmatpush1.msra.mxu0 0.0
        %2812 = vmatprep.subr.mxu0 0.0
        %2813 = vmatpush1.msra.mxu0 0.0
        %2814 = vmatprep.subr.mxu0 0.0
        %2815 = vmatpush1.msra.mxu0 0.0
        %2816 = vmatprep.subr.mxu0 0.0
        %2817 = vmatpush1.msra.mxu0 0.0
        %2818 = vmatprep.subr.mxu0 0.0
        %2819 = vmatpush1.msra.mxu0 0.0
        %2820 = vmatprep.subr.mxu0 0.0
        %2821 = vmatpush1.msra.mxu0 0.0
        %2822 = vmatprep.subr.mxu0 0.0
        %2823 = vmatpush1.msra.mxu0 0.0
        %2824 = vmatprep.subr.mxu0 0.0
        %2825 = vmatpush1.msra.mxu0 0.0
        %2826 = vmatprep.subr.mxu0 0.0
        %2827 = vmatpush1.msra.mxu0 0.0
        %2828 = vmatprep.subr.mxu0 0.0
        %2829 = vmatpush1.msra.mxu0 0.0
        %2830 = vmatprep.subr.mxu0 0.0
        %2831 = vmatpush1.msra.mxu0 0.0
        %2832 = vmatprep.subr.mxu0 0.0
        %2833 = vmatpush1.msra.mxu0 0.0
        %2834 = vmatprep.subr.mxu0 0.0
        %2835 = vmatpush1.msra.mxu0 0.0
        %2836 = vmatprep.subr.mxu0 0.0
        %2837 = vmatpush1.msra.mxu0 0.0
        %2838 = vmatprep.mubr.f32.mxu0 0.0
        %2839 = vmatmul.mubr.f32.gmra.mrb[0].mxu0 %v855
        %v2840 = vpop.f32.mrb[0].mxu0
        %v2841 = vadd.f32 %v752, %v2840
        %v2842 = vpop.f32.mrb[0].mxu0
        %v2843 = vadd.f32 %v756, %v2842
        %2844 = vdwg.mxu0
        %2845 = vmatprep.subr.mxu0 %v318
        %2846 = vmatpush1.msra.mxu0 %v317
        %2847 = vmatprep.subr.mxu0 %v382
        %2848 = vmatpush1.msra.mxu0 %v381
        %2849 = vmatprep.subr.mxu0 %v446
        %2850 = vmatpush1.msra.mxu0 %v445
        %2851 = vmatprep.subr.mxu0 %v510
        %2852 = vmatpush1.msra.mxu0 %v509
        %2853 = vmatprep.subr.mxu0 0.0
        %2854 = vmatpush1.msra.mxu0 0.0
        %2855 = vmatprep.subr.mxu0 0.0
        %2856 = vmatpush1.msra.mxu0 0.0
        %2857 = vmatprep.subr.mxu0 0.0
        %2858 = vmatpush1.msra.mxu0 0.0
        %2859 = vmatprep.subr.mxu0 0.0
        %2860 = vmatpush1.msra.mxu0 0.0
        %2861 = vmatprep.subr.mxu0 0.0
        %2862 = vmatpush1.msra.mxu0 0.0
        %2863 = vmatprep.subr.mxu0 0.0
        %2864 = vmatpush1.msra.mxu0 0.0
        %2865 = vmatprep.subr.mxu0 0.0
        %2866 = vmatpush1.msra.mxu0 0.0
        %2867 = vmatprep.subr.mxu0 0.0
        %2868 = vmatpush1.msra.mxu0 0.0
        %2869 = vmatprep.subr.mxu0 0.0
        %2870 = vmatpush1.msra.mxu0 0.0
        %2871 = vmatprep.subr.mxu0 0.0
        %2872 = vmatpush1.msra.mxu0 0.0
        %2873 = vmatprep.subr.mxu0 0.0
        %2874 = vmatpush1.msra.mxu0 0.0
        %2875 = vmatprep.subr.mxu0 0.0
        %2876 = vmatpush1.msra.mxu0 0.0
        %2877 = vmatprep.subr.mxu0 0.0
        %2878 = vmatpush1.msra.mxu0 0.0
        %2879 = vmatprep.subr.mxu0 0.0
        %2880 = vmatpush1.msra.mxu0 0.0
        %2881 = vmatprep.subr.mxu0 0.0
        %2882 = vmatpush1.msra.mxu0 0.0
        %2883 = vmatprep.subr.mxu0 0.0
        %2884 = vmatpush1.msra.mxu0 0.0
        %2885 = vmatprep.subr.mxu0 0.0
        %2886 = vmatpush1.msra.mxu0 0.0
        %2887 = vmatprep.subr.mxu0 0.0
        %2888 = vmatpush1.msra.mxu0 0.0
        %2889 = vmatprep.subr.mxu0 0.0
        %2890 = vmatpush1.msra.mxu0 0.0
        %2891 = vmatprep.subr.mxu0 0.0
        %2892 = vmatpush1.msra.mxu0 0.0
        %2893 = vmatprep.subr.mxu0 0.0
        %2894 = vmatpush1.msra.mxu0 0.0
        %2895 = vmatprep.subr.mxu0 0.0
        %2896 = vmatpush1.msra.mxu0 0.0
        %2897 = vmatprep.subr.mxu0 0.0
        %2898 = vmatpush1.msra.mxu0 0.0
        %2899 = vmatprep.subr.mxu0 0.0
        %2900 = vmatpush1.msra.mxu0 0.0
        %2901 = vmatprep.subr.mxu0 0.0
        %2902 = vmatpush1.msra.mxu0 0.0
        %2903 = vmatprep.subr.mxu0 0.0
        %2904 = vmatpush1.msra.mxu0 0.0
        %2905 = vmatprep.subr.mxu0 0.0
        %2906 = vmatpush1.msra.mxu0 0.0
        %2907 = vmatprep.subr.mxu0 0.0
        %2908 = vmatpush1.msra.mxu0 0.0
        %2909 = vmatprep.mubr.f32.mxu0 0.0
        %2910 = vmatmul.mubr.f32.gmra.mrb[0].mxu0 %v855
        %v2911 = vpop.f32.mrb[0].mxu0
        %v2912 = vadd.f32 %v760, %v2911
        %v2913 = vpop.f32.mrb[0].mxu0
        %v2914 = vadd.f32 %v764, %v2913
        %2915 = vdwg.mxu0
        %2916 = vmatprep.subr.mxu0 %v320
        %2917 = vmatpush1.msra.mxu0 %v319
        %2918 = vmatprep.subr.mxu0 %v384
        %2919 = vmatpush1.msra.mxu0 %v383
        %2920 = vmatprep.subr.mxu0 %v448
        %2921 = vmatpush1.msra.mxu0 %v447
        %2922 = vmatprep.subr.mxu0 %v512
        %2923 = vmatpush1.msra.mxu0 %v511
        %2924 = vmatprep.subr.mxu0 0.0
        %2925 = vmatpush1.msra.mxu0 0.0
        %2926 = vmatprep.subr.mxu0 0.0
        %2927 = vmatpush1.msra.mxu0 0.0
        %2928 = vmatprep.subr.mxu0 0.0
        %2929 = vmatpush1.msra.mxu0 0.0
        %2930 = vmatprep.subr.mxu0 0.0
        %2931 = vmatpush1.msra.mxu0 0.0
        %2932 = vmatprep.subr.mxu0 0.0
        %2933 = vmatpush1.msra.mxu0 0.0
        %2934 = vmatprep.subr.mxu0 0.0
        %2935 = vmatpush1.msra.mxu0 0.0
        %2936 = vmatprep.subr.mxu0 0.0
        %2937 = vmatpush1.msra.mxu0 0.0
        %2938 = vmatprep.subr.mxu0 0.0
        %2939 = vmatpush1.msra.mxu0 0.0
        %2940 = vmatprep.subr.mxu0 0.0
        %2941 = vmatpush1.msra.mxu0 0.0
        %2942 = vmatprep.subr.mxu0 0.0
        %2943 = vmatpush1.msra.mxu0 0.0
        %2944 = vmatprep.subr.mxu0 0.0
        %2945 = vmatpush1.msra.mxu0 0.0
        %2946 = vmatprep.subr.mxu0 0.0
        %2947 = vmatpush1.msra.mxu0 0.0
        %2948 = vmatprep.subr.mxu0 0.0
        %2949 = vmatpush1.msra.mxu0 0.0
        %2950 = vmatprep.subr.mxu0 0.0
        %2951 = vmatpush1.msra.mxu0 0.0
        %2952 = vmatprep.subr.mxu0 0.0
        %2953 = vmatpush1.msra.mxu0 0.0
        %2954 = vmatprep.subr.mxu0 0.0
        %2955 = vmatpush1.msra.mxu0 0.0
        %2956 = vmatprep.subr.mxu0 0.0
        %2957 = vmatpush1.msra.mxu0 0.0
        %2958 = vmatprep.subr.mxu0 0.0
        %2959 = vmatpush1.msra.mxu0 0.0
        %2960 = vmatprep.subr.mxu0 0.0
        %2961 = vmatpush1.msra.mxu0 0.0
        %2962 = vmatprep.subr.mxu0 0.0
        %2963 = vmatpush1.msra.mxu0 0.0
        %2964 = vmatprep.subr.mxu0 0.0
        %2965 = vmatpush1.msra.mxu0 0.0
        %2966 = vmatprep.subr.mxu0 0.0
        %2967 = vmatpush1.msra.mxu0 0.0
        %2968 = vmatprep.subr.mxu0 0.0
        %2969 = vmatpush1.msra.mxu0 0.0
        %2970 = vmatprep.subr.mxu0 0.0
        %2971 = vmatpush1.msra.mxu0 0.0
        %2972 = vmatprep.subr.mxu0 0.0
        %2973 = vmatpush1.msra.mxu0 0.0
        %2974 = vmatprep.subr.mxu0 0.0
        %2975 = vmatpush1.msra.mxu0 0.0
        %2976 = vmatprep.subr.mxu0 0.0
        %2977 = vmatpush1.msra.mxu0 0.0
        %2978 = vmatprep.subr.mxu0 0.0
        %2979 = vmatpush1.msra.mxu0 0.0
        %2980 = vmatprep.mubr.f32.mxu0 0.0
        %2981 = vmatmul.mubr.f32.gmra.mrb[0].mxu0 %v855
        %v2982 = vpop.f32.mrb[0].mxu0
        %v2983 = vadd.f32 %v768, %v2982
        %v2984 = vpop.f32.mrb[0].mxu0
        %v2985 = vadd.f32 %v772, %v2984
        %2986 = vdwg.mxu0
        %2987 = vmatprep.subr.mxu0 %v322
        %2988 = vmatpush1.msra.mxu0 %v321
        %2989 = vmatprep.subr.mxu0 %v386
        %2990 = vmatpush1.msra.mxu0 %v385
        %2991 = vmatprep.subr.mxu0 %v450
        %2992 = vmatpush1.msra.mxu0 %v449
        %2993 = vmatprep.subr.mxu0 %v514
        %2994 = vmatpush1.msra.mxu0 %v513
        %2995 = vmatprep.subr.mxu0 0.0
        %2996 = vmatpush1.msra.mxu0 0.0
        %2997 = vmatprep.subr.mxu0 0.0
        %2998 = vmatpush1.msra.mxu0 0.0
        %2999 = vmatprep.subr.mxu0 0.0
        %3000 = vmatpush1.msra.mxu0 0.0
        %3001 = vmatprep.subr.mxu0 0.0
        %3002 = vmatpush1.msra.mxu0 0.0
        %3003 = vmatprep.subr.mxu0 0.0
        %3004 = vmatpush1.msra.mxu0 0.0
        %3005 = vmatprep.subr.mxu0 0.0
        %3006 = vmatpush1.msra.mxu0 0.0
        %3007 = vmatprep.subr.mxu0 0.0
        %3008 = vmatpush1.msra.mxu0 0.0
        %3009 = vmatprep.subr.mxu0 0.0
        %3010 = vmatpush1.msra.mxu0 0.0
        %3011 = vmatprep.subr.mxu0 0.0
        %3012 = vmatpush1.msra.mxu0 0.0
        %3013 = vmatprep.subr.mxu0 0.0
        %3014 = vmatpush1.msra.mxu0 0.0
        %3015 = vmatprep.subr.mxu0 0.0
        %3016 = vmatpush1.msra.mxu0 0.0
        %3017 = vmatprep.subr.mxu0 0.0
        %3018 = vmatpush1.msra.mxu0 0.0
        %3019 = vmatprep.subr.mxu0 0.0
        %3020 = vmatpush1.msra.mxu0 0.0
        %3021 = vmatprep.subr.mxu0 0.0
        %3022 = vmatpush1.msra.mxu0 0.0
        %3023 = vmatprep.subr.mxu0 0.0
        %3024 = vmatpush1.msra.mxu0 0.0
        %3025 = vmatprep.subr.mxu0 0.0
        %3026 = vmatpush1.msra.mxu0 0.0
        %3027 = vmatprep.subr.mxu0 0.0
        %3028 = vmatpush1.msra.mxu0 0.0
        %3029 = vmatprep.subr.mxu0 0.0
        %3030 = vmatpush1.msra.mxu0 0.0
        %3031 = vmatprep.subr.mxu0 0.0
        %3032 = vmatpush1.msra.mxu0 0.0
        %3033 = vmatprep.subr.mxu0 0.0
        %3034 = vmatpush1.msra.mxu0 0.0
        %3035 = vmatprep.subr.mxu0 0.0
        %3036 = vmatpush1.msra.mxu0 0.0
        %3037 = vmatprep.subr.mxu0 0.0
        %3038 = vmatpush1.msra.mxu0 0.0
        %3039 = vmatprep.subr.mxu0 0.0
        %3040 = vmatpush1.msra.mxu0 0.0
        %3041 = vmatprep.subr.mxu0 0.0
        %3042 = vmatpush1.msra.mxu0 0.0
        %3043 = vmatprep.subr.mxu0 0.0
        %3044 = vmatpush1.msra.mxu0 0.0
        %3045 = vmatprep.subr.mxu0 0.0
        %3046 = vmatpush1.msra.mxu0 0.0
        %3047 = vmatprep.subr.mxu0 0.0
        %3048 = vmatpush1.msra.mxu0 0.0
        %3049 = vmatprep.subr.mxu0 0.0
        %3050 = vmatpush1.msra.mxu0 0.0
        %3051 = vmatprep.mubr.f32.mxu0 0.0
        %3052 = vmatmul.mubr.f32.gmra.mrb[0].mxu0 %v855
        %v3053 = vpop.f32.mrb[0].mxu0
        %v3054 = vadd.f32 %v776, %v3053
        %v3055 = vpop.f32.mrb[0].mxu0
        %v3056 = vadd.f32 %v780, %v3055
        %3057 = vdwg.mxu0
        %3058 = vmatprep.subr.mxu0 %v324
        %3059 = vmatpush1.msra.mxu0 %v323
        %3060 = vmatprep.subr.mxu0 %v388
        %3061 = vmatpush1.msra.mxu0 %v387
        %3062 = vmatprep.subr.mxu0 %v452
        %3063 = vmatpush1.msra.mxu0 %v451
        %3064 = vmatprep.subr.mxu0 %v516
        %3065 = vmatpush1.msra.mxu0 %v515
        %3066 = vmatprep.subr.mxu0 0.0
        %3067 = vmatpush1.msra.mxu0 0.0
        %3068 = vmatprep.subr.mxu0 0.0
        %3069 = vmatpush1.msra.mxu0 0.0
        %3070 = vmatprep.subr.mxu0 0.0
        %3071 = vmatpush1.msra.mxu0 0.0
        %3072 = vmatprep.subr.mxu0 0.0
        %3073 = vmatpush1.msra.mxu0 0.0
        %3074 = vmatprep.subr.mxu0 0.0
        %3075 = vmatpush1.msra.mxu0 0.0
        %3076 = vmatprep.subr.mxu0 0.0
        %3077 = vmatpush1.msra.mxu0 0.0
        %3078 = vmatprep.subr.mxu0 0.0
        %3079 = vmatpush1.msra.mxu0 0.0
        %3080 = vmatprep.subr.mxu0 0.0
        %3081 = vmatpush1.msra.mxu0 0.0
        %3082 = vmatprep.subr.mxu0 0.0
        %3083 = vmatpush1.msra.mxu0 0.0
        %3084 = vmatprep.subr.mxu0 0.0
        %3085 = vmatpush1.msra.mxu0 0.0
        %3086 = vmatprep.subr.mxu0 0.0
        %3087 = vmatpush1.msra.mxu0 0.0
        %3088 = vmatprep.subr.mxu0 0.0
        %3089 = vmatpush1.msra.mxu0 0.0
        %3090 = vmatprep.subr.mxu0 0.0
        %3091 = vmatpush1.msra.mxu0 0.0
        %3092 = vmatprep.subr.mxu0 0.0
        %3093 = vmatpush1.msra.mxu0 0.0
        %3094 = vmatprep.subr.mxu0 0.0
        %3095 = vmatpush1.msra.mxu0 0.0
        %3096 = vmatprep.subr.mxu0 0.0
        %3097 = vmatpush1.msra.mxu0 0.0
        %3098 = vmatprep.subr.mxu0 0.0
        %3099 = vmatpush1.msra.mxu0 0.0
        %3100 = vmatprep.subr.mxu0 0.0
        %3101 = vmatpush1.msra.mxu0 0.0
        %3102 = vmatprep.subr.mxu0 0.0
        %3103 = vmatpush1.msra.mxu0 0.0
        %3104 = vmatprep.subr.mxu0 0.0
        %3105 = vmatpush1.msra.mxu0 0.0
        %3106 = vmatprep.subr.mxu0 0.0
        %3107 = vmatpush1.msra.mxu0 0.0
        %3108 = vmatprep.subr.mxu0 0.0
        %3109 = vmatpush1.msra.mxu0 0.0
        %3110 = vmatprep.subr.mxu0 0.0
        %3111 = vmatpush1.msra.mxu0 0.0
        %3112 = vmatprep.subr.mxu0 0.0
        %3113 = vmatpush1.msra.mxu0 0.0
        %3114 = vmatprep.subr.mxu0 0.0
        %3115 = vmatpush1.msra.mxu0 0.0
        %3116 = vmatprep.subr.mxu0 0.0
        %3117 = vmatpush1.msra.mxu0 0.0
        %3118 = vmatprep.subr.mxu0 0.0
        %3119 = vmatpush1.msra.mxu0 0.0
        %3120 = vmatprep.subr.mxu0 0.0
        %3121 = vmatpush1.msra.mxu0 0.0
        %3122 = vmatprep.mubr.f32.mxu0 0.0
        %3123 = vmatmul.mubr.f32.gmra.mrb[0].mxu0 %v855
        %v3124 = vpop.f32.mrb[0].mxu0
        %v3125 = vadd.f32 %v784, %v3124
        %v3126 = vpop.f32.mrb[0].mxu0
        %v3127 = vadd.f32 %v788, %v3126
        %3128 = vdwg.mxu0
        %v3129 = vmax.f32 %v924, 0.0
        %v3130 = vmax.f32 %v926, 0.0
        %v3131 = vmax.f32 %v995, 0.0
        %v3132 = vmax.f32 %v997, 0.0
        %v3133 = vmax.f32 %v1066, 0.0
        %v3134 = vmax.f32 %v1068, 0.0
        %v3135 = vmax.f32 %v1137, 0.0
        %v3136 = vmax.f32 %v1139, 0.0
        %v3137 = vmax.f32 %v1208, 0.0
        %v3138 = vmax.f32 %v1210, 0.0
        %v3139 = vmax.f32 %v1279, 0.0
        %v3140 = vmax.f32 %v1281, 0.0
        %v3141 = vmax.f32 %v1350, 0.0
        %v3142 = vmax.f32 %v1352, 0.0
        %v3143 = vmax.f32 %v1421, 0.0
        %v3144 = vmax.f32 %v1423, 0.0
        %v3145 = vmax.f32 %v1492, 0.0
        %v3146 = vmax.f32 %v1494, 0.0
        %v3147 = vmax.f32 %v1563, 0.0
        %v3148 = vmax.f32 %v1565, 0.0
        %v3149 = vmax.f32 %v1634, 0.0
        %v3150 = vmax.f32 %v1636, 0.0
        %v3151 = vmax.f32 %v1705, 0.0
        %v3152 = vmax.f32 %v1707, 0.0
        %v3153 = vmax.f32 %v1776, 0.0
        %v3154 = vmax.f32 %v1778, 0.0
        %v3155 = vmax.f32 %v1847, 0.0
        %v3156 = vmax.f32 %v1849, 0.0
        %v3157 = vmax.f32 %v1918, 0.0
        %v3158 = vmax.f32 %v1920, 0.0
        %v3159 = vmax.f32 %v1989, 0.0
        %v3160 = vmax.f32 %v1991, 0.0
        %v3161 = vmax.f32 %v2060, 0.0
        %v3162 = vmax.f32 %v2062, 0.0
        %v3163 = vmax.f32 %v2131, 0.0
        %v3164 = vmax.f32 %v2133, 0.0
        %v3165 = vmax.f32 %v2202, 0.0
        %v3166 = vmax.f32 %v2204, 0.0
        %v3167 = vmax.f32 %v2273, 0.0
        %v3168 = vmax.f32 %v2275, 0.0
        %v3169 = vmax.f32 %v2344, 0.0
        %v3170 = vmax.f32 %v2346, 0.0
        %v3171 = vmax.f32 %v2415, 0.0
        %v3172 = vmax.f32 %v2417, 0.0
        %v3173 = vmax.f32 %v2486, 0.0
        %v3174 = vmax.f32 %v2488, 0.0
        %v3175 = vmax.f32 %v2557, 0.0
        %v3176 = vmax.f32 %v2559, 0.0
        %v3177 = vmax.f32 %v2628, 0.0
        %v3178 = vmax.f32 %v2630, 0.0
        %v3179 = vmax.f32 %v2699, 0.0
        %v3180 = vmax.f32 %v2701, 0.0
        %v3181 = vmax.f32 %v2770, 0.0
        %v3182 = vmax.f32 %v2772, 0.0
        %v3183 = vmax.f32 %v2841, 0.0
        %v3184 = vmax.f32 %v2843, 0.0
        %v3185 = vmax.f32 %v2912, 0.0
        %v3186 = vmax.f32 %v2914, 0.0
        %v3187 = vmax.f32 %v2983, 0.0
        %v3188 = vmax.f32 %v2985, 0.0
        %v3189 = vmax.f32 %v3054, 0.0
        %v3190 = vmax.f32 %v3056, 0.0
        %v3191 = vmax.f32 %v3125, 0.0
        %v3192 = vmax.f32 %v3127, 0.0
        %v3257 = vcombine.low %v3129, %v3130
        %v3258 = vcombine.low %v3131, %v3132
        %v3260 = vunpack.c.l.s4 1983009808
        %v3261 = vunpack.c.0.s8 %v3260
        %v3262 = vlaneseq
        %v3263 = vshrl.u32 %v3262, 7
        %v3264 = vsub.s32 %v3261, %v3263
        %v3265 = vrot.slane %v3257, %v3264
        %v3267 = vunpack.c.l.s4 1983009808
        %v3268 = vunpack.c.0.s8 %v3267
        %v3269 = vlaneseq
        %v3270 = vshrl.u32 %v3269, 7
        %v3271 = vsub.s32 %v3268, %v3270
        %v3272 = vrot.slane %v3258, %v3271
        %v3273 = vcombine.low %v3265, %v3272
        %v3274 = vcombine.low %v3133, %v3134
        %v3275 = vcombine.low %v3135, %v3136
        %v3277 = vunpack.c.l.s4 1983009808
        %v3278 = vunpack.c.0.s8 %v3277
        %v3279 = vlaneseq
        %v3280 = vshrl.u32 %v3279, 7
        %v3281 = vsub.s32 %v3278, %v3280
        %v3282 = vrot.slane %v3274, %v3281
        %v3284 = vunpack.c.l.s4 1983009808
        %v3285 = vunpack.c.0.s8 %v3284
        %v3286 = vlaneseq
        %v3287 = vshrl.u32 %v3286, 7
        %v3288 = vsub.s32 %v3285, %v3287
        %v3289 = vrot.slane %v3275, %v3288
        %v3290 = vcombine.low %v3282, %v3289
        %v3291 = vcombine.low %v3137, %v3138
        %v3292 = vcombine.low %v3139, %v3140
        %v3294 = vunpack.c.l.s4 1983009808
        %v3295 = vunpack.c.0.s8 %v3294
        %v3296 = vlaneseq
        %v3297 = vshrl.u32 %v3296, 7
        %v3298 = vsub.s32 %v3295, %v3297
        %v3299 = vrot.slane %v3291, %v3298
        %v3301 = vunpack.c.l.s4 1983009808
        %v3302 = vunpack.c.0.s8 %v3301
        %v3303 = vlaneseq
        %v3304 = vshrl.u32 %v3303, 7
        %v3305 = vsub.s32 %v3302, %v3304
        %v3306 = vrot.slane %v3292, %v3305
        %v3307 = vcombine.low %v3299, %v3306
        %v3308 = vcombine.low %v3141, %v3142
        %v3309 = vcombine.low %v3143, %v3144
        %v3311 = vunpack.c.l.s4 1983009808
        %v3312 = vunpack.c.0.s8 %v3311
        %v3313 = vlaneseq
        %v3314 = vshrl.u32 %v3313, 7
        %v3315 = vsub.s32 %v3312, %v3314
        %v3316 = vrot.slane %v3308, %v3315
        %v3318 = vunpack.c.l.s4 1983009808
        %v3319 = vunpack.c.0.s8 %v3318
        %v3320 = vlaneseq
        %v3321 = vshrl.u32 %v3320, 7
        %v3322 = vsub.s32 %v3319, %v3321
        %v3323 = vrot.slane %v3309, %v3322
        %v3324 = vcombine.low %v3316, %v3323
        %v3325 = vcombine.low %v3145, %v3146
        %v3326 = vcombine.low %v3147, %v3148
        %v3328 = vunpack.c.l.s4 1983009808
        %v3329 = vunpack.c.0.s8 %v3328
        %v3330 = vlaneseq
        %v3331 = vshrl.u32 %v3330, 7
        %v3332 = vsub.s32 %v3329, %v3331
        %v3333 = vrot.slane %v3325, %v3332
        %v3335 = vunpack.c.l.s4 1983009808
        %v3336 = vunpack.c.0.s8 %v3335
        %v3337 = vlaneseq
        %v3338 = vshrl.u32 %v3337, 7
        %v3339 = vsub.s32 %v3336, %v3338
        %v3340 = vrot.slane %v3326, %v3339
        %v3341 = vcombine.low %v3333, %v3340
        %v3342 = vcombine.low %v3149, %v3150
        %v3343 = vcombine.low %v3151, %v3152
        %v3345 = vunpack.c.l.s4 1983009808
        %v3346 = vunpack.c.0.s8 %v3345
        %v3347 = vlaneseq
        %v3348 = vshrl.u32 %v3347, 7
        %v3349 = vsub.s32 %v3346, %v3348
        %v3350 = vrot.slane %v3342, %v3349
        %v3352 = vunpack.c.l.s4 1983009808
        %v3353 = vunpack.c.0.s8 %v3352
        %v3354 = vlaneseq
        %v3355 = vshrl.u32 %v3354, 7
        %v3356 = vsub.s32 %v3353, %v3355
        %v3357 = vrot.slane %v3343, %v3356
        %v3358 = vcombine.low %v3350, %v3357
        %v3359 = vcombine.low %v3153, %v3154
        %v3360 = vcombine.low %v3155, %v3156
        %v3362 = vunpack.c.l.s4 1983009808
        %v3363 = vunpack.c.0.s8 %v3362
        %v3364 = vlaneseq
        %v3365 = vshrl.u32 %v3364, 7
        %v3366 = vsub.s32 %v3363, %v3365
        %v3367 = vrot.slane %v3359, %v3366
        %v3369 = vunpack.c.l.s4 1983009808
        %v3370 = vunpack.c.0.s8 %v3369
        %v3371 = vlaneseq
        %v3372 = vshrl.u32 %v3371, 7
        %v3373 = vsub.s32 %v3370, %v3372
        %v3374 = vrot.slane %v3360, %v3373
        %v3375 = vcombine.low %v3367, %v3374
        %v3376 = vcombine.low %v3157, %v3158
        %v3377 = vcombine.low %v3159, %v3160
        %v3379 = vunpack.c.l.s4 1983009808
        %v3380 = vunpack.c.0.s8 %v3379
        %v3381 = vlaneseq
        %v3382 = vshrl.u32 %v3381, 7
        %v3383 = vsub.s32 %v3380, %v3382
        %v3384 = vrot.slane %v3376, %v3383
        %v3386 = vunpack.c.l.s4 1983009808
        %v3387 = vunpack.c.0.s8 %v3386
        %v3388 = vlaneseq
        %v3389 = vshrl.u32 %v3388, 7
        %v3390 = vsub.s32 %v3387, %v3389
        %v3391 = vrot.slane %v3377, %v3390
        %v3392 = vcombine.low %v3384, %v3391
        %v3393 = vcombine.low %v3161, %v3162
        %v3394 = vcombine.low %v3163, %v3164
        %v3396 = vunpack.c.l.s4 1983009808
        %v3397 = vunpack.c.0.s8 %v3396
        %v3398 = vlaneseq
        %v3399 = vshrl.u32 %v3398, 7
        %v3400 = vsub.s32 %v3397, %v3399
        %v3401 = vrot.slane %v3393, %v3400
        %v3403 = vunpack.c.l.s4 1983009808
        %v3404 = vunpack.c.0.s8 %v3403
        %v3405 = vlaneseq
        %v3406 = vshrl.u32 %v3405, 7
        %v3407 = vsub.s32 %v3404, %v3406
        %v3408 = vrot.slane %v3394, %v3407
        %v3409 = vcombine.low %v3401, %v3408
        %v3410 = vcombine.low %v3165, %v3166
        %v3411 = vcombine.low %v3167, %v3168
        %v3413 = vunpack.c.l.s4 1983009808
        %v3414 = vunpack.c.0.s8 %v3413
        %v3415 = vlaneseq
        %v3416 = vshrl.u32 %v3415, 7
        %v3417 = vsub.s32 %v3414, %v3416
        %v3418 = vrot.slane %v3410, %v3417
        %v3420 = vunpack.c.l.s4 1983009808
        %v3421 = vunpack.c.0.s8 %v3420
        %v3422 = vlaneseq
        %v3423 = vshrl.u32 %v3422, 7
        %v3424 = vsub.s32 %v3421, %v3423
        %v3425 = vrot.slane %v3411, %v3424
        %v3426 = vcombine.low %v3418, %v3425
        %v3427 = vcombine.low %v3169, %v3170
        %v3428 = vcombine.low %v3171, %v3172
        %v3430 = vunpack.c.l.s4 1983009808
        %v3431 = vunpack.c.0.s8 %v3430
        %v3432 = vlaneseq
        %v3433 = vshrl.u32 %v3432, 7
        %v3434 = vsub.s32 %v3431, %v3433
        %v3435 = vrot.slane %v3427, %v3434
        %v3437 = vunpack.c.l.s4 1983009808
        %v3438 = vunpack.c.0.s8 %v3437
        %v3439 = vlaneseq
        %v3440 = vshrl.u32 %v3439, 7
        %v3441 = vsub.s32 %v3438, %v3440
        %v3442 = vrot.slane %v3428, %v3441
        %v3443 = vcombine.low %v3435, %v3442
        %v3444 = vcombine.low %v3173, %v3174
        %v3445 = vcombine.low %v3175, %v3176
        %v3447 = vunpack.c.l.s4 1983009808
        %v3448 = vunpack.c.0.s8 %v3447
        %v3449 = vlaneseq
        %v3450 = vshrl.u32 %v3449, 7
        %v3451 = vsub.s32 %v3448, %v3450
        %v3452 = vrot.slane %v3444, %v3451
        %v3454 = vunpack.c.l.s4 1983009808
        %v3455 = vunpack.c.0.s8 %v3454
        %v3456 = vlaneseq
        %v3457 = vshrl.u32 %v3456, 7
        %v3458 = vsub.s32 %v3455, %v3457
        %v3459 = vrot.slane %v3445, %v3458
        %v3460 = vcombine.low %v3452, %v3459
        %v3461 = vcombine.low %v3177, %v3178
        %v3462 = vcombine.low %v3179, %v3180
        %v3464 = vunpack.c.l.s4 1983009808
        %v3465 = vunpack.c.0.s8 %v3464
        %v3466 = vlaneseq
        %v3467 = vshrl.u32 %v3466, 7
        %v3468 = vsub.s32 %v3465, %v3467
        %v3469 = vrot.slane %v3461, %v3468
        %v3471 = vunpack.c.l.s4 1983009808
        %v3472 = vunpack.c.0.s8 %v3471
        %v3473 = vlaneseq
        %v3474 = vshrl.u32 %v3473, 7
        %v3475 = vsub.s32 %v3472, %v3474
        %v3476 = vrot.slane %v3462, %v3475
        %v3477 = vcombine.low %v3469, %v3476
        %v3478 = vcombine.low %v3181, %v3182
        %v3479 = vcombine.low %v3183, %v3184
        %v3481 = vunpack.c.l.s4 1983009808
        %v3482 = vunpack.c.0.s8 %v3481
        %v3483 = vlaneseq
        %v3484 = vshrl.u32 %v3483, 7
        %v3485 = vsub.s32 %v3482, %v3484
        %v3486 = vrot.slane %v3478, %v3485
        %v3488 = vunpack.c.l.s4 1983009808
        %v3489 = vunpack.c.0.s8 %v3488
        %v3490 = vlaneseq
        %v3491 = vshrl.u32 %v3490, 7
        %v3492 = vsub.s32 %v3489, %v3491
        %v3493 = vrot.slane %v3479, %v3492
        %v3494 = vcombine.low %v3486, %v3493
        %v3495 = vcombine.low %v3185, %v3186
        %v3496 = vcombine.low %v3187, %v3188
        %v3498 = vunpack.c.l.s4 1983009808
        %v3499 = vunpack.c.0.s8 %v3498
        %v3500 = vlaneseq
        %v3501 = vshrl.u32 %v3500, 7
        %v3502 = vsub.s32 %v3499, %v3501
        %v3503 = vrot.slane %v3495, %v3502
        %v3505 = vunpack.c.l.s4 1983009808
        %v3506 = vunpack.c.0.s8 %v3505
        %v3507 = vlaneseq
        %v3508 = vshrl.u32 %v3507, 7
        %v3509 = vsub.s32 %v3506, %v3508
        %v3510 = vrot.slane %v3496, %v3509
        %v3511 = vcombine.low %v3503, %v3510
        %v3512 = vcombine.low %v3189, %v3190
        %v3513 = vcombine.low %v3191, %v3192
        %v3515 = vunpack.c.l.s4 1983009808
        %v3516 = vunpack.c.0.s8 %v3515
        %v3517 = vlaneseq
        %v3518 = vshrl.u32 %v3517, 7
        %v3519 = vsub.s32 %v3516, %v3518
        %v3520 = vrot.slane %v3512, %v3519
        %v3522 = vunpack.c.l.s4 1983009808
        %v3523 = vunpack.c.0.s8 %v3522
        %v3524 = vlaneseq
        %v3525 = vshrl.u32 %v3524, 7
        %v3526 = vsub.s32 %v3523, %v3525
        %v3527 = vrot.slane %v3513, %v3526
        %v3528 = vcombine.low %v3520, %v3527
        %3545 = vst [vmem:[%s244] sm:$0xff] %v3273
        %3546 = vst [vmem:[%s244 + $0x8] sm:$0xff] %v3290
        %3547 = vst [vmem:[%s244 + $0x10] sm:$0xff] %v3307
        %3548 = vst [vmem:[%s244 + $0x18] sm:$0xff] %v3324
        %3549 = vst [vmem:[%s244 + $0x20] sm:$0xff] %v3341
        %3550 = vst [vmem:[%s244 + $0x28] sm:$0xff] %v3358
        %3551 = vst [vmem:[%s244 + $0x30] sm:$0xff] %v3375
        %3552 = vst [vmem:[%s244 + $0x38] sm:$0xff] %v3392
        %3553 = vst [vmem:[%s244 + $0x40] sm:$0xff] %v3409
        %3554 = vst [vmem:[%s244 + $0x48] sm:$0xff] %v3426
        %3555 = vst [vmem:[%s244 + $0x50] sm:$0xff] %v3443
        %3556 = vst [vmem:[%s244 + $0x58] sm:$0xff] %v3460
        %3557 = vst [vmem:[%s244 + $0x60] sm:$0xff] %v3477
        %3558 = vst [vmem:[%s244 + $0x68] sm:$0xff] %v3494
        %3559 = vst [vmem:[%s244 + $0x70] sm:$0xff] %v3511
        %3560 = vst [vmem:[%s244 + $0x78] sm:$0xff] %v3528
        %s3561 = sand.u32 %s99, 1
        %s3562 = sand.u32 %s99, 1
        %s3563 = smul.addr %s3562, 128
        %s3564 = scalar_lea.vmem [#allocation7], %s3563
        // Predicated region
        $region45: #{decoder_forward.3} parent=31 // pred_check
          %p3565 = pneg %p109
        $region46: #{decoder_forward.3} parent=31 // pred_check_branch
          %3567 = sbr.rel (%p3565) target = $region48
        $region47: #{decoder_forward.3} parent=31 // pred_region
          %s3568 = smul.u32 64, %s18
          %s3569 = ssub.s32 96, %s3568
          %p3570 = scmp.lt.s32.totalorder %s3569, 64
          %s3571 = scalar_select %p3570, %s3569, 64
          %s3572 = smul.u32 32, %s3571
          %p3573 = scmp.ne.s32.totalorder 0, %s3572
          %s3574 = smul.addr %s3568, 2
          %s3575 = scalar_lea.vmem %s3, %s3574
          %s3576 = smul.u32 %s3571, 2
          // Predicated region
          $region49: #{decoder_forward.3} parent=47 // pred_check
            %p3577 = pneg %p3573
          $region50: #{decoder_forward.3} parent=47 // pred_check_branch
            %3579 = sbr.rel (%p3577) target = $region52
          $region51: #{decoder_forward.3} parent=47 // pred_region
            %p3580 = scmp.lt.u32.totalorder %s3576, 8
            %p3581 = pneg %p3580
            // Predicated region
            $region53: #{decoder_forward.3} parent=51 // pred_check
              _
            $region54: #{decoder_forward.3} parent=51 // pred_check_branch
              %3583 = sbr.rel (%p3580) target = $region56
            $region55: #{decoder_forward.3} parent=51 // pred_region
              %s3598 = sand.u32 %s3576, 7
              %p3599 = scmp.eq.s32.totalorder %s3598, 0
              // Predicated region
              $region68: #{decoder_forward.3} parent=55 // pred_check
                %p3600 = pneg %p3599
              $region69: #{decoder_forward.3} parent=55 // pred_check_branch
                %3602 = sbr.rel (%p3600) target = $region71
              $region70: #{decoder_forward.3} parent=55 // pred_region
                %s3603 = sshrl.u32 %s3576, 3
                %s3604 = sshrl.u32 %s3603, 6
                // While loop
                $region72: #{decoder_forward.3} parent=70 // loop_pre_header
                  _
                $region73: #{decoder_forward.3} parent=70 // loop_header
                  %s3608 = sphi 0, %s3610
                  %p3609 = scmp.ge.s32.totalorder %s3608, %s3604
                  %s3613 = sphi 0, %s3746
                  %s3614 = sphi %s3564, %s3749
                  %s3615 = sphi %s3575, %s3750
                $region74: #{decoder_forward.3} parent=70 // loop_header_branch
                  %3612 = sbr.rel (%p3609) target = $region78
                $region75: #{decoder_forward.3} parent=70 // loop_body
                  %v3616 = vld [vmem:[%s3614] sm:$0xff]
                  %3617 = vst [vmem:[%s3615] sm:$0xff] %v3616
                  %v3618 = vld [vmem:[%s3614 + $0x8] sm:$0xff]
                  %3619 = vst [vmem:[%s3615 + $0x8] sm:$0xff] %v3618
                  %v3620 = vld [vmem:[%s3614 + $0x10] sm:$0xff]
                  %3621 = vst [vmem:[%s3615 + $0x10] sm:$0xff] %v3620
                  %v3622 = vld [vmem:[%s3614 + $0x18] sm:$0xff]
                  %3623 = vst [vmem:[%s3615 + $0x18] sm:$0xff] %v3622
                  %v3624 = vld [vmem:[%s3614 + $0x20] sm:$0xff]
                  %3625 = vst [vmem:[%s3615 + $0x20] sm:$0xff] %v3624
                  %v3626 = vld [vmem:[%s3614 + $0x28] sm:$0xff]
                  %3627 = vst [vmem:[%s3615 + $0x28] sm:$0xff] %v3626
                  %v3628 = vld [vmem:[%s3614 + $0x30] sm:$0xff]
                  %3629 = vst [vmem:[%s3615 + $0x30] sm:$0xff] %v3628
                  %v3630 = vld [vmem:[%s3614 + $0x38] sm:$0xff]
                  %3631 = vst [vmem:[%s3615 + $0x38] sm:$0xff] %v3630
                  %v3632 = vld [vmem:[%s3614 + $0x40] sm:$0xff]
                  %3633 = vst [vmem:[%s3615 + $0x40] sm:$0xff] %v3632
                  %v3634 = vld [vmem:[%s3614 + $0x48] sm:$0xff]
                  %3635 = vst [vmem:[%s3615 + $0x48] sm:$0xff] %v3634
                  %v3636 = vld [vmem:[%s3614 + $0x50] sm:$0xff]
                  %3637 = vst [vmem:[%s3615 + $0x50] sm:$0xff] %v3636
                  %v3638 = vld [vmem:[%s3614 + $0x58] sm:$0xff]
                  %3639 = vst [vmem:[%s3615 + $0x58] sm:$0xff] %v3638
                  %v3640 = vld [vmem:[%s3614 + $0x60] sm:$0xff]
                  %3641 = vst [vmem:[%s3615 + $0x60] sm:$0xff] %v3640
                  %v3642 = vld [vmem:[%s3614 + $0x68] sm:$0xff]
                  %3643 = vst [vmem:[%s3615 + $0x68] sm:$0xff] %v3642
                  %v3644 = vld [vmem:[%s3614 + $0x70] sm:$0xff]
                  %3645 = vst [vmem:[%s3615 + $0x70] sm:$0xff] %v3644
                  %v3646 = vld [vmem:[%s3614 + $0x78] sm:$0xff]
                  %3647 = vst [vmem:[%s3615 + $0x78] sm:$0xff] %v3646
                  %v3648 = vld [vmem:[%s3614 + $0x80] sm:$0xff]
                  %3649 = vst [vmem:[%s3615 + $0x80] sm:$0xff] %v3648
                  %v3650 = vld [vmem:[%s3614 + $0x88] sm:$0xff]
                  %3651 = vst [vmem:[%s3615 + $0x88] sm:$0xff] %v3650
                  %v3652 = vld [vmem:[%s3614 + $0x90] sm:$0xff]
                  %3653 = vst [vmem:[%s3615 + $0x90] sm:$0xff] %v3652
                  %v3654 = vld [vmem:[%s3614 + $0x98] sm:$0xff]
                  %3655 = vst [vmem:[%s3615 + $0x98] sm:$0xff] %v3654
                  %v3656 = vld [vmem:[%s3614 + $0xa0] sm:$0xff]
                  %3657 = vst [vmem:[%s3615 + $0xa0] sm:$0xff] %v3656
                  %v3658 = vld [vmem:[%s3614 + $0xa8] sm:$0xff]
                  %3659 = vst [vmem:[%s3615 + $0xa8] sm:$0xff] %v3658
                  %v3660 = vld [vmem:[%s3614 + $0xb0] sm:$0xff]
                  %3661 = vst [vmem:[%s3615 + $0xb0] sm:$0xff] %v3660
                  %v3662 = vld [vmem:[%s3614 + $0xb8] sm:$0xff]
                  %3663 = vst [vmem:[%s3615 + $0xb8] sm:$0xff] %v3662
                  %v3664 = vld [vmem:[%s3614 + $0xc0] sm:$0xff]
                  %3665 = vst [vmem:[%s3615 + $0xc0] sm:$0xff] %v3664
                  %v3666 = vld [vmem:[%s3614 + $0xc8] sm:$0xff]
                  %3667 = vst [vmem:[%s3615 + $0xc8] sm:$0xff] %v3666
                  %v3668 = vld [vmem:[%s3614 + $0xd0] sm:$0xff]
                  %3669 = vst [vmem:[%s3615 + $0xd0] sm:$0xff] %v3668
                  %v3670 = vld [vmem:[%s3614 + $0xd8] sm:$0xff]
                  %3671 = vst [vmem:[%s3615 + $0xd8] sm:$0xff] %v3670
                  %v3672 = vld [vmem:[%s3614 + $0xe0] sm:$0xff]
                  %3673 = vst [vmem:[%s3615 + $0xe0] sm:$0xff] %v3672
                  %v3674 = vld [vmem:[%s3614 + $0xe8] sm:$0xff]
                  %3675 = vst [vmem:[%s3615 + $0xe8] sm:$0xff] %v3674
                  %v3676 = vld [vmem:[%s3614 + $0xf0] sm:$0xff]
                  %3677 = vst [vmem:[%s3615 + $0xf0] sm:$0xff] %v3676
                  %v3678 = vld [vmem:[%s3614 + $0xf8] sm:$0xff]
                  %3679 = vst [vmem:[%s3615 + $0xf8] sm:$0xff] %v3678
                  %v3680 = vld [vmem:[%s3614 + $0x100] sm:$0xff]
                  %3681 = vst [vmem:[%s3615 + $0x100] sm:$0xff] %v3680
                  %v3682 = vld [vmem:[%s3614 + $0x108] sm:$0xff]
                  %3683 = vst [vmem:[%s3615 + $0x108] sm:$0xff] %v3682
                  %v3684 = vld [vmem:[%s3614 + $0x110] sm:$0xff]
                  %3685 = vst [vmem:[%s3615 + $0x110] sm:$0xff] %v3684
                  %v3686 = vld [vmem:[%s3614 + $0x118] sm:$0xff]
                  %3687 = vst [vmem:[%s3615 + $0x118] sm:$0xff] %v3686
                  %v3688 = vld [vmem:[%s3614 + $0x120] sm:$0xff]
                  %3689 = vst [vmem:[%s3615 + $0x120] sm:$0xff] %v3688
                  %v3690 = vld [vmem:[%s3614 + $0x128] sm:$0xff]
                  %3691 = vst [vmem:[%s3615 + $0x128] sm:$0xff] %v3690
                  %v3692 = vld [vmem:[%s3614 + $0x130] sm:$0xff]
                  %3693 = vst [vmem:[%s3615 + $0x130] sm:$0xff] %v3692
                  %v3694 = vld [vmem:[%s3614 + $0x138] sm:$0xff]
                  %3695 = vst [vmem:[%s3615 + $0x138] sm:$0xff] %v3694
                  %v3696 = vld [vmem:[%s3614 + $0x140] sm:$0xff]
                  %3697 = vst [vmem:[%s3615 + $0x140] sm:$0xff] %v3696
                  %v3698 = vld [vmem:[%s3614 + $0x148] sm:$0xff]
                  %3699 = vst [vmem:[%s3615 + $0x148] sm:$0xff] %v3698
                  %v3700 = vld [vmem:[%s3614 + $0x150] sm:$0xff]
                  %3701 = vst [vmem:[%s3615 + $0x150] sm:$0xff] %v3700
                  %v3702 = vld [vmem:[%s3614 + $0x158] sm:$0xff]
                  %3703 = vst [vmem:[%s3615 + $0x158] sm:$0xff] %v3702
                  %v3704 = vld [vmem:[%s3614 + $0x160] sm:$0xff]
                  %3705 = vst [vmem:[%s3615 + $0x160] sm:$0xff] %v3704
                  %v3706 = vld [vmem:[%s3614 + $0x168] sm:$0xff]
                  %3707 = vst [vmem:[%s3615 + $0x168] sm:$0xff] %v3706
                  %v3708 = vld [vmem:[%s3614 + $0x170] sm:$0xff]
                  %3709 = vst [vmem:[%s3615 + $0x170] sm:$0xff] %v3708
                  %v3710 = vld [vmem:[%s3614 + $0x178] sm:$0xff]
                  %3711 = vst [vmem:[%s3615 + $0x178] sm:$0xff] %v3710
                  %v3712 = vld [vmem:[%s3614 + $0x180] sm:$0xff]
                  %3713 = vst [vmem:[%s3615 + $0x180] sm:$0xff] %v3712
                  %v3714 = vld [vmem:[%s3614 + $0x188] sm:$0xff]
                  %3715 = vst [vmem:[%s3615 + $0x188] sm:$0xff] %v3714
                  %v3716 = vld [vmem:[%s3614 + $0x190] sm:$0xff]
                  %3717 = vst [vmem:[%s3615 + $0x190] sm:$0xff] %v3716
                  %v3718 = vld [vmem:[%s3614 + $0x198] sm:$0xff]
                  %3719 = vst [vmem:[%s3615 + $0x198] sm:$0xff] %v3718
                  %v3720 = vld [vmem:[%s3614 + $0x1a0] sm:$0xff]
                  %3721 = vst [vmem:[%s3615 + $0x1a0] sm:$0xff] %v3720
                  %v3722 = vld [vmem:[%s3614 + $0x1a8] sm:$0xff]
                  %3723 = vst [vmem:[%s3615 + $0x1a8] sm:$0xff] %v3722
                  %v3724 = vld [vmem:[%s3614 + $0x1b0] sm:$0xff]
                  %3725 = vst [vmem:[%s3615 + $0x1b0] sm:$0xff] %v3724
                  %v3726 = vld [vmem:[%s3614 + $0x1b8] sm:$0xff]
                  %3727 = vst [vmem:[%s3615 + $0x1b8] sm:$0xff] %v3726
                  %v3728 = vld [vmem:[%s3614 + $0x1c0] sm:$0xff]
                  %3729 = vst [vmem:[%s3615 + $0x1c0] sm:$0xff] %v3728
                  %v3730 = vld [vmem:[%s3614 + $0x1c8] sm:$0xff]
                  %3731 = vst [vmem:[%s3615 + $0x1c8] sm:$0xff] %v3730
                  %v3732 = vld [vmem:[%s3614 + $0x1d0] sm:$0xff]
                  %3733 = vst [vmem:[%s3615 + $0x1d0] sm:$0xff] %v3732
                  %v3734 = vld [vmem:[%s3614 + $0x1d8] sm:$0xff]
                  %3735 = vst [vmem:[%s3615 + $0x1d8] sm:$0xff] %v3734
                  %v3736 = vld [vmem:[%s3614 + $0x1e0] sm:$0xff]
                  %3737 = vst [vmem:[%s3615 + $0x1e0] sm:$0xff] %v3736
                  %v3738 = vld [vmem:[%s3614 + $0x1e8] sm:$0xff]
                  %3739 = vst [vmem:[%s3615 + $0x1e8] sm:$0xff] %v3738
                  %v3740 = vld [vmem:[%s3614 + $0x1f0] sm:$0xff]
                  %3741 = vst [vmem:[%s3615 + $0x1f0] sm:$0xff] %v3740
                  %v3742 = vld [vmem:[%s3614 + $0x1f8] sm:$0xff]
                  %3743 = vst [vmem:[%s3615 + $0x1f8] sm:$0xff] %v3742
                  %s3744 = sadd.s32 1, %s3613
                  %p3745 = scmp.ge.s32.totalorder %s3744, %s3604
                  %s3746 = scalar_select %p3745, 0, %s3744
                  %s3747 = smul.u32 %s3746, 512
                  %s3748 = smul.u32 %s3746, 512
                  %s3749 = scalar_lea.vmem %s3564, %s3747 [#allocation7]
                  %s3750 = scalar_lea.vmem %s3575, %s3748
                $region76: #{decoder_forward.3} parent=70 // loop_footer
                  %s3610 = sadd.s32 %s3608, 1
                $region77: #{decoder_forward.3} parent=70 // loop_footer_branch
                  %3607 = sbr.rel target = $region73
                $region78: #{decoder_forward.3} parent=70 // loop_exit
                  _
                %s3751 = sshrl.u32 %s3603, 6
                %s3752 = sand.u32 %s3603, 63
                %s3753 = smul.u32 %s3751, 64
                %s3754 = smul.u32 128, %s3753
                %s3755 = sshra.s32 %s3754, 4
                %s3756 = scalar_lea.vmem %s3564, %s3755 [#allocation7]
                %s3757 = smul.u32 128, %s3753
                %s3758 = sshra.s32 %s3757, 4
                %s3759 = scalar_lea.vmem %s3575, %s3758
                // While loop
                $region79: #{decoder_forward.3} parent=70 // loop_pre_header
                  _
                $region80: #{decoder_forward.3} parent=70 // loop_header
                  %s3763 = sphi 0, %s3765
                  %p3764 = scmp.ge.s32.totalorder %s3763, %s3752
                  %s3768 = sphi 0, %s3775
                  %s3769 = sphi %s3756, %s3778
                  %s3770 = sphi %s3759, %s3779
                $region81: #{decoder_forward.3} parent=70 // loop_header_branch
                  %3767 = sbr.rel (%p3764) target = $region85
                $region82: #{decoder_forward.3} parent=70 // loop_body
                  %v3771 = vld [vmem:[%s3769] sm:$0xff]
                  %3772 = vst [vmem:[%s3770] sm:$0xff] %v3771
                  %s3773 = sadd.s32 1, %s3768
                  %p3774 = scmp.ge.s32.totalorder %s3773, %s3752
                  %s3775 = scalar_select %p3774, 0, %s3773
                  %s3776 = smul.u32 %s3775, 8
                  %s3777 = smul.u32 %s3775, 8
                  %s3778 = scalar_lea.vmem %s3756, %s3776 [#allocation7]
                  %s3779 = scalar_lea.vmem %s3759, %s3777
                $region83: #{decoder_forward.3} parent=70 // loop_footer
                  %s3765 = sadd.s32 %s3763, 1
                $region84: #{decoder_forward.3} parent=70 // loop_footer_branch
                  %3762 = sbr.rel target = $region80
                $region85: #{decoder_forward.3} parent=70 // loop_exit
                  _
              $region71: #{decoder_forward.3} parent=55 // pred_fallthru
                _
              %p3780 = pneg %p3599
              // Predicated region
              $region86: #{decoder_forward.3} parent=55 // pred_check
                _
              $region87: #{decoder_forward.3} parent=55 // pred_check_branch
                %3782 = sbr.rel (%p3599) target = $region89
              $region88: #{decoder_forward.3} parent=55 // pred_region
                %s3783 = sand.u32 %s3576, 7
                %s3784 = ssub.s32 %s3576, %s3783
                %s3785 = scalar_lea.vmem %s3564, %s3784 [#allocation7]
                %s3786 = ssub.s32 %s3576, %s3783
                %s3787 = scalar_lea.vmem %s3575, %s3786
                %s3788 = sshrl.u32 %s3576, 3
                %s3789 = sshrl.u32 %s3788, 6
                // While loop
                $region90: #{decoder_forward.3} parent=88 // loop_pre_header
                  _
                $region91: #{decoder_forward.3} parent=88 // loop_header
                  %s3793 = sphi 0, %s3795
                  %p3794 = scmp.ge.s32.totalorder %s3793, %s3789
                  %s3798 = sphi 0, %s3931
                  %s3799 = sphi %s3564, %s3934
                  %s3800 = sphi %s3575, %s3935
                $region92: #{decoder_forward.3} parent=88 // loop_header_branch
                  %3797 = sbr.rel (%p3794) target = $region96
                $region93: #{decoder_forward.3} parent=88 // loop_body
                  %v3801 = vld [vmem:[%s3799] sm:$0xff]
                  %3802 = vst [vmem:[%s3800] sm:$0xff] %v3801
                  %v3803 = vld [vmem:[%s3799 + $0x8] sm:$0xff]
                  %3804 = vst [vmem:[%s3800 + $0x8] sm:$0xff] %v3803
                  %v3805 = vld [vmem:[%s3799 + $0x10] sm:$0xff]
                  %3806 = vst [vmem:[%s3800 + $0x10] sm:$0xff] %v3805
                  %v3807 = vld [vmem:[%s3799 + $0x18] sm:$0xff]
                  %3808 = vst [vmem:[%s3800 + $0x18] sm:$0xff] %v3807
                  %v3809 = vld [vmem:[%s3799 + $0x20] sm:$0xff]
                  %3810 = vst [vmem:[%s3800 + $0x20] sm:$0xff] %v3809
                  %v3811 = vld [vmem:[%s3799 + $0x28] sm:$0xff]
                  %3812 = vst [vmem:[%s3800 + $0x28] sm:$0xff] %v3811
                  %v3813 = vld [vmem:[%s3799 + $0x30] sm:$0xff]
                  %3814 = vst [vmem:[%s3800 + $0x30] sm:$0xff] %v3813
                  %v3815 = vld [vmem:[%s3799 + $0x38] sm:$0xff]
                  %3816 = vst [vmem:[%s3800 + $0x38] sm:$0xff] %v3815
                  %v3817 = vld [vmem:[%s3799 + $0x40] sm:$0xff]
                  %3818 = vst [vmem:[%s3800 + $0x40] sm:$0xff] %v3817
                  %v3819 = vld [vmem:[%s3799 + $0x48] sm:$0xff]
                  %3820 = vst [vmem:[%s3800 + $0x48] sm:$0xff] %v3819
                  %v3821 = vld [vmem:[%s3799 + $0x50] sm:$0xff]
                  %3822 = vst [vmem:[%s3800 + $0x50] sm:$0xff] %v3821
                  %v3823 = vld [vmem:[%s3799 + $0x58] sm:$0xff]
                  %3824 = vst [vmem:[%s3800 + $0x58] sm:$0xff] %v3823
                  %v3825 = vld [vmem:[%s3799 + $0x60] sm:$0xff]
                  %3826 = vst [vmem:[%s3800 + $0x60] sm:$0xff] %v3825
                  %v3827 = vld [vmem:[%s3799 + $0x68] sm:$0xff]
                  %3828 = vst [vmem:[%s3800 + $0x68] sm:$0xff] %v3827
                  %v3829 = vld [vmem:[%s3799 + $0x70] sm:$0xff]
                  %3830 = vst [vmem:[%s3800 + $0x70] sm:$0xff] %v3829
                  %v3831 = vld [vmem:[%s3799 + $0x78] sm:$0xff]
                  %3832 = vst [vmem:[%s3800 + $0x78] sm:$0xff] %v3831
                  %v3833 = vld [vmem:[%s3799 + $0x80] sm:$0xff]
                  %3834 = vst [vmem:[%s3800 + $0x80] sm:$0xff] %v3833
                  %v3835 = vld [vmem:[%s3799 + $0x88] sm:$0xff]
                  %3836 = vst [vmem:[%s3800 + $0x88] sm:$0xff] %v3835
                  %v3837 = vld [vmem:[%s3799 + $0x90] sm:$0xff]
                  %3838 = vst [vmem:[%s3800 + $0x90] sm:$0xff] %v3837
                  %v3839 = vld [vmem:[%s3799 + $0x98] sm:$0xff]
                  %3840 = vst [vmem:[%s3800 + $0x98] sm:$0xff] %v3839
                  %v3841 = vld [vmem:[%s3799 + $0xa0] sm:$0xff]
                  %3842 = vst [vmem:[%s3800 + $0xa0] sm:$0xff] %v3841
                  %v3843 = vld [vmem:[%s3799 + $0xa8] sm:$0xff]
                  %3844 = vst [vmem:[%s3800 + $0xa8] sm:$0xff] %v3843
                  %v3845 = vld [vmem:[%s3799 + $0xb0] sm:$0xff]
                  %3846 = vst [vmem:[%s3800 + $0xb0] sm:$0xff] %v3845
                  %v3847 = vld [vmem:[%s3799 + $0xb8] sm:$0xff]
                  %3848 = vst [vmem:[%s3800 + $0xb8] sm:$0xff] %v3847
                  %v3849 = vld [vmem:[%s3799 + $0xc0] sm:$0xff]
                  %3850 = vst [vmem:[%s3800 + $0xc0] sm:$0xff] %v3849
                  %v3851 = vld [vmem:[%s3799 + $0xc8] sm:$0xff]
                  %3852 = vst [vmem:[%s3800 + $0xc8] sm:$0xff] %v3851
                  %v3853 = vld [vmem:[%s3799 + $0xd0] sm:$0xff]
                  %3854 = vst [vmem:[%s3800 + $0xd0] sm:$0xff] %v3853
                  %v3855 = vld [vmem:[%s3799 + $0xd8] sm:$0xff]
                  %3856 = vst [vmem:[%s3800 + $0xd8] sm:$0xff] %v3855
                  %v3857 = vld [vmem:[%s3799 + $0xe0] sm:$0xff]
                  %3858 = vst [vmem:[%s3800 + $0xe0] sm:$0xff] %v3857
                  %v3859 = vld [vmem:[%s3799 + $0xe8] sm:$0xff]
                  %3860 = vst [vmem:[%s3800 + $0xe8] sm:$0xff] %v3859
                  %v3861 = vld [vmem:[%s3799 + $0xf0] sm:$0xff]
                  %3862 = vst [vmem:[%s3800 + $0xf0] sm:$0xff] %v3861
                  %v3863 = vld [vmem:[%s3799 + $0xf8] sm:$0xff]
                  %3864 = vst [vmem:[%s3800 + $0xf8] sm:$0xff] %v3863
                  %v3865 = vld [vmem:[%s3799 + $0x100] sm:$0xff]
                  %3866 = vst [vmem:[%s3800 + $0x100] sm:$0xff] %v3865
                  %v3867 = vld [vmem:[%s3799 + $0x108] sm:$0xff]
                  %3868 = vst [vmem:[%s3800 + $0x108] sm:$0xff] %v3867
                  %v3869 = vld [vmem:[%s3799 + $0x110] sm:$0xff]
                  %3870 = vst [vmem:[%s3800 + $0x110] sm:$0xff] %v3869
                  %v3871 = vld [vmem:[%s3799 + $0x118] sm:$0xff]
                  %3872 = vst [vmem:[%s3800 + $0x118] sm:$0xff] %v3871
                  %v3873 = vld [vmem:[%s3799 + $0x120] sm:$0xff]
                  %3874 = vst [vmem:[%s3800 + $0x120] sm:$0xff] %v3873
                  %v3875 = vld [vmem:[%s3799 + $0x128] sm:$0xff]
                  %3876 = vst [vmem:[%s3800 + $0x128] sm:$0xff] %v3875
                  %v3877 = vld [vmem:[%s3799 + $0x130] sm:$0xff]
                  %3878 = vst [vmem:[%s3800 + $0x130] sm:$0xff] %v3877
                  %v3879 = vld [vmem:[%s3799 + $0x138] sm:$0xff]
                  %3880 = vst [vmem:[%s3800 + $0x138] sm:$0xff] %v3879
                  %v3881 = vld [vmem:[%s3799 + $0x140] sm:$0xff]
                  %3882 = vst [vmem:[%s3800 + $0x140] sm:$0xff] %v3881
                  %v3883 = vld [vmem:[%s3799 + $0x148] sm:$0xff]
                  %3884 = vst [vmem:[%s3800 + $0x148] sm:$0xff] %v3883
                  %v3885 = vld [vmem:[%s3799 + $0x150] sm:$0xff]
                  %3886 = vst [vmem:[%s3800 + $0x150] sm:$0xff] %v3885
                  %v3887 = vld [vmem:[%s3799 + $0x158] sm:$0xff]
                  %3888 = vst [vmem:[%s3800 + $0x158] sm:$0xff] %v3887
                  %v3889 = vld [vmem:[%s3799 + $0x160] sm:$0xff]
                  %3890 = vst [vmem:[%s3800 + $0x160] sm:$0xff] %v3889
                  %v3891 = vld [vmem:[%s3799 + $0x168] sm:$0xff]
                  %3892 = vst [vmem:[%s3800 + $0x168] sm:$0xff] %v3891
                  %v3893 = vld [vmem:[%s3799 + $0x170] sm:$0xff]
                  %3894 = vst [vmem:[%s3800 + $0x170] sm:$0xff] %v3893
                  %v3895 = vld [vmem:[%s3799 + $0x178] sm:$0xff]
                  %3896 = vst [vmem:[%s3800 + $0x178] sm:$0xff] %v3895
                  %v3897 = vld [vmem:[%s3799 + $0x180] sm:$0xff]
                  %3898 = vst [vmem:[%s3800 + $0x180] sm:$0xff] %v3897
                  %v3899 = vld [vmem:[%s3799 + $0x188] sm:$0xff]
                  %3900 = vst [vmem:[%s3800 + $0x188] sm:$0xff] %v3899
                  %v3901 = vld [vmem:[%s3799 + $0x190] sm:$0xff]
                  %3902 = vst [vmem:[%s3800 + $0x190] sm:$0xff] %v3901
                  %v3903 = vld [vmem:[%s3799 + $0x198] sm:$0xff]
                  %3904 = vst [vmem:[%s3800 + $0x198] sm:$0xff] %v3903
                  %v3905 = vld [vmem:[%s3799 + $0x1a0] sm:$0xff]
                  %3906 = vst [vmem:[%s3800 + $0x1a0] sm:$0xff] %v3905
                  %v3907 = vld [vmem:[%s3799 + $0x1a8] sm:$0xff]
                  %3908 = vst [vmem:[%s3800 + $0x1a8] sm:$0xff] %v3907
                  %v3909 = vld [vmem:[%s3799 + $0x1b0] sm:$0xff]
                  %3910 = vst [vmem:[%s3800 + $0x1b0] sm:$0xff] %v3909
                  %v3911 = vld [vmem:[%s3799 + $0x1b8] sm:$0xff]
                  %3912 = vst [vmem:[%s3800 + $0x1b8] sm:$0xff] %v3911
                  %v3913 = vld [vmem:[%s3799 + $0x1c0] sm:$0xff]
                  %3914 = vst [vmem:[%s3800 + $0x1c0] sm:$0xff] %v3913
                  %v3915 = vld [vmem:[%s3799 + $0x1c8] sm:$0xff]
                  %3916 = vst [vmem:[%s3800 + $0x1c8] sm:$0xff] %v3915
                  %v3917 = vld [vmem:[%s3799 + $0x1d0] sm:$0xff]
                  %3918 = vst [vmem:[%s3800 + $0x1d0] sm:$0xff] %v3917
                  %v3919 = vld [vmem:[%s3799 + $0x1d8] sm:$0xff]
                  %3920 = vst [vmem:[%s3800 + $0x1d8] sm:$0xff] %v3919
                  %v3921 = vld [vmem:[%s3799 + $0x1e0] sm:$0xff]
                  %3922 = vst [vmem:[%s3800 + $0x1e0] sm:$0xff] %v3921
                  %v3923 = vld [vmem:[%s3799 + $0x1e8] sm:$0xff]
                  %3924 = vst [vmem:[%s3800 + $0x1e8] sm:$0xff] %v3923
                  %v3925 = vld [vmem:[%s3799 + $0x1f0] sm:$0xff]
                  %3926 = vst [vmem:[%s3800 + $0x1f0] sm:$0xff] %v3925
                  %v3927 = vld [vmem:[%s3799 + $0x1f8] sm:$0xff]
                  %3928 = vst [vmem:[%s3800 + $0x1f8] sm:$0xff] %v3927
                  %s3929 = sadd.s32 1, %s3798
                  %p3930 = scmp.ge.s32.totalorder %s3929, %s3789
                  %s3931 = scalar_select %p3930, 0, %s3929
                  %s3932 = smul.u32 %s3931, 512
                  %s3933 = smul.u32 %s3931, 512
                  %s3934 = scalar_lea.vmem %s3564, %s3932 [#allocation7]
                  %s3935 = scalar_lea.vmem %s3575, %s3933
                $region94: #{decoder_forward.3} parent=88 // loop_footer
                  %s3795 = sadd.s32 %s3793, 1
                $region95: #{decoder_forward.3} parent=88 // loop_footer_branch
                  %3792 = sbr.rel target = $region91
                $region96: #{decoder_forward.3} parent=88 // loop_exit
                  _
                %s3936 = sshrl.u32 %s3788, 6
                %s3937 = sand.u32 %s3788, 63
                %s3938 = smul.u32 %s3936, 64
                %s3939 = smul.u32 128, %s3938
                %s3940 = sshra.s32 %s3939, 4
                %s3941 = scalar_lea.vmem %s3564, %s3940 [#allocation7]
                %s3942 = smul.u32 128, %s3938
                %s3943 = sshra.s32 %s3942, 4
                %s3944 = scalar_lea.vmem %s3575, %s3943
                // While loop
                $region97: #{decoder_forward.3} parent=88 // loop_pre_header
                  _
                $region98: #{decoder_forward.3} parent=88 // loop_header
                  %s3948 = sphi 0, %s3950
                  %p3949 = scmp.ge.s32.totalorder %s3948, %s3937
                  %s3953 = sphi 0, %s3960
                  %s3954 = sphi %s3941, %s3963
                  %s3955 = sphi %s3944, %s3964
                $region99: #{decoder_forward.3} parent=88 // loop_header_branch
                  %3952 = sbr.rel (%p3949) target = $region103
                $region100: #{decoder_forward.3} parent=88 // loop_body
                  %v3956 = vld [vmem:[%s3954] sm:$0xff]
                  %3957 = vst [vmem:[%s3955] sm:$0xff] %v3956
                  %s3958 = sadd.s32 1, %s3953
                  %p3959 = scmp.ge.s32.totalorder %s3958, %s3937
                  %s3960 = scalar_select %p3959, 0, %s3958
                  %s3961 = smul.u32 %s3960, 8
                  %s3962 = smul.u32 %s3960, 8
                  %s3963 = scalar_lea.vmem %s3941, %s3961 [#allocation7]
                  %s3964 = scalar_lea.vmem %s3944, %s3962
                $region101: #{decoder_forward.3} parent=88 // loop_footer
                  %s3950 = sadd.s32 %s3948, 1
                $region102: #{decoder_forward.3} parent=88 // loop_footer_branch
                  %3947 = sbr.rel target = $region98
                $region103: #{decoder_forward.3} parent=88 // loop_exit
                  _
                %s3965 = sshllo.u32 0, %s3783
                loop: start=0, step=1, limit=1
                $region104: #{decoder_forward.3} parent=88 // loop_pre_header
                  _
                $region105: #{decoder_forward.3} parent=88 // loop_header
                  %s3967 = sphi 0, %s3971
                  %p3968 = scmp.ge.s32.totalorder %s3967, 1
                  %s3972 = sphi %s3785, %s3785
                  %s3973 = sphi %s3787, %s3787
                $region106: #{decoder_forward.3} parent=88 // loop_header_branch
                  %3970 = sbr.rel (%p3968) target = $region110
                $region107: #{decoder_forward.3} parent=88 // loop_body
                  %v3974 = vld [vmem:[%s3972] sm:%s3965]
                  %3975 = vst [vmem:[%s3973] sm:%s3965] %v3974
                $region108: #{decoder_forward.3} parent=88 // loop_footer
                  %s3971 = sadd.s32 1, %s3967
                $region109: #{decoder_forward.3} parent=88 // loop_footer_branch
                  %3966 = sbr.rel target = $region105
                $region110: #{decoder_forward.3} parent=88 // loop_exit
                  _
              $region89: #{decoder_forward.3} parent=55 // pred_fallthru
                _
            $region56: #{decoder_forward.3} parent=51 // pred_fallthru
              _
            // Predicated region
            $region57: #{decoder_forward.3} parent=51 // pred_check
              %p3584 = pneg %p3580
            $region58: #{decoder_forward.3} parent=51 // pred_check_branch
              %3586 = sbr.rel (%p3584) target = $region60
            $region59: #{decoder_forward.3} parent=51 // pred_region
              %s3587 = sshllo.u32 0, %s3576
              loop: start=0, step=1, limit=1
              $region61: #{decoder_forward.3} parent=59 // loop_pre_header
                _
              $region62: #{decoder_forward.3} parent=59 // loop_header
                %s3589 = sphi 0, %s3593
                %p3590 = scmp.ge.s32.totalorder %s3589, 1
                %s3594 = sphi %s3564, %s3564
                %s3595 = sphi %s3575, %s3575
              $region63: #{decoder_forward.3} parent=59 // loop_header_branch
                %3592 = sbr.rel (%p3590) target = $region67
              $region64: #{decoder_forward.3} parent=59 // loop_body
                %v3596 = vld [vmem:[%s3594] sm:%s3587]
                %3597 = vst [vmem:[%s3595] sm:%s3587] %v3596
              $region65: #{decoder_forward.3} parent=59 // loop_footer
                %s3593 = sadd.s32 1, %s3589
              $region66: #{decoder_forward.3} parent=59 // loop_footer_branch
                %3588 = sbr.rel target = $region62
              $region67: #{decoder_forward.3} parent=59 // loop_exit
                _
            $region60: #{decoder_forward.3} parent=51 // pred_fallthru
              _
          $region52: #{decoder_forward.3} parent=47 // pred_fallthru
            _
          %3976 = vnop
        $region48: #{decoder_forward.3} parent=31 // pred_fallthru
          _
      $region32: #{decoder_forward.3} parent=5 // pred_fallthru
        _
      %p3977 = scmp.le.s32.totalorder 2, %s13
      // Predicated region
      $region111: #{decoder_forward.3} parent=5 // pred_check
        %p3978 = pneg %p3977
      $region112: #{decoder_forward.3} parent=5 // pred_check_branch
        %3980 = sbr.rel (%p3978) target = $region114
      $region113: #{decoder_forward.3} parent=5 // pred_region
        %s3981 = ssub.s32 %s13, 2
        // Predicated region
        $region115: #{decoder_forward.3} parent=113 // pred_check
          %p3982 = pneg %p115
        $region116: #{decoder_forward.3} parent=113 // pred_check_branch
          %3984 = sbr.rel (%p3982) target = $region118
        $region117: #{decoder_forward.3} parent=113 // pred_region
          %s3985 = sand.u32 %s100, 1
          %s3986 = sand.u32 %s100, 1
          %s3987 = smul.addr %s3986, 128
          %s3988 = scalar_lea.vmem [#allocation7], %s3987
        $region118: #{decoder_forward.3} parent=113 // pred_fallthru
          _
      $region114: #{decoder_forward.3} parent=5 // pred_fallthru
        _
    $region6: #{decoder_forward.3} parent=1 // loop_footer
      %s17 = sadd.s32 1, %s13
    $region7: #{decoder_forward.3} parent=1 // loop_footer_branch
      %12 = sbr.rel target = $region3
    $region8: #{decoder_forward.3} parent=1 // loop_exit
      _
    %3989 = vsyncpa [#allocation3], 1
    %s3990 = scalar_lea.sflag [#allocation3], 1
    %3991 = vsyncpa %s3990, 1
    %3992 = vsyncpa [#allocation5], 1
    %s3993 = scalar_lea.sflag [#allocation5], 1
    %3994 = vsyncpa %s3993, 1

// kernel: decoder_forward.4
$region0: #{decoder_forward.4}
  #allocation0 [shape = 'u32[]', space=smem, size = 0x4, offset = 0x4, fixed_abs, tag = 'smem constant byte address 0x4 - core index']
  #allocation1 [shape = 'u32[144,128]{1,0:T(1,128)}', space=vmem, size = 0x12000, scoped, tag = 'internal scratch']
  #allocation2 [shape = 'f32[43,344]{1,0:T(8,128)}', space=vmem, size = 0x12000, scoped, tag = 'scratch operand']
  %s0 = inlined_call_operand.vmem [shape: f32[2,39,312], index: 0, kind: input, shape index: {}]
  %s1 = inlined_call_operand.vmem [shape: f32[3,272,256], index: 1, kind: input, shape index: {}]
  %s2 = inlined_call_operand.vmem [shape: f32[1,256], index: 2, kind: input, shape index: {}]
  %s3 = inlined_call_operand.vmem [shape: f32[2,41,328], index: 3, kind: output, shape index: {}]
  %s4 = sld [smem:[#allocation0]]
  $region45: #{decoder_forward.4} parent=0
    _
  %s6 = ssub.s32 1, %s4
  %s7 = scalar_select 0, %s6, %s4
  loop: start=0, step=1, limit=4
  $region2: #{decoder_forward.4} parent=0 // loop_pre_header
    _
  $region3: #{decoder_forward.4} parent=0 // loop_header
    %s9 = sphi 0, %s13
    %p10 = scmp.ge.s32.totalorder %s9, 4
    %s19 = sphi 0, %s21
    %s22 = sphi 0, %s19
    %s23 = sphi 0, %s22
    %s39 = sphi 0, %s23
    %s43 = sphi 0, %s43
    %s45 = sphi 0, %s43
    %s46 = sphi 0, %s45
    %s60 = sphi 0, %s46
    %s64 = sphi 0, %s64
    %s66 = sphi 0, %s64
    %s67 = sphi 0, %s66
    %s81 = sphi 0, %s67
    %s87 = sphi 0, %s89
    %s90 = sphi 0, %s87
    %s91 = sphi 0, %s90
    %s107 = sphi 0, %s91
  $region4: #{decoder_forward.4} parent=0 // loop_header_branch
    %12 = sbr.rel (%p10) target = $region8
  $region5: #{decoder_forward.4} parent=0 // loop_body
    %s14 = ssub.s32 %s9, 1
    %s15 = ssub.s32 %s9, 2
    %s16 = sadd.s32 %s9, 1
    %s17 = ssub.s32 %s9, %s16
    %p18 = scmp.eq.s32.totalorder %s17, 0
    %s20 = sadd.s32 %s19, 1
    %s21 = scalar_select %p18, %s19, %s20
    %p24 = pneg %p18
    %p25 = scmp.eq.s32.totalorder %s9, 1
    %p26 = por %p24, %p25
    %p27 = scmp.ne.s32.totalorder %s19, %s22
    %p28 = scmp.eq.s32.totalorder %s9, 0
    %p29 = por %p27, %p28
    %p30 = scmp.ne.s32.totalorder %s19, %s22
    %p31 = scmp.eq.s32.totalorder %s14, 1
    %p32 = por %p30, %p31
    %p33 = scmp.ne.s32.totalorder %s22, %s23
    %p34 = scmp.eq.s32.totalorder %s14, 0
    %p35 = por %p33, %p34
    %p36 = scmp.ne.s32.totalorder %s22, %s23
    %p37 = scmp.eq.s32.totalorder %s15, 1
    %p38 = por %p36, %p37
    %p40 = scmp.ne.s32.totalorder %s23, %s39
    %p41 = scmp.eq.s32.totalorder %s15, 0
    %p42 = por %p40, %p41
    %s44 = sadd.s32 %s43, 1
    %p47 = scmp.eq.s32.totalorder %s9, 1
    %p48 = scmp.ne.s32.totalorder %s43, %s45
    %p49 = scmp.eq.s32.totalorder %s9, 0
    %p50 = por %p48, %p49
    %p51 = scmp.ne.s32.totalorder %s43, %s45
    %p52 = scmp.eq.s32.totalorder %s14, 1
    %p53 = por %p51, %p52
    %p54 = scmp.ne.s32.totalorder %s45, %s46
    %p55 = scmp.eq.s32.totalorder %s14, 0
    %p56 = por %p54, %p55
    %p57 = scmp.ne.s32.totalorder %s45, %s46
    %p58 = scmp.eq.s32.totalorder %s15, 1
    %p59 = por %p57, %p58
    %p61 = scmp.ne.s32.totalorder %s46, %s60
    %p62 = scmp.eq.s32.totalorder %s15, 0
    %p63 = por %p61, %p62
    %s65 = sadd.s32 %s64, 1
    %p68 = scmp.eq.s32.totalorder %s9, 1
    %p69 = scmp.ne.s32.totalorder %s64, %s66
    %p70 = scmp.eq.s32.totalorder %s9, 0
    %p71 = por %p69, %p70
    %p72 = scmp.ne.s32.totalorder %s64, %s66
    %p73 = scmp.eq.s32.totalorder %s14, 1
    %p74 = por %p72, %p73
    %p75 = scmp.ne.s32.totalorder %s66, %s67
    %p76 = scmp.eq.s32.totalorder %s14, 0
    %p77 = por %p75, %p76
    %p78 = scmp.ne.s32.totalorder %s66, %s67
    %p79 = scmp.eq.s32.totalorder %s15, 1
    %p80 = por %p78, %p79
    %p82 = scmp.ne.s32.totalorder %s67, %s81
    %p83 = scmp.eq.s32.totalorder %s15, 0
    %p84 = por %p82, %p83
    %s85 = ssub.s32 %s9, %s16
    %p86 = scmp.eq.s32.totalorder %s85, 0
    %s88 = sadd.s32 %s87, 1
    %s89 = scalar_select %p86, %s87, %s88
    %p92 = pneg %p86
    %p93 = scmp.eq.s32.totalorder %s9, 1
    %p94 = por %p92, %p93
    %p95 = scmp.ne.s32.totalorder %s87, %s90
    %p96 = scmp.eq.s32.totalorder %s9, 0
    %p97 = por %p95, %p96
    %p98 = scmp.ne.s32.totalorder %s87, %s90
    %p99 = scmp.eq.s32.totalorder %s14, 1
    %p100 = por %p98, %p99
    %p101 = scmp.ne.s32.totalorder %s90, %s91
    %p102 = scmp.eq.s32.totalorder %s14, 0
    %p103 = por %p101, %p102
    %p104 = scmp.ne.s32.totalorder %s90, %s91
    %p105 = scmp.eq.s32.totalorder %s15, 1
    %p106 = por %p104, %p105
    %p108 = scmp.ne.s32.totalorder %s91, %s107
    %p109 = scmp.eq.s32.totalorder %s15, 0
    %p110 = por %p108, %p109
    %p111 = scmp.le.s32.totalorder 1, %s9
    %p112 = scmp.lt.s32.totalorder %s9, 3
    %p113 = pnand %p111, %p112
    %p114 = pneg %p113
    // Predicated region
    $region9: #{decoder_forward.4} parent=5 // pred_check
      _
    $region10: #{decoder_forward.4} parent=5 // pred_check_branch
      %116 = sbr.rel (%p113) target = $region12
    $region11: #{decoder_forward.4} parent=5 // pred_region
      %s117 = ssub.s32 %s9, 1
      // Predicated region
      $region13: #{decoder_forward.4} parent=11 // pred_check
        %p118 = pneg %p56
      $region14: #{decoder_forward.4} parent=11 // pred_check_branch
        %120 = sbr.rel (%p118) target = $region16
      $region15: #{decoder_forward.4} parent=11 // pred_region
        _
      $region16: #{decoder_forward.4} parent=11 // pred_fallthru
        _
      // Predicated region
      $region17: #{decoder_forward.4} parent=11 // pred_check
        %p121 = pneg %p77
      $region18: #{decoder_forward.4} parent=11 // pred_check_branch
        %123 = sbr.rel (%p121) target = $region20
      $region19: #{decoder_forward.4} parent=11 // pred_region
        _
      $region20: #{decoder_forward.4} parent=11 // pred_fallthru
        _
    $region12: #{decoder_forward.4} parent=5 // pred_fallthru
      _
    %p124 = scmp.lt.s32.totalorder %s9, 2
    // Predicated region
    $region21: #{decoder_forward.4} parent=5 // pred_check
      %p125 = pneg %p124
    $region22: #{decoder_forward.4} parent=5 // pred_check_branch
      %127 = sbr.rel (%p125) target = $region24
    $region23: #{decoder_forward.4} parent=5 // pred_region
      // Predicated region
      $region25: #{decoder_forward.4} parent=23 // pred_check
        %p128 = pneg %p29
      $region26: #{decoder_forward.4} parent=23 // pred_check_branch
        %130 = sbr.rel (%p128) target = $region28
      $region27: #{decoder_forward.4} parent=23 // pred_region
        %p131 = scmp.lt.s32.totalorder %s9, 1
        %s132 = scalar_select %p131, %s9, 1
        %s133 = smul.addr %s132, 15
        %s134 = smul.addr %s133, 8
        %s135 = scalar_lea.vmem %s0, %s134
      $region28: #{decoder_forward.4} parent=23 // pred_fallthru
        _
    $region24: #{decoder_forward.4} parent=5 // pred_fallthru
      _
    %p136 = scmp.le.s32.totalorder 1, %s9
    %p137 = scmp.lt.s32.totalorder %s9, 3
    %p138 = pnand %p136, %p137
    %p139 = pneg %p138
    // Predicated region
    $region29: #{decoder_forward.4} parent=5 // pred_check
      _
    $region30: #{decoder_forward.4} parent=5 // pred_check_branch
      %141 = sbr.rel (%p138) target = $region32
    $region31: #{decoder_forward.4} parent=5 // pred_region
      %s142 = ssub.s32 %s9, 1
      %p143 = scmp.lt.s32.totalorder %s14, 1
      %s144 = scalar_select %p143, %s14, 1
      %s145 = smul.addr %s144, 15
      %s146 = smul.addr %s145, 8
      %s147 = scalar_lea.vmem %s0, %s146
      %p148 = pneg %p35
      %p149 = pneg %p32
      %p150 = pneg %p56
      %p151 = pneg %p53
      %p152 = pneg %p77
      %p153 = pneg %p74
      %p154 = pneg %p103
      %p155 = pneg %p100
      %p156 = scmp.lt.s32.totalorder %s14, 1
      %s157 = scalar_select %p156, %s14, 1
      %s158 = smul.addr %s157, 18
      %s159 = smul.addr %s158, 8
      %s160 = scalar_lea.vmem %s3, %s159
      %p161 = scmp.lt.s32.totalorder %s14, 1
      %s162 = scalar_select %p161, %s14, 1
      %s163 = smul.addr %s162, 15
      %s164 = smul.addr %s163, 8
      %s165 = scalar_lea.vmem %s0, %s164
      %p166 = scmp.lt.s32.totalorder %s14, 1
      %s167 = scalar_select %p166, %s14, 1
      %s168 = smul.addr %s167, 18
      %s169 = smul.addr %s168, 8
      %s170 = scalar_lea.vmem %s3, %s169
      %171 = vst [vmem:[#allocation2] sm:$0xff] 0.0
      %172 = vst [vmem:[#allocation2 + $0x8] sm:$0xff] 0.0
      %vm173 = vcmask 719872
      %174 = vst.msk [vmem:[#allocation2 + $0x10] sm:$0xff] %vm173, 0.0
      %175 = vst [vmem:[#allocation2 + $0x18] sm:$0xff] 0.0
      %176 = vst [vmem:[#allocation2 + $0x20] sm:$0xff] 0.0
      %177 = vst.msk [vmem:[#allocation2 + $0x28] sm:$0xff] %vm173, 0.0
      %178 = vst [vmem:[#allocation2 + $0x30] sm:$0xff] 0.0
      %179 = vst [vmem:[#allocation2 + $0x38] sm:$0xff] 0.0
      %180 = vst.msk [vmem:[#allocation2 + $0x40] sm:$0xff] %vm173, 0.0
      %181 = vst [vmem:[#allocation2 + $0x48] sm:$0xff] 0.0
      %182 = vst [vmem:[#allocation2 + $0x50] sm:$0xff] 0.0
      %183 = vst.msk [vmem:[#allocation2 + $0x58] sm:$0xff] %vm173, 0.0
      %184 = vst [vmem:[#allocation2 + $0x60] sm:$0xff] 0.0
      %185 = vst [vmem:[#allocation2 + $0x68] sm:$0xff] 0.0
      %186 = vst.msk [vmem:[#allocation2 + $0x70] sm:$0xff] %vm173, 0.0
      %187 = vst [vmem:[#allocation2 + $0x78] sm:$0x7] 0.0
      %188 = vst [vmem:[#allocation2 + $0x80] sm:$0x7] 0.0
      %vm189 = vcmask 714752
      %190 = vst.msk [vmem:[#allocation2 + $0x88] sm:$0x7] %vm189, 0.0
      %v191 = vld [vmem:[%s165] sm:$0xff]
      %v192 = vld [vmem:[%s165 + $0x8] sm:$0xff]
      %v193 = vld [vmem:[%s165 + $0x10] sm:$0xff]
      %v194 = vld [vmem:[%s165 + $0x18] sm:$0xff]
      %v195 = vld [vmem:[%s165 + $0x20] sm:$0xff]
      %v196 = vld [vmem:[%s165 + $0x28] sm:$0xff]
      %v197 = vld [vmem:[%s165 + $0x30] sm:$0xff]
      %v198 = vld [vmem:[%s165 + $0x38] sm:$0xff]
      %v199 = vld [vmem:[%s165 + $0x40] sm:$0xff]
      %v200 = vld [vmem:[%s165 + $0x48] sm:$0xff]
      %v201 = vld [vmem:[%s165 + $0x50] sm:$0xff]
      %v202 = vld [vmem:[%s165 + $0x58] sm:$0xff]
      %v203 = vld [vmem:[%s165 + $0x60] sm:$0x7f]
      %v204 = vld [vmem:[%s165 + $0x68] sm:$0x7f]
      %v205 = vld [vmem:[%s165 + $0x70] sm:$0x7f]
      %vm221 = vcmask 1041408
      %v222 = vrot.slane %v191, 6
      %v223 = vrot.slane %v192, 6
      %v224 = vrot.slane %v193, 6
      %v225 = vrot.slane %v194, 6
      %v226 = vsel %vm221, %v222, %v225
      %v227 = vrot.slane %v195, 6
      %v228 = vsel %vm221, %v223, %v227
      %v229 = vrot.slane %v196, 6
      %v230 = vsel %vm221, %v224, %v229
      %v231 = vrot.slane %v197, 6
      %v232 = vsel %vm221, %v225, %v231
      %v233 = vrot.slane %v198, 6
      %v234 = vsel %vm221, %v227, %v233
      %v235 = vrot.slane %v199, 6
      %v236 = vsel %vm221, %v229, %v235
      %v237 = vrot.slane %v200, 6
      %v238 = vsel %vm221, %v231, %v237
      %v239 = vrot.slane %v201, 6
      %v240 = vsel %vm221, %v233, %v239
      %v241 = vrot.slane %v202, 6
      %v242 = vsel %vm221, %v235, %v241
      %v243 = vrot.slane %v203, 6
      %v244 = vsel %vm221, %v237, %v243
      %v245 = vrot.slane %v204, 6
      %v246 = vsel %vm221, %v239, %v245
      %v247 = vrot.slane %v205, 6
      %v248 = vsel %vm221, %v241, %v247
      %249 = vrot.lane.b32.xlu0 %v222, 16
      %v250 = vpop.permute.xlu0 %249
      %251 = vrot.lane.b32.xlu0 %v223, 16
      %v252 = vpop.permute.xlu0 %251
      %253 = vrot.lane.b32.xlu0 %v224, 16
      %v254 = vpop.permute.xlu0 %253
      %255 = vrot.lane.b32.xlu0 %v226, 16
      %v256 = vpop.permute.xlu0 %255
      %257 = vrot.lane.b32.xlu0 %v228, 16
      %v258 = vpop.permute.xlu0 %257
      %259 = vrot.lane.b32.xlu0 %v230, 16
      %v260 = vpop.permute.xlu0 %259
      %261 = vrot.lane.b32.xlu0 %v232, 16
      %v262 = vpop.permute.xlu0 %261
      %263 = vrot.lane.b32.xlu0 %v234, 16
      %v264 = vpop.permute.xlu0 %263
      %265 = vrot.lane.b32.xlu0 %v236, 16
      %v266 = vpop.permute.xlu0 %265
      %267 = vrot.lane.b32.xlu0 %v238, 16
      %v268 = vpop.permute.xlu0 %267
      %269 = vrot.lane.b32.xlu0 %v240, 16
      %v270 = vpop.permute.xlu0 %269
      %271 = vrot.lane.b32.xlu0 %v242, 16
      %v272 = vpop.permute.xlu0 %271
      %273 = vrot.lane.b32.xlu0 %v244, 16
      %v274 = vpop.permute.xlu0 %273
      %275 = vrot.lane.b32.xlu0 %v246, 16
      %v276 = vpop.permute.xlu0 %275
      %277 = vrot.lane.b32.xlu0 %v248, 16
      %v278 = vpop.permute.xlu0 %277
      %279 = vrot.lane.b32.xlu0 %v243, 16
      %v280 = vpop.permute.xlu0 %279
      %281 = vrot.lane.b32.xlu0 %v245, 16
      %v282 = vpop.permute.xlu0 %281
      %283 = vrot.lane.b32.xlu0 %v247, 16
      %v284 = vpop.permute.xlu0 %283
      %vm285 = vcmask 130048
      %v286 = vsel %vm285, %v250, %v252
      %v287 = vsel %vm285, %v252, %v254
      %v288 = vsel %vm285, %v256, %v258
      %v289 = vsel %vm285, %v258, %v260
      %v290 = vsel %vm285, %v262, %v264
      %v291 = vsel %vm285, %v264, %v266
      %v292 = vsel %vm285, %v268, %v270
      %v293 = vsel %vm285, %v270, %v272
      %v294 = vsel %vm285, %v274, %v276
      %v295 = vsel %vm285, %v276, %v278
      %v296 = vsel %vm285, %v280, %v282
      %v297 = vsel %vm285, %v282, %v284
      %vm316 = vcmask 1047682
      %317 = vst.msk [vmem:[#allocation2] sm:$0xfc] %vm316, %v250
      %318 = vst [vmem:[#allocation2 + $0x8] sm:$0xfc] %v286
      %vm319 = vcmask 588802
      %320 = vst.msk [vmem:[#allocation2 + $0x10] sm:$0xfc] %vm319, %v287
      %vm321 = vcmask 1047680
      %322 = vst.msk [vmem:[#allocation2 + $0x18] sm:$0xff] %vm321, %v256
      %323 = vst [vmem:[#allocation2 + $0x20] sm:$0xff] %v288
      %vm324 = vcmask 588800
      %325 = vst.msk [vmem:[#allocation2 + $0x28] sm:$0xff] %vm324, %v289
      %326 = vst.msk [vmem:[#allocation2 + $0x30] sm:$0xff] %vm321, %v262
      %327 = vst [vmem:[#allocation2 + $0x38] sm:$0xff] %v290
      %328 = vst.msk [vmem:[#allocation2 + $0x40] sm:$0xff] %vm324, %v291
      %329 = vst.msk [vmem:[#allocation2 + $0x48] sm:$0xff] %vm321, %v268
      %330 = vst [vmem:[#allocation2 + $0x50] sm:$0xff] %v292
      %331 = vst.msk [vmem:[#allocation2 + $0x58] sm:$0xff] %vm324, %v293
      %332 = vst.msk [vmem:[#allocation2 + $0x60] sm:$0xff] %vm321, %v274
      %333 = vst [vmem:[#allocation2 + $0x68] sm:$0xff] %v294
      %334 = vst.msk [vmem:[#allocation2 + $0x70] sm:$0xff] %vm324, %v295
      %vm335 = vcmask 1040512
      %336 = vst.msk [vmem:[#allocation2 + $0x78] sm:$0x1] %vm335, %v280
      %337 = vst [vmem:[#allocation2 + $0x80] sm:$0x1] %v296
      %vm338 = vcmask 581632
      %339 = vst.msk [vmem:[#allocation2 + $0x88] sm:$0x1] %vm338, %v297
      %v340 = vld [vmem:[#allocation2] sm:$0xff]
      %v341 = vld [vmem:[#allocation2 + $0x8] sm:$0xff]
      %v342 = vld [vmem:[#allocation2 + $0x10] sm:$0xff]
      %v343 = vld [vmem:[#allocation2 + $0x18] sm:$0xff]
      %v344 = vld [vmem:[#allocation2 + $0x20] sm:$0xff]
      %v345 = vld [vmem:[#allocation2 + $0x28] sm:$0xff]
      %v346 = vld [vmem:[#allocation2 + $0x30] sm:$0xff]
      %v347 = vld [vmem:[#allocation2 + $0x38] sm:$0xff]
      %v348 = vld [vmem:[#allocation2 + $0x40] sm:$0xff]
      %v349 = vld [vmem:[#allocation2 + $0x48] sm:$0xff]
      %v350 = vld [vmem:[#allocation2 + $0x50] sm:$0xff]
      %v351 = vld [vmem:[#allocation2 + $0x58] sm:$0xff]
      %v352 = vld [vmem:[#allocation2 + $0x60] sm:$0xff]
      %v353 = vld [vmem:[#allocation2 + $0x68] sm:$0xff]
      %v354 = vld [vmem:[#allocation2 + $0x70] sm:$0xff]
      %v355 = vld [vmem:[#allocation2 + $0x78] sm:$0x1]
      %v356 = vld [vmem:[#allocation2 + $0x80] sm:$0x1]
      %v357 = vld [vmem:[#allocation2 + $0x88] sm:$0x1]
      %v358 = vld [vmem:[%s1] sm:$0xff]
      %v359 = vld [vmem:[%s1 + $0x8] sm:$0xff]
      %v360 = vld [vmem:[%s1 + $0x10] sm:$0xff]
      %v361 = vld [vmem:[%s1 + $0x18] sm:$0xff]
      %v362 = vld [vmem:[%s1 + $0x20] sm:$0xff]
      %v363 = vld [vmem:[%s1 + $0x28] sm:$0xff]
      %v364 = vld [vmem:[%s1 + $0x30] sm:$0xff]
      %v365 = vld [vmem:[%s1 + $0x38] sm:$0xff]
      %v366 = vld [vmem:[%s1 + $0x40] sm:$0xff]
      %v367 = vld [vmem:[%s1 + $0x48] sm:$0xff]
      %v368 = vld [vmem:[%s1 + $0x50] sm:$0xff]
      %v369 = vld [vmem:[%s1 + $0x58] sm:$0xff]
      %v370 = vld [vmem:[%s1 + $0x60] sm:$0xff]
      %v371 = vld [vmem:[%s1 + $0x68] sm:$0xff]
      %v372 = vld [vmem:[%s1 + $0x70] sm:$0xff]
      %v373 = vld [vmem:[%s1 + $0x78] sm:$0xff]
      %v374 = vld [vmem:[%s1 + $0x80] sm:$0xff]
      %v375 = vld [vmem:[%s1 + $0x88] sm:$0xff]
      %v376 = vld [vmem:[%s1 + $0x90] sm:$0xff]
      %v377 = vld [vmem:[%s1 + $0x98] sm:$0xff]
      %v378 = vld [vmem:[%s1 + $0xa0] sm:$0xff]
      %v379 = vld [vmem:[%s1 + $0xa8] sm:$0xff]
      %v380 = vld [vmem:[%s1 + $0xb0] sm:$0xff]
      %v381 = vld [vmem:[%s1 + $0xb8] sm:$0xff]
      %v382 = vld [vmem:[%s1 + $0xc0] sm:$0xff]
      %v383 = vld [vmem:[%s1 + $0xc8] sm:$0xff]
      %v384 = vld [vmem:[%s1 + $0xd0] sm:$0xff]
      %v385 = vld [vmem:[%s1 + $0xd8] sm:$0xff]
      %v386 = vld [vmem:[%s1 + $0xe0] sm:$0xff]
      %v387 = vld [vmem:[%s1 + $0xe8] sm:$0xff]
      %v388 = vld [vmem:[%s1 + $0xf0] sm:$0xff]
      %v389 = vld [vmem:[%s1 + $0xf8] sm:$0xff]
      %v390 = vld [vmem:[%s1 + $0x100] sm:$0xff]
      %v391 = vld [vmem:[%s1 + $0x108] sm:$0xff]
      %v392 = vld [vmem:[%s1 + $0x110] sm:$0xff]
      %v393 = vld [vmem:[%s1 + $0x118] sm:$0xff]
      %v394 = vld [vmem:[%s1 + $0x120] sm:$0xff]
      %v395 = vld [vmem:[%s1 + $0x128] sm:$0xff]
      %v396 = vld [vmem:[%s1 + $0x130] sm:$0xff]
      %v397 = vld [vmem:[%s1 + $0x138] sm:$0xff]
      %v398 = vld [vmem:[%s1 + $0x140] sm:$0xff]
      %v399 = vld [vmem:[%s1 + $0x148] sm:$0xff]
      %v400 = vld [vmem:[%s1 + $0x150] sm:$0xff]
      %v401 = vld [vmem:[%s1 + $0x158] sm:$0xff]
      %v402 = vld [vmem:[%s1 + $0x160] sm:$0xff]
      %v403 = vld [vmem:[%s1 + $0x168] sm:$0xff]
      %v404 = vld [vmem:[%s1 + $0x170] sm:$0xff]
      %v405 = vld [vmem:[%s1 + $0x178] sm:$0xff]
      %v406 = vld [vmem:[%s1 + $0x180] sm:$0xff]
      %v407 = vld [vmem:[%s1 + $0x188] sm:$0xff]
      %v408 = vld [vmem:[%s1 + $0x190] sm:$0xff]
      %v409 = vld [vmem:[%s1 + $0x198] sm:$0xff]
      %v410 = vld [vmem:[%s1 + $0x1a0] sm:$0xff]
      %v411 = vld [vmem:[%s1 + $0x1a8] sm:$0xff]
      %v412 = vld [vmem:[%s1 + $0x1b0] sm:$0xff]
      %v413 = vld [vmem:[%s1 + $0x1b8] sm:$0xff]
      %v414 = vld [vmem:[%s1 + $0x1c0] sm:$0xff]
      %v415 = vld [vmem:[%s1 + $0x1c8] sm:$0xff]
      %v416 = vld [vmem:[%s1 + $0x1d0] sm:$0xff]
      %v417 = vld [vmem:[%s1 + $0x1d8] sm:$0xff]
      %v418 = vld [vmem:[%s1 + $0x1e0] sm:$0xff]
      %v419 = vld [vmem:[%s1 + $0x1e8] sm:$0xff]
      %v420 = vld [vmem:[%s1 + $0x1f0] sm:$0xff]
      %v421 = vld [vmem:[%s1 + $0x1f8] sm:$0xff]
      %v422 = vld [vmem:[%s1 + $0x200] sm:$0xff]
      %v423 = vld [vmem:[%s1 + $0x208] sm:$0xff]
      %v424 = vld [vmem:[%s1 + $0x210] sm:$0xff]
      %v425 = vld [vmem:[%s1 + $0x218] sm:$0xff]
      %v426 = vld [vmem:[#allocation2] sm:$0xfe]
      %v427 = vld [vmem:[#allocation2 + $0x8] sm:$0xfe]
      %v428 = vld [vmem:[#allocation2 + $0x10] sm:$0xfe]
      %v429 = vld [vmem:[#allocation2 + $0x78] sm:$0x3]
      %v430 = vld [vmem:[#allocation2 + $0x80] sm:$0x3]
      %v431 = vld [vmem:[#allocation2 + $0x88] sm:$0x3]
      %s432 = scalar_lea.vmem %s1, 544
      %v433 = vld [vmem:[%s432] sm:$0xff]
      %v434 = vld [vmem:[%s432 + $0x8] sm:$0xff]
      %v435 = vld [vmem:[%s432 + $0x10] sm:$0xff]
      %v436 = vld [vmem:[%s432 + $0x18] sm:$0xff]
      %v437 = vld [vmem:[%s432 + $0x20] sm:$0xff]
      %v438 = vld [vmem:[%s432 + $0x28] sm:$0xff]
      %v439 = vld [vmem:[%s432 + $0x30] sm:$0xff]
      %v440 = vld [vmem:[%s432 + $0x38] sm:$0xff]
      %v441 = vld [vmem:[%s432 + $0x40] sm:$0xff]
      %v442 = vld [vmem:[%s432 + $0x48] sm:$0xff]
      %v443 = vld [vmem:[%s432 + $0x50] sm:$0xff]
      %v444 = vld [vmem:[%s432 + $0x58] sm:$0xff]
      %v445 = vld [vmem:[%s432 + $0x60] sm:$0xff]
      %v446 = vld [vmem:[%s432 + $0x68] sm:$0xff]
      %v447 = vld [vmem:[%s432 + $0x70] sm:$0xff]
      %v448 = vld [vmem:[%s432 + $0x78] sm:$0xff]
      %v449 = vld [vmem:[%s432 + $0x80] sm:$0xff]
      %v450 = vld [vmem:[%s432 + $0x88] sm:$0xff]
      %v451 = vld [vmem:[%s432 + $0x90] sm:$0xff]
      %v452 = vld [vmem:[%s432 + $0x98] sm:$0xff]
      %v453 = vld [vmem:[%s432 + $0xa0] sm:$0xff]
      %v454 = vld [vmem:[%s432 + $0xa8] sm:$0xff]
      %v455 = vld [vmem:[%s432 + $0xb0] sm:$0xff]
      %v456 = vld [vmem:[%s432 + $0xb8] sm:$0xff]
      %v457 = vld [vmem:[%s432 + $0xc0] sm:$0xff]
      %v458 = vld [vmem:[%s432 + $0xc8] sm:$0xff]
      %v459 = vld [vmem:[%s432 + $0xd0] sm:$0xff]
      %v460 = vld [vmem:[%s432 + $0xd8] sm:$0xff]
      %v461 = vld [vmem:[%s432 + $0xe0] sm:$0xff]
      %v462 = vld [vmem:[%s432 + $0xe8] sm:$0xff]
      %v463 = vld [vmem:[%s432 + $0xf0] sm:$0xff]
      %v464 = vld [vmem:[%s432 + $0xf8] sm:$0xff]
      %v465 = vld [vmem:[%s432 + $0x100] sm:$0xff]
      %v466 = vld [vmem:[%s432 + $0x108] sm:$0xff]
      %v467 = vld [vmem:[%s432 + $0x110] sm:$0xff]
      %v468 = vld [vmem:[%s432 + $0x118] sm:$0xff]
      %v469 = vld [vmem:[%s432 + $0x120] sm:$0xff]
      %v470 = vld [vmem:[%s432 + $0x128] sm:$0xff]
      %v471 = vld [vmem:[%s432 + $0x130] sm:$0xff]
      %v472 = vld [vmem:[%s432 + $0x138] sm:$0xff]
      %v473 = vld [vmem:[%s432 + $0x140] sm:$0xff]
      %v474 = vld [vmem:[%s432 + $0x148] sm:$0xff]
      %v475 = vld [vmem:[%s432 + $0x150] sm:$0xff]
      %v476 = vld [vmem:[%s432 + $0x158] sm:$0xff]
      %v477 = vld [vmem:[%s432 + $0x160] sm:$0xff]
      %v478 = vld [vmem:[%s432 + $0x168] sm:$0xff]
      %v479 = vld [vmem:[%s432 + $0x170] sm:$0xff]
      %v480 = vld [vmem:[%s432 + $0x178] sm:$0xff]
      %v481 = vld [vmem:[%s432 + $0x180] sm:$0xff]
      %v482 = vld [vmem:[%s432 + $0x188] sm:$0xff]
      %v483 = vld [vmem:[%s432 + $0x190] sm:$0xff]
      %v484 = vld [vmem:[%s432 + $0x198] sm:$0xff]
      %v485 = vld [vmem:[%s432 + $0x1a0] sm:$0xff]
      %v486 = vld [vmem:[%s432 + $0x1a8] sm:$0xff]
      %v487 = vld [vmem:[%s432 + $0x1b0] sm:$0xff]
      %v488 = vld [vmem:[%s432 + $0x1b8] sm:$0xff]
      %v489 = vld [vmem:[%s432 + $0x1c0] sm:$0xff]
      %v490 = vld [vmem:[%s432 + $0x1c8] sm:$0xff]
      %v491 = vld [vmem:[%s432 + $0x1d0] sm:$0xff]
      %v492 = vld [vmem:[%s432 + $0x1d8] sm:$0xff]
      %v493 = vld [vmem:[%s432 + $0x1e0] sm:$0xff]
      %v494 = vld [vmem:[%s432 + $0x1e8] sm:$0xff]
      %v495 = vld [vmem:[%s432 + $0x1f0] sm:$0xff]
      %v496 = vld [vmem:[%s432 + $0x1f8] sm:$0xff]
      %v497 = vld [vmem:[%s432 + $0x200] sm:$0xff]
      %v498 = vld [vmem:[%s432 + $0x208] sm:$0xff]
      %v499 = vld [vmem:[%s432 + $0x210] sm:$0xff]
      %v500 = vld [vmem:[%s432 + $0x218] sm:$0xff]
      %vm519 = vcmask 1046528
      %v520 = vrot.slane %v426, 1
      %v521 = vrot.slane %v343, 1
      %v522 = vsel %vm519, %v520, %v521
      %v523 = vrot.slane %v427, 1
      %v524 = vrot.slane %v344, 1
      %v525 = vsel %vm519, %v523, %v524
      %v526 = vrot.slane %v428, 1
      %v527 = vrot.slane %v345, 1
      %v528 = vsel %vm519, %v526, %v527
      %v529 = vrot.slane %v346, 1
      %v530 = vsel %vm519, %v521, %v529
      %v531 = vrot.slane %v347, 1
      %v532 = vsel %vm519, %v524, %v531
      %v533 = vrot.slane %v348, 1
      %v534 = vsel %vm519, %v527, %v533
      %v535 = vrot.slane %v349, 1
      %v536 = vsel %vm519, %v529, %v535
      %v537 = vrot.slane %v350, 1
      %v538 = vsel %vm519, %v531, %v537
      %v539 = vrot.slane %v351, 1
      %v540 = vsel %vm519, %v533, %v539
      %v541 = vrot.slane %v352, 1
      %v542 = vsel %vm519, %v535, %v541
      %v543 = vrot.slane %v353, 1
      %v544 = vsel %vm519, %v537, %v543
      %v545 = vrot.slane %v354, 1
      %v546 = vsel %vm519, %v539, %v545
      %v547 = vrot.slane %v429, 1
      %v548 = vsel %vm519, %v541, %v547
      %v549 = vrot.slane %v430, 1
      %v550 = vsel %vm519, %v543, %v549
      %v551 = vrot.slane %v431, 1
      %v552 = vsel %vm519, %v545, %v551
      %v565 = vsel %vm285, %v528, 0
      %v567 = vsel %vm285, %v534, 0
      %v569 = vsel %vm285, %v540, 0
      %v571 = vsel %vm285, %v546, 0
      %v573 = vsel %vm285, %v552, 0
      %v575 = vsel %vm285, %v551, 0
      %577 = vmatprep.subr.mxu0 %v434
      %578 = vmatpush1.msra.mxu0 %v433
      %579 = vmatprep.subr.mxu0 %v436
      %580 = vmatpush1.msra.mxu0 %v435
      %581 = vmatprep.subr.mxu0 %v438
      %582 = vmatpush1.msra.mxu0 %v437
      %583 = vmatprep.subr.mxu0 %v440
      %584 = vmatpush1.msra.mxu0 %v439
      %585 = vmatprep.subr.mxu0 %v442
      %586 = vmatpush1.msra.mxu0 %v441
      %587 = vmatprep.subr.mxu0 %v444
      %588 = vmatpush1.msra.mxu0 %v443
      %589 = vmatprep.subr.mxu0 %v446
      %590 = vmatpush1.msra.mxu0 %v445
      %591 = vmatprep.subr.mxu0 %v448
      %592 = vmatpush1.msra.mxu0 %v447
      %593 = vmatprep.subr.mxu0 %v450
      %594 = vmatpush1.msra.mxu0 %v449
      %595 = vmatprep.subr.mxu0 %v452
      %596 = vmatpush1.msra.mxu0 %v451
      %597 = vmatprep.subr.mxu0 %v454
      %598 = vmatpush1.msra.mxu0 %v453
      %599 = vmatprep.subr.mxu0 %v456
      %600 = vmatpush1.msra.mxu0 %v455
      %601 = vmatprep.subr.mxu0 %v458
      %602 = vmatpush1.msra.mxu0 %v457
      %603 = vmatprep.subr.mxu0 %v460
      %604 = vmatpush1.msra.mxu0 %v459
      %605 = vmatprep.subr.mxu0 %v462
      %606 = vmatpush1.msra.mxu0 %v461
      %607 = vmatprep.subr.mxu0 %v464
      %608 = vmatpush1.msra.mxu0 %v463
      %609 = vmatprep.subr.mxu0 %v466
      %610 = vmatpush1.msra.mxu0 %v465
      %611 = vmatprep.subr.mxu0 %v468
      %612 = vmatpush1.msra.mxu0 %v467
      %613 = vmatprep.subr.mxu0 %v470
      %614 = vmatpush1.msra.mxu0 %v469
      %615 = vmatprep.subr.mxu0 %v472
      %616 = vmatpush1.msra.mxu0 %v471
      %617 = vmatprep.subr.mxu0 %v474
      %618 = vmatpush1.msra.mxu0 %v473
      %619 = vmatprep.subr.mxu0 %v476
      %620 = vmatpush1.msra.mxu0 %v475
      %621 = vmatprep.subr.mxu0 %v478
      %622 = vmatpush1.msra.mxu0 %v477
      %623 = vmatprep.subr.mxu0 %v480
      %624 = vmatpush1.msra.mxu0 %v479
      %625 = vmatprep.subr.mxu0 %v482
      %626 = vmatpush1.msra.mxu0 %v481
      %627 = vmatprep.subr.mxu0 %v484
      %628 = vmatpush1.msra.mxu0 %v483
      %629 = vmatprep.subr.mxu0 %v486
      %630 = vmatpush1.msra.mxu0 %v485
      %631 = vmatprep.subr.mxu0 %v488
      %632 = vmatpush1.msra.mxu0 %v487
      %633 = vmatprep.subr.mxu0 %v490
      %634 = vmatpush1.msra.mxu0 %v489
      %635 = vmatprep.subr.mxu0 %v492
      %636 = vmatpush1.msra.mxu0 %v491
      %637 = vmatprep.subr.mxu0 %v494
      %638 = vmatpush1.msra.mxu0 %v493
      %639 = vmatprep.subr.mxu0 %v496
      %640 = vmatpush1.msra.mxu0 %v495
      %641 = vmatprep.mubr.f32.mxu0 %v525
      %642 = vmatmul.mubr.f32.gmra.mrb[0].mxu0 %v522
      %v643 = vpop.f32.mrb[0].mxu0
      %v644 = vadd.f32 0.0, %v643
      %v645 = vpop.f32.mrb[0].mxu0
      %v646 = vadd.f32 0.0, %v645
      %647 = vmatprep.mubr.f32.mxu0 %v532
      %648 = vmatmul.mubr.f32.gmra.mrb[0].mxu0 %v530
      %v649 = vpop.f32.mrb[0].mxu0
      %v650 = vadd.f32 0.0, %v649
      %v651 = vpop.f32.mrb[0].mxu0
      %v652 = vadd.f32 0.0, %v651
      %653 = vmatprep.mubr.f32.mxu0 %v538
      %654 = vmatmul.mubr.f32.gmra.mrb[0].mxu0 %v536
      %v655 = vpop.f32.mrb[0].mxu0
      %v656 = vadd.f32 0.0, %v655
      %v657 = vpop.f32.mrb[0].mxu0
      %v658 = vadd.f32 0.0, %v657
      %659 = vmatprep.mubr.f32.mxu0 %v544
      %660 = vmatmul.mubr.f32.gmra.mrb[0].mxu0 %v542
      %v661 = vpop.f32.mrb[0].mxu0
      %v662 = vadd.f32 0.0, %v661
      %v663 = vpop.f32.mrb[0].mxu0
      %v664 = vadd.f32 0.0, %v663
      %665 = vmatprep.mubr.f32.mxu0 %v550
      %666 = vmatmul.mubr.f32.gmra.mrb[0].mxu0 %v548
      %v667 = vpop.f32.mrb[0].mxu0
      %v668 = vadd.f32 0.0, %v667
      %v669 = vpop.f32.mrb[0].mxu0
      %v670 = vadd.f32 0.0, %v669
      %671 = vmatprep.mubr.f32.mxu0 %v549
      %672 = vmatmul.mubr.f32.gmra.mrb[0].mxu0 %v547
      %v673 = vpop.f32.mrb[0].mxu0
      %v674 = vadd.f32 0.0, %v673
      %v675 = vpop.f32.mrb[0].mxu0
      %v676 = vadd.f32 0.0, %v675
      %677 = vdwg.mxu0
      %678 = vmatprep.subr.mxu0 %v498
      %679 = vmatpush1.msra.mxu0 %v497
      %680 = vmatprep.subr.mxu0 %v500
      %681 = vmatpush1.msra.mxu0 %v499
      %682 = vmatprep.subr.mxu0 0.0
      %683 = vmatpush1.msra.mxu0 0.0
      %684 = vmatprep.subr.mxu0 0.0
      %685 = vmatpush1.msra.mxu0 0.0
      %686 = vmatprep.subr.mxu0 0.0
      %687 = vmatpush1.msra.mxu0 0.0
      %688 = vmatprep.subr.mxu0 0.0
      %689 = vmatpush1.msra.mxu0 0.0
      %690 = vmatprep.subr.mxu0 0.0
      %691 = vmatpush1.msra.mxu0 0.0
      %692 = vmatprep.subr.mxu0 0.0
      %693 = vmatpush1.msra.mxu0 0.0
      %694 = vmatprep.subr.mxu0 0.0
      %695 = vmatpush1.msra.mxu0 0.0
      %696 = vmatprep.subr.mxu0 0.0
      %697 = vmatpush1.msra.mxu0 0.0
      %698 = vmatprep.subr.mxu0 0.0
      %699 = vmatpush1.msra.mxu0 0.0
      %700 = vmatprep.subr.mxu0 0.0
      %701 = vmatpush1.msra.mxu0 0.0
      %702 = vmatprep.subr.mxu0 0.0
      %703 = vmatpush1.msra.mxu0 0.0
      %704 = vmatprep.subr.mxu0 0.0
      %705 = vmatpush1.msra.mxu0 0.0
      %706 = vmatprep.subr.mxu0 0.0
      %707 = vmatpush1.msra.mxu0 0.0
      %708 = vmatprep.subr.mxu0 0.0
      %709 = vmatpush1.msra.mxu0 0.0
      %710 = vmatprep.subr.mxu0 0.0
      %711 = vmatpush1.msra.mxu0 0.0
      %712 = vmatprep.subr.mxu0 0.0
      %713 = vmatpush1.msra.mxu0 0.0
      %714 = vmatprep.subr.mxu0 0.0
      %715 = vmatpush1.msra.mxu0 0.0
      %716 = vmatprep.subr.mxu0 0.0
      %717 = vmatpush1.msra.mxu0 0.0
      %718 = vmatprep.subr.mxu0 0.0
      %719 = vmatpush1.msra.mxu0 0.0
      %720 = vmatprep.subr.mxu0 0.0
      %721 = vmatpush1.msra.mxu0 0.0
      %722 = vmatprep.subr.mxu0 0.0
      %723 = vmatpush1.msra.mxu0 0.0
      %724 = vmatprep.subr.mxu0 0.0
      %725 = vmatpush1.msra.mxu0 0.0
      %726 = vmatprep.subr.mxu0 0.0
      %727 = vmatpush1.msra.mxu0 0.0
      %728 = vmatprep.subr.mxu0 0.0
      %729 = vmatpush1.msra.mxu0 0.0
      %730 = vmatprep.subr.mxu0 0.0
      %731 = vmatpush1.msra.mxu0 0.0
      %732 = vmatprep.subr.mxu0 0.0
      %733 = vmatpush1.msra.mxu0 0.0
      %734 = vmatprep.subr.mxu0 0.0
      %735 = vmatpush1.msra.mxu0 0.0
      %736 = vmatprep.subr.mxu0 0.0
      %737 = vmatpush1.msra.mxu0 0.0
      %738 = vmatprep.subr.mxu0 0.0
      %739 = vmatpush1.msra.mxu0 0.0
      %740 = vmatprep.subr.mxu0 0.0
      %741 = vmatpush1.msra.mxu0 0.0
      %742 = vmatprep.mubr.f32.mxu0 0.0
      %743 = vmatmul.mubr.f32.gmra.mrb[0].mxu0 %v565
      %v744 = vpop.f32.mrb[0].mxu0
      %v745 = vadd.f32 %v644, %v744
      %v746 = vpop.f32.mrb[0].mxu0
      %v747 = vadd.f32 %v646, %v746
      %748 = vmatprep.mubr.f32.mxu0 0.0
      %749 = vmatmul.mubr.f32.gmra.mrb[0].mxu0 %v567
      %v750 = vpop.f32.mrb[0].mxu0
      %v751 = vadd.f32 %v650, %v750
      %v752 = vpop.f32.mrb[0].mxu0
      %v753 = vadd.f32 %v652, %v752
      %754 = vmatprep.mubr.f32.mxu0 0.0
      %755 = vmatmul.mubr.f32.gmra.mrb[0].mxu0 %v569
      %v756 = vpop.f32.mrb[0].mxu0
      %v757 = vadd.f32 %v656, %v756
      %v758 = vpop.f32.mrb[0].mxu0
      %v759 = vadd.f32 %v658, %v758
      %760 = vmatprep.mubr.f32.mxu0 0.0
      %761 = vmatmul.mubr.f32.gmra.mrb[0].mxu0 %v571
      %v762 = vpop.f32.mrb[0].mxu0
      %v763 = vadd.f32 %v662, %v762
      %v764 = vpop.f32.mrb[0].mxu0
      %v765 = vadd.f32 %v664, %v764
      %766 = vmatprep.mubr.f32.mxu0 0.0
      %767 = vmatmul.mubr.f32.gmra.mrb[0].mxu0 %v573
      %v768 = vpop.f32.mrb[0].mxu0
      %v769 = vadd.f32 %v668, %v768
      %v770 = vpop.f32.mrb[0].mxu0
      %v771 = vadd.f32 %v670, %v770
      %772 = vmatprep.mubr.f32.mxu0 0.0
      %773 = vmatmul.mubr.f32.gmra.mrb[0].mxu0 %v575
      %v774 = vpop.f32.mrb[0].mxu0
      %v775 = vadd.f32 %v674, %v774
      %v776 = vpop.f32.mrb[0].mxu0
      %v777 = vadd.f32 %v676, %v776
      %778 = vdwg.mxu0
      %v780 = vsel %vm285, %v342, 0
      %v782 = vsel %vm285, %v345, 0
      %v784 = vsel %vm285, %v348, 0
      %v786 = vsel %vm285, %v351, 0
      %v788 = vsel %vm285, %v354, 0
      %v791 = vsel %vm285, %v357, 0
      %793 = vmatprep.subr.mxu0 %v359
      %794 = vmatpush1.msra.mxu0 %v358
      %795 = vmatprep.subr.mxu0 %v361
      %796 = vmatpush1.msra.mxu0 %v360
      %797 = vmatprep.subr.mxu0 %v363
      %798 = vmatpush1.msra.mxu0 %v362
      %799 = vmatprep.subr.mxu0 %v365
      %800 = vmatpush1.msra.mxu0 %v364
      %801 = vmatprep.subr.mxu0 %v367
      %802 = vmatpush1.msra.mxu0 %v366
      %803 = vmatprep.subr.mxu0 %v369
      %804 = vmatpush1.msra.mxu0 %v368
      %805 = vmatprep.subr.mxu0 %v371
      %806 = vmatpush1.msra.mxu0 %v370
      %807 = vmatprep.subr.mxu0 %v373
      %808 = vmatpush1.msra.mxu0 %v372
      %809 = vmatprep.subr.mxu0 %v375
      %810 = vmatpush1.msra.mxu0 %v374
      %811 = vmatprep.subr.mxu0 %v377
      %812 = vmatpush1.msra.mxu0 %v376
      %813 = vmatprep.subr.mxu0 %v379
      %814 = vmatpush1.msra.mxu0 %v378
      %815 = vmatprep.subr.mxu0 %v381
      %816 = vmatpush1.msra.mxu0 %v380
      %817 = vmatprep.subr.mxu0 %v383
      %818 = vmatpush1.msra.mxu0 %v382
      %819 = vmatprep.subr.mxu0 %v385
      %820 = vmatpush1.msra.mxu0 %v384
      %821 = vmatprep.subr.mxu0 %v387
      %822 = vmatpush1.msra.mxu0 %v386
      %823 = vmatprep.subr.mxu0 %v389
      %824 = vmatpush1.msra.mxu0 %v388
      %825 = vmatprep.subr.mxu0 %v391
      %826 = vmatpush1.msra.mxu0 %v390
      %827 = vmatprep.subr.mxu0 %v393
      %828 = vmatpush1.msra.mxu0 %v392
      %829 = vmatprep.subr.mxu0 %v395
      %830 = vmatpush1.msra.mxu0 %v394
      %831 = vmatprep.subr.mxu0 %v397
      %832 = vmatpush1.msra.mxu0 %v396
      %833 = vmatprep.subr.mxu0 %v399
      %834 = vmatpush1.msra.mxu0 %v398
      %835 = vmatprep.subr.mxu0 %v401
      %836 = vmatpush1.msra.mxu0 %v400
      %837 = vmatprep.subr.mxu0 %v403
      %838 = vmatpush1.msra.mxu0 %v402
      %839 = vmatprep.subr.mxu0 %v405
      %840 = vmatpush1.msra.mxu0 %v404
      %841 = vmatprep.subr.mxu0 %v407
      %842 = vmatpush1.msra.mxu0 %v406
      %843 = vmatprep.subr.mxu0 %v409
      %844 = vmatpush1.msra.mxu0 %v408
      %845 = vmatprep.subr.mxu0 %v411
      %846 = vmatpush1.msra.mxu0 %v410
      %847 = vmatprep.subr.mxu0 %v413
      %848 = vmatpush1.msra.mxu0 %v412
      %849 = vmatprep.subr.mxu0 %v415
      %850 = vmatpush1.msra.mxu0 %v414
      %851 = vmatprep.subr.mxu0 %v417
      %852 = vmatpush1.msra.mxu0 %v416
      %853 = vmatprep.subr.mxu0 %v419
      %854 = vmatpush1.msra.mxu0 %v418
      %855 = vmatprep.subr.mxu0 %v421
      %856 = vmatpush1.msra.mxu0 %v420
      %857 = vmatprep.mubr.f32.mxu0 %v341
      %858 = vmatmul.mubr.f32.gmra.mrb[0].mxu0 %v340
      %v859 = vpop.f32.mrb[0].mxu0
      %v860 = vadd.f32 %v745, %v859
      %v861 = vpop.f32.mrb[0].mxu0
      %v862 = vadd.f32 %v747, %v861
      %863 = vmatprep.mubr.f32.mxu0 %v344
      %864 = vmatmul.mubr.f32.gmra.mrb[0].mxu0 %v343
      %v865 = vpop.f32.mrb[0].mxu0
      %v866 = vadd.f32 %v751, %v865
      %v867 = vpop.f32.mrb[0].mxu0
      %v868 = vadd.f32 %v753, %v867
      %869 = vmatprep.mubr.f32.mxu0 %v347
      %870 = vmatmul.mubr.f32.gmra.mrb[0].mxu0 %v346
      %v871 = vpop.f32.mrb[0].mxu0
      %v872 = vadd.f32 %v757, %v871
      %v873 = vpop.f32.mrb[0].mxu0
      %v874 = vadd.f32 %v759, %v873
      %875 = vmatprep.mubr.f32.mxu0 %v350
      %876 = vmatmul.mubr.f32.gmra.mrb[0].mxu0 %v349
      %v877 = vpop.f32.mrb[0].mxu0
      %v878 = vadd.f32 %v763, %v877
      %v879 = vpop.f32.mrb[0].mxu0
      %v880 = vadd.f32 %v765, %v879
      %881 = vmatprep.mubr.f32.mxu0 %v353
      %882 = vmatmul.mubr.f32.gmra.mrb[0].mxu0 %v352
      %v883 = vpop.f32.mrb[0].mxu0
      %v884 = vadd.f32 %v769, %v883
      %v885 = vpop.f32.mrb[0].mxu0
      %v886 = vadd.f32 %v771, %v885
      %887 = vmatprep.mubr.f32.mxu0 %v356
      %888 = vmatmul.mubr.f32.gmra.mrb[0].mxu0 %v355
      %v889 = vpop.f32.mrb[0].mxu0
      %v890 = vadd.f32 %v775, %v889
      %v891 = vpop.f32.mrb[0].mxu0
      %v892 = vadd.f32 %v777, %v891
      %893 = vdwg.mxu0
      %894 = vmatprep.subr.mxu0 %v423
      %895 = vmatpush1.msra.mxu0 %v422
      %896 = vmatprep.subr.mxu0 %v425
      %897 = vmatpush1.msra.mxu0 %v424
      %898 = vmatprep.subr.mxu0 0.0
      %899 = vmatpush1.msra.mxu0 0.0
      %900 = vmatprep.subr.mxu0 0.0
      %901 = vmatpush1.msra.mxu0 0.0
      %902 = vmatprep.subr.mxu0 0.0
      %903 = vmatpush1.msra.mxu0 0.0
      %904 = vmatprep.subr.mxu0 0.0
      %905 = vmatpush1.msra.mxu0 0.0
      %906 = vmatprep.subr.mxu0 0.0
      %907 = vmatpush1.msra.mxu0 0.0
      %908 = vmatprep.subr.mxu0 0.0
      %909 = vmatpush1.msra.mxu0 0.0
      %910 = vmatprep.subr.mxu0 0.0
      %911 = vmatpush1.msra.mxu0 0.0
      %912 = vmatprep.subr.mxu0 0.0
      %913 = vmatpush1.msra.mxu0 0.0
      %914 = vmatprep.subr.mxu0 0.0
      %915 = vmatpush1.msra.mxu0 0.0
      %916 = vmatprep.subr.mxu0 0.0
      %917 = vmatpush1.msra.mxu0 0.0
      %918 = vmatprep.subr.mxu0 0.0
      %919 = vmatpush1.msra.mxu0 0.0
      %920 = vmatprep.subr.mxu0 0.0
      %921 = vmatpush1.msra.mxu0 0.0
      %922 = vmatprep.subr.mxu0 0.0
      %923 = vmatpush1.msra.mxu0 0.0
      %924 = vmatprep.subr.mxu0 0.0
      %925 = vmatpush1.msra.mxu0 0.0
      %926 = vmatprep.subr.mxu0 0.0
      %927 = vmatpush1.msra.mxu0 0.0
      %928 = vmatprep.subr.mxu0 0.0
      %929 = vmatpush1.msra.mxu0 0.0
      %930 = vmatprep.subr.mxu0 0.0
      %931 = vmatpush1.msra.mxu0 0.0
      %932 = vmatprep.subr.mxu0 0.0
      %933 = vmatpush1.msra.mxu0 0.0
      %934 = vmatprep.subr.mxu0 0.0
      %935 = vmatpush1.msra.mxu0 0.0
      %936 = vmatprep.subr.mxu0 0.0
      %937 = vmatpush1.msra.mxu0 0.0
      %938 = vmatprep.subr.mxu0 0.0
      %939 = vmatpush1.msra.mxu0 0.0
      %940 = vmatprep.subr.mxu0 0.0
      %941 = vmatpush1.msra.mxu0 0.0
      %942 = vmatprep.subr.mxu0 0.0
      %943 = vmatpush1.msra.mxu0 0.0
      %944 = vmatprep.subr.mxu0 0.0
      %945 = vmatpush1.msra.mxu0 0.0
      %946 = vmatprep.subr.mxu0 0.0
      %947 = vmatpush1.msra.mxu0 0.0
      %948 = vmatprep.subr.mxu0 0.0
      %949 = vmatpush1.msra.mxu0 0.0
      %950 = vmatprep.subr.mxu0 0.0
      %951 = vmatpush1.msra.mxu0 0.0
      %952 = vmatprep.subr.mxu0 0.0
      %953 = vmatpush1.msra.mxu0 0.0
      %954 = vmatprep.subr.mxu0 0.0
      %955 = vmatpush1.msra.mxu0 0.0
      %956 = vmatprep.subr.mxu0 0.0
      %957 = vmatpush1.msra.mxu0 0.0
      %958 = vmatprep.mubr.f32.mxu0 0.0
      %959 = vmatmul.mubr.f32.gmra.mrb[0].mxu0 %v780
      %v960 = vpop.f32.mrb[0].mxu0
      %v961 = vadd.f32 %v860, %v960
      %v962 = vpop.f32.mrb[0].mxu0
      %v963 = vadd.f32 %v862, %v962
      %964 = vmatprep.mubr.f32.mxu0 0.0
      %965 = vmatmul.mubr.f32.gmra.mrb[0].mxu0 %v782
      %v966 = vpop.f32.mrb[0].mxu0
      %v967 = vadd.f32 %v866, %v966
      %v968 = vpop.f32.mrb[0].mxu0
      %v969 = vadd.f32 %v868, %v968
      %970 = vmatprep.mubr.f32.mxu0 0.0
      %971 = vmatmul.mubr.f32.gmra.mrb[0].mxu0 %v784
      %v972 = vpop.f32.mrb[0].mxu0
      %v973 = vadd.f32 %v872, %v972
      %v974 = vpop.f32.mrb[0].mxu0
      %v975 = vadd.f32 %v874, %v974
      %976 = vmatprep.mubr.f32.mxu0 0.0
      %977 = vmatmul.mubr.f32.gmra.mrb[0].mxu0 %v786
      %v978 = vpop.f32.mrb[0].mxu0
      %v979 = vadd.f32 %v878, %v978
      %v980 = vpop.f32.mrb[0].mxu0
      %v981 = vadd.f32 %v880, %v980
      %982 = vmatprep.mubr.f32.mxu0 0.0
      %983 = vmatmul.mubr.f32.gmra.mrb[0].mxu0 %v788
      %v984 = vpop.f32.mrb[0].mxu0
      %v985 = vadd.f32 %v884, %v984
      %v986 = vpop.f32.mrb[0].mxu0
      %v987 = vadd.f32 %v886, %v986
      %988 = vmatprep.mubr.f32.mxu0 0.0
      %989 = vmatmul.mubr.f32.gmra.mrb[0].mxu0 %v791
      %v990 = vpop.f32.mrb[0].mxu0
      %v991 = vadd.f32 %v890, %v990
      %v992 = vpop.f32.mrb[0].mxu0
      %v993 = vadd.f32 %v892, %v992
      %994 = vdwg.mxu0
      %v995 = vld [vmem:[#allocation2] sm:$0xfc]
      %v996 = vld [vmem:[#allocation2 + $0x8] sm:$0xfc]
      %v997 = vld [vmem:[#allocation2 + $0x10] sm:$0xfc]
      %v998 = vld [vmem:[#allocation2 + $0x78] sm:$0x7]
      %v999 = vld [vmem:[#allocation2 + $0x80] sm:$0x7]
      %v1000 = vld [vmem:[#allocation2 + $0x88] sm:$0x7]
      %s1001 = scalar_lea.vmem %s1, 1088
      %v1002 = vld [vmem:[%s1001] sm:$0xff]
      %v1003 = vld [vmem:[%s1001 + $0x8] sm:$0xff]
      %v1004 = vld [vmem:[%s1001 + $0x10] sm:$0xff]
      %v1005 = vld [vmem:[%s1001 + $0x18] sm:$0xff]
      %v1006 = vld [vmem:[%s1001 + $0x20] sm:$0xff]
      %v1007 = vld [vmem:[%s1001 + $0x28] sm:$0xff]
      %v1008 = vld [vmem:[%s1001 + $0x30] sm:$0xff]
      %v1009 = vld [vmem:[%s1001 + $0x38] sm:$0xff]
      %v1010 = vld [vmem:[%s1001 + $0x40] sm:$0xff]
      %v1011 = vld [vmem:[%s1001 + $0x48] sm:$0xff]
      %v1012 = vld [vmem:[%s1001 + $0x50] sm:$0xff]
      %v1013 = vld [vmem:[%s1001 + $0x58] sm:$0xff]
      %v1014 = vld [vmem:[%s1001 + $0x60] sm:$0xff]
      %v1015 = vld [vmem:[%s1001 + $0x68] sm:$0xff]
      %v1016 = vld [vmem:[%s1001 + $0x70] sm:$0xff]
      %v1017 = vld [vmem:[%s1001 + $0x78] sm:$0xff]
      %v1018 = vld [vmem:[%s1001 + $0x80] sm:$0xff]
      %v1019 = vld [vmem:[%s1001 + $0x88] sm:$0xff]
      %v1020 = vld [vmem:[%s1001 + $0x90] sm:$0xff]
      %v1021 = vld [vmem:[%s1001 + $0x98] sm:$0xff]
      %v1022 = vld [vmem:[%s1001 + $0xa0] sm:$0xff]
      %v1023 = vld [vmem:[%s1001 + $0xa8] sm:$0xff]
      %v1024 = vld [vmem:[%s1001 + $0xb0] sm:$0xff]
      %v1025 = vld [vmem:[%s1001 + $0xb8] sm:$0xff]
      %v1026 = vld [vmem:[%s1001 + $0xc0] sm:$0xff]
      %v1027 = vld [vmem:[%s1001 + $0xc8] sm:$0xff]
      %v1028 = vld [vmem:[%s1001 + $0xd0] sm:$0xff]
      %v1029 = vld [vmem:[%s1001 + $0xd8] sm:$0xff]
      %v1030 = vld [vmem:[%s1001 + $0xe0] sm:$0xff]
      %v1031 = vld [vmem:[%s1001 + $0xe8] sm:$0xff]
      %v1032 = vld [vmem:[%s1001 + $0xf0] sm:$0xff]
      %v1033 = vld [vmem:[%s1001 + $0xf8] sm:$0xff]
      %v1034 = vld [vmem:[%s1001 + $0x100] sm:$0xff]
      %v1035 = vld [vmem:[%s1001 + $0x108] sm:$0xff]
      %v1036 = vld [vmem:[%s1001 + $0x110] sm:$0xff]
      %v1037 = vld [vmem:[%s1001 + $0x118] sm:$0xff]
      %v1038 = vld [vmem:[%s1001 + $0x120] sm:$0xff]
      %v1039 = vld [vmem:[%s1001 + $0x128] sm:$0xff]
      %v1040 = vld [vmem:[%s1001 + $0x130] sm:$0xff]
      %v1041 = vld [vmem:[%s1001 + $0x138] sm:$0xff]
      %v1042 = vld [vmem:[%s1001 + $0x140] sm:$0xff]
      %v1043 = vld [vmem:[%s1001 + $0x148] sm:$0xff]
      %v1044 = vld [vmem:[%s1001 + $0x150] sm:$0xff]
      %v1045 = vld [vmem:[%s1001 + $0x158] sm:$0xff]
      %v1046 = vld [vmem:[%s1001 + $0x160] sm:$0xff]
      %v1047 = vld [vmem:[%s1001 + $0x168] sm:$0xff]
      %v1048 = vld [vmem:[%s1001 + $0x170] sm:$0xff]
      %v1049 = vld [vmem:[%s1001 + $0x178] sm:$0xff]
      %v1050 = vld [vmem:[%s1001 + $0x180] sm:$0xff]
      %v1051 = vld [vmem:[%s1001 + $0x188] sm:$0xff]
      %v1052 = vld [vmem:[%s1001 + $0x190] sm:$0xff]
      %v1053 = vld [vmem:[%s1001 + $0x198] sm:$0xff]
      %v1054 = vld [vmem:[%s1001 + $0x1a0] sm:$0xff]
      %v1055 = vld [vmem:[%s1001 + $0x1a8] sm:$0xff]
      %v1056 = vld [vmem:[%s1001 + $0x1b0] sm:$0xff]
      %v1057 = vld [vmem:[%s1001 + $0x1b8] sm:$0xff]
      %v1058 = vld [vmem:[%s1001 + $0x1c0] sm:$0xff]
      %v1059 = vld [vmem:[%s1001 + $0x1c8] sm:$0xff]
      %v1060 = vld [vmem:[%s1001 + $0x1d0] sm:$0xff]
      %v1061 = vld [vmem:[%s1001 + $0x1d8] sm:$0xff]
      %v1062 = vld [vmem:[%s1001 + $0x1e0] sm:$0xff]
      %v1063 = vld [vmem:[%s1001 + $0x1e8] sm:$0xff]
      %v1064 = vld [vmem:[%s1001 + $0x1f0] sm:$0xff]
      %v1065 = vld [vmem:[%s1001 + $0x1f8] sm:$0xff]
      %v1066 = vld [vmem:[%s1001 + $0x200] sm:$0xff]
      %v1067 = vld [vmem:[%s1001 + $0x208] sm:$0xff]
      %v1068 = vld [vmem:[%s1001 + $0x210] sm:$0xff]
      %v1069 = vld [vmem:[%s1001 + $0x218] sm:$0xff]
      %vm1076 = vcmask 1045504
      %v1077 = vrot.slane %v995, 2
      %v1078 = vrot.slane %v343, 2
      %v1079 = vsel %vm1076, %v1077, %v1078
      %v1080 = vrot.slane %v996, 2
      %v1081 = vrot.slane %v344, 2
      %v1082 = vsel %vm1076, %v1080, %v1081
      %v1083 = vrot.slane %v997, 2
      %v1084 = vrot.slane %v345, 2
      %v1085 = vsel %vm1076, %v1083, %v1084
      %v1086 = vrot.slane %v346, 2
      %v1087 = vsel %vm1076, %v1078, %v1086
      %v1088 = vrot.slane %v347, 2
      %v1089 = vsel %vm1076, %v1081, %v1088
      %v1090 = vrot.slane %v348, 2
      %v1091 = vsel %vm1076, %v1084, %v1090
      %v1092 = vrot.slane %v349, 2
      %v1093 = vsel %vm1076, %v1086, %v1092
      %v1094 = vrot.slane %v350, 2
      %v1095 = vsel %vm1076, %v1088, %v1094
      %v1096 = vrot.slane %v351, 2
      %v1097 = vsel %vm1076, %v1090, %v1096
      %v1098 = vrot.slane %v352, 2
      %v1099 = vsel %vm1076, %v1092, %v1098
      %v1100 = vrot.slane %v353, 2
      %v1101 = vsel %vm1076, %v1094, %v1100
      %v1102 = vrot.slane %v354, 2
      %v1103 = vsel %vm1076, %v1096, %v1102
      %v1104 = vrot.slane %v998, 2
      %v1105 = vsel %vm1076, %v1098, %v1104
      %v1106 = vrot.slane %v999, 2
      %v1107 = vsel %vm1076, %v1100, %v1106
      %v1108 = vrot.slane %v1000, 2
      %v1109 = vsel %vm1076, %v1102, %v1108
      %v1122 = vsel %vm285, %v1085, 0
      %v1124 = vsel %vm285, %v1091, 0
      %v1126 = vsel %vm285, %v1097, 0
      %v1128 = vsel %vm285, %v1103, 0
      %v1130 = vsel %vm285, %v1109, 0
      %v1132 = vsel %vm285, %v1108, 0
      %1134 = vmatprep.subr.mxu0 %v1003
      %1135 = vmatpush1.msra.mxu0 %v1002
      %1136 = vmatprep.subr.mxu0 %v1005
      %1137 = vmatpush1.msra.mxu0 %v1004
      %1138 = vmatprep.subr.mxu0 %v1007
      %1139 = vmatpush1.msra.mxu0 %v1006
      %1140 = vmatprep.subr.mxu0 %v1009
      %1141 = vmatpush1.msra.mxu0 %v1008
      %1142 = vmatprep.subr.mxu0 %v1011
      %1143 = vmatpush1.msra.mxu0 %v1010
      %1144 = vmatprep.subr.mxu0 %v1013
      %1145 = vmatpush1.msra.mxu0 %v1012
      %1146 = vmatprep.subr.mxu0 %v1015
      %1147 = vmatpush1.msra.mxu0 %v1014
      %1148 = vmatprep.subr.mxu0 %v1017
      %1149 = vmatpush1.msra.mxu0 %v1016
      %1150 = vmatprep.subr.mxu0 %v1019
      %1151 = vmatpush1.msra.mxu0 %v1018
      %1152 = vmatprep.subr.mxu0 %v1021
      %1153 = vmatpush1.msra.mxu0 %v1020
      %1154 = vmatprep.subr.mxu0 %v1023
      %1155 = vmatpush1.msra.mxu0 %v1022
      %1156 = vmatprep.subr.mxu0 %v1025
      %1157 = vmatpush1.msra.mxu0 %v1024
      %1158 = vmatprep.subr.mxu0 %v1027
      %1159 = vmatpush1.msra.mxu0 %v1026
      %1160 = vmatprep.subr.mxu0 %v1029
      %1161 = vmatpush1.msra.mxu0 %v1028
      %1162 = vmatprep.subr.mxu0 %v1031
      %1163 = vmatpush1.msra.mxu0 %v1030
      %1164 = vmatprep.subr.mxu0 %v1033
      %1165 = vmatpush1.msra.mxu0 %v1032
      %1166 = vmatprep.subr.mxu0 %v1035
      %1167 = vmatpush1.msra.mxu0 %v1034
      %1168 = vmatprep.subr.mxu0 %v1037
      %1169 = vmatpush1.msra.mxu0 %v1036
      %1170 = vmatprep.subr.mxu0 %v1039
      %1171 = vmatpush1.msra.mxu0 %v1038
      %1172 = vmatprep.subr.mxu0 %v1041
      %1173 = vmatpush1.msra.mxu0 %v1040
      %1174 = vmatprep.subr.mxu0 %v1043
      %1175 = vmatpush1.msra.mxu0 %v1042
      %1176 = vmatprep.subr.mxu0 %v1045
      %1177 = vmatpush1.msra.mxu0 %v1044
      %1178 = vmatprep.subr.mxu0 %v1047
      %1179 = vmatpush1.msra.mxu0 %v1046
      %1180 = vmatprep.subr.mxu0 %v1049
      %1181 = vmatpush1.msra.mxu0 %v1048
      %1182 = vmatprep.subr.mxu0 %v1051
      %1183 = vmatpush1.msra.mxu0 %v1050
      %1184 = vmatprep.subr.mxu0 %v1053
      %1185 = vmatpush1.msra.mxu0 %v1052
      %1186 = vmatprep.subr.mxu0 %v1055
      %1187 = vmatpush1.msra.mxu0 %v1054
      %1188 = vmatprep.subr.mxu0 %v1057
      %1189 = vmatpush1.msra.mxu0 %v1056
      %1190 = vmatprep.subr.mxu0 %v1059
      %1191 = vmatpush1.msra.mxu0 %v1058
      %1192 = vmatprep.subr.mxu0 %v1061
      %1193 = vmatpush1.msra.mxu0 %v1060
      %1194 = vmatprep.subr.mxu0 %v1063
      %1195 = vmatpush1.msra.mxu0 %v1062
      %1196 = vmatprep.subr.mxu0 %v1065
      %1197 = vmatpush1.msra.mxu0 %v1064
      %1198 = vmatprep.mubr.f32.mxu0 %v1082
      %1199 = vmatmul.mubr.f32.gmra.mrb[0].mxu0 %v1079
      %v1200 = vpop.f32.mrb[0].mxu0
      %v1201 = vadd.f32 0.0, %v1200
      %v1202 = vpop.f32.mrb[0].mxu0
      %v1203 = vadd.f32 0.0, %v1202
      %1204 = vmatprep.mubr.f32.mxu0 %v1089
      %1205 = vmatmul.mubr.f32.gmra.mrb[0].mxu0 %v1087
      %v1206 = vpop.f32.mrb[0].mxu0
      %v1207 = vadd.f32 0.0, %v1206
      %v1208 = vpop.f32.mrb[0].mxu0
      %v1209 = vadd.f32 0.0, %v1208
      %1210 = vmatprep.mubr.f32.mxu0 %v1095
      %1211 = vmatmul.mubr.f32.gmra.mrb[0].mxu0 %v1093
      %v1212 = vpop.f32.mrb[0].mxu0
      %v1213 = vadd.f32 0.0, %v1212
      %v1214 = vpop.f32.mrb[0].mxu0
      %v1215 = vadd.f32 0.0, %v1214
      %1216 = vmatprep.mubr.f32.mxu0 %v1101
      %1217 = vmatmul.mubr.f32.gmra.mrb[0].mxu0 %v1099
      %v1218 = vpop.f32.mrb[0].mxu0
      %v1219 = vadd.f32 0.0, %v1218
      %v1220 = vpop.f32.mrb[0].mxu0
      %v1221 = vadd.f32 0.0, %v1220
      %1222 = vmatprep.mubr.f32.mxu0 %v1107
      %1223 = vmatmul.mubr.f32.gmra.mrb[0].mxu0 %v1105
      %v1224 = vpop.f32.mrb[0].mxu0
      %v1225 = vadd.f32 0.0, %v1224
      %v1226 = vpop.f32.mrb[0].mxu0
      %v1227 = vadd.f32 0.0, %v1226
      %1228 = vmatprep.mubr.f32.mxu0 %v1106
      %1229 = vmatmul.mubr.f32.gmra.mrb[0].mxu0 %v1104
      %v1230 = vpop.f32.mrb[0].mxu0
      %v1231 = vadd.f32 0.0, %v1230
      %v1232 = vpop.f32.mrb[0].mxu0
      %v1233 = vadd.f32 0.0, %v1232
      %1234 = vdwg.mxu0
      %1235 = vmatprep.subr.mxu0 %v1067
      %1236 = vmatpush1.msra.mxu0 %v1066
      %1237 = vmatprep.subr.mxu0 %v1069
      %1238 = vmatpush1.msra.mxu0 %v1068
      %1239 = vmatprep.subr.mxu0 0.0
      %1240 = vmatpush1.msra.mxu0 0.0
      %1241 = vmatprep.subr.mxu0 0.0
      %1242 = vmatpush1.msra.mxu0 0.0
      %1243 = vmatprep.subr.mxu0 0.0
      %1244 = vmatpush1.msra.mxu0 0.0
      %1245 = vmatprep.subr.mxu0 0.0
      %1246 = vmatpush1.msra.mxu0 0.0
      %1247 = vmatprep.subr.mxu0 0.0
      %1248 = vmatpush1.msra.mxu0 0.0
      %1249 = vmatprep.subr.mxu0 0.0
      %1250 = vmatpush1.msra.mxu0 0.0
      %1251 = vmatprep.subr.mxu0 0.0
      %1252 = vmatpush1.msra.mxu0 0.0
      %1253 = vmatprep.subr.mxu0 0.0
      %1254 = vmatpush1.msra.mxu0 0.0
      %1255 = vmatprep.subr.mxu0 0.0
      %1256 = vmatpush1.msra.mxu0 0.0
      %1257 = vmatprep.subr.mxu0 0.0
      %1258 = vmatpush1.msra.mxu0 0.0
      %1259 = vmatprep.subr.mxu0 0.0
      %1260 = vmatpush1.msra.mxu0 0.0
      %1261 = vmatprep.subr.mxu0 0.0
      %1262 = vmatpush1.msra.mxu0 0.0
      %1263 = vmatprep.subr.mxu0 0.0
      %1264 = vmatpush1.msra.mxu0 0.0
      %1265 = vmatprep.subr.mxu0 0.0
      %1266 = vmatpush1.msra.mxu0 0.0
      %1267 = vmatprep.subr.mxu0 0.0
      %1268 = vmatpush1.msra.mxu0 0.0
      %1269 = vmatprep.subr.mxu0 0.0
      %1270 = vmatpush1.msra.mxu0 0.0
      %1271 = vmatprep.subr.mxu0 0.0
      %1272 = vmatpush1.msra.mxu0 0.0
      %1273 = vmatprep.subr.mxu0 0.0
      %1274 = vmatpush1.msra.mxu0 0.0
      %1275 = vmatprep.subr.mxu0 0.0
      %1276 = vmatpush1.msra.mxu0 0.0
      %1277 = vmatprep.subr.mxu0 0.0
      %1278 = vmatpush1.msra.mxu0 0.0
      %1279 = vmatprep.subr.mxu0 0.0
      %1280 = vmatpush1.msra.mxu0 0.0
      %1281 = vmatprep.subr.mxu0 0.0
      %1282 = vmatpush1.msra.mxu0 0.0
      %1283 = vmatprep.subr.mxu0 0.0
      %1284 = vmatpush1.msra.mxu0 0.0
      %1285 = vmatprep.subr.mxu0 0.0
      %1286 = vmatpush1.msra.mxu0 0.0
      %1287 = vmatprep.subr.mxu0 0.0
      %1288 = vmatpush1.msra.mxu0 0.0
      %1289 = vmatprep.subr.mxu0 0.0
      %1290 = vmatpush1.msra.mxu0 0.0
      %1291 = vmatprep.subr.mxu0 0.0
      %1292 = vmatpush1.msra.mxu0 0.0
      %1293 = vmatprep.subr.mxu0 0.0
      %1294 = vmatpush1.msra.mxu0 0.0
      %1295 = vmatprep.subr.mxu0 0.0
      %1296 = vmatpush1.msra.mxu0 0.0
      %1297 = vmatprep.subr.mxu0 0.0
      %1298 = vmatpush1.msra.mxu0 0.0
      %1299 = vmatprep.mubr.f32.mxu0 0.0
      %1300 = vmatmul.mubr.f32.gmra.mrb[0].mxu0 %v1122
      %v1301 = vpop.f32.mrb[0].mxu0
      %v1302 = vadd.f32 %v1201, %v1301
      %v1303 = vpop.f32.mrb[0].mxu0
      %v1304 = vadd.f32 %v1203, %v1303
      %1305 = vmatprep.mubr.f32.mxu0 0.0
      %1306 = vmatmul.mubr.f32.gmra.mrb[0].mxu0 %v1124
      %v1307 = vpop.f32.mrb[0].mxu0
      %v1308 = vadd.f32 %v1207, %v1307
      %v1309 = vpop.f32.mrb[0].mxu0
      %v1310 = vadd.f32 %v1209, %v1309
      %1311 = vmatprep.mubr.f32.mxu0 0.0
      %1312 = vmatmul.mubr.f32.gmra.mrb[0].mxu0 %v1126
      %v1313 = vpop.f32.mrb[0].mxu0
      %v1314 = vadd.f32 %v1213, %v1313
      %v1315 = vpop.f32.mrb[0].mxu0
      %v1316 = vadd.f32 %v1215, %v1315
      %1317 = vmatprep.mubr.f32.mxu0 0.0
      %1318 = vmatmul.mubr.f32.gmra.mrb[0].mxu0 %v1128
      %v1319 = vpop.f32.mrb[0].mxu0
      %v1320 = vadd.f32 %v1219, %v1319
      %v1321 = vpop.f32.mrb[0].mxu0
      %v1322 = vadd.f32 %v1221, %v1321
      %1323 = vmatprep.mubr.f32.mxu0 0.0
      %1324 = vmatmul.mubr.f32.gmra.mrb[0].mxu0 %v1130
      %v1325 = vpop.f32.mrb[0].mxu0
      %v1326 = vadd.f32 %v1225, %v1325
      %v1327 = vpop.f32.mrb[0].mxu0
      %v1328 = vadd.f32 %v1227, %v1327
      %1329 = vmatprep.mubr.f32.mxu0 0.0
      %1330 = vmatmul.mubr.f32.gmra.mrb[0].mxu0 %v1132
      %v1331 = vpop.f32.mrb[0].mxu0
      %v1332 = vadd.f32 %v1231, %v1331
      %v1333 = vpop.f32.mrb[0].mxu0
      %v1334 = vadd.f32 %v1233, %v1333
      %1335 = vdwg.mxu0
      %v1336 = vadd.f32 %v961, %v1302
      %v1337 = vadd.f32 %v963, %v1304
      %v1338 = vadd.f32 %v967, %v1308
      %v1339 = vadd.f32 %v969, %v1310
      %v1340 = vadd.f32 %v973, %v1314
      %v1341 = vadd.f32 %v975, %v1316
      %v1342 = vadd.f32 %v979, %v1320
      %v1343 = vadd.f32 %v981, %v1322
      %v1344 = vadd.f32 %v985, %v1326
      %v1345 = vadd.f32 %v987, %v1328
      %v1346 = vadd.f32 %v991, %v1332
      %v1347 = vadd.f32 %v993, %v1334
      %v1348 = vld [vmem:[%s2] sm:$0x3]
      %v1350 = vlaneseq
      %v1351 = vshrl.u32 %v1350, 7
      %v1352 = vsub.s32 0, %v1351
      %v1353 = vrot.slane %v1348, %v1352
      %v1354 = vlaneseq
      %v1355 = vshrl.u32 %v1354, 7
      %v1356 = vsub.s32 1, %v1355
      %v1357 = vrot.slane %v1348, %v1356
      %v1360 = vadd.f32 %v1336, %v1353
      %v1361 = vadd.f32 %v1337, %v1357
      %v1362 = vadd.f32 %v1338, %v1353
      %v1363 = vadd.f32 %v1339, %v1357
      %v1364 = vadd.f32 %v1340, %v1353
      %v1365 = vadd.f32 %v1341, %v1357
      %v1366 = vadd.f32 %v1342, %v1353
      %v1367 = vadd.f32 %v1343, %v1357
      %v1368 = vadd.f32 %v1344, %v1353
      %v1369 = vadd.f32 %v1345, %v1357
      %v1370 = vadd.f32 %v1346, %v1353
      %v1371 = vadd.f32 %v1347, %v1357
      %v1372 = vmax.f32 %v1360, 0.0
      %v1373 = vmax.f32 %v1361, 0.0
      %v1374 = vmax.f32 %v1362, 0.0
      %v1375 = vmax.f32 %v1363, 0.0
      %v1376 = vmax.f32 %v1364, 0.0
      %v1377 = vmax.f32 %v1365, 0.0
      %v1378 = vmax.f32 %v1366, 0.0
      %v1379 = vmax.f32 %v1367, 0.0
      %v1380 = vmax.f32 %v1368, 0.0
      %v1381 = vmax.f32 %v1369, 0.0
      %v1382 = vmax.f32 %v1370, 0.0
      %v1383 = vmax.f32 %v1371, 0.0
      %1384 = vst [vmem:[%s170] sm:$0xff] %v1372
      %1385 = vst [vmem:[%s170 + $0x8] sm:$0xff] %v1373
      %1386 = vst [vmem:[%s170 + $0x18] sm:$0xff] %v1374
      %1387 = vst [vmem:[%s170 + $0x20] sm:$0xff] %v1375
      %1388 = vst [vmem:[%s170 + $0x30] sm:$0xff] %v1376
      %1389 = vst [vmem:[%s170 + $0x38] sm:$0xff] %v1377
      %1390 = vst [vmem:[%s170 + $0x48] sm:$0xff] %v1378
      %1391 = vst [vmem:[%s170 + $0x50] sm:$0xff] %v1379
      %1392 = vst [vmem:[%s170 + $0x60] sm:$0xff] %v1380
      %1393 = vst [vmem:[%s170 + $0x68] sm:$0xff] %v1381
      %1394 = vst [vmem:[%s170 + $0x78] sm:$0x1] %v1382
      %1395 = vst [vmem:[%s170 + $0x80] sm:$0x1] %v1383
      %v1396 = vld [vmem:[#allocation2] sm:$0xff]
      %v1397 = vld [vmem:[#allocation2 + $0x8] sm:$0xff]
      %v1398 = vld [vmem:[#allocation2 + $0x10] sm:$0xff]
      %v1399 = vld [vmem:[#allocation2 + $0x18] sm:$0xff]
      %v1400 = vld [vmem:[#allocation2 + $0x20] sm:$0xff]
      %v1401 = vld [vmem:[#allocation2 + $0x28] sm:$0xff]
      %v1402 = vld [vmem:[#allocation2 + $0x30] sm:$0xff]
      %v1403 = vld [vmem:[#allocation2 + $0x38] sm:$0xff]
      %v1404 = vld [vmem:[#allocation2 + $0x40] sm:$0xff]
      %v1405 = vld [vmem:[#allocation2 + $0x48] sm:$0xff]
      %v1406 = vld [vmem:[#allocation2 + $0x50] sm:$0xff]
      %v1407 = vld [vmem:[#allocation2 + $0x58] sm:$0xff]
      %v1408 = vld [vmem:[#allocation2 + $0x60] sm:$0xff]
      %v1409 = vld [vmem:[#allocation2 + $0x68] sm:$0xff]
      %v1410 = vld [vmem:[#allocation2 + $0x70] sm:$0xff]
      %v1411 = vld [vmem:[#allocation2 + $0x78] sm:$0x1]
      %v1412 = vld [vmem:[#allocation2 + $0x80] sm:$0x1]
      %v1413 = vld [vmem:[#allocation2 + $0x88] sm:$0x1]
      %v1414 = vld [vmem:[%s1] sm:$0xff]
      %v1415 = vld [vmem:[%s1 + $0x8] sm:$0xff]
      %v1416 = vld [vmem:[%s1 + $0x10] sm:$0xff]
      %v1417 = vld [vmem:[%s1 + $0x18] sm:$0xff]
      %v1418 = vld [vmem:[%s1 + $0x20] sm:$0xff]
      %v1419 = vld [vmem:[%s1 + $0x28] sm:$0xff]
      %v1420 = vld [vmem:[%s1 + $0x30] sm:$0xff]
      %v1421 = vld [vmem:[%s1 + $0x38] sm:$0xff]
      %v1422 = vld [vmem:[%s1 + $0x40] sm:$0xff]
      %v1423 = vld [vmem:[%s1 + $0x48] sm:$0xff]
      %v1424 = vld [vmem:[%s1 + $0x50] sm:$0xff]
      %v1425 = vld [vmem:[%s1 + $0x58] sm:$0xff]
      %v1426 = vld [vmem:[%s1 + $0x60] sm:$0xff]
      %v1427 = vld [vmem:[%s1 + $0x68] sm:$0xff]
      %v1428 = vld [vmem:[%s1 + $0x70] sm:$0xff]
      %v1429 = vld [vmem:[%s1 + $0x78] sm:$0xff]
      %v1430 = vld [vmem:[%s1 + $0x80] sm:$0xff]
      %v1431 = vld [vmem:[%s1 + $0x88] sm:$0xff]
      %v1432 = vld [vmem:[%s1 + $0x90] sm:$0xff]
      %v1433 = vld [vmem:[%s1 + $0x98] sm:$0xff]
      %v1434 = vld [vmem:[%s1 + $0xa0] sm:$0xff]
      %v1435 = vld [vmem:[%s1 + $0xa8] sm:$0xff]
      %v1436 = vld [vmem:[%s1 + $0xb0] sm:$0xff]
      %v1437 = vld [vmem:[%s1 + $0xb8] sm:$0xff]
      %v1438 = vld [vmem:[%s1 + $0xc0] sm:$0xff]
      %v1439 = vld [vmem:[%s1 + $0xc8] sm:$0xff]
      %v1440 = vld [vmem:[%s1 + $0xd0] sm:$0xff]
      %v1441 = vld [vmem:[%s1 + $0xd8] sm:$0xff]
      %v1442 = vld [vmem:[%s1 + $0xe0] sm:$0xff]
      %v1443 = vld [vmem:[%s1 + $0xe8] sm:$0xff]
      %v1444 = vld [vmem:[%s1 + $0xf0] sm:$0xff]
      %v1445 = vld [vmem:[%s1 + $0xf8] sm:$0xff]
      %v1446 = vld [vmem:[%s1 + $0x100] sm:$0xff]
      %v1447 = vld [vmem:[%s1 + $0x108] sm:$0xff]
      %v1448 = vld [vmem:[%s1 + $0x110] sm:$0xff]
      %v1449 = vld [vmem:[%s1 + $0x118] sm:$0xff]
      %v1450 = vld [vmem:[%s1 + $0x120] sm:$0xff]
      %v1451 = vld [vmem:[%s1 + $0x128] sm:$0xff]
      %v1452 = vld [vmem:[%s1 + $0x130] sm:$0xff]
      %v1453 = vld [vmem:[%s1 + $0x138] sm:$0xff]
      %v1454 = vld [vmem:[%s1 + $0x140] sm:$0xff]
      %v1455 = vld [vmem:[%s1 + $0x148] sm:$0xff]
      %v1456 = vld [vmem:[%s1 + $0x150] sm:$0xff]
      %v1457 = vld [vmem:[%s1 + $0x158] sm:$0xff]
      %v1458 = vld [vmem:[%s1 + $0x160] sm:$0xff]
      %v1459 = vld [vmem:[%s1 + $0x168] sm:$0xff]
      %v1460 = vld [vmem:[%s1 + $0x170] sm:$0xff]
      %v1461 = vld [vmem:[%s1 + $0x178] sm:$0xff]
      %v1462 = vld [vmem:[%s1 + $0x180] sm:$0xff]
      %v1463 = vld [vmem:[%s1 + $0x188] sm:$0xff]
      %v1464 = vld [vmem:[%s1 + $0x190] sm:$0xff]
      %v1465 = vld [vmem:[%s1 + $0x198] sm:$0xff]
      %v1466 = vld [vmem:[%s1 + $0x1a0] sm:$0xff]
      %v1467 = vld [vmem:[%s1 + $0x1a8] sm:$0xff]
      %v1468 = vld [vmem:[%s1 + $0x1b0] sm:$0xff]
      %v1469 = vld [vmem:[%s1 + $0x1b8] sm:$0xff]
      %v1470 = vld [vmem:[%s1 + $0x1c0] sm:$0xff]
      %v1471 = vld [vmem:[%s1 + $0x1c8] sm:$0xff]
      %v1472 = vld [vmem:[%s1 + $0x1d0] sm:$0xff]
      %v1473 = vld [vmem:[%s1 + $0x1d8] sm:$0xff]
      %v1474 = vld [vmem:[%s1 + $0x1e0] sm:$0xff]
      %v1475 = vld [vmem:[%s1 + $0x1e8] sm:$0xff]
      %v1476 = vld [vmem:[%s1 + $0x1f0] sm:$0xff]
      %v1477 = vld [vmem:[%s1 + $0x1f8] sm:$0xff]
      %v1478 = vld [vmem:[%s1 + $0x200] sm:$0xff]
      %v1479 = vld [vmem:[%s1 + $0x208] sm:$0xff]
      %v1480 = vld [vmem:[%s1 + $0x210] sm:$0xff]
      %v1481 = vld [vmem:[%s1 + $0x218] sm:$0xff]
      %v1482 = vld [vmem:[#allocation2] sm:$0xfe]
      %v1483 = vld [vmem:[#allocation2 + $0x8] sm:$0xfe]
      %v1484 = vld [vmem:[#allocation2 + $0x10] sm:$0xfe]
      %v1485 = vld [vmem:[#allocation2 + $0x78] sm:$0x3]
      %v1486 = vld [vmem:[#allocation2 + $0x80] sm:$0x3]
      %v1487 = vld [vmem:[#allocation2 + $0x88] sm:$0x3]
      %v1488 = vld [vmem:[%s432] sm:$0xff]
      %v1489 = vld [vmem:[%s432 + $0x8] sm:$0xff]
      %v1490 = vld [vmem:[%s432 + $0x10] sm:$0xff]
      %v1491 = vld [vmem:[%s432 + $0x18] sm:$0xff]
      %v1492 = vld [vmem:[%s432 + $0x20] sm:$0xff]
      %v1493 = vld [vmem:[%s432 + $0x28] sm:$0xff]
      %v1494 = vld [vmem:[%s432 + $0x30] sm:$0xff]
      %v1495 = vld [vmem:[%s432 + $0x38] sm:$0xff]
      %v1496 = vld [vmem:[%s432 + $0x40] sm:$0xff]
      %v1497 = vld [vmem:[%s432 + $0x48] sm:$0xff]
      %v1498 = vld [vmem:[%s432 + $0x50] sm:$0xff]
      %v1499 = vld [vmem:[%s432 + $0x58] sm:$0xff]
      %v1500 = vld [vmem:[%s432 + $0x60] sm:$0xff]
      %v1501 = vld [vmem:[%s432 + $0x68] sm:$0xff]
      %v1502 = vld [vmem:[%s432 + $0x70] sm:$0xff]
      %v1503 = vld [vmem:[%s432 + $0x78] sm:$0xff]
      %v1504 = vld [vmem:[%s432 + $0x80] sm:$0xff]
      %v1505 = vld [vmem:[%s432 + $0x88] sm:$0xff]
      %v1506 = vld [vmem:[%s432 + $0x90] sm:$0xff]
      %v1507 = vld [vmem:[%s432 + $0x98] sm:$0xff]
      %v1508 = vld [vmem:[%s432 + $0xa0] sm:$0xff]
      %v1509 = vld [vmem:[%s432 + $0xa8] sm:$0xff]
      %v1510 = vld [vmem:[%s432 + $0xb0] sm:$0xff]
      %v1511 = vld [vmem:[%s432 + $0xb8] sm:$0xff]
      %v1512 = vld [vmem:[%s432 + $0xc0] sm:$0xff]
      %v1513 = vld [vmem:[%s432 + $0xc8] sm:$0xff]
      %v1514 = vld [vmem:[%s432 + $0xd0] sm:$0xff]
      %v1515 = vld [vmem:[%s432 + $0xd8] sm:$0xff]
      %v1516 = vld [vmem:[%s432 + $0xe0] sm:$0xff]
      %v1517 = vld [vmem:[%s432 + $0xe8] sm:$0xff]
      %v1518 = vld [vmem:[%s432 + $0xf0] sm:$0xff]
      %v1519 = vld [vmem:[%s432 + $0xf8] sm:$0xff]
      %v1520 = vld [vmem:[%s432 + $0x100] sm:$0xff]
      %v1521 = vld [vmem:[%s432 + $0x108] sm:$0xff]
      %v1522 = vld [vmem:[%s432 + $0x110] sm:$0xff]
      %v1523 = vld [vmem:[%s432 + $0x118] sm:$0xff]
      %v1524 = vld [vmem:[%s432 + $0x120] sm:$0xff]
      %v1525 = vld [vmem:[%s432 + $0x128] sm:$0xff]
      %v1526 = vld [vmem:[%s432 + $0x130] sm:$0xff]
      %v1527 = vld [vmem:[%s432 + $0x138] sm:$0xff]
      %v1528 = vld [vmem:[%s432 + $0x140] sm:$0xff]
      %v1529 = vld [vmem:[%s432 + $0x148] sm:$0xff]
      %v1530 = vld [vmem:[%s432 + $0x150] sm:$0xff]
      %v1531 = vld [vmem:[%s432 + $0x158] sm:$0xff]
      %v1532 = vld [vmem:[%s432 + $0x160] sm:$0xff]
      %v1533 = vld [vmem:[%s432 + $0x168] sm:$0xff]
      %v1534 = vld [vmem:[%s432 + $0x170] sm:$0xff]
      %v1535 = vld [vmem:[%s432 + $0x178] sm:$0xff]
      %v1536 = vld [vmem:[%s432 + $0x180] sm:$0xff]
      %v1537 = vld [vmem:[%s432 + $0x188] sm:$0xff]
      %v1538 = vld [vmem:[%s432 + $0x190] sm:$0xff]
      %v1539 = vld [vmem:[%s432 + $0x198] sm:$0xff]
      %v1540 = vld [vmem:[%s432 + $0x1a0] sm:$0xff]
      %v1541 = vld [vmem:[%s432 + $0x1a8] sm:$0xff]
      %v1542 = vld [vmem:[%s432 + $0x1b0] sm:$0xff]
      %v1543 = vld [vmem:[%s432 + $0x1b8] sm:$0xff]
      %v1544 = vld [vmem:[%s432 + $0x1c0] sm:$0xff]
      %v1545 = vld [vmem:[%s432 + $0x1c8] sm:$0xff]
      %v1546 = vld [vmem:[%s432 + $0x1d0] sm:$0xff]
      %v1547 = vld [vmem:[%s432 + $0x1d8] sm:$0xff]
      %v1548 = vld [vmem:[%s432 + $0x1e0] sm:$0xff]
      %v1549 = vld [vmem:[%s432 + $0x1e8] sm:$0xff]
      %v1550 = vld [vmem:[%s432 + $0x1f0] sm:$0xff]
      %v1551 = vld [vmem:[%s432 + $0x1f8] sm:$0xff]
      %v1552 = vld [vmem:[%s432 + $0x200] sm:$0xff]
      %v1553 = vld [vmem:[%s432 + $0x208] sm:$0xff]
      %v1554 = vld [vmem:[%s432 + $0x210] sm:$0xff]
      %v1555 = vld [vmem:[%s432 + $0x218] sm:$0xff]
      %v1574 = vrot.slane %v1482, 1
      %v1575 = vrot.slane %v1399, 1
      %v1576 = vsel %vm519, %v1574, %v1575
      %v1577 = vrot.slane %v1483, 1
      %v1578 = vrot.slane %v1400, 1
      %v1579 = vsel %vm519, %v1577, %v1578
      %v1580 = vrot.slane %v1484, 1
      %v1581 = vrot.slane %v1401, 1
      %v1582 = vsel %vm519, %v1580, %v1581
      %v1583 = vrot.slane %v1402, 1
      %v1584 = vsel %vm519, %v1575, %v1583
      %v1585 = vrot.slane %v1403, 1
      %v1586 = vsel %vm519, %v1578, %v1585
      %v1587 = vrot.slane %v1404, 1
      %v1588 = vsel %vm519, %v1581, %v1587
      %v1589 = vrot.slane %v1405, 1
      %v1590 = vsel %vm519, %v1583, %v1589
      %v1591 = vrot.slane %v1406, 1
      %v1592 = vsel %vm519, %v1585, %v1591
      %v1593 = vrot.slane %v1407, 1
      %v1594 = vsel %vm519, %v1587, %v1593
      %v1595 = vrot.slane %v1408, 1
      %v1596 = vsel %vm519, %v1589, %v1595
      %v1597 = vrot.slane %v1409, 1
      %v1598 = vsel %vm519, %v1591, %v1597
      %v1599 = vrot.slane %v1410, 1
      %v1600 = vsel %vm519, %v1593, %v1599
      %v1601 = vrot.slane %v1485, 1
      %v1602 = vsel %vm519, %v1595, %v1601
      %v1603 = vrot.slane %v1486, 1
      %v1604 = vsel %vm519, %v1597, %v1603
      %v1605 = vrot.slane %v1487, 1
      %v1606 = vsel %vm519, %v1599, %v1605
      %1607 = vrot.lane.b32.xlu0 %v1576, 56
      %v1608 = vpop.permute.xlu0 %1607
      %1609 = vrot.lane.b32.xlu0 %v1579, 56
      %v1610 = vpop.permute.xlu0 %1609
      %1611 = vrot.lane.b32.xlu0 %v1582, 56
      %v1612 = vpop.permute.xlu0 %1611
      %1613 = vrot.lane.b32.xlu0 %v1584, 56
      %v1614 = vpop.permute.xlu0 %1613
      %1615 = vrot.lane.b32.xlu0 %v1586, 56
      %v1616 = vpop.permute.xlu0 %1615
      %1617 = vrot.lane.b32.xlu0 %v1588, 56
      %v1618 = vpop.permute.xlu0 %1617
      %1619 = vrot.lane.b32.xlu0 %v1590, 56
      %v1620 = vpop.permute.xlu0 %1619
      %1621 = vrot.lane.b32.xlu0 %v1592, 56
      %v1622 = vpop.permute.xlu0 %1621
      %1623 = vrot.lane.b32.xlu0 %v1594, 56
      %v1624 = vpop.permute.xlu0 %1623
      %1625 = vrot.lane.b32.xlu0 %v1596, 56
      %v1626 = vpop.permute.xlu0 %1625
      %1627 = vrot.lane.b32.xlu0 %v1598, 56
      %v1628 = vpop.permute.xlu0 %1627
      %1629 = vrot.lane.b32.xlu0 %v1600, 56
      %v1630 = vpop.permute.xlu0 %1629
      %1631 = vrot.lane.b32.xlu0 %v1602, 56
      %v1632 = vpop.permute.xlu0 %1631
      %1633 = vrot.lane.b32.xlu0 %v1604, 56
      %v1634 = vpop.permute.xlu0 %1633
      %1635 = vrot.lane.b32.xlu0 %v1606, 56
      %v1636 = vpop.permute.xlu0 %1635
      %1637 = vrot.lane.b32.xlu0 %v1601, 56
      %v1638 = vpop.permute.xlu0 %1637
      %1639 = vrot.lane.b32.xlu0 %v1603, 56
      %v1640 = vpop.permute.xlu0 %1639
      %1641 = vrot.lane.b32.xlu0 %v1605, 56
      %v1642 = vpop.permute.xlu0 %1641
      %vm1643 = vcmask 457728
      %v1644 = vsel %vm1643, %v1608, %v1610
      %v1645 = vsel %vm1643, %v1610, %v1612
      %v1646 = vsel %vm1643, %v1614, %v1616
      %v1647 = vsel %vm1643, %v1616, %v1618
      %v1648 = vsel %vm1643, %v1620, %v1622
      %v1649 = vsel %vm1643, %v1622, %v1624
      %v1650 = vsel %vm1643, %v1626, %v1628
      %v1651 = vsel %vm1643, %v1628, %v1630
      %v1652 = vsel %vm1643, %v1632, %v1634
      %v1653 = vsel %vm1643, %v1634, %v1636
      %v1654 = vsel %vm1643, %v1638, %v1640
      %v1655 = vsel %vm1643, %v1640, %v1642
      %v1668 = vsel %vm285, %v1612, 0
      %v1670 = vsel %vm285, %v1618, 0
      %v1672 = vsel %vm285, %v1624, 0
      %v1674 = vsel %vm285, %v1630, 0
      %v1676 = vsel %vm285, %v1636, 0
      %v1678 = vsel %vm285, %v1642, 0
      %1680 = vmatprep.subr.mxu0 %v1489
      %1681 = vmatpush1.msra.mxu0 %v1488
      %1682 = vmatprep.subr.mxu0 %v1491
      %1683 = vmatpush1.msra.mxu0 %v1490
      %1684 = vmatprep.subr.mxu0 %v1493
      %1685 = vmatpush1.msra.mxu0 %v1492
      %1686 = vmatprep.subr.mxu0 %v1495
      %1687 = vmatpush1.msra.mxu0 %v1494
      %1688 = vmatprep.subr.mxu0 %v1497
      %1689 = vmatpush1.msra.mxu0 %v1496
      %1690 = vmatprep.subr.mxu0 %v1499
      %1691 = vmatpush1.msra.mxu0 %v1498
      %1692 = vmatprep.subr.mxu0 %v1501
      %1693 = vmatpush1.msra.mxu0 %v1500
      %1694 = vmatprep.subr.mxu0 %v1503
      %1695 = vmatpush1.msra.mxu0 %v1502
      %1696 = vmatprep.subr.mxu0 %v1505
      %1697 = vmatpush1.msra.mxu0 %v1504
      %1698 = vmatprep.subr.mxu0 %v1507
      %1699 = vmatpush1.msra.mxu0 %v1506
      %1700 = vmatprep.subr.mxu0 %v1509
      %1701 = vmatpush1.msra.mxu0 %v1508
      %1702 = vmatprep.subr.mxu0 %v1511
      %1703 = vmatpush1.msra.mxu0 %v1510
      %1704 = vmatprep.subr.mxu0 %v1513
      %1705 = vmatpush1.msra.mxu0 %v1512
      %1706 = vmatprep.subr.mxu0 %v1515
      %1707 = vmatpush1.msra.mxu0 %v1514
      %1708 = vmatprep.subr.mxu0 %v1517
      %1709 = vmatpush1.msra.mxu0 %v1516
      %1710 = vmatprep.subr.mxu0 %v1519
      %1711 = vmatpush1.msra.mxu0 %v1518
      %1712 = vmatprep.subr.mxu0 %v1521
      %1713 = vmatpush1.msra.mxu0 %v1520
      %1714 = vmatprep.subr.mxu0 %v1523
      %1715 = vmatpush1.msra.mxu0 %v1522
      %1716 = vmatprep.subr.mxu0 %v1525
      %1717 = vmatpush1.msra.mxu0 %v1524
      %1718 = vmatprep.subr.mxu0 %v1527
      %1719 = vmatpush1.msra.mxu0 %v1526
      %1720 = vmatprep.subr.mxu0 %v1529
      %1721 = vmatpush1.msra.mxu0 %v1528
      %1722 = vmatprep.subr.mxu0 %v1531
      %1723 = vmatpush1.msra.mxu0 %v1530
      %1724 = vmatprep.subr.mxu0 %v1533
      %1725 = vmatpush1.msra.mxu0 %v1532
      %1726 = vmatprep.subr.mxu0 %v1535
      %1727 = vmatpush1.msra.mxu0 %v1534
      %1728 = vmatprep.subr.mxu0 %v1537
      %1729 = vmatpush1.msra.mxu0 %v1536
      %1730 = vmatprep.subr.mxu0 %v1539
      %1731 = vmatpush1.msra.mxu0 %v1538
      %1732 = vmatprep.subr.mxu0 %v1541
      %1733 = vmatpush1.msra.mxu0 %v1540
      %1734 = vmatprep.subr.mxu0 %v1543
      %1735 = vmatpush1.msra.mxu0 %v1542
      %1736 = vmatprep.subr.mxu0 %v1545
      %1737 = vmatpush1.msra.mxu0 %v1544
      %1738 = vmatprep.subr.mxu0 %v1547
      %1739 = vmatpush1.msra.mxu0 %v1546
      %1740 = vmatprep.subr.mxu0 %v1549
      %1741 = vmatpush1.msra.mxu0 %v1548
      %1742 = vmatprep.subr.mxu0 %v1551
      %1743 = vmatpush1.msra.mxu0 %v1550
      %1744 = vmatprep.mubr.f32.mxu0 %v1645
      %1745 = vmatmul.mubr.f32.gmra.mrb[0].mxu0 %v1644
      %v1746 = vpop.f32.mrb[0].mxu0
      %v1747 = vadd.f32 0.0, %v1746
      %v1748 = vpop.f32.mrb[0].mxu0
      %v1749 = vadd.f32 0.0, %v1748
      %1750 = vmatprep.mubr.f32.mxu0 %v1647
      %1751 = vmatmul.mubr.f32.gmra.mrb[0].mxu0 %v1646
      %v1752 = vpop.f32.mrb[0].mxu0
      %v1753 = vadd.f32 0.0, %v1752
      %v1754 = vpop.f32.mrb[0].mxu0
      %v1755 = vadd.f32 0.0, %v1754
      %1756 = vmatprep.mubr.f32.mxu0 %v1649
      %1757 = vmatmul.mubr.f32.gmra.mrb[0].mxu0 %v1648
      %v1758 = vpop.f32.mrb[0].mxu0
      %v1759 = vadd.f32 0.0, %v1758
      %v1760 = vpop.f32.mrb[0].mxu0
      %v1761 = vadd.f32 0.0, %v1760
      %1762 = vmatprep.mubr.f32.mxu0 %v1651
      %1763 = vmatmul.mubr.f32.gmra.mrb[0].mxu0 %v1650
      %v1764 = vpop.f32.mrb[0].mxu0
      %v1765 = vadd.f32 0.0, %v1764
      %v1766 = vpop.f32.mrb[0].mxu0
      %v1767 = vadd.f32 0.0, %v1766
      %1768 = vmatprep.mubr.f32.mxu0 %v1653
      %1769 = vmatmul.mubr.f32.gmra.mrb[0].mxu0 %v1652
      %v1770 = vpop.f32.mrb[0].mxu0
      %v1771 = vadd.f32 0.0, %v1770
      %v1772 = vpop.f32.mrb[0].mxu0
      %v1773 = vadd.f32 0.0, %v1772
      %1774 = vmatprep.mubr.f32.mxu0 %v1655
      %1775 = vmatmul.mubr.f32.gmra.mrb[0].mxu0 %v1654
      %v1776 = vpop.f32.mrb[0].mxu0
      %v1777 = vadd.f32 0.0, %v1776
      %v1778 = vpop.f32.mrb[0].mxu0
      %v1779 = vadd.f32 0.0, %v1778
      %1780 = vdwg.mxu0
      %1781 = vmatprep.subr.mxu0 %v1553
      %1782 = vmatpush1.msra.mxu0 %v1552
      %1783 = vmatprep.subr.mxu0 %v1555
      %1784 = vmatpush1.msra.mxu0 %v1554
      %1785 = vmatprep.subr.mxu0 0.0
      %1786 = vmatpush1.msra.mxu0 0.0
      %1787 = vmatprep.subr.mxu0 0.0
      %1788 = vmatpush1.msra.mxu0 0.0
      %1789 = vmatprep.subr.mxu0 0.0
      %1790 = vmatpush1.msra.mxu0 0.0
      %1791 = vmatprep.subr.mxu0 0.0
      %1792 = vmatpush1.msra.mxu0 0.0
      %1793 = vmatprep.subr.mxu0 0.0
      %1794 = vmatpush1.msra.mxu0 0.0
      %1795 = vmatprep.subr.mxu0 0.0
      %1796 = vmatpush1.msra.mxu0 0.0
      %1797 = vmatprep.subr.mxu0 0.0
      %1798 = vmatpush1.msra.mxu0 0.0
      %1799 = vmatprep.subr.mxu0 0.0
      %1800 = vmatpush1.msra.mxu0 0.0
      %1801 = vmatprep.subr.mxu0 0.0
      %1802 = vmatpush1.msra.mxu0 0.0
      %1803 = vmatprep.subr.mxu0 0.0
      %1804 = vmatpush1.msra.mxu0 0.0
      %1805 = vmatprep.subr.mxu0 0.0
      %1806 = vmatpush1.msra.mxu0 0.0
      %1807 = vmatprep.subr.mxu0 0.0
      %1808 = vmatpush1.msra.mxu0 0.0
      %1809 = vmatprep.subr.mxu0 0.0
      %1810 = vmatpush1.msra.mxu0 0.0
      %1811 = vmatprep.subr.mxu0 0.0
      %1812 = vmatpush1.msra.mxu0 0.0
      %1813 = vmatprep.subr.mxu0 0.0
      %1814 = vmatpush1.msra.mxu0 0.0
      %1815 = vmatprep.subr.mxu0 0.0
      %1816 = vmatpush1.msra.mxu0 0.0
      %1817 = vmatprep.subr.mxu0 0.0
      %1818 = vmatpush1.msra.mxu0 0.0
      %1819 = vmatprep.subr.mxu0 0.0
      %1820 = vmatpush1.msra.mxu0 0.0
      %1821 = vmatprep.subr.mxu0 0.0
      %1822 = vmatpush1.msra.mxu0 0.0
      %1823 = vmatprep.subr.mxu0 0.0
      %1824 = vmatpush1.msra.mxu0 0.0
      %1825 = vmatprep.subr.mxu0 0.0
      %1826 = vmatpush1.msra.mxu0 0.0
      %1827 = vmatprep.subr.mxu0 0.0
      %1828 = vmatpush1.msra.mxu0 0.0
      %1829 = vmatprep.subr.mxu0 0.0
      %1830 = vmatpush1.msra.mxu0 0.0
      %1831 = vmatprep.subr.mxu0 0.0
      %1832 = vmatpush1.msra.mxu0 0.0
      %1833 = vmatprep.subr.mxu0 0.0
      %1834 = vmatpush1.msra.mxu0 0.0
      %1835 = vmatprep.subr.mxu0 0.0
      %1836 = vmatpush1.msra.mxu0 0.0
      %1837 = vmatprep.subr.mxu0 0.0
      %1838 = vmatpush1.msra.mxu0 0.0
      %1839 = vmatprep.subr.mxu0 0.0
      %1840 = vmatpush1.msra.mxu0 0.0
      %1841 = vmatprep.subr.mxu0 0.0
      %1842 = vmatpush1.msra.mxu0 0.0
      %1843 = vmatprep.subr.mxu0 0.0
      %1844 = vmatpush1.msra.mxu0 0.0
      %1845 = vmatprep.mubr.f32.mxu0 0.0
      %1846 = vmatmul.mubr.f32.gmra.mrb[0].mxu0 %v1668
      %v1847 = vpop.f32.mrb[0].mxu0
      %v1848 = vadd.f32 %v1747, %v1847
      %v1849 = vpop.f32.mrb[0].mxu0
      %v1850 = vadd.f32 %v1749, %v1849
      %1851 = vmatprep.mubr.f32.mxu0 0.0
      %1852 = vmatmul.mubr.f32.gmra.mrb[0].mxu0 %v1670
      %v1853 = vpop.f32.mrb[0].mxu0
      %v1854 = vadd.f32 %v1753, %v1853
      %v1855 = vpop.f32.mrb[0].mxu0
      %v1856 = vadd.f32 %v1755, %v1855
      %1857 = vmatprep.mubr.f32.mxu0 0.0
      %1858 = vmatmul.mubr.f32.gmra.mrb[0].mxu0 %v1672
      %v1859 = vpop.f32.mrb[0].mxu0
      %v1860 = vadd.f32 %v1759, %v1859
      %v1861 = vpop.f32.mrb[0].mxu0
      %v1862 = vadd.f32 %v1761, %v1861
      %1863 = vmatprep.mubr.f32.mxu0 0.0
      %1864 = vmatmul.mubr.f32.gmra.mrb[0].mxu0 %v1674
      %v1865 = vpop.f32.mrb[0].mxu0
      %v1866 = vadd.f32 %v1765, %v1865
      %v1867 = vpop.f32.mrb[0].mxu0
      %v1868 = vadd.f32 %v1767, %v1867
      %1869 = vmatprep.mubr.f32.mxu0 0.0
      %1870 = vmatmul.mubr.f32.gmra.mrb[0].mxu0 %v1676
      %v1871 = vpop.f32.mrb[0].mxu0
      %v1872 = vadd.f32 %v1771, %v1871
      %v1873 = vpop.f32.mrb[0].mxu0
      %v1874 = vadd.f32 %v1773, %v1873
      %1875 = vmatprep.mubr.f32.mxu0 0.0
      %1876 = vmatmul.mubr.f32.gmra.mrb[0].mxu0 %v1678
      %v1877 = vpop.f32.mrb[0].mxu0
      %v1878 = vadd.f32 %v1777, %v1877
      %v1879 = vpop.f32.mrb[0].mxu0
      %v1880 = vadd.f32 %v1779, %v1879
      %1881 = vdwg.mxu0
      %1888 = vrot.lane.b32.xlu0 %v1396, 56
      %v1889 = vpop.permute.xlu0 %1888
      %1890 = vrot.lane.b32.xlu0 %v1397, 56
      %v1891 = vpop.permute.xlu0 %1890
      %1892 = vrot.lane.b32.xlu0 %v1398, 56
      %v1893 = vpop.permute.xlu0 %1892
      %1894 = vrot.lane.b32.xlu0 %v1399, 56
      %v1895 = vpop.permute.xlu0 %1894
      %1896 = vrot.lane.b32.xlu0 %v1400, 56
      %v1897 = vpop.permute.xlu0 %1896
      %1898 = vrot.lane.b32.xlu0 %v1401, 56
      %v1899 = vpop.permute.xlu0 %1898
      %1900 = vrot.lane.b32.xlu0 %v1402, 56
      %v1901 = vpop.permute.xlu0 %1900
      %1902 = vrot.lane.b32.xlu0 %v1403, 56
      %v1903 = vpop.permute.xlu0 %1902
      %1904 = vrot.lane.b32.xlu0 %v1404, 56
      %v1905 = vpop.permute.xlu0 %1904
      %1906 = vrot.lane.b32.xlu0 %v1405, 56
      %v1907 = vpop.permute.xlu0 %1906
      %1908 = vrot.lane.b32.xlu0 %v1406, 56
      %v1909 = vpop.permute.xlu0 %1908
      %1910 = vrot.lane.b32.xlu0 %v1407, 56
      %v1911 = vpop.permute.xlu0 %1910
      %1912 = vrot.lane.b32.xlu0 %v1408, 56
      %v1913 = vpop.permute.xlu0 %1912
      %1914 = vrot.lane.b32.xlu0 %v1409, 56
      %v1915 = vpop.permute.xlu0 %1914
      %1916 = vrot.lane.b32.xlu0 %v1410, 56
      %v1917 = vpop.permute.xlu0 %1916
      %1918 = vrot.lane.b32.xlu0 %v1411, 56
      %v1919 = vpop.permute.xlu0 %1918
      %1920 = vrot.lane.b32.xlu0 %v1412, 56
      %v1921 = vpop.permute.xlu0 %1920
      %1922 = vrot.lane.b32.xlu0 %v1413, 56
      %v1923 = vpop.permute.xlu0 %1922
      %v1924 = vsel %vm1643, %v1889, %v1891
      %v1925 = vsel %vm1643, %v1891, %v1893
      %v1926 = vsel %vm1643, %v1895, %v1897
      %v1927 = vsel %vm1643, %v1897, %v1899
      %v1928 = vsel %vm1643, %v1901, %v1903
      %v1929 = vsel %vm1643, %v1903, %v1905
      %v1930 = vsel %vm1643, %v1907, %v1909
      %v1931 = vsel %vm1643, %v1909, %v1911
      %v1932 = vsel %vm1643, %v1913, %v1915
      %v1933 = vsel %vm1643, %v1915, %v1917
      %v1934 = vsel %vm1643, %v1919, %v1921
      %v1935 = vsel %vm1643, %v1921, %v1923
      %v1948 = vsel %vm285, %v1893, 0
      %v1950 = vsel %vm285, %v1899, 0
      %v1952 = vsel %vm285, %v1905, 0
      %v1954 = vsel %vm285, %v1911, 0
      %v1956 = vsel %vm285, %v1917, 0
      %v1958 = vsel %vm285, %v1923, 0
      %1960 = vmatprep.subr.mxu0 %v1415
      %1961 = vmatpush1.msra.mxu0 %v1414
      %1962 = vmatprep.subr.mxu0 %v1417
      %1963 = vmatpush1.msra.mxu0 %v1416
      %1964 = vmatprep.subr.mxu0 %v1419
      %1965 = vmatpush1.msra.mxu0 %v1418
      %1966 = vmatprep.subr.mxu0 %v1421
      %1967 = vmatpush1.msra.mxu0 %v1420
      %1968 = vmatprep.subr.mxu0 %v1423
      %1969 = vmatpush1.msra.mxu0 %v1422
      %1970 = vmatprep.subr.mxu0 %v1425
      %1971 = vmatpush1.msra.mxu0 %v1424
      %1972 = vmatprep.subr.mxu0 %v1427
      %1973 = vmatpush1.msra.mxu0 %v1426
      %1974 = vmatprep.subr.mxu0 %v1429
      %1975 = vmatpush1.msra.mxu0 %v1428
      %1976 = vmatprep.subr.mxu0 %v1431
      %1977 = vmatpush1.msra.mxu0 %v1430
      %1978 = vmatprep.subr.mxu0 %v1433
      %1979 = vmatpush1.msra.mxu0 %v1432
      %1980 = vmatprep.subr.mxu0 %v1435
      %1981 = vmatpush1.msra.mxu0 %v1434
      %1982 = vmatprep.subr.mxu0 %v1437
      %1983 = vmatpush1.msra.mxu0 %v1436
      %1984 = vmatprep.subr.mxu0 %v1439
      %1985 = vmatpush1.msra.mxu0 %v1438
      %1986 = vmatprep.subr.mxu0 %v1441
      %1987 = vmatpush1.msra.mxu0 %v1440
      %1988 = vmatprep.subr.mxu0 %v1443
      %1989 = vmatpush1.msra.mxu0 %v1442
      %1990 = vmatprep.subr.mxu0 %v1445
      %1991 = vmatpush1.msra.mxu0 %v1444
      %1992 = vmatprep.subr.mxu0 %v1447
      %1993 = vmatpush1.msra.mxu0 %v1446
      %1994 = vmatprep.subr.mxu0 %v1449
      %1995 = vmatpush1.msra.mxu0 %v1448
      %1996 = vmatprep.subr.mxu0 %v1451
      %1997 = vmatpush1.msra.mxu0 %v1450
      %1998 = vmatprep.subr.mxu0 %v1453
      %1999 = vmatpush1.msra.mxu0 %v1452
      %2000 = vmatprep.subr.mxu0 %v1455
      %2001 = vmatpush1.msra.mxu0 %v1454
      %2002 = vmatprep.subr.mxu0 %v1457
      %2003 = vmatpush1.msra.mxu0 %v1456
      %2004 = vmatprep.subr.mxu0 %v1459
      %2005 = vmatpush1.msra.mxu0 %v1458
      %2006 = vmatprep.subr.mxu0 %v1461
      %2007 = vmatpush1.msra.mxu0 %v1460
      %2008 = vmatprep.subr.mxu0 %v1463
      %2009 = vmatpush1.msra.mxu0 %v1462
      %2010 = vmatprep.subr.mxu0 %v1465
      %2011 = vmatpush1.msra.mxu0 %v1464
      %2012 = vmatprep.subr.mxu0 %v1467
      %2013 = vmatpush1.msra.mxu0 %v1466
      %2014 = vmatprep.subr.mxu0 %v1469
      %2015 = vmatpush1.msra.mxu0 %v1468
      %2016 = vmatprep.subr.mxu0 %v1471
      %2017 = vmatpush1.msra.mxu0 %v1470
      %2018 = vmatprep.subr.mxu0 %v1473
      %2019 = vmatpush1.msra.mxu0 %v1472
      %2020 = vmatprep.subr.mxu0 %v1475
      %2021 = vmatpush1.msra.mxu0 %v1474
      %2022 = vmatprep.subr.mxu0 %v1477
      %2023 = vmatpush1.msra.mxu0 %v1476
      %2024 = vmatprep.mubr.f32.mxu0 %v1925
      %2025 = vmatmul.mubr.f32.gmra.mrb[0].mxu0 %v1924
      %v2026 = vpop.f32.mrb[0].mxu0
      %v2027 = vadd.f32 %v1848, %v2026
      %v2028 = vpop.f32.mrb[0].mxu0
      %v2029 = vadd.f32 %v1850, %v2028
      %2030 = vmatprep.mubr.f32.mxu0 %v1927
      %2031 = vmatmul.mubr.f32.gmra.mrb[0].mxu0 %v1926
      %v2032 = vpop.f32.mrb[0].mxu0
      %v2033 = vadd.f32 %v1854, %v2032
      %v2034 = vpop.f32.mrb[0].mxu0
      %v2035 = vadd.f32 %v1856, %v2034
      %2036 = vmatprep.mubr.f32.mxu0 %v1929
      %2037 = vmatmul.mubr.f32.gmra.mrb[0].mxu0 %v1928
      %v2038 = vpop.f32.mrb[0].mxu0
      %v2039 = vadd.f32 %v1860, %v2038
      %v2040 = vpop.f32.mrb[0].mxu0
      %v2041 = vadd.f32 %v1862, %v2040
      %2042 = vmatprep.mubr.f32.mxu0 %v1931
      %2043 = vmatmul.mubr.f32.gmra.mrb[0].mxu0 %v1930
      %v2044 = vpop.f32.mrb[0].mxu0
      %v2045 = vadd.f32 %v1866, %v2044
      %v2046 = vpop.f32.mrb[0].mxu0
      %v2047 = vadd.f32 %v1868, %v2046
      %2048 = vmatprep.mubr.f32.mxu0 %v1933
      %2049 = vmatmul.mubr.f32.gmra.mrb[0].mxu0 %v1932
      %v2050 = vpop.f32.mrb[0].mxu0
      %v2051 = vadd.f32 %v1872, %v2050
      %v2052 = vpop.f32.mrb[0].mxu0
      %v2053 = vadd.f32 %v1874, %v2052
      %2054 = vmatprep.mubr.f32.mxu0 %v1935
      %2055 = vmatmul.mubr.f32.gmra.mrb[0].mxu0 %v1934
      %v2056 = vpop.f32.mrb[0].mxu0
      %v2057 = vadd.f32 %v1878, %v2056
      %v2058 = vpop.f32.mrb[0].mxu0
      %v2059 = vadd.f32 %v1880, %v2058
      %2060 = vdwg.mxu0
      %2061 = vmatprep.subr.mxu0 %v1479
      %2062 = vmatpush1.msra.mxu0 %v1478
      %2063 = vmatprep.subr.mxu0 %v1481
      %2064 = vmatpush1.msra.mxu0 %v1480
      %2065 = vmatprep.subr.mxu0 0.0
      %2066 = vmatpush1.msra.mxu0 0.0
      %2067 = vmatprep.subr.mxu0 0.0
      %2068 = vmatpush1.msra.mxu0 0.0
      %2069 = vmatprep.subr.mxu0 0.0
      %2070 = vmatpush1.msra.mxu0 0.0
      %2071 = vmatprep.subr.mxu0 0.0
      %2072 = vmatpush1.msra.mxu0 0.0
      %2073 = vmatprep.subr.mxu0 0.0
      %2074 = vmatpush1.msra.mxu0 0.0
      %2075 = vmatprep.subr.mxu0 0.0
      %2076 = vmatpush1.msra.mxu0 0.0
      %2077 = vmatprep.subr.mxu0 0.0
      %2078 = vmatpush1.msra.mxu0 0.0
      %2079 = vmatprep.subr.mxu0 0.0
      %2080 = vmatpush1.msra.mxu0 0.0
      %2081 = vmatprep.subr.mxu0 0.0
      %2082 = vmatpush1.msra.mxu0 0.0
      %2083 = vmatprep.subr.mxu0 0.0
      %2084 = vmatpush1.msra.mxu0 0.0
      %2085 = vmatprep.subr.mxu0 0.0
      %2086 = vmatpush1.msra.mxu0 0.0
      %2087 = vmatprep.subr.mxu0 0.0
      %2088 = vmatpush1.msra.mxu0 0.0
      %2089 = vmatprep.subr.mxu0 0.0
      %2090 = vmatpush1.msra.mxu0 0.0
      %2091 = vmatprep.subr.mxu0 0.0
      %2092 = vmatpush1.msra.mxu0 0.0
      %2093 = vmatprep.subr.mxu0 0.0
      %2094 = vmatpush1.msra.mxu0 0.0
      %2095 = vmatprep.subr.mxu0 0.0
      %2096 = vmatpush1.msra.mxu0 0.0
      %2097 = vmatprep.subr.mxu0 0.0
      %2098 = vmatpush1.msra.mxu0 0.0
      %2099 = vmatprep.subr.mxu0 0.0
      %2100 = vmatpush1.msra.mxu0 0.0
      %2101 = vmatprep.subr.mxu0 0.0
      %2102 = vmatpush1.msra.mxu0 0.0
      %2103 = vmatprep.subr.mxu0 0.0
      %2104 = vmatpush1.msra.mxu0 0.0
      %2105 = vmatprep.subr.mxu0 0.0
      %2106 = vmatpush1.msra.mxu0 0.0
      %2107 = vmatprep.subr.mxu0 0.0
      %2108 = vmatpush1.msra.mxu0 0.0
      %2109 = vmatprep.subr.mxu0 0.0
      %2110 = vmatpush1.msra.mxu0 0.0
      %2111 = vmatprep.subr.mxu0 0.0
      %2112 = vmatpush1.msra.mxu0 0.0
      %2113 = vmatprep.subr.mxu0 0.0
      %2114 = vmatpush1.msra.mxu0 0.0
      %2115 = vmatprep.subr.mxu0 0.0
      %2116 = vmatpush1.msra.mxu0 0.0
      %2117 = vmatprep.subr.mxu0 0.0
      %2118 = vmatpush1.msra.mxu0 0.0
      %2119 = vmatprep.subr.mxu0 0.0
      %2120 = vmatpush1.msra.mxu0 0.0
      %2121 = vmatprep.subr.mxu0 0.0
      %2122 = vmatpush1.msra.mxu0 0.0
      %2123 = vmatprep.subr.mxu0 0.0
      %2124 = vmatpush1.msra.mxu0 0.0
      %2125 = vmatprep.mubr.f32.mxu0 0.0
      %2126 = vmatmul.mubr.f32.gmra.mrb[0].mxu0 %v1948
      %v2127 = vpop.f32.mrb[0].mxu0
      %v2128 = vadd.f32 %v2027, %v2127
      %v2129 = vpop.f32.mrb[0].mxu0
      %v2130 = vadd.f32 %v2029, %v2129
      %2131 = vmatprep.mubr.f32.mxu0 0.0
      %2132 = vmatmul.mubr.f32.gmra.mrb[0].mxu0 %v1950
      %v2133 = vpop.f32.mrb[0].mxu0
      %v2134 = vadd.f32 %v2033, %v2133
      %v2135 = vpop.f32.mrb[0].mxu0
      %v2136 = vadd.f32 %v2035, %v2135
      %2137 = vmatprep.mubr.f32.mxu0 0.0
      %2138 = vmatmul.mubr.f32.gmra.mrb[0].mxu0 %v1952
      %v2139 = vpop.f32.mrb[0].mxu0
      %v2140 = vadd.f32 %v2039, %v2139
      %v2141 = vpop.f32.mrb[0].mxu0
      %v2142 = vadd.f32 %v2041, %v2141
      %2143 = vmatprep.mubr.f32.mxu0 0.0
      %2144 = vmatmul.mubr.f32.gmra.mrb[0].mxu0 %v1954
      %v2145 = vpop.f32.mrb[0].mxu0
      %v2146 = vadd.f32 %v2045, %v2145
      %v2147 = vpop.f32.mrb[0].mxu0
      %v2148 = vadd.f32 %v2047, %v2147
      %2149 = vmatprep.mubr.f32.mxu0 0.0
      %2150 = vmatmul.mubr.f32.gmra.mrb[0].mxu0 %v1956
      %v2151 = vpop.f32.mrb[0].mxu0
      %v2152 = vadd.f32 %v2051, %v2151
      %v2153 = vpop.f32.mrb[0].mxu0
      %v2154 = vadd.f32 %v2053, %v2153
      %2155 = vmatprep.mubr.f32.mxu0 0.0
      %2156 = vmatmul.mubr.f32.gmra.mrb[0].mxu0 %v1958
      %v2157 = vpop.f32.mrb[0].mxu0
      %v2158 = vadd.f32 %v2057, %v2157
      %v2159 = vpop.f32.mrb[0].mxu0
      %v2160 = vadd.f32 %v2059, %v2159
      %2161 = vdwg.mxu0
      %v2162 = vld [vmem:[#allocation2] sm:$0xfc]
      %v2163 = vld [vmem:[#allocation2 + $0x8] sm:$0xfc]
      %v2164 = vld [vmem:[#allocation2 + $0x10] sm:$0xfc]
      %v2165 = vld [vmem:[#allocation2 + $0x78] sm:$0x7]
      %v2166 = vld [vmem:[#allocation2 + $0x80] sm:$0x7]
      %v2167 = vld [vmem:[#allocation2 + $0x88] sm:$0x7]
      %v2168 = vld [vmem:[%s1001] sm:$0xff]
      %v2169 = vld [vmem:[%s1001 + $0x8] sm:$0xff]
      %v2170 = vld [vmem:[%s1001 + $0x10] sm:$0xff]
      %v2171 = vld [vmem:[%s1001 + $0x18] sm:$0xff]
      %v2172 = vld [vmem:[%s1001 + $0x20] sm:$0xff]
      %v2173 = vld [vmem:[%s1001 + $0x28] sm:$0xff]
      %v2174 = vld [vmem:[%s1001 + $0x30] sm:$0xff]
      %v2175 = vld [vmem:[%s1001 + $0x38] sm:$0xff]
      %v2176 = vld [vmem:[%s1001 + $0x40] sm:$0xff]
      %v2177 = vld [vmem:[%s1001 + $0x48] sm:$0xff]
      %v2178 = vld [vmem:[%s1001 + $0x50] sm:$0xff]
      %v2179 = vld [vmem:[%s1001 + $0x58] sm:$0xff]
      %v2180 = vld [vmem:[%s1001 + $0x60] sm:$0xff]
      %v2181 = vld [vmem:[%s1001 + $0x68] sm:$0xff]
      %v2182 = vld [vmem:[%s1001 + $0x70] sm:$0xff]
      %v2183 = vld [vmem:[%s1001 + $0x78] sm:$0xff]
      %v2184 = vld [vmem:[%s1001 + $0x80] sm:$0xff]
      %v2185 = vld [vmem:[%s1001 + $0x88] sm:$0xff]
      %v2186 = vld [vmem:[%s1001 + $0x90] sm:$0xff]
      %v2187 = vld [vmem:[%s1001 + $0x98] sm:$0xff]
      %v2188 = vld [vmem:[%s1001 + $0xa0] sm:$0xff]
      %v2189 = vld [vmem:[%s1001 + $0xa8] sm:$0xff]
      %v2190 = vld [vmem:[%s1001 + $0xb0] sm:$0xff]
      %v2191 = vld [vmem:[%s1001 + $0xb8] sm:$0xff]
      %v2192 = vld [vmem:[%s1001 + $0xc0] sm:$0xff]
      %v2193 = vld [vmem:[%s1001 + $0xc8] sm:$0xff]
      %v2194 = vld [vmem:[%s1001 + $0xd0] sm:$0xff]
      %v2195 = vld [vmem:[%s1001 + $0xd8] sm:$0xff]
      %v2196 = vld [vmem:[%s1001 + $0xe0] sm:$0xff]
      %v2197 = vld [vmem:[%s1001 + $0xe8] sm:$0xff]
      %v2198 = vld [vmem:[%s1001 + $0xf0] sm:$0xff]
      %v2199 = vld [vmem:[%s1001 + $0xf8] sm:$0xff]
      %v2200 = vld [vmem:[%s1001 + $0x100] sm:$0xff]
      %v2201 = vld [vmem:[%s1001 + $0x108] sm:$0xff]
      %v2202 = vld [vmem:[%s1001 + $0x110] sm:$0xff]
      %v2203 = vld [vmem:[%s1001 + $0x118] sm:$0xff]
      %v2204 = vld [vmem:[%s1001 + $0x120] sm:$0xff]
      %v2205 = vld [vmem:[%s1001 + $0x128] sm:$0xff]
      %v2206 = vld [vmem:[%s1001 + $0x130] sm:$0xff]
      %v2207 = vld [vmem:[%s1001 + $0x138] sm:$0xff]
      %v2208 = vld [vmem:[%s1001 + $0x140] sm:$0xff]
      %v2209 = vld [vmem:[%s1001 + $0x148] sm:$0xff]
      %v2210 = vld [vmem:[%s1001 + $0x150] sm:$0xff]
      %v2211 = vld [vmem:[%s1001 + $0x158] sm:$0xff]
      %v2212 = vld [vmem:[%s1001 + $0x160] sm:$0xff]
      %v2213 = vld [vmem:[%s1001 + $0x168] sm:$0xff]
      %v2214 = vld [vmem:[%s1001 + $0x170] sm:$0xff]
      %v2215 = vld [vmem:[%s1001 + $0x178] sm:$0xff]
      %v2216 = vld [vmem:[%s1001 + $0x180] sm:$0xff]
      %v2217 = vld [vmem:[%s1001 + $0x188] sm:$0xff]
      %v2218 = vld [vmem:[%s1001 + $0x190] sm:$0xff]
      %v2219 = vld [vmem:[%s1001 + $0x198] sm:$0xff]
      %v2220 = vld [vmem:[%s1001 + $0x1a0] sm:$0xff]
      %v2221 = vld [vmem:[%s1001 + $0x1a8] sm:$0xff]
      %v2222 = vld [vmem:[%s1001 + $0x1b0] sm:$0xff]
      %v2223 = vld [vmem:[%s1001 + $0x1b8] sm:$0xff]
      %v2224 = vld [vmem:[%s1001 + $0x1c0] sm:$0xff]
      %v2225 = vld [vmem:[%s1001 + $0x1c8] sm:$0xff]
      %v2226 = vld [vmem:[%s1001 + $0x1d0] sm:$0xff]
      %v2227 = vld [vmem:[%s1001 + $0x1d8] sm:$0xff]
      %v2228 = vld [vmem:[%s1001 + $0x1e0] sm:$0xff]
      %v2229 = vld [vmem:[%s1001 + $0x1e8] sm:$0xff]
      %v2230 = vld [vmem:[%s1001 + $0x1f0] sm:$0xff]
      %v2231 = vld [vmem:[%s1001 + $0x1f8] sm:$0xff]
      %v2232 = vld [vmem:[%s1001 + $0x200] sm:$0xff]
      %v2233 = vld [vmem:[%s1001 + $0x208] sm:$0xff]
      %v2234 = vld [vmem:[%s1001 + $0x210] sm:$0xff]
      %v2235 = vld [vmem:[%s1001 + $0x218] sm:$0xff]
      %v2242 = vrot.slane %v2162, 2
      %v2243 = vrot.slane %v1399, 2
      %v2244 = vsel %vm1076, %v2242, %v2243
      %v2245 = vrot.slane %v2163, 2
      %v2246 = vrot.slane %v1400, 2
      %v2247 = vsel %vm1076, %v2245, %v2246
      %v2248 = vrot.slane %v2164, 2
      %v2249 = vrot.slane %v1401, 2
      %v2250 = vsel %vm1076, %v2248, %v2249
      %v2251 = vrot.slane %v1402, 2
      %v2252 = vsel %vm1076, %v2243, %v2251
      %v2253 = vrot.slane %v1403, 2
      %v2254 = vsel %vm1076, %v2246, %v2253
      %v2255 = vrot.slane %v1404, 2
      %v2256 = vsel %vm1076, %v2249, %v2255
      %v2257 = vrot.slane %v1405, 2
      %v2258 = vsel %vm1076, %v2251, %v2257
      %v2259 = vrot.slane %v1406, 2
      %v2260 = vsel %vm1076, %v2253, %v2259
      %v2261 = vrot.slane %v1407, 2
      %v2262 = vsel %vm1076, %v2255, %v2261
      %v2263 = vrot.slane %v1408, 2
      %v2264 = vsel %vm1076, %v2257, %v2263
      %v2265 = vrot.slane %v1409, 2
      %v2266 = vsel %vm1076, %v2259, %v2265
      %v2267 = vrot.slane %v1410, 2
      %v2268 = vsel %vm1076, %v2261, %v2267
      %v2269 = vrot.slane %v2165, 2
      %v2270 = vsel %vm1076, %v2263, %v2269
      %v2271 = vrot.slane %v2166, 2
      %v2272 = vsel %vm1076, %v2265, %v2271
      %v2273 = vrot.slane %v2167, 2
      %v2274 = vsel %vm1076, %v2267, %v2273
      %2275 = vrot.lane.b32.xlu0 %v2244, 56
      %v2276 = vpop.permute.xlu0 %2275
      %2277 = vrot.lane.b32.xlu0 %v2247, 56
      %v2278 = vpop.permute.xlu0 %2277
      %2279 = vrot.lane.b32.xlu0 %v2250, 56
      %v2280 = vpop.permute.xlu0 %2279
      %2281 = vrot.lane.b32.xlu0 %v2252, 56
      %v2282 = vpop.permute.xlu0 %2281
      %2283 = vrot.lane.b32.xlu0 %v2254, 56
      %v2284 = vpop.permute.xlu0 %2283
      %2285 = vrot.lane.b32.xlu0 %v2256, 56
      %v2286 = vpop.permute.xlu0 %2285
      %2287 = vrot.lane.b32.xlu0 %v2258, 56
      %v2288 = vpop.permute.xlu0 %2287
      %2289 = vrot.lane.b32.xlu0 %v2260, 56
      %v2290 = vpop.permute.xlu0 %2289
      %2291 = vrot.lane.b32.xlu0 %v2262, 56
      %v2292 = vpop.permute.xlu0 %2291
      %2293 = vrot.lane.b32.xlu0 %v2264, 56
      %v2294 = vpop.permute.xlu0 %2293
      %2295 = vrot.lane.b32.xlu0 %v2266, 56
      %v2296 = vpop.permute.xlu0 %2295
      %2297 = vrot.lane.b32.xlu0 %v2268, 56
      %v2298 = vpop.permute.xlu0 %2297
      %2299 = vrot.lane.b32.xlu0 %v2270, 56
      %v2300 = vpop.permute.xlu0 %2299
      %2301 = vrot.lane.b32.xlu0 %v2272, 56
      %v2302 = vpop.permute.xlu0 %2301
      %2303 = vrot.lane.b32.xlu0 %v2274, 56
      %v2304 = vpop.permute.xlu0 %2303
      %2305 = vrot.lane.b32.xlu0 %v2269, 56
      %v2306 = vpop.permute.xlu0 %2305
      %2307 = vrot.lane.b32.xlu0 %v2271, 56
      %v2308 = vpop.permute.xlu0 %2307
      %2309 = vrot.lane.b32.xlu0 %v2273, 56
      %v2310 = vpop.permute.xlu0 %2309
      %v2311 = vsel %vm1643, %v2276, %v2278
      %v2312 = vsel %vm1643, %v2278, %v2280
      %v2313 = vsel %vm1643, %v2282, %v2284
      %v2314 = vsel %vm1643, %v2284, %v2286
      %v2315 = vsel %vm1643, %v2288, %v2290
      %v2316 = vsel %vm1643, %v2290, %v2292
      %v2317 = vsel %vm1643, %v2294, %v2296
      %v2318 = vsel %vm1643, %v2296, %v2298
      %v2319 = vsel %vm1643, %v2300, %v2302
      %v2320 = vsel %vm1643, %v2302, %v2304
      %v2321 = vsel %vm1643, %v2306, %v2308
      %v2322 = vsel %vm1643, %v2308, %v2310
      %v2335 = vsel %vm285, %v2280, 0
      %v2337 = vsel %vm285, %v2286, 0
      %v2339 = vsel %vm285, %v2292, 0
      %v2341 = vsel %vm285, %v2298, 0
      %v2343 = vsel %vm285, %v2304, 0
      %v2345 = vsel %vm285, %v2310, 0
      %2347 = vmatprep.subr.mxu0 %v2169
      %2348 = vmatpush1.msra.mxu0 %v2168
      %2349 = vmatprep.subr.mxu0 %v2171
      %2350 = vmatpush1.msra.mxu0 %v2170
      %2351 = vmatprep.subr.mxu0 %v2173
      %2352 = vmatpush1.msra.mxu0 %v2172
      %2353 = vmatprep.subr.mxu0 %v2175
      %2354 = vmatpush1.msra.mxu0 %v2174
      %2355 = vmatprep.subr.mxu0 %v2177
      %2356 = vmatpush1.msra.mxu0 %v2176
      %2357 = vmatprep.subr.mxu0 %v2179
      %2358 = vmatpush1.msra.mxu0 %v2178
      %2359 = vmatprep.subr.mxu0 %v2181
      %2360 = vmatpush1.msra.mxu0 %v2180
      %2361 = vmatprep.subr.mxu0 %v2183
      %2362 = vmatpush1.msra.mxu0 %v2182
      %2363 = vmatprep.subr.mxu0 %v2185
      %2364 = vmatpush1.msra.mxu0 %v2184
      %2365 = vmatprep.subr.mxu0 %v2187
      %2366 = vmatpush1.msra.mxu0 %v2186
      %2367 = vmatprep.subr.mxu0 %v2189
      %2368 = vmatpush1.msra.mxu0 %v2188
      %2369 = vmatprep.subr.mxu0 %v2191
      %2370 = vmatpush1.msra.mxu0 %v2190
      %2371 = vmatprep.subr.mxu0 %v2193
      %2372 = vmatpush1.msra.mxu0 %v2192
      %2373 = vmatprep.subr.mxu0 %v2195
      %2374 = vmatpush1.msra.mxu0 %v2194
      %2375 = vmatprep.subr.mxu0 %v2197
      %2376 = vmatpush1.msra.mxu0 %v2196
      %2377 = vmatprep.subr.mxu0 %v2199
      %2378 = vmatpush1.msra.mxu0 %v2198
      %2379 = vmatprep.subr.mxu0 %v2201
      %2380 = vmatpush1.msra.mxu0 %v2200
      %2381 = vmatprep.subr.mxu0 %v2203
      %2382 = vmatpush1.msra.mxu0 %v2202
      %2383 = vmatprep.subr.mxu0 %v2205
      %2384 = vmatpush1.msra.mxu0 %v2204
      %2385 = vmatprep.subr.mxu0 %v2207
      %2386 = vmatpush1.msra.mxu0 %v2206
      %2387 = vmatprep.subr.mxu0 %v2209
      %2388 = vmatpush1.msra.mxu0 %v2208
      %2389 = vmatprep.subr.mxu0 %v2211
      %2390 = vmatpush1.msra.mxu0 %v2210
      %2391 = vmatprep.subr.mxu0 %v2213
      %2392 = vmatpush1.msra.mxu0 %v2212
      %2393 = vmatprep.subr.mxu0 %v2215
      %2394 = vmatpush1.msra.mxu0 %v2214
      %2395 = vmatprep.subr.mxu0 %v2217
      %2396 = vmatpush1.msra.mxu0 %v2216
      %2397 = vmatprep.subr.mxu0 %v2219
      %2398 = vmatpush1.msra.mxu0 %v2218
      %2399 = vmatprep.subr.mxu0 %v2221
      %2400 = vmatpush1.msra.mxu0 %v2220
      %2401 = vmatprep.subr.mxu0 %v2223
      %2402 = vmatpush1.msra.mxu0 %v2222
      %2403 = vmatprep.subr.mxu0 %v2225
      %2404 = vmatpush1.msra.mxu0 %v2224
      %2405 = vmatprep.subr.mxu0 %v2227
      %2406 = vmatpush1.msra.mxu0 %v2226
      %2407 = vmatprep.subr.mxu0 %v2229
      %2408 = vmatpush1.msra.mxu0 %v2228
      %2409 = vmatprep.subr.mxu0 %v2231
      %2410 = vmatpush1.msra.mxu0 %v2230
      %2411 = vmatprep.mubr.f32.mxu0 %v2312
      %2412 = vmatmul.mubr.f32.gmra.mrb[0].mxu0 %v2311
      %v2413 = vpop.f32.mrb[0].mxu0
      %v2414 = vadd.f32 0.0, %v2413
      %v2415 = vpop.f32.mrb[0].mxu0
      %v2416 = vadd.f32 0.0, %v2415
      %2417 = vmatprep.mubr.f32.mxu0 %v2314
      %2418 = vmatmul.mubr.f32.gmra.mrb[0].mxu0 %v2313
      %v2419 = vpop.f32.mrb[0].mxu0
      %v2420 = vadd.f32 0.0, %v2419
      %v2421 = vpop.f32.mrb[0].mxu0
      %v2422 = vadd.f32 0.0, %v2421
      %2423 = vmatprep.mubr.f32.mxu0 %v2316
      %2424 = vmatmul.mubr.f32.gmra.mrb[0].mxu0 %v2315
      %v2425 = vpop.f32.mrb[0].mxu0
      %v2426 = vadd.f32 0.0, %v2425
      %v2427 = vpop.f32.mrb[0].mxu0
      %v2428 = vadd.f32 0.0, %v2427
      %2429 = vmatprep.mubr.f32.mxu0 %v2318
      %2430 = vmatmul.mubr.f32.gmra.mrb[0].mxu0 %v2317
      %v2431 = vpop.f32.mrb[0].mxu0
      %v2432 = vadd.f32 0.0, %v2431
      %v2433 = vpop.f32.mrb[0].mxu0
      %v2434 = vadd.f32 0.0, %v2433
      %2435 = vmatprep.mubr.f32.mxu0 %v2320
      %2436 = vmatmul.mubr.f32.gmra.mrb[0].mxu0 %v2319
      %v2437 = vpop.f32.mrb[0].mxu0
      %v2438 = vadd.f32 0.0, %v2437
      %v2439 = vpop.f32.mrb[0].mxu0
      %v2440 = vadd.f32 0.0, %v2439
      %2441 = vmatprep.mubr.f32.mxu0 %v2322
      %2442 = vmatmul.mubr.f32.gmra.mrb[0].mxu0 %v2321
      %v2443 = vpop.f32.mrb[0].mxu0
      %v2444 = vadd.f32 0.0, %v2443
      %v2445 = vpop.f32.mrb[0].mxu0
      %v2446 = vadd.f32 0.0, %v2445
      %2447 = vdwg.mxu0
      %2448 = vmatprep.subr.mxu0 %v2233
      %2449 = vmatpush1.msra.mxu0 %v2232
      %2450 = vmatprep.subr.mxu0 %v2235
      %2451 = vmatpush1.msra.mxu0 %v2234
      %2452 = vmatprep.subr.mxu0 0.0
      %2453 = vmatpush1.msra.mxu0 0.0
      %2454 = vmatprep.subr.mxu0 0.0
      %2455 = vmatpush1.msra.mxu0 0.0
      %2456 = vmatprep.subr.mxu0 0.0
      %2457 = vmatpush1.msra.mxu0 0.0
      %2458 = vmatprep.subr.mxu0 0.0
      %2459 = vmatpush1.msra.mxu0 0.0
      %2460 = vmatprep.subr.mxu0 0.0
      %2461 = vmatpush1.msra.mxu0 0.0
      %2462 = vmatprep.subr.mxu0 0.0
      %2463 = vmatpush1.msra.mxu0 0.0
      %2464 = vmatprep.subr.mxu0 0.0
      %2465 = vmatpush1.msra.mxu0 0.0
      %2466 = vmatprep.subr.mxu0 0.0
      %2467 = vmatpush1.msra.mxu0 0.0
      %2468 = vmatprep.subr.mxu0 0.0
      %2469 = vmatpush1.msra.mxu0 0.0
      %2470 = vmatprep.subr.mxu0 0.0
      %2471 = vmatpush1.msra.mxu0 0.0
      %2472 = vmatprep.subr.mxu0 0.0
      %2473 = vmatpush1.msra.mxu0 0.0
      %2474 = vmatprep.subr.mxu0 0.0
      %2475 = vmatpush1.msra.mxu0 0.0
      %2476 = vmatprep.subr.mxu0 0.0
      %2477 = vmatpush1.msra.mxu0 0.0
      %2478 = vmatprep.subr.mxu0 0.0
      %2479 = vmatpush1.msra.mxu0 0.0
      %2480 = vmatprep.subr.mxu0 0.0
      %2481 = vmatpush1.msra.mxu0 0.0
      %2482 = vmatprep.subr.mxu0 0.0
      %2483 = vmatpush1.msra.mxu0 0.0
      %2484 = vmatprep.subr.mxu0 0.0
      %2485 = vmatpush1.msra.mxu0 0.0
      %2486 = vmatprep.subr.mxu0 0.0
      %2487 = vmatpush1.msra.mxu0 0.0
      %2488 = vmatprep.subr.mxu0 0.0
      %2489 = vmatpush1.msra.mxu0 0.0
      %2490 = vmatprep.subr.mxu0 0.0
      %2491 = vmatpush1.msra.mxu0 0.0
      %2492 = vmatprep.subr.mxu0 0.0
      %2493 = vmatpush1.msra.mxu0 0.0
      %2494 = vmatprep.subr.mxu0 0.0
      %2495 = vmatpush1.msra.mxu0 0.0
      %2496 = vmatprep.subr.mxu0 0.0
      %2497 = vmatpush1.msra.mxu0 0.0
      %2498 = vmatprep.subr.mxu0 0.0
      %2499 = vmatpush1.msra.mxu0 0.0
      %2500 = vmatprep.subr.mxu0 0.0
      %2501 = vmatpush1.msra.mxu0 0.0
      %2502 = vmatprep.subr.mxu0 0.0
      %2503 = vmatpush1.msra.mxu0 0.0
      %2504 = vmatprep.subr.mxu0 0.0
      %2505 = vmatpush1.msra.mxu0 0.0
      %2506 = vmatprep.subr.mxu0 0.0
      %2507 = vmatpush1.msra.mxu0 0.0
      %2508 = vmatprep.subr.mxu0 0.0
      %2509 = vmatpush1.msra.mxu0 0.0
      %2510 = vmatprep.subr.mxu0 0.0
      %2511 = vmatpush1.msra.mxu0 0.0
      %2512 = vmatprep.mubr.f32.mxu0 0.0
      %2513 = vmatmul.mubr.f32.gmra.mrb[0].mxu0 %v2335
      %v2514 = vpop.f32.mrb[0].mxu0
      %v2515 = vadd.f32 %v2414, %v2514
      %v2516 = vpop.f32.mrb[0].mxu0
      %v2517 = vadd.f32 %v2416, %v2516
      %2518 = vmatprep.mubr.f32.mxu0 0.0
      %2519 = vmatmul.mubr.f32.gmra.mrb[0].mxu0 %v2337
      %v2520 = vpop.f32.mrb[0].mxu0
      %v2521 = vadd.f32 %v2420, %v2520
      %v2522 = vpop.f32.mrb[0].mxu0
      %v2523 = vadd.f32 %v2422, %v2522
      %2524 = vmatprep.mubr.f32.mxu0 0.0
      %2525 = vmatmul.mubr.f32.gmra.mrb[0].mxu0 %v2339
      %v2526 = vpop.f32.mrb[0].mxu0
      %v2527 = vadd.f32 %v2426, %v2526
      %v2528 = vpop.f32.mrb[0].mxu0
      %v2529 = vadd.f32 %v2428, %v2528
      %2530 = vmatprep.mubr.f32.mxu0 0.0
      %2531 = vmatmul.mubr.f32.gmra.mrb[0].mxu0 %v2341
      %v2532 = vpop.f32.mrb[0].mxu0
      %v2533 = vadd.f32 %v2432, %v2532
      %v2534 = vpop.f32.mrb[0].mxu0
      %v2535 = vadd.f32 %v2434, %v2534
      %2536 = vmatprep.mubr.f32.mxu0 0.0
      %2537 = vmatmul.mubr.f32.gmra.mrb[0].mxu0 %v2343
      %v2538 = vpop.f32.mrb[0].mxu0
      %v2539 = vadd.f32 %v2438, %v2538
      %v2540 = vpop.f32.mrb[0].mxu0
      %v2541 = vadd.f32 %v2440, %v2540
      %2542 = vmatprep.mubr.f32.mxu0 0.0
      %2543 = vmatmul.mubr.f32.gmra.mrb[0].mxu0 %v2345
      %v2544 = vpop.f32.mrb[0].mxu0
      %v2545 = vadd.f32 %v2444, %v2544
      %v2546 = vpop.f32.mrb[0].mxu0
      %v2547 = vadd.f32 %v2446, %v2546
      %2548 = vdwg.mxu0
      %v2549 = vadd.f32 %v2128, %v2515
      %v2550 = vadd.f32 %v2130, %v2517
      %v2551 = vadd.f32 %v2134, %v2521
      %v2552 = vadd.f32 %v2136, %v2523
      %v2553 = vadd.f32 %v2140, %v2527
      %v2554 = vadd.f32 %v2142, %v2529
      %v2555 = vadd.f32 %v2146, %v2533
      %v2556 = vadd.f32 %v2148, %v2535
      %v2557 = vadd.f32 %v2152, %v2539
      %v2558 = vadd.f32 %v2154, %v2541
      %v2559 = vadd.f32 %v2158, %v2545
      %v2560 = vadd.f32 %v2160, %v2547
      %v2561 = vld [vmem:[%s2] sm:$0x3]
      %v2563 = vlaneseq
      %v2564 = vshrl.u32 %v2563, 7
      %v2565 = vsub.s32 0, %v2564
      %v2566 = vrot.slane %v2561, %v2565
      %v2567 = vlaneseq
      %v2568 = vshrl.u32 %v2567, 7
      %v2569 = vsub.s32 1, %v2568
      %v2570 = vrot.slane %v2561, %v2569
      %v2573 = vadd.f32 %v2549, %v2566
      %v2574 = vadd.f32 %v2550, %v2570
      %v2575 = vadd.f32 %v2551, %v2566
      %v2576 = vadd.f32 %v2552, %v2570
      %v2577 = vadd.f32 %v2553, %v2566
      %v2578 = vadd.f32 %v2554, %v2570
      %v2579 = vadd.f32 %v2555, %v2566
      %v2580 = vadd.f32 %v2556, %v2570
      %v2581 = vadd.f32 %v2557, %v2566
      %v2582 = vadd.f32 %v2558, %v2570
      %v2583 = vadd.f32 %v2559, %v2566
      %v2584 = vadd.f32 %v2560, %v2570
      %v2585 = vmax.f32 %v2573, 0.0
      %v2586 = vmax.f32 %v2574, 0.0
      %v2587 = vmax.f32 %v2575, 0.0
      %v2588 = vmax.f32 %v2576, 0.0
      %v2589 = vmax.f32 %v2577, 0.0
      %v2590 = vmax.f32 %v2578, 0.0
      %v2591 = vmax.f32 %v2579, 0.0
      %v2592 = vmax.f32 %v2580, 0.0
      %v2593 = vmax.f32 %v2581, 0.0
      %v2594 = vmax.f32 %v2582, 0.0
      %v2595 = vmax.f32 %v2583, 0.0
      %v2596 = vmax.f32 %v2584, 0.0
      %2609 = vrot.lane.b32.xlu0 %v2585, 72
      %v2610 = vpop.permute.xlu0 %2609
      %2611 = vrot.lane.b32.xlu0 %v2586, 72
      %v2612 = vpop.permute.xlu0 %2611
      %2613 = vrot.lane.b32.xlu0 %v2587, 72
      %v2614 = vpop.permute.xlu0 %2613
      %2615 = vrot.lane.b32.xlu0 %v2588, 72
      %v2616 = vpop.permute.xlu0 %2615
      %2617 = vrot.lane.b32.xlu0 %v2589, 72
      %v2618 = vpop.permute.xlu0 %2617
      %2619 = vrot.lane.b32.xlu0 %v2590, 72
      %v2620 = vpop.permute.xlu0 %2619
      %2621 = vrot.lane.b32.xlu0 %v2591, 72
      %v2622 = vpop.permute.xlu0 %2621
      %2623 = vrot.lane.b32.xlu0 %v2592, 72
      %v2624 = vpop.permute.xlu0 %2623
      %2625 = vrot.lane.b32.xlu0 %v2593, 72
      %v2626 = vpop.permute.xlu0 %2625
      %2627 = vrot.lane.b32.xlu0 %v2594, 72
      %v2628 = vpop.permute.xlu0 %2627
      %2629 = vrot.lane.b32.xlu0 %v2595, 72
      %v2630 = vpop.permute.xlu0 %2629
      %2631 = vrot.lane.b32.xlu0 %v2596, 72
      %v2632 = vpop.permute.xlu0 %2631
      %v2633 = vsel %vm324, %v2610, %v2612
      %v2634 = vsel %vm324, %v2614, %v2616
      %v2635 = vsel %vm324, %v2618, %v2620
      %v2636 = vsel %vm324, %v2622, %v2624
      %v2637 = vsel %vm324, %v2626, %v2628
      %v2638 = vsel %vm324, %v2630, %v2632
      %vm2657 = vcmask 1048128
      %2658 = vst.msk [vmem:[%s170] sm:$0xff] %vm2657, %v2610
      %2659 = vst [vmem:[%s170 + $0x8] sm:$0xff] %v2633
      %2660 = vst.msk [vmem:[%s170 + $0x10] sm:$0xff] %vm324, %v2612
      %2661 = vst.msk [vmem:[%s170 + $0x18] sm:$0xff] %vm2657, %v2614
      %2662 = vst [vmem:[%s170 + $0x20] sm:$0xff] %v2634
      %2663 = vst.msk [vmem:[%s170 + $0x28] sm:$0xff] %vm324, %v2616
      %2664 = vst.msk [vmem:[%s170 + $0x30] sm:$0xff] %vm2657, %v2618
      %2665 = vst [vmem:[%s170 + $0x38] sm:$0xff] %v2635
      %2666 = vst.msk [vmem:[%s170 + $0x40] sm:$0xff] %vm324, %v2620
      %2667 = vst.msk [vmem:[%s170 + $0x48] sm:$0xff] %vm2657, %v2622
      %2668 = vst [vmem:[%s170 + $0x50] sm:$0xff] %v2636
      %2669 = vst.msk [vmem:[%s170 + $0x58] sm:$0xff] %vm324, %v2624
      %2670 = vst.msk [vmem:[%s170 + $0x60] sm:$0xff] %vm2657, %v2626
      %2671 = vst [vmem:[%s170 + $0x68] sm:$0xff] %v2637
      %2672 = vst.msk [vmem:[%s170 + $0x70] sm:$0xff] %vm324, %v2628
      %vm2673 = vcmask 1040960
      %2674 = vst.msk [vmem:[%s170 + $0x78] sm:$0x1] %vm2673, %v2630
      %2675 = vst [vmem:[%s170 + $0x80] sm:$0x1] %v2638
      %2676 = vst.msk [vmem:[%s170 + $0x88] sm:$0x1] %vm338, %v2632
      %p2677 = scmp.lt.s32.totalorder %s14, 1
      %s2678 = scalar_select %p2677, %s14, 1
      %s2679 = smul.addr %s2678, 18
      %s2680 = smul.addr %s2679, 8
      %s2681 = scalar_lea.vmem %s3, %s2680
      // Predicated region
      $region33: #{decoder_forward.4} parent=31 // pred_check
        %p2682 = pneg %p100
      $region34: #{decoder_forward.4} parent=31 // pred_check_branch
        %2684 = sbr.rel (%p2682) target = $region36
      $region35: #{decoder_forward.4} parent=31 // pred_region
        _
      $region36: #{decoder_forward.4} parent=31 // pred_fallthru
        _
    $region32: #{decoder_forward.4} parent=5 // pred_fallthru
      _
    %p2685 = scmp.le.s32.totalorder 2, %s9
    // Predicated region
    $region37: #{decoder_forward.4} parent=5 // pred_check
      %p2686 = pneg %p2685
    $region38: #{decoder_forward.4} parent=5 // pred_check_branch
      %2688 = sbr.rel (%p2686) target = $region40
    $region39: #{decoder_forward.4} parent=5 // pred_region
      %s2689 = ssub.s32 %s9, 2
      // Predicated region
      $region41: #{decoder_forward.4} parent=39 // pred_check
        %p2690 = pneg %p106
      $region42: #{decoder_forward.4} parent=39 // pred_check_branch
        %2692 = sbr.rel (%p2690) target = $region44
      $region43: #{decoder_forward.4} parent=39 // pred_region
        %p2693 = scmp.lt.s32.totalorder %s15, 1
        %s2694 = scalar_select %p2693, %s15, 1
        %s2695 = smul.addr %s2694, 18
        %s2696 = smul.addr %s2695, 8
        %s2697 = scalar_lea.vmem %s3, %s2696
      $region44: #{decoder_forward.4} parent=39 // pred_fallthru
        _
    $region40: #{decoder_forward.4} parent=5 // pred_fallthru
      _
  $region6: #{decoder_forward.4} parent=0 // loop_footer
    %s13 = sadd.s32 1, %s9
  $region7: #{decoder_forward.4} parent=0 // loop_footer_branch
    %8 = sbr.rel target = $region3
  $region8: #{decoder_forward.4} parent=0 // loop_exit
    _

// kernel: decoder_forward.5
$region0: #{decoder_forward.5}
  #allocation0 [shape = 'u32[]', space=smem, size = 0x4, offset = 0x4, fixed_abs, tag = 'smem constant byte address 0x4 - core index']
  #allocation1 [shape = 'u32[144,128]{1,0:T(1,128)}', space=vmem, size = 0x12000, scoped, tag = 'internal scratch']
  #allocation2 [shape = 'f32[43,344]{1,0:T(8,128)}', space=vmem, size = 0x12000, scoped, tag = 'scratch operand']
  %s0 = inlined_call_operand.vmem [shape: f32[2,41,328], index: 0, kind: input, shape index: {}]
  %s1 = inlined_call_operand.vmem [shape: f32[4,184,132], index: 1, kind: input, shape index: {}]
  %s2 = inlined_call_operand.vmem [shape: f32[1,132], index: 2, kind: input, shape index: {}]
  %s3 = inlined_call_operand.vmem [shape: f32[2,2,42,252], index: 3, kind: output, shape index: {}]
  %s4 = sld [smem:[#allocation0]]
  $region45: #{decoder_forward.5} parent=0
    _
  %s6 = ssub.s32 1, %s4
  %s7 = scalar_select 0, %s6, %s4
  loop: start=0, step=1, limit=4
  $region2: #{decoder_forward.5} parent=0 // loop_pre_header
    _
  $region3: #{decoder_forward.5} parent=0 // loop_header
    %s9 = sphi 0, %s13
    %p10 = scmp.ge.s32.totalorder %s9, 4
    %s19 = sphi 0, %s21
    %s22 = sphi 0, %s19
    %s23 = sphi 0, %s22
    %s39 = sphi 0, %s23
    %s43 = sphi 0, %s43
    %s45 = sphi 0, %s43
    %s46 = sphi 0, %s45
    %s60 = sphi 0, %s46
    %s64 = sphi 0, %s64
    %s66 = sphi 0, %s64
    %s67 = sphi 0, %s66
    %s81 = sphi 0, %s67
    %s87 = sphi 0, %s89
    %s90 = sphi 0, %s87
    %s91 = sphi 0, %s90
    %s107 = sphi 0, %s91
  $region4: #{decoder_forward.5} parent=0 // loop_header_branch
    %12 = sbr.rel (%p10) target = $region8
  $region5: #{decoder_forward.5} parent=0 // loop_body
    %s14 = ssub.s32 %s9, 1
    %s15 = ssub.s32 %s9, 2
    %s16 = sadd.s32 %s9, 1
    %s17 = ssub.s32 %s9, %s16
    %p18 = scmp.eq.s32.totalorder %s17, 0
    %s20 = sadd.s32 %s19, 1
    %s21 = scalar_select %p18, %s19, %s20
    %p24 = pneg %p18
    %p25 = scmp.eq.s32.totalorder %s9, 1
    %p26 = por %p24, %p25
    %p27 = scmp.ne.s32.totalorder %s19, %s22
    %p28 = scmp.eq.s32.totalorder %s9, 0
    %p29 = por %p27, %p28
    %p30 = scmp.ne.s32.totalorder %s19, %s22
    %p31 = scmp.eq.s32.totalorder %s14, 1
    %p32 = por %p30, %p31
    %p33 = scmp.ne.s32.totalorder %s22, %s23
    %p34 = scmp.eq.s32.totalorder %s14, 0
    %p35 = por %p33, %p34
    %p36 = scmp.ne.s32.totalorder %s22, %s23
    %p37 = scmp.eq.s32.totalorder %s15, 1
    %p38 = por %p36, %p37
    %p40 = scmp.ne.s32.totalorder %s23, %s39
    %p41 = scmp.eq.s32.totalorder %s15, 0
    %p42 = por %p40, %p41
    %s44 = sadd.s32 %s43, 1
    %p47 = scmp.eq.s32.totalorder %s9, 1
    %p48 = scmp.ne.s32.totalorder %s43, %s45
    %p49 = scmp.eq.s32.totalorder %s9, 0
    %p50 = por %p48, %p49
    %p51 = scmp.ne.s32.totalorder %s43, %s45
    %p52 = scmp.eq.s32.totalorder %s14, 1
    %p53 = por %p51, %p52
    %p54 = scmp.ne.s32.totalorder %s45, %s46
    %p55 = scmp.eq.s32.totalorder %s14, 0
    %p56 = por %p54, %p55
    %p57 = scmp.ne.s32.totalorder %s45, %s46
    %p58 = scmp.eq.s32.totalorder %s15, 1
    %p59 = por %p57, %p58
    %p61 = scmp.ne.s32.totalorder %s46, %s60
    %p62 = scmp.eq.s32.totalorder %s15, 0
    %p63 = por %p61, %p62
    %s65 = sadd.s32 %s64, 1
    %p68 = scmp.eq.s32.totalorder %s9, 1
    %p69 = scmp.ne.s32.totalorder %s64, %s66
    %p70 = scmp.eq.s32.totalorder %s9, 0
    %p71 = por %p69, %p70
    %p72 = scmp.ne.s32.totalorder %s64, %s66
    %p73 = scmp.eq.s32.totalorder %s14, 1
    %p74 = por %p72, %p73
    %p75 = scmp.ne.s32.totalorder %s66, %s67
    %p76 = scmp.eq.s32.totalorder %s14, 0
    %p77 = por %p75, %p76
    %p78 = scmp.ne.s32.totalorder %s66, %s67
    %p79 = scmp.eq.s32.totalorder %s15, 1
    %p80 = por %p78, %p79
    %p82 = scmp.ne.s32.totalorder %s67, %s81
    %p83 = scmp.eq.s32.totalorder %s15, 0
    %p84 = por %p82, %p83
    %s85 = ssub.s32 %s9, %s16
    %p86 = scmp.eq.s32.totalorder %s85, 0
    %s88 = sadd.s32 %s87, 1
    %s89 = scalar_select %p86, %s87, %s88
    %p92 = pneg %p86
    %p93 = scmp.eq.s32.totalorder %s9, 1
    %p94 = por %p92, %p93
    %p95 = scmp.ne.s32.totalorder %s87, %s90
    %p96 = scmp.eq.s32.totalorder %s9, 0
    %p97 = por %p95, %p96
    %p98 = scmp.ne.s32.totalorder %s87, %s90
    %p99 = scmp.eq.s32.totalorder %s14, 1
    %p100 = por %p98, %p99
    %p101 = scmp.ne.s32.totalorder %s90, %s91
    %p102 = scmp.eq.s32.totalorder %s14, 0
    %p103 = por %p101, %p102
    %p104 = scmp.ne.s32.totalorder %s90, %s91
    %p105 = scmp.eq.s32.totalorder %s15, 1
    %p106 = por %p104, %p105
    %p108 = scmp.ne.s32.totalorder %s91, %s107
    %p109 = scmp.eq.s32.totalorder %s15, 0
    %p110 = por %p108, %p109
    %p111 = scmp.le.s32.totalorder 1, %s9
    %p112 = scmp.lt.s32.totalorder %s9, 3
    %p113 = pnand %p111, %p112
    %p114 = pneg %p113
    // Predicated region
    $region9: #{decoder_forward.5} parent=5 // pred_check
      _
    $region10: #{decoder_forward.5} parent=5 // pred_check_branch
      %116 = sbr.rel (%p113) target = $region12
    $region11: #{decoder_forward.5} parent=5 // pred_region
      %s117 = ssub.s32 %s9, 1
      // Predicated region
      $region13: #{decoder_forward.5} parent=11 // pred_check
        %p118 = pneg %p56
      $region14: #{decoder_forward.5} parent=11 // pred_check_branch
        %120 = sbr.rel (%p118) target = $region16
      $region15: #{decoder_forward.5} parent=11 // pred_region
        _
      $region16: #{decoder_forward.5} parent=11 // pred_fallthru
        _
      // Predicated region
      $region17: #{decoder_forward.5} parent=11 // pred_check
        %p121 = pneg %p77
      $region18: #{decoder_forward.5} parent=11 // pred_check_branch
        %123 = sbr.rel (%p121) target = $region20
      $region19: #{decoder_forward.5} parent=11 // pred_region
        _
      $region20: #{decoder_forward.5} parent=11 // pred_fallthru
        _
    $region12: #{decoder_forward.5} parent=5 // pred_fallthru
      _
    %p124 = scmp.lt.s32.totalorder %s9, 2
    // Predicated region
    $region21: #{decoder_forward.5} parent=5 // pred_check
      %p125 = pneg %p124
    $region22: #{decoder_forward.5} parent=5 // pred_check_branch
      %127 = sbr.rel (%p125) target = $region24
    $region23: #{decoder_forward.5} parent=5 // pred_region
      // Predicated region
      $region25: #{decoder_forward.5} parent=23 // pred_check
        %p128 = pneg %p29
      $region26: #{decoder_forward.5} parent=23 // pred_check_branch
        %130 = sbr.rel (%p128) target = $region28
      $region27: #{decoder_forward.5} parent=23 // pred_region
        %p131 = scmp.lt.s32.totalorder %s9, 1
        %s132 = scalar_select %p131, %s9, 1
        %s133 = smul.addr %s132, 18
        %s134 = smul.addr %s133, 8
        %s135 = scalar_lea.vmem %s0, %s134
      $region28: #{decoder_forward.5} parent=23 // pred_fallthru
        _
    $region24: #{decoder_forward.5} parent=5 // pred_fallthru
      _
    %p136 = scmp.le.s32.totalorder 1, %s9
    %p137 = scmp.lt.s32.totalorder %s9, 3
    %p138 = pnand %p136, %p137
    %p139 = pneg %p138
    // Predicated region
    $region29: #{decoder_forward.5} parent=5 // pred_check
      _
    $region30: #{decoder_forward.5} parent=5 // pred_check_branch
      %141 = sbr.rel (%p138) target = $region32
    $region31: #{decoder_forward.5} parent=5 // pred_region
      %s142 = ssub.s32 %s9, 1
      %p143 = scmp.lt.s32.totalorder %s14, 1
      %s144 = scalar_select %p143, %s14, 1
      %s145 = smul.addr %s144, 18
      %s146 = smul.addr %s145, 8
      %s147 = scalar_lea.vmem %s0, %s146
      %p148 = pneg %p35
      %p149 = pneg %p32
      %p150 = pneg %p56
      %p151 = pneg %p53
      %p152 = pneg %p77
      %p153 = pneg %p74
      %p154 = pneg %p103
      %p155 = pneg %p100
      %p156 = scmp.lt.s32.totalorder %s14, 1
      %s157 = scalar_select %p156, %s14, 1
      %s158 = smul.addr %s157, 24
      %s159 = smul.addr %s158, 8
      %s160 = scalar_lea.vmem %s3, %s159
      %p161 = scmp.lt.s32.totalorder %s14, 1
      %s162 = scalar_select %p161, %s14, 1
      %s163 = smul.addr %s162, 18
      %s164 = smul.addr %s163, 8
      %s165 = scalar_lea.vmem %s0, %s164
      %p166 = scmp.lt.s32.totalorder %s14, 1
      %s167 = scalar_select %p166, %s14, 1
      %s168 = smul.addr %s167, 24
      %s169 = smul.addr %s168, 8
      %s170 = scalar_lea.vmem %s3, %s169
      %171 = vst [vmem:[#allocation2] sm:$0xff] 0.0
      %172 = vst [vmem:[#allocation2 + $0x8] sm:$0xff] 0.0
      %vm173 = vcmask 719872
      %174 = vst.msk [vmem:[#allocation2 + $0x10] sm:$0xff] %vm173, 0.0
      %175 = vst [vmem:[#allocation2 + $0x18] sm:$0xff] 0.0
      %176 = vst [vmem:[#allocation2 + $0x20] sm:$0xff] 0.0
      %177 = vst.msk [vmem:[#allocation2 + $0x28] sm:$0xff] %vm173, 0.0
      %178 = vst [vmem:[#allocation2 + $0x30] sm:$0xff] 0.0
      %179 = vst [vmem:[#allocation2 + $0x38] sm:$0xff] 0.0
      %180 = vst.msk [vmem:[#allocation2 + $0x40] sm:$0xff] %vm173, 0.0
      %181 = vst [vmem:[#allocation2 + $0x48] sm:$0xff] 0.0
      %182 = vst [vmem:[#allocation2 + $0x50] sm:$0xff] 0.0
      %183 = vst.msk [vmem:[#allocation2 + $0x58] sm:$0xff] %vm173, 0.0
      %184 = vst [vmem:[#allocation2 + $0x60] sm:$0xff] 0.0
      %185 = vst [vmem:[#allocation2 + $0x68] sm:$0xff] 0.0
      %186 = vst.msk [vmem:[#allocation2 + $0x70] sm:$0xff] %vm173, 0.0
      %187 = vst [vmem:[#allocation2 + $0x78] sm:$0x7] 0.0
      %188 = vst [vmem:[#allocation2 + $0x80] sm:$0x7] 0.0
      %vm189 = vcmask 714752
      %190 = vst.msk [vmem:[#allocation2 + $0x88] sm:$0x7] %vm189, 0.0
      %v191 = vld [vmem:[%s165] sm:$0xff]
      %v192 = vld [vmem:[%s165 + $0x8] sm:$0xff]
      %v193 = vld [vmem:[%s165 + $0x10] sm:$0xff]
      %v194 = vld [vmem:[%s165 + $0x18] sm:$0xff]
      %v195 = vld [vmem:[%s165 + $0x20] sm:$0xff]
      %v196 = vld [vmem:[%s165 + $0x28] sm:$0xff]
      %v197 = vld [vmem:[%s165 + $0x30] sm:$0xff]
      %v198 = vld [vmem:[%s165 + $0x38] sm:$0xff]
      %v199 = vld [vmem:[%s165 + $0x40] sm:$0xff]
      %v200 = vld [vmem:[%s165 + $0x48] sm:$0xff]
      %v201 = vld [vmem:[%s165 + $0x50] sm:$0xff]
      %v202 = vld [vmem:[%s165 + $0x58] sm:$0xff]
      %v203 = vld [vmem:[%s165 + $0x60] sm:$0xff]
      %v204 = vld [vmem:[%s165 + $0x68] sm:$0xff]
      %v205 = vld [vmem:[%s165 + $0x70] sm:$0xff]
      %v206 = vld [vmem:[%s165 + $0x78] sm:$0x1]
      %v207 = vld [vmem:[%s165 + $0x80] sm:$0x1]
      %v208 = vld [vmem:[%s165 + $0x88] sm:$0x1]
      %vm227 = vcmask 1040384
      %v228 = vrot.slane %v191, 7
      %v229 = vrot.slane %v192, 7
      %v230 = vrot.slane %v193, 7
      %v231 = vrot.slane %v194, 7
      %v232 = vsel %vm227, %v228, %v231
      %v233 = vrot.slane %v195, 7
      %v234 = vsel %vm227, %v229, %v233
      %v235 = vrot.slane %v196, 7
      %v236 = vsel %vm227, %v230, %v235
      %v237 = vrot.slane %v197, 7
      %v238 = vsel %vm227, %v231, %v237
      %v239 = vrot.slane %v198, 7
      %v240 = vsel %vm227, %v233, %v239
      %v241 = vrot.slane %v199, 7
      %v242 = vsel %vm227, %v235, %v241
      %v243 = vrot.slane %v200, 7
      %v244 = vsel %vm227, %v237, %v243
      %v245 = vrot.slane %v201, 7
      %v246 = vsel %vm227, %v239, %v245
      %v247 = vrot.slane %v202, 7
      %v248 = vsel %vm227, %v241, %v247
      %v249 = vrot.slane %v203, 7
      %v250 = vsel %vm227, %v243, %v249
      %v251 = vrot.slane %v204, 7
      %v252 = vsel %vm227, %v245, %v251
      %v253 = vrot.slane %v205, 7
      %v254 = vsel %vm227, %v247, %v253
      %v255 = vrot.slane %v206, 7
      %v256 = vsel %vm227, %v249, %v255
      %v257 = vrot.slane %v207, 7
      %v258 = vsel %vm227, %v251, %v257
      %v259 = vrot.slane %v208, 7
      %v260 = vsel %vm227, %v253, %v259
      %261 = vrot.lane.b32.xlu0 %v228, 8
      %v262 = vpop.permute.xlu0 %261
      %263 = vrot.lane.b32.xlu0 %v229, 8
      %v264 = vpop.permute.xlu0 %263
      %265 = vrot.lane.b32.xlu0 %v230, 8
      %v266 = vpop.permute.xlu0 %265
      %267 = vrot.lane.b32.xlu0 %v232, 8
      %v268 = vpop.permute.xlu0 %267
      %269 = vrot.lane.b32.xlu0 %v234, 8
      %v270 = vpop.permute.xlu0 %269
      %271 = vrot.lane.b32.xlu0 %v236, 8
      %v272 = vpop.permute.xlu0 %271
      %273 = vrot.lane.b32.xlu0 %v238, 8
      %v274 = vpop.permute.xlu0 %273
      %275 = vrot.lane.b32.xlu0 %v240, 8
      %v276 = vpop.permute.xlu0 %275
      %277 = vrot.lane.b32.xlu0 %v242, 8
      %v278 = vpop.permute.xlu0 %277
      %279 = vrot.lane.b32.xlu0 %v244, 8
      %v280 = vpop.permute.xlu0 %279
      %281 = vrot.lane.b32.xlu0 %v246, 8
      %v282 = vpop.permute.xlu0 %281
      %283 = vrot.lane.b32.xlu0 %v248, 8
      %v284 = vpop.permute.xlu0 %283
      %285 = vrot.lane.b32.xlu0 %v250, 8
      %v286 = vpop.permute.xlu0 %285
      %287 = vrot.lane.b32.xlu0 %v252, 8
      %v288 = vpop.permute.xlu0 %287
      %289 = vrot.lane.b32.xlu0 %v254, 8
      %v290 = vpop.permute.xlu0 %289
      %291 = vrot.lane.b32.xlu0 %v256, 8
      %v292 = vpop.permute.xlu0 %291
      %293 = vrot.lane.b32.xlu0 %v258, 8
      %v294 = vpop.permute.xlu0 %293
      %295 = vrot.lane.b32.xlu0 %v260, 8
      %v296 = vpop.permute.xlu0 %295
      %vm297 = vcmask 64512
      %v298 = vsel %vm297, %v262, %v264
      %v299 = vsel %vm297, %v264, %v266
      %v300 = vsel %vm297, %v268, %v270
      %v301 = vsel %vm297, %v270, %v272
      %v302 = vsel %vm297, %v274, %v276
      %v303 = vsel %vm297, %v276, %v278
      %v304 = vsel %vm297, %v280, %v282
      %v305 = vsel %vm297, %v282, %v284
      %v306 = vsel %vm297, %v286, %v288
      %v307 = vsel %vm297, %v288, %v290
      %v308 = vsel %vm297, %v292, %v294
      %v309 = vsel %vm297, %v294, %v296
      %vm328 = vcmask 1047617
      %329 = vst.msk [vmem:[#allocation2] sm:$0xfe] %vm328, %v262
      %330 = vst [vmem:[#allocation2 + $0x8] sm:$0xfe] %v298
      %vm331 = vcmask 654337
      %332 = vst.msk [vmem:[#allocation2 + $0x10] sm:$0xfe] %vm331, %v299
      %vm333 = vcmask 1047616
      %334 = vst.msk [vmem:[#allocation2 + $0x18] sm:$0xff] %vm333, %v268
      %335 = vst [vmem:[#allocation2 + $0x20] sm:$0xff] %v300
      %vm336 = vcmask 654336
      %337 = vst.msk [vmem:[#allocation2 + $0x28] sm:$0xff] %vm336, %v301
      %338 = vst.msk [vmem:[#allocation2 + $0x30] sm:$0xff] %vm333, %v274
      %339 = vst [vmem:[#allocation2 + $0x38] sm:$0xff] %v302
      %340 = vst.msk [vmem:[#allocation2 + $0x40] sm:$0xff] %vm336, %v303
      %341 = vst.msk [vmem:[#allocation2 + $0x48] sm:$0xff] %vm333, %v280
      %342 = vst [vmem:[#allocation2 + $0x50] sm:$0xff] %v304
      %343 = vst.msk [vmem:[#allocation2 + $0x58] sm:$0xff] %vm336, %v305
      %344 = vst.msk [vmem:[#allocation2 + $0x60] sm:$0xff] %vm333, %v286
      %345 = vst [vmem:[#allocation2 + $0x68] sm:$0xff] %v306
      %346 = vst.msk [vmem:[#allocation2 + $0x70] sm:$0xff] %vm336, %v307
      %vm347 = vcmask 1041472
      %348 = vst.msk [vmem:[#allocation2 + $0x78] sm:$0x3] %vm347, %v292
      %349 = vst [vmem:[#allocation2 + $0x80] sm:$0x3] %v308
      %vm350 = vcmask 648192
      %351 = vst.msk [vmem:[#allocation2 + $0x88] sm:$0x3] %vm350, %v309
      %v352 = vld [vmem:[#allocation2] sm:$0xff]
      %v353 = vld [vmem:[#allocation2 + $0x8] sm:$0xff]
      %v354 = vld [vmem:[#allocation2 + $0x18] sm:$0xff]
      %v355 = vld [vmem:[#allocation2 + $0x20] sm:$0xff]
      %v356 = vld [vmem:[#allocation2 + $0x30] sm:$0xff]
      %v357 = vld [vmem:[#allocation2 + $0x38] sm:$0xff]
      %v358 = vld [vmem:[#allocation2 + $0x48] sm:$0xff]
      %v359 = vld [vmem:[#allocation2 + $0x50] sm:$0xff]
      %v360 = vld [vmem:[#allocation2 + $0x60] sm:$0xff]
      %v361 = vld [vmem:[#allocation2 + $0x68] sm:$0xff]
      %v362 = vld [vmem:[#allocation2 + $0x78] sm:$0x3]
      %v363 = vld [vmem:[#allocation2 + $0x80] sm:$0x3]
      %v364 = vld [vmem:[#allocation2] sm:$0xfe]
      %v365 = vld [vmem:[#allocation2 + $0x8] sm:$0xfe]
      %v366 = vld [vmem:[#allocation2 + $0x78] sm:$0x7]
      %v367 = vld [vmem:[#allocation2 + $0x80] sm:$0x7]
      %v368 = vld [vmem:[%s1] sm:$0xff]
      %v369 = vld [vmem:[%s1 + $0x8] sm:$0xff]
      %v370 = vld [vmem:[%s1 + $0x10] sm:$0xff]
      %v371 = vld [vmem:[%s1 + $0x18] sm:$0xff]
      %v372 = vld [vmem:[%s1 + $0x20] sm:$0xff]
      %v373 = vld [vmem:[%s1 + $0x28] sm:$0xff]
      %v374 = vld [vmem:[%s1 + $0x30] sm:$0xff]
      %v375 = vld [vmem:[%s1 + $0x38] sm:$0xff]
      %v376 = vld [vmem:[%s1 + $0x40] sm:$0xff]
      %v377 = vld [vmem:[%s1 + $0x48] sm:$0xff]
      %v378 = vld [vmem:[%s1 + $0x50] sm:$0xff]
      %v379 = vld [vmem:[%s1 + $0x58] sm:$0xff]
      %v380 = vld [vmem:[%s1 + $0x60] sm:$0xff]
      %v381 = vld [vmem:[%s1 + $0x68] sm:$0xff]
      %v382 = vld [vmem:[%s1 + $0x70] sm:$0xff]
      %v383 = vld [vmem:[%s1 + $0x78] sm:$0xff]
      %v384 = vld [vmem:[%s1 + $0x80] sm:$0xff]
      %v385 = vld [vmem:[%s1 + $0x88] sm:$0xff]
      %v386 = vld [vmem:[%s1 + $0x90] sm:$0xff]
      %v387 = vld [vmem:[%s1 + $0x98] sm:$0xff]
      %v388 = vld [vmem:[%s1 + $0xa0] sm:$0xff]
      %v389 = vld [vmem:[%s1 + $0xa8] sm:$0xff]
      %v390 = vld [vmem:[%s1 + $0xb0] sm:$0xff]
      %v391 = vld [vmem:[%s1 + $0xb8] sm:$0xff]
      %v392 = vld [vmem:[%s1 + $0xc0] sm:$0xff]
      %v393 = vld [vmem:[%s1 + $0xc8] sm:$0xff]
      %v394 = vld [vmem:[%s1 + $0xd0] sm:$0xff]
      %v395 = vld [vmem:[%s1 + $0xd8] sm:$0xff]
      %v396 = vld [vmem:[%s1 + $0xe0] sm:$0xff]
      %v397 = vld [vmem:[%s1 + $0xe8] sm:$0xff]
      %v398 = vld [vmem:[%s1 + $0xf0] sm:$0xff]
      %v399 = vld [vmem:[%s1 + $0xf8] sm:$0xff]
      %v400 = vld [vmem:[%s1 + $0x100] sm:$0xff]
      %v401 = vld [vmem:[%s1 + $0x108] sm:$0xff]
      %v402 = vld [vmem:[%s1 + $0x110] sm:$0xff]
      %v403 = vld [vmem:[%s1 + $0x118] sm:$0xff]
      %v404 = vld [vmem:[%s1 + $0x120] sm:$0xff]
      %v405 = vld [vmem:[%s1 + $0x128] sm:$0xff]
      %v406 = vld [vmem:[%s1 + $0x130] sm:$0xff]
      %v407 = vld [vmem:[%s1 + $0x138] sm:$0xff]
      %v408 = vld [vmem:[%s1 + $0x140] sm:$0xff]
      %v409 = vld [vmem:[%s1 + $0x148] sm:$0xff]
      %v410 = vld [vmem:[%s1 + $0x150] sm:$0xff]
      %v411 = vld [vmem:[%s1 + $0x158] sm:$0xff]
      %v412 = vld [vmem:[%s1 + $0x160] sm:$0xff]
      %v413 = vld [vmem:[%s1 + $0x168] sm:$0xff]
      %s414 = scalar_lea.vmem %s1, 368
      %v415 = vld [vmem:[%s414] sm:$0xff]
      %v416 = vld [vmem:[%s414 + $0x8] sm:$0xff]
      %v417 = vld [vmem:[%s414 + $0x10] sm:$0xff]
      %v418 = vld [vmem:[%s414 + $0x18] sm:$0xff]
      %v419 = vld [vmem:[%s414 + $0x20] sm:$0xff]
      %v420 = vld [vmem:[%s414 + $0x28] sm:$0xff]
      %v421 = vld [vmem:[%s414 + $0x30] sm:$0xff]
      %v422 = vld [vmem:[%s414 + $0x38] sm:$0xff]
      %v423 = vld [vmem:[%s414 + $0x40] sm:$0xff]
      %v424 = vld [vmem:[%s414 + $0x48] sm:$0xff]
      %v425 = vld [vmem:[%s414 + $0x50] sm:$0xff]
      %v426 = vld [vmem:[%s414 + $0x58] sm:$0xff]
      %v427 = vld [vmem:[%s414 + $0x60] sm:$0xff]
      %v428 = vld [vmem:[%s414 + $0x68] sm:$0xff]
      %v429 = vld [vmem:[%s414 + $0x70] sm:$0xff]
      %v430 = vld [vmem:[%s414 + $0x78] sm:$0xff]
      %v431 = vld [vmem:[%s414 + $0x80] sm:$0xff]
      %v432 = vld [vmem:[%s414 + $0x88] sm:$0xff]
      %v433 = vld [vmem:[%s414 + $0x90] sm:$0xff]
      %v434 = vld [vmem:[%s414 + $0x98] sm:$0xff]
      %v435 = vld [vmem:[%s414 + $0xa0] sm:$0xff]
      %v436 = vld [vmem:[%s414 + $0xa8] sm:$0xff]
      %v437 = vld [vmem:[%s414 + $0xb0] sm:$0xff]
      %v438 = vld [vmem:[%s414 + $0xb8] sm:$0xff]
      %v439 = vld [vmem:[%s414 + $0xc0] sm:$0xff]
      %v440 = vld [vmem:[%s414 + $0xc8] sm:$0xff]
      %v441 = vld [vmem:[%s414 + $0xd0] sm:$0xff]
      %v442 = vld [vmem:[%s414 + $0xd8] sm:$0xff]
      %v443 = vld [vmem:[%s414 + $0xe0] sm:$0xff]
      %v444 = vld [vmem:[%s414 + $0xe8] sm:$0xff]
      %v445 = vld [vmem:[%s414 + $0xf0] sm:$0xff]
      %v446 = vld [vmem:[%s414 + $0xf8] sm:$0xff]
      %v447 = vld [vmem:[%s414 + $0x100] sm:$0xff]
      %v448 = vld [vmem:[%s414 + $0x108] sm:$0xff]
      %v449 = vld [vmem:[%s414 + $0x110] sm:$0xff]
      %v450 = vld [vmem:[%s414 + $0x118] sm:$0xff]
      %v451 = vld [vmem:[%s414 + $0x120] sm:$0xff]
      %v452 = vld [vmem:[%s414 + $0x128] sm:$0xff]
      %v453 = vld [vmem:[%s414 + $0x130] sm:$0xff]
      %v454 = vld [vmem:[%s414 + $0x138] sm:$0xff]
      %v455 = vld [vmem:[%s414 + $0x140] sm:$0xff]
      %v456 = vld [vmem:[%s414 + $0x148] sm:$0xff]
      %v457 = vld [vmem:[%s414 + $0x150] sm:$0xff]
      %v458 = vld [vmem:[%s414 + $0x158] sm:$0xff]
      %v459 = vld [vmem:[%s414 + $0x160] sm:$0xff]
      %v460 = vld [vmem:[%s414 + $0x168] sm:$0xff]
      %vm473 = vcmask 1046528
      %v474 = vrot.slane %v364, 1
      %v475 = vrot.slane %v354, 1
      %v476 = vsel %vm473, %v474, %v475
      %v477 = vrot.slane %v365, 1
      %v478 = vrot.slane %v355, 1
      %v479 = vsel %vm473, %v477, %v478
      %v480 = vrot.slane %v356, 1
      %v481 = vsel %vm473, %v475, %v480
      %v482 = vrot.slane %v357, 1
      %v483 = vsel %vm473, %v478, %v482
      %v484 = vrot.slane %v358, 1
      %v485 = vsel %vm473, %v480, %v484
      %v486 = vrot.slane %v359, 1
      %v487 = vsel %vm473, %v482, %v486
      %v488 = vrot.slane %v360, 1
      %v489 = vsel %vm473, %v484, %v488
      %v490 = vrot.slane %v361, 1
      %v491 = vsel %vm473, %v486, %v490
      %v492 = vrot.slane %v366, 1
      %v493 = vsel %vm473, %v488, %v492
      %v494 = vrot.slane %v367, 1
      %v495 = vsel %vm473, %v490, %v494
      %vm502 = vcmask 457728
      %v503 = vsel %vm502, %v479, 0
      %v505 = vsel %vm502, %v483, 0
      %v507 = vsel %vm502, %v487, 0
      %v509 = vsel %vm502, %v491, 0
      %v511 = vsel %vm502, %v495, 0
      %v513 = vsel %vm502, %v494, 0
      %515 = vmatprep.subr.mxu0 %v416
      %516 = vmatpush1.msra.mxu0 %v415
      %517 = vmatprep.subr.mxu0 %v418
      %518 = vmatpush1.msra.mxu0 %v417
      %519 = vmatprep.subr.mxu0 %v420
      %520 = vmatpush1.msra.mxu0 %v419
      %521 = vmatprep.subr.mxu0 %v422
      %522 = vmatpush1.msra.mxu0 %v421
      %523 = vmatprep.subr.mxu0 %v424
      %524 = vmatpush1.msra.mxu0 %v423
      %525 = vmatprep.subr.mxu0 %v426
      %526 = vmatpush1.msra.mxu0 %v425
      %527 = vmatprep.subr.mxu0 %v428
      %528 = vmatpush1.msra.mxu0 %v427
      %529 = vmatprep.subr.mxu0 %v430
      %530 = vmatpush1.msra.mxu0 %v429
      %531 = vmatprep.subr.mxu0 %v432
      %532 = vmatpush1.msra.mxu0 %v431
      %533 = vmatprep.subr.mxu0 %v434
      %534 = vmatpush1.msra.mxu0 %v433
      %535 = vmatprep.subr.mxu0 %v436
      %536 = vmatpush1.msra.mxu0 %v435
      %537 = vmatprep.subr.mxu0 %v438
      %538 = vmatpush1.msra.mxu0 %v437
      %539 = vmatprep.subr.mxu0 %v440
      %540 = vmatpush1.msra.mxu0 %v439
      %541 = vmatprep.subr.mxu0 %v442
      %542 = vmatpush1.msra.mxu0 %v441
      %543 = vmatprep.subr.mxu0 %v444
      %544 = vmatpush1.msra.mxu0 %v443
      %545 = vmatprep.subr.mxu0 %v446
      %546 = vmatpush1.msra.mxu0 %v445
      %547 = vmatprep.subr.mxu0 %v448
      %548 = vmatpush1.msra.mxu0 %v447
      %549 = vmatprep.subr.mxu0 %v450
      %550 = vmatpush1.msra.mxu0 %v449
      %551 = vmatprep.subr.mxu0 %v452
      %552 = vmatpush1.msra.mxu0 %v451
      %553 = vmatprep.subr.mxu0 %v454
      %554 = vmatpush1.msra.mxu0 %v453
      %555 = vmatprep.subr.mxu0 %v456
      %556 = vmatpush1.msra.mxu0 %v455
      %557 = vmatprep.subr.mxu0 %v458
      %558 = vmatpush1.msra.mxu0 %v457
      %559 = vmatprep.subr.mxu0 %v460
      %560 = vmatpush1.msra.mxu0 %v459
      %561 = vmatprep.subr.mxu0 0.0
      %562 = vmatpush1.msra.mxu0 0.0
      %563 = vmatprep.subr.mxu0 0.0
      %564 = vmatpush1.msra.mxu0 0.0
      %565 = vmatprep.subr.mxu0 0.0
      %566 = vmatpush1.msra.mxu0 0.0
      %567 = vmatprep.subr.mxu0 0.0
      %568 = vmatpush1.msra.mxu0 0.0
      %569 = vmatprep.subr.mxu0 0.0
      %570 = vmatpush1.msra.mxu0 0.0
      %571 = vmatprep.subr.mxu0 0.0
      %572 = vmatpush1.msra.mxu0 0.0
      %573 = vmatprep.subr.mxu0 0.0
      %574 = vmatpush1.msra.mxu0 0.0
      %575 = vmatprep.subr.mxu0 0.0
      %576 = vmatpush1.msra.mxu0 0.0
      %577 = vmatprep.subr.mxu0 0.0
      %578 = vmatpush1.msra.mxu0 0.0
      %579 = vmatprep.mubr.f32.mxu0 %v503
      %580 = vmatmul.mubr.f32.gmra.mrb[0].mxu0 %v476
      %v581 = vpop.f32.mrb[0].mxu0
      %v582 = vadd.f32 0.0, %v581
      %v583 = vpop.f32.mrb[0].mxu0
      %v584 = vadd.f32 0.0, %v583
      %585 = vmatprep.mubr.f32.mxu0 %v505
      %586 = vmatmul.mubr.f32.gmra.mrb[0].mxu0 %v481
      %v587 = vpop.f32.mrb[0].mxu0
      %v588 = vadd.f32 0.0, %v587
      %v589 = vpop.f32.mrb[0].mxu0
      %v590 = vadd.f32 0.0, %v589
      %591 = vmatprep.mubr.f32.mxu0 %v507
      %592 = vmatmul.mubr.f32.gmra.mrb[0].mxu0 %v485
      %v593 = vpop.f32.mrb[0].mxu0
      %v594 = vadd.f32 0.0, %v593
      %v595 = vpop.f32.mrb[0].mxu0
      %v596 = vadd.f32 0.0, %v595
      %597 = vmatprep.mubr.f32.mxu0 %v509
      %598 = vmatmul.mubr.f32.gmra.mrb[0].mxu0 %v489
      %v599 = vpop.f32.mrb[0].mxu0
      %v600 = vadd.f32 0.0, %v599
      %v601 = vpop.f32.mrb[0].mxu0
      %v602 = vadd.f32 0.0, %v601
      %603 = vmatprep.mubr.f32.mxu0 %v511
      %604 = vmatmul.mubr.f32.gmra.mrb[0].mxu0 %v493
      %v605 = vpop.f32.mrb[0].mxu0
      %v606 = vadd.f32 0.0, %v605
      %v607 = vpop.f32.mrb[0].mxu0
      %v608 = vadd.f32 0.0, %v607
      %609 = vmatprep.mubr.f32.mxu0 %v513
      %610 = vmatmul.mubr.f32.gmra.mrb[0].mxu0 %v492
      %v611 = vpop.f32.mrb[0].mxu0
      %v612 = vadd.f32 0.0, %v611
      %v613 = vpop.f32.mrb[0].mxu0
      %v614 = vadd.f32 0.0, %v613
      %615 = vdwg.mxu0
      %v617 = vsel %vm502, %v353, 0
      %v619 = vsel %vm502, %v355, 0
      %v621 = vsel %vm502, %v357, 0
      %v623 = vsel %vm502, %v359, 0
      %v625 = vsel %vm502, %v361, 0
      %v628 = vsel %vm502, %v363, 0
      %630 = vmatprep.subr.mxu0 %v369
      %631 = vmatpush1.msra.mxu0 %v368
      %632 = vmatprep.subr.mxu0 %v371
      %633 = vmatpush1.msra.mxu0 %v370
      %634 = vmatprep.subr.mxu0 %v373
      %635 = vmatpush1.msra.mxu0 %v372
      %636 = vmatprep.subr.mxu0 %v375
      %637 = vmatpush1.msra.mxu0 %v374
      %638 = vmatprep.subr.mxu0 %v377
      %639 = vmatpush1.msra.mxu0 %v376
      %640 = vmatprep.subr.mxu0 %v379
      %641 = vmatpush1.msra.mxu0 %v378
      %642 = vmatprep.subr.mxu0 %v381
      %643 = vmatpush1.msra.mxu0 %v380
      %644 = vmatprep.subr.mxu0 %v383
      %645 = vmatpush1.msra.mxu0 %v382
      %646 = vmatprep.subr.mxu0 %v385
      %647 = vmatpush1.msra.mxu0 %v384
      %648 = vmatprep.subr.mxu0 %v387
      %649 = vmatpush1.msra.mxu0 %v386
      %650 = vmatprep.subr.mxu0 %v389
      %651 = vmatpush1.msra.mxu0 %v388
      %652 = vmatprep.subr.mxu0 %v391
      %653 = vmatpush1.msra.mxu0 %v390
      %654 = vmatprep.subr.mxu0 %v393
      %655 = vmatpush1.msra.mxu0 %v392
      %656 = vmatprep.subr.mxu0 %v395
      %657 = vmatpush1.msra.mxu0 %v394
      %658 = vmatprep.subr.mxu0 %v397
      %659 = vmatpush1.msra.mxu0 %v396
      %660 = vmatprep.subr.mxu0 %v399
      %661 = vmatpush1.msra.mxu0 %v398
      %662 = vmatprep.subr.mxu0 %v401
      %663 = vmatpush1.msra.mxu0 %v400
      %664 = vmatprep.subr.mxu0 %v403
      %665 = vmatpush1.msra.mxu0 %v402
      %666 = vmatprep.subr.mxu0 %v405
      %667 = vmatpush1.msra.mxu0 %v404
      %668 = vmatprep.subr.mxu0 %v407
      %669 = vmatpush1.msra.mxu0 %v406
      %670 = vmatprep.subr.mxu0 %v409
      %671 = vmatpush1.msra.mxu0 %v408
      %672 = vmatprep.subr.mxu0 %v411
      %673 = vmatpush1.msra.mxu0 %v410
      %674 = vmatprep.subr.mxu0 %v413
      %675 = vmatpush1.msra.mxu0 %v412
      %676 = vmatprep.subr.mxu0 0.0
      %677 = vmatpush1.msra.mxu0 0.0
      %678 = vmatprep.subr.mxu0 0.0
      %679 = vmatpush1.msra.mxu0 0.0
      %680 = vmatprep.subr.mxu0 0.0
      %681 = vmatpush1.msra.mxu0 0.0
      %682 = vmatprep.subr.mxu0 0.0
      %683 = vmatpush1.msra.mxu0 0.0
      %684 = vmatprep.subr.mxu0 0.0
      %685 = vmatpush1.msra.mxu0 0.0
      %686 = vmatprep.subr.mxu0 0.0
      %687 = vmatpush1.msra.mxu0 0.0
      %688 = vmatprep.subr.mxu0 0.0
      %689 = vmatpush1.msra.mxu0 0.0
      %690 = vmatprep.subr.mxu0 0.0
      %691 = vmatpush1.msra.mxu0 0.0
      %692 = vmatprep.subr.mxu0 0.0
      %693 = vmatpush1.msra.mxu0 0.0
      %694 = vmatprep.mubr.f32.mxu0 %v617
      %695 = vmatmul.mubr.f32.gmra.mrb[0].mxu0 %v352
      %v696 = vpop.f32.mrb[0].mxu0
      %v697 = vadd.f32 %v582, %v696
      %v698 = vpop.f32.mrb[0].mxu0
      %v699 = vadd.f32 %v584, %v698
      %700 = vmatprep.mubr.f32.mxu0 %v619
      %701 = vmatmul.mubr.f32.gmra.mrb[0].mxu0 %v354
      %v702 = vpop.f32.mrb[0].mxu0
      %v703 = vadd.f32 %v588, %v702
      %v704 = vpop.f32.mrb[0].mxu0
      %v705 = vadd.f32 %v590, %v704
      %706 = vmatprep.mubr.f32.mxu0 %v621
      %707 = vmatmul.mubr.f32.gmra.mrb[0].mxu0 %v356
      %v708 = vpop.f32.mrb[0].mxu0
      %v709 = vadd.f32 %v594, %v708
      %v710 = vpop.f32.mrb[0].mxu0
      %v711 = vadd.f32 %v596, %v710
      %712 = vmatprep.mubr.f32.mxu0 %v623
      %713 = vmatmul.mubr.f32.gmra.mrb[0].mxu0 %v358
      %v714 = vpop.f32.mrb[0].mxu0
      %v715 = vadd.f32 %v600, %v714
      %v716 = vpop.f32.mrb[0].mxu0
      %v717 = vadd.f32 %v602, %v716
      %718 = vmatprep.mubr.f32.mxu0 %v625
      %719 = vmatmul.mubr.f32.gmra.mrb[0].mxu0 %v360
      %v720 = vpop.f32.mrb[0].mxu0
      %v721 = vadd.f32 %v606, %v720
      %v722 = vpop.f32.mrb[0].mxu0
      %v723 = vadd.f32 %v608, %v722
      %724 = vmatprep.mubr.f32.mxu0 %v628
      %725 = vmatmul.mubr.f32.gmra.mrb[0].mxu0 %v362
      %v726 = vpop.f32.mrb[0].mxu0
      %v727 = vadd.f32 %v612, %v726
      %v728 = vpop.f32.mrb[0].mxu0
      %v729 = vadd.f32 %v614, %v728
      %730 = vdwg.mxu0
      %v731 = vld [vmem:[%s2] sm:$0x3]
      %v733 = vlaneseq
      %v734 = vshrl.u32 %v733, 7
      %v735 = vsub.s32 0, %v734
      %v736 = vrot.slane %v731, %v735
      %v737 = vlaneseq
      %v738 = vshrl.u32 %v737, 7
      %v739 = vsub.s32 1, %v738
      %v740 = vrot.slane %v731, %v739
      %v743 = vadd.f32 %v697, %v736
      %v744 = vadd.f32 %v699, %v740
      %v745 = vadd.f32 %v703, %v736
      %v746 = vadd.f32 %v705, %v740
      %v747 = vadd.f32 %v709, %v736
      %v748 = vadd.f32 %v711, %v740
      %v749 = vadd.f32 %v715, %v736
      %v750 = vadd.f32 %v717, %v740
      %v751 = vadd.f32 %v721, %v736
      %v752 = vadd.f32 %v723, %v740
      %v753 = vadd.f32 %v727, %v736
      %v754 = vadd.f32 %v729, %v740
      %755 = vst [vmem:[%s170] sm:$0xff] %v743
      %vm756 = vcmask 31744
      %757 = vst.msk [vmem:[%s170 + $0x8] sm:$0xff] %vm756, %v744
      %758 = vst [vmem:[%s170 + $0x10] sm:$0xff] %v745
      %759 = vst.msk [vmem:[%s170 + $0x18] sm:$0xff] %vm756, %v746
      %760 = vst [vmem:[%s170 + $0x20] sm:$0xff] %v747
      %761 = vst.msk [vmem:[%s170 + $0x28] sm:$0xff] %vm756, %v748
      %762 = vst [vmem:[%s170 + $0x30] sm:$0xff] %v749
      %763 = vst.msk [vmem:[%s170 + $0x38] sm:$0xff] %vm756, %v750
      %764 = vst [vmem:[%s170 + $0x40] sm:$0xff] %v751
      %765 = vst.msk [vmem:[%s170 + $0x48] sm:$0xff] %vm756, %v752
      %766 = vst [vmem:[%s170 + $0x50] sm:$0x3] %v753
      %vm767 = vcmask 25600
      %768 = vst.msk [vmem:[%s170 + $0x58] sm:$0x3] %vm767, %v754
      %s769 = scalar_lea.vmem %s1, 736
      %v770 = vld [vmem:[%s769] sm:$0xff]
      %v771 = vld [vmem:[%s769 + $0x8] sm:$0xff]
      %v772 = vld [vmem:[%s769 + $0x10] sm:$0xff]
      %v773 = vld [vmem:[%s769 + $0x18] sm:$0xff]
      %v774 = vld [vmem:[%s769 + $0x20] sm:$0xff]
      %v775 = vld [vmem:[%s769 + $0x28] sm:$0xff]
      %v776 = vld [vmem:[%s769 + $0x30] sm:$0xff]
      %v777 = vld [vmem:[%s769 + $0x38] sm:$0xff]
      %v778 = vld [vmem:[%s769 + $0x40] sm:$0xff]
      %v779 = vld [vmem:[%s769 + $0x48] sm:$0xff]
      %v780 = vld [vmem:[%s769 + $0x50] sm:$0xff]
      %v781 = vld [vmem:[%s769 + $0x58] sm:$0xff]
      %v782 = vld [vmem:[%s769 + $0x60] sm:$0xff]
      %v783 = vld [vmem:[%s769 + $0x68] sm:$0xff]
      %v784 = vld [vmem:[%s769 + $0x70] sm:$0xff]
      %v785 = vld [vmem:[%s769 + $0x78] sm:$0xff]
      %v786 = vld [vmem:[%s769 + $0x80] sm:$0xff]
      %v787 = vld [vmem:[%s769 + $0x88] sm:$0xff]
      %v788 = vld [vmem:[%s769 + $0x90] sm:$0xff]
      %v789 = vld [vmem:[%s769 + $0x98] sm:$0xff]
      %v790 = vld [vmem:[%s769 + $0xa0] sm:$0xff]
      %v791 = vld [vmem:[%s769 + $0xa8] sm:$0xff]
      %v792 = vld [vmem:[%s769 + $0xb0] sm:$0xff]
      %v793 = vld [vmem:[%s769 + $0xb8] sm:$0xff]
      %v794 = vld [vmem:[%s769 + $0xc0] sm:$0xff]
      %v795 = vld [vmem:[%s769 + $0xc8] sm:$0xff]
      %v796 = vld [vmem:[%s769 + $0xd0] sm:$0xff]
      %v797 = vld [vmem:[%s769 + $0xd8] sm:$0xff]
      %v798 = vld [vmem:[%s769 + $0xe0] sm:$0xff]
      %v799 = vld [vmem:[%s769 + $0xe8] sm:$0xff]
      %v800 = vld [vmem:[%s769 + $0xf0] sm:$0xff]
      %v801 = vld [vmem:[%s769 + $0xf8] sm:$0xff]
      %v802 = vld [vmem:[%s769 + $0x100] sm:$0xff]
      %v803 = vld [vmem:[%s769 + $0x108] sm:$0xff]
      %v804 = vld [vmem:[%s769 + $0x110] sm:$0xff]
      %v805 = vld [vmem:[%s769 + $0x118] sm:$0xff]
      %v806 = vld [vmem:[%s769 + $0x120] sm:$0xff]
      %v807 = vld [vmem:[%s769 + $0x128] sm:$0xff]
      %v808 = vld [vmem:[%s769 + $0x130] sm:$0xff]
      %v809 = vld [vmem:[%s769 + $0x138] sm:$0xff]
      %v810 = vld [vmem:[%s769 + $0x140] sm:$0xff]
      %v811 = vld [vmem:[%s769 + $0x148] sm:$0xff]
      %v812 = vld [vmem:[%s769 + $0x150] sm:$0xff]
      %v813 = vld [vmem:[%s769 + $0x158] sm:$0xff]
      %v814 = vld [vmem:[%s769 + $0x160] sm:$0xff]
      %v815 = vld [vmem:[%s769 + $0x168] sm:$0xff]
      %s816 = scalar_lea.vmem %s1, 1104
      %v817 = vld [vmem:[%s816] sm:$0xff]
      %v818 = vld [vmem:[%s816 + $0x8] sm:$0xff]
      %v819 = vld [vmem:[%s816 + $0x10] sm:$0xff]
      %v820 = vld [vmem:[%s816 + $0x18] sm:$0xff]
      %v821 = vld [vmem:[%s816 + $0x20] sm:$0xff]
      %v822 = vld [vmem:[%s816 + $0x28] sm:$0xff]
      %v823 = vld [vmem:[%s816 + $0x30] sm:$0xff]
      %v824 = vld [vmem:[%s816 + $0x38] sm:$0xff]
      %v825 = vld [vmem:[%s816 + $0x40] sm:$0xff]
      %v826 = vld [vmem:[%s816 + $0x48] sm:$0xff]
      %v827 = vld [vmem:[%s816 + $0x50] sm:$0xff]
      %v828 = vld [vmem:[%s816 + $0x58] sm:$0xff]
      %v829 = vld [vmem:[%s816 + $0x60] sm:$0xff]
      %v830 = vld [vmem:[%s816 + $0x68] sm:$0xff]
      %v831 = vld [vmem:[%s816 + $0x70] sm:$0xff]
      %v832 = vld [vmem:[%s816 + $0x78] sm:$0xff]
      %v833 = vld [vmem:[%s816 + $0x80] sm:$0xff]
      %v834 = vld [vmem:[%s816 + $0x88] sm:$0xff]
      %v835 = vld [vmem:[%s816 + $0x90] sm:$0xff]
      %v836 = vld [vmem:[%s816 + $0x98] sm:$0xff]
      %v837 = vld [vmem:[%s816 + $0xa0] sm:$0xff]
      %v838 = vld [vmem:[%s816 + $0xa8] sm:$0xff]
      %v839 = vld [vmem:[%s816 + $0xb0] sm:$0xff]
      %v840 = vld [vmem:[%s816 + $0xb8] sm:$0xff]
      %v841 = vld [vmem:[%s816 + $0xc0] sm:$0xff]
      %v842 = vld [vmem:[%s816 + $0xc8] sm:$0xff]
      %v843 = vld [vmem:[%s816 + $0xd0] sm:$0xff]
      %v844 = vld [vmem:[%s816 + $0xd8] sm:$0xff]
      %v845 = vld [vmem:[%s816 + $0xe0] sm:$0xff]
      %v846 = vld [vmem:[%s816 + $0xe8] sm:$0xff]
      %v847 = vld [vmem:[%s816 + $0xf0] sm:$0xff]
      %v848 = vld [vmem:[%s816 + $0xf8] sm:$0xff]
      %v849 = vld [vmem:[%s816 + $0x100] sm:$0xff]
      %v850 = vld [vmem:[%s816 + $0x108] sm:$0xff]
      %v851 = vld [vmem:[%s816 + $0x110] sm:$0xff]
      %v852 = vld [vmem:[%s816 + $0x118] sm:$0xff]
      %v853 = vld [vmem:[%s816 + $0x120] sm:$0xff]
      %v854 = vld [vmem:[%s816 + $0x128] sm:$0xff]
      %v855 = vld [vmem:[%s816 + $0x130] sm:$0xff]
      %v856 = vld [vmem:[%s816 + $0x138] sm:$0xff]
      %v857 = vld [vmem:[%s816 + $0x140] sm:$0xff]
      %v858 = vld [vmem:[%s816 + $0x148] sm:$0xff]
      %v859 = vld [vmem:[%s816 + $0x150] sm:$0xff]
      %v860 = vld [vmem:[%s816 + $0x158] sm:$0xff]
      %v861 = vld [vmem:[%s816 + $0x160] sm:$0xff]
      %v862 = vld [vmem:[%s816 + $0x168] sm:$0xff]
      %863 = vmatprep.subr.mxu0 %v818
      %864 = vmatpush1.msra.mxu0 %v817
      %865 = vmatprep.subr.mxu0 %v820
      %866 = vmatpush1.msra.mxu0 %v819
      %867 = vmatprep.subr.mxu0 %v822
      %868 = vmatpush1.msra.mxu0 %v821
      %869 = vmatprep.subr.mxu0 %v824
      %870 = vmatpush1.msra.mxu0 %v823
      %871 = vmatprep.subr.mxu0 %v826
      %872 = vmatpush1.msra.mxu0 %v825
      %873 = vmatprep.subr.mxu0 %v828
      %874 = vmatpush1.msra.mxu0 %v827
      %875 = vmatprep.subr.mxu0 %v830
      %876 = vmatpush1.msra.mxu0 %v829
      %877 = vmatprep.subr.mxu0 %v832
      %878 = vmatpush1.msra.mxu0 %v831
      %879 = vmatprep.subr.mxu0 %v834
      %880 = vmatpush1.msra.mxu0 %v833
      %881 = vmatprep.subr.mxu0 %v836
      %882 = vmatpush1.msra.mxu0 %v835
      %883 = vmatprep.subr.mxu0 %v838
      %884 = vmatpush1.msra.mxu0 %v837
      %885 = vmatprep.subr.mxu0 %v840
      %886 = vmatpush1.msra.mxu0 %v839
      %887 = vmatprep.subr.mxu0 %v842
      %888 = vmatpush1.msra.mxu0 %v841
      %889 = vmatprep.subr.mxu0 %v844
      %890 = vmatpush1.msra.mxu0 %v843
      %891 = vmatprep.subr.mxu0 %v846
      %892 = vmatpush1.msra.mxu0 %v845
      %893 = vmatprep.subr.mxu0 %v848
      %894 = vmatpush1.msra.mxu0 %v847
      %895 = vmatprep.subr.mxu0 %v850
      %896 = vmatpush1.msra.mxu0 %v849
      %897 = vmatprep.subr.mxu0 %v852
      %898 = vmatpush1.msra.mxu0 %v851
      %899 = vmatprep.subr.mxu0 %v854
      %900 = vmatpush1.msra.mxu0 %v853
      %901 = vmatprep.subr.mxu0 %v856
      %902 = vmatpush1.msra.mxu0 %v855
      %903 = vmatprep.subr.mxu0 %v858
      %904 = vmatpush1.msra.mxu0 %v857
      %905 = vmatprep.subr.mxu0 %v860
      %906 = vmatpush1.msra.mxu0 %v859
      %907 = vmatprep.subr.mxu0 %v862
      %908 = vmatpush1.msra.mxu0 %v861
      %909 = vmatprep.subr.mxu0 0.0
      %910 = vmatpush1.msra.mxu0 0.0
      %911 = vmatprep.subr.mxu0 0.0
      %912 = vmatpush1.msra.mxu0 0.0
      %913 = vmatprep.subr.mxu0 0.0
      %914 = vmatpush1.msra.mxu0 0.0
      %915 = vmatprep.subr.mxu0 0.0
      %916 = vmatpush1.msra.mxu0 0.0
      %917 = vmatprep.subr.mxu0 0.0
      %918 = vmatpush1.msra.mxu0 0.0
      %919 = vmatprep.subr.mxu0 0.0
      %920 = vmatpush1.msra.mxu0 0.0
      %921 = vmatprep.subr.mxu0 0.0
      %922 = vmatpush1.msra.mxu0 0.0
      %923 = vmatprep.subr.mxu0 0.0
      %924 = vmatpush1.msra.mxu0 0.0
      %925 = vmatprep.subr.mxu0 0.0
      %926 = vmatpush1.msra.mxu0 0.0
      %927 = vmatprep.mubr.f32.mxu0 %v503
      %928 = vmatmul.mubr.f32.gmra.mrb[0].mxu0 %v476
      %v929 = vpop.f32.mrb[0].mxu0
      %v930 = vadd.f32 0.0, %v929
      %v931 = vpop.f32.mrb[0].mxu0
      %v932 = vadd.f32 0.0, %v931
      %933 = vmatprep.mubr.f32.mxu0 %v505
      %934 = vmatmul.mubr.f32.gmra.mrb[0].mxu0 %v481
      %v935 = vpop.f32.mrb[0].mxu0
      %v936 = vadd.f32 0.0, %v935
      %v937 = vpop.f32.mrb[0].mxu0
      %v938 = vadd.f32 0.0, %v937
      %939 = vmatprep.mubr.f32.mxu0 %v507
      %940 = vmatmul.mubr.f32.gmra.mrb[0].mxu0 %v485
      %v941 = vpop.f32.mrb[0].mxu0
      %v942 = vadd.f32 0.0, %v941
      %v943 = vpop.f32.mrb[0].mxu0
      %v944 = vadd.f32 0.0, %v943
      %945 = vmatprep.mubr.f32.mxu0 %v509
      %946 = vmatmul.mubr.f32.gmra.mrb[0].mxu0 %v489
      %v947 = vpop.f32.mrb[0].mxu0
      %v948 = vadd.f32 0.0, %v947
      %v949 = vpop.f32.mrb[0].mxu0
      %v950 = vadd.f32 0.0, %v949
      %951 = vmatprep.mubr.f32.mxu0 %v511
      %952 = vmatmul.mubr.f32.gmra.mrb[0].mxu0 %v493
      %v953 = vpop.f32.mrb[0].mxu0
      %v954 = vadd.f32 0.0, %v953
      %v955 = vpop.f32.mrb[0].mxu0
      %v956 = vadd.f32 0.0, %v955
      %957 = vmatprep.mubr.f32.mxu0 %v513
      %958 = vmatmul.mubr.f32.gmra.mrb[0].mxu0 %v492
      %v959 = vpop.f32.mrb[0].mxu0
      %v960 = vadd.f32 0.0, %v959
      %v961 = vpop.f32.mrb[0].mxu0
      %v962 = vadd.f32 0.0, %v961
      %963 = vdwg.mxu0
      %964 = vmatprep.subr.mxu0 %v771
      %965 = vmatpush1.msra.mxu0 %v770
      %966 = vmatprep.subr.mxu0 %v773
      %967 = vmatpush1.msra.mxu0 %v772
      %968 = vmatprep.subr.mxu0 %v775
      %969 = vmatpush1.msra.mxu0 %v774
      %970 = vmatprep.subr.mxu0 %v777
      %971 = vmatpush1.msra.mxu0 %v776
      %972 = vmatprep.subr.mxu0 %v779
      %973 = vmatpush1.msra.mxu0 %v778
      %974 = vmatprep.subr.mxu0 %v781
      %975 = vmatpush1.msra.mxu0 %v780
      %976 = vmatprep.subr.mxu0 %v783
      %977 = vmatpush1.msra.mxu0 %v782
      %978 = vmatprep.subr.mxu0 %v785
      %979 = vmatpush1.msra.mxu0 %v784
      %980 = vmatprep.subr.mxu0 %v787
      %981 = vmatpush1.msra.mxu0 %v786
      %982 = vmatprep.subr.mxu0 %v789
      %983 = vmatpush1.msra.mxu0 %v788
      %984 = vmatprep.subr.mxu0 %v791
      %985 = vmatpush1.msra.mxu0 %v790
      %986 = vmatprep.subr.mxu0 %v793
      %987 = vmatpush1.msra.mxu0 %v792
      %988 = vmatprep.subr.mxu0 %v795
      %989 = vmatpush1.msra.mxu0 %v794
      %990 = vmatprep.subr.mxu0 %v797
      %991 = vmatpush1.msra.mxu0 %v796
      %992 = vmatprep.subr.mxu0 %v799
      %993 = vmatpush1.msra.mxu0 %v798
      %994 = vmatprep.subr.mxu0 %v801
      %995 = vmatpush1.msra.mxu0 %v800
      %996 = vmatprep.subr.mxu0 %v803
      %997 = vmatpush1.msra.mxu0 %v802
      %998 = vmatprep.subr.mxu0 %v805
      %999 = vmatpush1.msra.mxu0 %v804
      %1000 = vmatprep.subr.mxu0 %v807
      %1001 = vmatpush1.msra.mxu0 %v806
      %1002 = vmatprep.subr.mxu0 %v809
      %1003 = vmatpush1.msra.mxu0 %v808
      %1004 = vmatprep.subr.mxu0 %v811
      %1005 = vmatpush1.msra.mxu0 %v810
      %1006 = vmatprep.subr.mxu0 %v813
      %1007 = vmatpush1.msra.mxu0 %v812
      %1008 = vmatprep.subr.mxu0 %v815
      %1009 = vmatpush1.msra.mxu0 %v814
      %1010 = vmatprep.subr.mxu0 0.0
      %1011 = vmatpush1.msra.mxu0 0.0
      %1012 = vmatprep.subr.mxu0 0.0
      %1013 = vmatpush1.msra.mxu0 0.0
      %1014 = vmatprep.subr.mxu0 0.0
      %1015 = vmatpush1.msra.mxu0 0.0
      %1016 = vmatprep.subr.mxu0 0.0
      %1017 = vmatpush1.msra.mxu0 0.0
      %1018 = vmatprep.subr.mxu0 0.0
      %1019 = vmatpush1.msra.mxu0 0.0
      %1020 = vmatprep.subr.mxu0 0.0
      %1021 = vmatpush1.msra.mxu0 0.0
      %1022 = vmatprep.subr.mxu0 0.0
      %1023 = vmatpush1.msra.mxu0 0.0
      %1024 = vmatprep.subr.mxu0 0.0
      %1025 = vmatpush1.msra.mxu0 0.0
      %1026 = vmatprep.subr.mxu0 0.0
      %1027 = vmatpush1.msra.mxu0 0.0
      %1028 = vmatprep.mubr.f32.mxu0 %v617
      %1029 = vmatmul.mubr.f32.gmra.mrb[0].mxu0 %v352
      %v1030 = vpop.f32.mrb[0].mxu0
      %v1031 = vadd.f32 %v930, %v1030
      %v1032 = vpop.f32.mrb[0].mxu0
      %v1033 = vadd.f32 %v932, %v1032
      %1034 = vmatprep.mubr.f32.mxu0 %v619
      %1035 = vmatmul.mubr.f32.gmra.mrb[0].mxu0 %v354
      %v1036 = vpop.f32.mrb[0].mxu0
      %v1037 = vadd.f32 %v936, %v1036
      %v1038 = vpop.f32.mrb[0].mxu0
      %v1039 = vadd.f32 %v938, %v1038
      %1040 = vmatprep.mubr.f32.mxu0 %v621
      %1041 = vmatmul.mubr.f32.gmra.mrb[0].mxu0 %v356
      %v1042 = vpop.f32.mrb[0].mxu0
      %v1043 = vadd.f32 %v942, %v1042
      %v1044 = vpop.f32.mrb[0].mxu0
      %v1045 = vadd.f32 %v944, %v1044
      %1046 = vmatprep.mubr.f32.mxu0 %v623
      %1047 = vmatmul.mubr.f32.gmra.mrb[0].mxu0 %v358
      %v1048 = vpop.f32.mrb[0].mxu0
      %v1049 = vadd.f32 %v948, %v1048
      %v1050 = vpop.f32.mrb[0].mxu0
      %v1051 = vadd.f32 %v950, %v1050
      %1052 = vmatprep.mubr.f32.mxu0 %v625
      %1053 = vmatmul.mubr.f32.gmra.mrb[0].mxu0 %v360
      %v1054 = vpop.f32.mrb[0].mxu0
      %v1055 = vadd.f32 %v954, %v1054
      %v1056 = vpop.f32.mrb[0].mxu0
      %v1057 = vadd.f32 %v956, %v1056
      %1058 = vmatprep.mubr.f32.mxu0 %v628
      %1059 = vmatmul.mubr.f32.gmra.mrb[0].mxu0 %v362
      %v1060 = vpop.f32.mrb[0].mxu0
      %v1061 = vadd.f32 %v960, %v1060
      %v1062 = vpop.f32.mrb[0].mxu0
      %v1063 = vadd.f32 %v962, %v1062
      %1064 = vdwg.mxu0
      %v1065 = vld [vmem:[%s2] sm:$0x3]
      %v1067 = vlaneseq
      %v1068 = vshrl.u32 %v1067, 7
      %v1069 = vsub.s32 0, %v1068
      %v1070 = vrot.slane %v1065, %v1069
      %v1071 = vlaneseq
      %v1072 = vshrl.u32 %v1071, 7
      %v1073 = vsub.s32 1, %v1072
      %v1074 = vrot.slane %v1065, %v1073
      %v1077 = vadd.f32 %v1031, %v1070
      %v1078 = vadd.f32 %v1033, %v1074
      %v1079 = vadd.f32 %v1037, %v1070
      %v1080 = vadd.f32 %v1039, %v1074
      %v1081 = vadd.f32 %v1043, %v1070
      %v1082 = vadd.f32 %v1045, %v1074
      %v1083 = vadd.f32 %v1049, %v1070
      %v1084 = vadd.f32 %v1051, %v1074
      %v1085 = vadd.f32 %v1055, %v1070
      %v1086 = vadd.f32 %v1057, %v1074
      %v1087 = vadd.f32 %v1061, %v1070
      %v1088 = vadd.f32 %v1063, %v1074
      %s1089 = scalar_lea.vmem %s170, 96
      %1090 = vst [vmem:[%s1089] sm:$0xff] %v1077
      %1091 = vst.msk [vmem:[%s1089 + $0x8] sm:$0xff] %vm756, %v1078
      %1092 = vst [vmem:[%s1089 + $0x10] sm:$0xff] %v1079
      %1093 = vst.msk [vmem:[%s1089 + $0x18] sm:$0xff] %vm756, %v1080
      %1094 = vst [vmem:[%s1089 + $0x20] sm:$0xff] %v1081
      %1095 = vst.msk [vmem:[%s1089 + $0x28] sm:$0xff] %vm756, %v1082
      %1096 = vst [vmem:[%s1089 + $0x30] sm:$0xff] %v1083
      %1097 = vst.msk [vmem:[%s1089 + $0x38] sm:$0xff] %vm756, %v1084
      %1098 = vst [vmem:[%s1089 + $0x40] sm:$0xff] %v1085
      %1099 = vst.msk [vmem:[%s1089 + $0x48] sm:$0xff] %vm756, %v1086
      %1100 = vst [vmem:[%s1089 + $0x50] sm:$0x3] %v1087
      %1101 = vst.msk [vmem:[%s1089 + $0x58] sm:$0x3] %vm767, %v1088
      %v1102 = vld [vmem:[#allocation2 + $0x8] sm:$0xff]
      %v1103 = vld [vmem:[#allocation2 + $0x10] sm:$0xff]
      %v1104 = vld [vmem:[#allocation2 + $0x20] sm:$0xff]
      %v1105 = vld [vmem:[#allocation2 + $0x28] sm:$0xff]
      %v1106 = vld [vmem:[#allocation2 + $0x38] sm:$0xff]
      %v1107 = vld [vmem:[#allocation2 + $0x40] sm:$0xff]
      %v1108 = vld [vmem:[#allocation2 + $0x50] sm:$0xff]
      %v1109 = vld [vmem:[#allocation2 + $0x58] sm:$0xff]
      %v1110 = vld [vmem:[#allocation2 + $0x68] sm:$0xff]
      %v1111 = vld [vmem:[#allocation2 + $0x70] sm:$0xff]
      %v1112 = vld [vmem:[#allocation2 + $0x80] sm:$0x3]
      %v1113 = vld [vmem:[#allocation2 + $0x88] sm:$0x3]
      %v1114 = vld [vmem:[#allocation2 + $0x8] sm:$0xfe]
      %v1115 = vld [vmem:[#allocation2 + $0x10] sm:$0xfe]
      %v1116 = vld [vmem:[#allocation2 + $0x80] sm:$0x7]
      %v1117 = vld [vmem:[#allocation2 + $0x88] sm:$0x7]
      %v1118 = vld [vmem:[%s1] sm:$0xff]
      %v1119 = vld [vmem:[%s1 + $0x8] sm:$0xff]
      %v1120 = vld [vmem:[%s1 + $0x10] sm:$0xff]
      %v1121 = vld [vmem:[%s1 + $0x18] sm:$0xff]
      %v1122 = vld [vmem:[%s1 + $0x20] sm:$0xff]
      %v1123 = vld [vmem:[%s1 + $0x28] sm:$0xff]
      %v1124 = vld [vmem:[%s1 + $0x30] sm:$0xff]
      %v1125 = vld [vmem:[%s1 + $0x38] sm:$0xff]
      %v1126 = vld [vmem:[%s1 + $0x40] sm:$0xff]
      %v1127 = vld [vmem:[%s1 + $0x48] sm:$0xff]
      %v1128 = vld [vmem:[%s1 + $0x50] sm:$0xff]
      %v1129 = vld [vmem:[%s1 + $0x58] sm:$0xff]
      %v1130 = vld [vmem:[%s1 + $0x60] sm:$0xff]
      %v1131 = vld [vmem:[%s1 + $0x68] sm:$0xff]
      %v1132 = vld [vmem:[%s1 + $0x70] sm:$0xff]
      %v1133 = vld [vmem:[%s1 + $0x78] sm:$0xff]
      %v1134 = vld [vmem:[%s1 + $0x80] sm:$0xff]
      %v1135 = vld [vmem:[%s1 + $0x88] sm:$0xff]
      %v1136 = vld [vmem:[%s1 + $0x90] sm:$0xff]
      %v1137 = vld [vmem:[%s1 + $0x98] sm:$0xff]
      %v1138 = vld [vmem:[%s1 + $0xa0] sm:$0xff]
      %v1139 = vld [vmem:[%s1 + $0xa8] sm:$0xff]
      %v1140 = vld [vmem:[%s1 + $0xb0] sm:$0xff]
      %v1141 = vld [vmem:[%s1 + $0xb8] sm:$0xff]
      %v1142 = vld [vmem:[%s1 + $0xc0] sm:$0xff]
      %v1143 = vld [vmem:[%s1 + $0xc8] sm:$0xff]
      %v1144 = vld [vmem:[%s1 + $0xd0] sm:$0xff]
      %v1145 = vld [vmem:[%s1 + $0xd8] sm:$0xff]
      %v1146 = vld [vmem:[%s1 + $0xe0] sm:$0xff]
      %v1147 = vld [vmem:[%s1 + $0xe8] sm:$0xff]
      %v1148 = vld [vmem:[%s1 + $0xf0] sm:$0xff]
      %v1149 = vld [vmem:[%s1 + $0xf8] sm:$0xff]
      %v1150 = vld [vmem:[%s1 + $0x100] sm:$0xff]
      %v1151 = vld [vmem:[%s1 + $0x108] sm:$0xff]
      %v1152 = vld [vmem:[%s1 + $0x110] sm:$0xff]
      %v1153 = vld [vmem:[%s1 + $0x118] sm:$0xff]
      %v1154 = vld [vmem:[%s1 + $0x120] sm:$0xff]
      %v1155 = vld [vmem:[%s1 + $0x128] sm:$0xff]
      %v1156 = vld [vmem:[%s1 + $0x130] sm:$0xff]
      %v1157 = vld [vmem:[%s1 + $0x138] sm:$0xff]
      %v1158 = vld [vmem:[%s1 + $0x140] sm:$0xff]
      %v1159 = vld [vmem:[%s1 + $0x148] sm:$0xff]
      %v1160 = vld [vmem:[%s1 + $0x150] sm:$0xff]
      %v1161 = vld [vmem:[%s1 + $0x158] sm:$0xff]
      %v1162 = vld [vmem:[%s1 + $0x160] sm:$0xff]
      %v1163 = vld [vmem:[%s1 + $0x168] sm:$0xff]
      %v1164 = vld [vmem:[%s414] sm:$0xff]
      %v1165 = vld [vmem:[%s414 + $0x8] sm:$0xff]
      %v1166 = vld [vmem:[%s414 + $0x10] sm:$0xff]
      %v1167 = vld [vmem:[%s414 + $0x18] sm:$0xff]
      %v1168 = vld [vmem:[%s414 + $0x20] sm:$0xff]
      %v1169 = vld [vmem:[%s414 + $0x28] sm:$0xff]
      %v1170 = vld [vmem:[%s414 + $0x30] sm:$0xff]
      %v1171 = vld [vmem:[%s414 + $0x38] sm:$0xff]
      %v1172 = vld [vmem:[%s414 + $0x40] sm:$0xff]
      %v1173 = vld [vmem:[%s414 + $0x48] sm:$0xff]
      %v1174 = vld [vmem:[%s414 + $0x50] sm:$0xff]
      %v1175 = vld [vmem:[%s414 + $0x58] sm:$0xff]
      %v1176 = vld [vmem:[%s414 + $0x60] sm:$0xff]
      %v1177 = vld [vmem:[%s414 + $0x68] sm:$0xff]
      %v1178 = vld [vmem:[%s414 + $0x70] sm:$0xff]
      %v1179 = vld [vmem:[%s414 + $0x78] sm:$0xff]
      %v1180 = vld [vmem:[%s414 + $0x80] sm:$0xff]
      %v1181 = vld [vmem:[%s414 + $0x88] sm:$0xff]
      %v1182 = vld [vmem:[%s414 + $0x90] sm:$0xff]
      %v1183 = vld [vmem:[%s414 + $0x98] sm:$0xff]
      %v1184 = vld [vmem:[%s414 + $0xa0] sm:$0xff]
      %v1185 = vld [vmem:[%s414 + $0xa8] sm:$0xff]
      %v1186 = vld [vmem:[%s414 + $0xb0] sm:$0xff]
      %v1187 = vld [vmem:[%s414 + $0xb8] sm:$0xff]
      %v1188 = vld [vmem:[%s414 + $0xc0] sm:$0xff]
      %v1189 = vld [vmem:[%s414 + $0xc8] sm:$0xff]
      %v1190 = vld [vmem:[%s414 + $0xd0] sm:$0xff]
      %v1191 = vld [vmem:[%s414 + $0xd8] sm:$0xff]
      %v1192 = vld [vmem:[%s414 + $0xe0] sm:$0xff]
      %v1193 = vld [vmem:[%s414 + $0xe8] sm:$0xff]
      %v1194 = vld [vmem:[%s414 + $0xf0] sm:$0xff]
      %v1195 = vld [vmem:[%s414 + $0xf8] sm:$0xff]
      %v1196 = vld [vmem:[%s414 + $0x100] sm:$0xff]
      %v1197 = vld [vmem:[%s414 + $0x108] sm:$0xff]
      %v1198 = vld [vmem:[%s414 + $0x110] sm:$0xff]
      %v1199 = vld [vmem:[%s414 + $0x118] sm:$0xff]
      %v1200 = vld [vmem:[%s414 + $0x120] sm:$0xff]
      %v1201 = vld [vmem:[%s414 + $0x128] sm:$0xff]
      %v1202 = vld [vmem:[%s414 + $0x130] sm:$0xff]
      %v1203 = vld [vmem:[%s414 + $0x138] sm:$0xff]
      %v1204 = vld [vmem:[%s414 + $0x140] sm:$0xff]
      %v1205 = vld [vmem:[%s414 + $0x148] sm:$0xff]
      %v1206 = vld [vmem:[%s414 + $0x150] sm:$0xff]
      %v1207 = vld [vmem:[%s414 + $0x158] sm:$0xff]
      %v1208 = vld [vmem:[%s414 + $0x160] sm:$0xff]
      %v1209 = vld [vmem:[%s414 + $0x168] sm:$0xff]
      %v1222 = vrot.slane %v1114, 1
      %v1223 = vrot.slane %v1104, 1
      %v1224 = vsel %vm473, %v1222, %v1223
      %v1225 = vrot.slane %v1115, 1
      %v1226 = vrot.slane %v1105, 1
      %v1227 = vsel %vm473, %v1225, %v1226
      %v1228 = vrot.slane %v1106, 1
      %v1229 = vsel %vm473, %v1223, %v1228
      %v1230 = vrot.slane %v1107, 1
      %v1231 = vsel %vm473, %v1226, %v1230
      %v1232 = vrot.slane %v1108, 1
      %v1233 = vsel %vm473, %v1228, %v1232
      %v1234 = vrot.slane %v1109, 1
      %v1235 = vsel %vm473, %v1230, %v1234
      %v1236 = vrot.slane %v1110, 1
      %v1237 = vsel %vm473, %v1232, %v1236
      %v1238 = vrot.slane %v1111, 1
      %v1239 = vsel %vm473, %v1234, %v1238
      %v1240 = vrot.slane %v1116, 1
      %v1241 = vsel %vm473, %v1236, %v1240
      %v1242 = vrot.slane %v1117, 1
      %v1243 = vsel %vm473, %v1238, %v1242
      %1244 = vrot.lane.b32.xlu0 %v1224, 96
      %v1245 = vpop.permute.xlu0 %1244
      %1246 = vrot.lane.b32.xlu0 %v1227, 96
      %v1247 = vpop.permute.xlu0 %1246
      %1248 = vrot.lane.b32.xlu0 %v1229, 96
      %v1249 = vpop.permute.xlu0 %1248
      %1250 = vrot.lane.b32.xlu0 %v1231, 96
      %v1251 = vpop.permute.xlu0 %1250
      %1252 = vrot.lane.b32.xlu0 %v1233, 96
      %v1253 = vpop.permute.xlu0 %1252
      %1254 = vrot.lane.b32.xlu0 %v1235, 96
      %v1255 = vpop.permute.xlu0 %1254
      %1256 = vrot.lane.b32.xlu0 %v1237, 96
      %v1257 = vpop.permute.xlu0 %1256
      %1258 = vrot.lane.b32.xlu0 %v1239, 96
      %v1259 = vpop.permute.xlu0 %1258
      %1260 = vrot.lane.b32.xlu0 %v1241, 96
      %v1261 = vpop.permute.xlu0 %1260
      %1262 = vrot.lane.b32.xlu0 %v1243, 96
      %v1263 = vpop.permute.xlu0 %1262
      %1264 = vrot.lane.b32.xlu0 %v1240, 96
      %v1265 = vpop.permute.xlu0 %1264
      %1266 = vrot.lane.b32.xlu0 %v1242, 96
      %v1267 = vpop.permute.xlu0 %1266
      %vm1268 = vcmask 785408
      %v1269 = vsel %vm1268, %v1245, %v1247
      %v1270 = vsel %vm1268, %v1249, %v1251
      %v1271 = vsel %vm1268, %v1253, %v1255
      %v1272 = vsel %vm1268, %v1257, %v1259
      %v1273 = vsel %vm1268, %v1261, %v1263
      %v1274 = vsel %vm1268, %v1265, %v1267
      %v1281 = vsel %vm502, %v1247, 0
      %v1283 = vsel %vm502, %v1251, 0
      %v1285 = vsel %vm502, %v1255, 0
      %v1287 = vsel %vm502, %v1259, 0
      %v1289 = vsel %vm502, %v1263, 0
      %v1291 = vsel %vm502, %v1267, 0
      %1293 = vmatprep.subr.mxu0 %v1165
      %1294 = vmatpush1.msra.mxu0 %v1164
      %1295 = vmatprep.subr.mxu0 %v1167
      %1296 = vmatpush1.msra.mxu0 %v1166
      %1297 = vmatprep.subr.mxu0 %v1169
      %1298 = vmatpush1.msra.mxu0 %v1168
      %1299 = vmatprep.subr.mxu0 %v1171
      %1300 = vmatpush1.msra.mxu0 %v1170
      %1301 = vmatprep.subr.mxu0 %v1173
      %1302 = vmatpush1.msra.mxu0 %v1172
      %1303 = vmatprep.subr.mxu0 %v1175
      %1304 = vmatpush1.msra.mxu0 %v1174
      %1305 = vmatprep.subr.mxu0 %v1177
      %1306 = vmatpush1.msra.mxu0 %v1176
      %1307 = vmatprep.subr.mxu0 %v1179
      %1308 = vmatpush1.msra.mxu0 %v1178
      %1309 = vmatprep.subr.mxu0 %v1181
      %1310 = vmatpush1.msra.mxu0 %v1180
      %1311 = vmatprep.subr.mxu0 %v1183
      %1312 = vmatpush1.msra.mxu0 %v1182
      %1313 = vmatprep.subr.mxu0 %v1185
      %1314 = vmatpush1.msra.mxu0 %v1184
      %1315 = vmatprep.subr.mxu0 %v1187
      %1316 = vmatpush1.msra.mxu0 %v1186
      %1317 = vmatprep.subr.mxu0 %v1189
      %1318 = vmatpush1.msra.mxu0 %v1188
      %1319 = vmatprep.subr.mxu0 %v1191
      %1320 = vmatpush1.msra.mxu0 %v1190
      %1321 = vmatprep.subr.mxu0 %v1193
      %1322 = vmatpush1.msra.mxu0 %v1192
      %1323 = vmatprep.subr.mxu0 %v1195
      %1324 = vmatpush1.msra.mxu0 %v1194
      %1325 = vmatprep.subr.mxu0 %v1197
      %1326 = vmatpush1.msra.mxu0 %v1196
      %1327 = vmatprep.subr.mxu0 %v1199
      %1328 = vmatpush1.msra.mxu0 %v1198
      %1329 = vmatprep.subr.mxu0 %v1201
      %1330 = vmatpush1.msra.mxu0 %v1200
      %1331 = vmatprep.subr.mxu0 %v1203
      %1332 = vmatpush1.msra.mxu0 %v1202
      %1333 = vmatprep.subr.mxu0 %v1205
      %1334 = vmatpush1.msra.mxu0 %v1204
      %1335 = vmatprep.subr.mxu0 %v1207
      %1336 = vmatpush1.msra.mxu0 %v1206
      %1337 = vmatprep.subr.mxu0 %v1209
      %1338 = vmatpush1.msra.mxu0 %v1208
      %1339 = vmatprep.subr.mxu0 0.0
      %1340 = vmatpush1.msra.mxu0 0.0
      %1341 = vmatprep.subr.mxu0 0.0
      %1342 = vmatpush1.msra.mxu0 0.0
      %1343 = vmatprep.subr.mxu0 0.0
      %1344 = vmatpush1.msra.mxu0 0.0
      %1345 = vmatprep.subr.mxu0 0.0
      %1346 = vmatpush1.msra.mxu0 0.0
      %1347 = vmatprep.subr.mxu0 0.0
      %1348 = vmatpush1.msra.mxu0 0.0
      %1349 = vmatprep.subr.mxu0 0.0
      %1350 = vmatpush1.msra.mxu0 0.0
      %1351 = vmatprep.subr.mxu0 0.0
      %1352 = vmatpush1.msra.mxu0 0.0
      %1353 = vmatprep.subr.mxu0 0.0
      %1354 = vmatpush1.msra.mxu0 0.0
      %1355 = vmatprep.subr.mxu0 0.0
      %1356 = vmatpush1.msra.mxu0 0.0
      %1357 = vmatprep.mubr.f32.mxu0 %v1281
      %1358 = vmatmul.mubr.f32.gmra.mrb[0].mxu0 %v1269
      %v1359 = vpop.f32.mrb[0].mxu0
      %v1360 = vadd.f32 0.0, %v1359
      %v1361 = vpop.f32.mrb[0].mxu0
      %v1362 = vadd.f32 0.0, %v1361
      %1363 = vmatprep.mubr.f32.mxu0 %v1283
      %1364 = vmatmul.mubr.f32.gmra.mrb[0].mxu0 %v1270
      %v1365 = vpop.f32.mrb[0].mxu0
      %v1366 = vadd.f32 0.0, %v1365
      %v1367 = vpop.f32.mrb[0].mxu0
      %v1368 = vadd.f32 0.0, %v1367
      %1369 = vmatprep.mubr.f32.mxu0 %v1285
      %1370 = vmatmul.mubr.f32.gmra.mrb[0].mxu0 %v1271
      %v1371 = vpop.f32.mrb[0].mxu0
      %v1372 = vadd.f32 0.0, %v1371
      %v1373 = vpop.f32.mrb[0].mxu0
      %v1374 = vadd.f32 0.0, %v1373
      %1375 = vmatprep.mubr.f32.mxu0 %v1287
      %1376 = vmatmul.mubr.f32.gmra.mrb[0].mxu0 %v1272
      %v1377 = vpop.f32.mrb[0].mxu0
      %v1378 = vadd.f32 0.0, %v1377
      %v1379 = vpop.f32.mrb[0].mxu0
      %v1380 = vadd.f32 0.0, %v1379
      %1381 = vmatprep.mubr.f32.mxu0 %v1289
      %1382 = vmatmul.mubr.f32.gmra.mrb[0].mxu0 %v1273
      %v1383 = vpop.f32.mrb[0].mxu0
      %v1384 = vadd.f32 0.0, %v1383
      %v1385 = vpop.f32.mrb[0].mxu0
      %v1386 = vadd.f32 0.0, %v1385
      %1387 = vmatprep.mubr.f32.mxu0 %v1291
      %1388 = vmatmul.mubr.f32.gmra.mrb[0].mxu0 %v1274
      %v1389 = vpop.f32.mrb[0].mxu0
      %v1390 = vadd.f32 0.0, %v1389
      %v1391 = vpop.f32.mrb[0].mxu0
      %v1392 = vadd.f32 0.0, %v1391
      %1393 = vdwg.mxu0
      %1398 = vrot.lane.b32.xlu0 %v1102, 96
      %v1399 = vpop.permute.xlu0 %1398
      %1400 = vrot.lane.b32.xlu0 %v1103, 96
      %v1401 = vpop.permute.xlu0 %1400
      %1402 = vrot.lane.b32.xlu0 %v1104, 96
      %v1403 = vpop.permute.xlu0 %1402
      %1404 = vrot.lane.b32.xlu0 %v1105, 96
      %v1405 = vpop.permute.xlu0 %1404
      %1406 = vrot.lane.b32.xlu0 %v1106, 96
      %v1407 = vpop.permute.xlu0 %1406
      %1408 = vrot.lane.b32.xlu0 %v1107, 96
      %v1409 = vpop.permute.xlu0 %1408
      %1410 = vrot.lane.b32.xlu0 %v1108, 96
      %v1411 = vpop.permute.xlu0 %1410
      %1412 = vrot.lane.b32.xlu0 %v1109, 96
      %v1413 = vpop.permute.xlu0 %1412
      %1414 = vrot.lane.b32.xlu0 %v1110, 96
      %v1415 = vpop.permute.xlu0 %1414
      %1416 = vrot.lane.b32.xlu0 %v1111, 96
      %v1417 = vpop.permute.xlu0 %1416
      %1418 = vrot.lane.b32.xlu0 %v1112, 96
      %v1419 = vpop.permute.xlu0 %1418
      %1420 = vrot.lane.b32.xlu0 %v1113, 96
      %v1421 = vpop.permute.xlu0 %1420
      %v1422 = vsel %vm1268, %v1399, %v1401
      %v1423 = vsel %vm1268, %v1403, %v1405
      %v1424 = vsel %vm1268, %v1407, %v1409
      %v1425 = vsel %vm1268, %v1411, %v1413
      %v1426 = vsel %vm1268, %v1415, %v1417
      %v1427 = vsel %vm1268, %v1419, %v1421
      %v1434 = vsel %vm502, %v1401, 0
      %v1436 = vsel %vm502, %v1405, 0
      %v1438 = vsel %vm502, %v1409, 0
      %v1440 = vsel %vm502, %v1413, 0
      %v1442 = vsel %vm502, %v1417, 0
      %v1444 = vsel %vm502, %v1421, 0
      %1446 = vmatprep.subr.mxu0 %v1119
      %1447 = vmatpush1.msra.mxu0 %v1118
      %1448 = vmatprep.subr.mxu0 %v1121
      %1449 = vmatpush1.msra.mxu0 %v1120
      %1450 = vmatprep.subr.mxu0 %v1123
      %1451 = vmatpush1.msra.mxu0 %v1122
      %1452 = vmatprep.subr.mxu0 %v1125
      %1453 = vmatpush1.msra.mxu0 %v1124
      %1454 = vmatprep.subr.mxu0 %v1127
      %1455 = vmatpush1.msra.mxu0 %v1126
      %1456 = vmatprep.subr.mxu0 %v1129
      %1457 = vmatpush1.msra.mxu0 %v1128
      %1458 = vmatprep.subr.mxu0 %v1131
      %1459 = vmatpush1.msra.mxu0 %v1130
      %1460 = vmatprep.subr.mxu0 %v1133
      %1461 = vmatpush1.msra.mxu0 %v1132
      %1462 = vmatprep.subr.mxu0 %v1135
      %1463 = vmatpush1.msra.mxu0 %v1134
      %1464 = vmatprep.subr.mxu0 %v1137
      %1465 = vmatpush1.msra.mxu0 %v1136
      %1466 = vmatprep.subr.mxu0 %v1139
      %1467 = vmatpush1.msra.mxu0 %v1138
      %1468 = vmatprep.subr.mxu0 %v1141
      %1469 = vmatpush1.msra.mxu0 %v1140
      %1470 = vmatprep.subr.mxu0 %v1143
      %1471 = vmatpush1.msra.mxu0 %v1142
      %1472 = vmatprep.subr.mxu0 %v1145
      %1473 = vmatpush1.msra.mxu0 %v1144
      %1474 = vmatprep.subr.mxu0 %v1147
      %1475 = vmatpush1.msra.mxu0 %v1146
      %1476 = vmatprep.subr.mxu0 %v1149
      %1477 = vmatpush1.msra.mxu0 %v1148
      %1478 = vmatprep.subr.mxu0 %v1151
      %1479 = vmatpush1.msra.mxu0 %v1150
      %1480 = vmatprep.subr.mxu0 %v1153
      %1481 = vmatpush1.msra.mxu0 %v1152
      %1482 = vmatprep.subr.mxu0 %v1155
      %1483 = vmatpush1.msra.mxu0 %v1154
      %1484 = vmatprep.subr.mxu0 %v1157
      %1485 = vmatpush1.msra.mxu0 %v1156
      %1486 = vmatprep.subr.mxu0 %v1159
      %1487 = vmatpush1.msra.mxu0 %v1158
      %1488 = vmatprep.subr.mxu0 %v1161
      %1489 = vmatpush1.msra.mxu0 %v1160
      %1490 = vmatprep.subr.mxu0 %v1163
      %1491 = vmatpush1.msra.mxu0 %v1162
      %1492 = vmatprep.subr.mxu0 0.0
      %1493 = vmatpush1.msra.mxu0 0.0
      %1494 = vmatprep.subr.mxu0 0.0
      %1495 = vmatpush1.msra.mxu0 0.0
      %1496 = vmatprep.subr.mxu0 0.0
      %1497 = vmatpush1.msra.mxu0 0.0
      %1498 = vmatprep.subr.mxu0 0.0
      %1499 = vmatpush1.msra.mxu0 0.0
      %1500 = vmatprep.subr.mxu0 0.0
      %1501 = vmatpush1.msra.mxu0 0.0
      %1502 = vmatprep.subr.mxu0 0.0
      %1503 = vmatpush1.msra.mxu0 0.0
      %1504 = vmatprep.subr.mxu0 0.0
      %1505 = vmatpush1.msra.mxu0 0.0
      %1506 = vmatprep.subr.mxu0 0.0
      %1507 = vmatpush1.msra.mxu0 0.0
      %1508 = vmatprep.subr.mxu0 0.0
      %1509 = vmatpush1.msra.mxu0 0.0
      %1510 = vmatprep.mubr.f32.mxu0 %v1434
      %1511 = vmatmul.mubr.f32.gmra.mrb[0].mxu0 %v1422
      %v1512 = vpop.f32.mrb[0].mxu0
      %v1513 = vadd.f32 %v1360, %v1512
      %v1514 = vpop.f32.mrb[0].mxu0
      %v1515 = vadd.f32 %v1362, %v1514
      %1516 = vmatprep.mubr.f32.mxu0 %v1436
      %1517 = vmatmul.mubr.f32.gmra.mrb[0].mxu0 %v1423
      %v1518 = vpop.f32.mrb[0].mxu0
      %v1519 = vadd.f32 %v1366, %v1518
      %v1520 = vpop.f32.mrb[0].mxu0
      %v1521 = vadd.f32 %v1368, %v1520
      %1522 = vmatprep.mubr.f32.mxu0 %v1438
      %1523 = vmatmul.mubr.f32.gmra.mrb[0].mxu0 %v1424
      %v1524 = vpop.f32.mrb[0].mxu0
      %v1525 = vadd.f32 %v1372, %v1524
      %v1526 = vpop.f32.mrb[0].mxu0
      %v1527 = vadd.f32 %v1374, %v1526
      %1528 = vmatprep.mubr.f32.mxu0 %v1440
      %1529 = vmatmul.mubr.f32.gmra.mrb[0].mxu0 %v1425
      %v1530 = vpop.f32.mrb[0].mxu0
      %v1531 = vadd.f32 %v1378, %v1530
      %v1532 = vpop.f32.mrb[0].mxu0
      %v1533 = vadd.f32 %v1380, %v1532
      %1534 = vmatprep.mubr.f32.mxu0 %v1442
      %1535 = vmatmul.mubr.f32.gmra.mrb[0].mxu0 %v1426
      %v1536 = vpop.f32.mrb[0].mxu0
      %v1537 = vadd.f32 %v1384, %v1536
      %v1538 = vpop.f32.mrb[0].mxu0
      %v1539 = vadd.f32 %v1386, %v1538
      %1540 = vmatprep.mubr.f32.mxu0 %v1444
      %1541 = vmatmul.mubr.f32.gmra.mrb[0].mxu0 %v1427
      %v1542 = vpop.f32.mrb[0].mxu0
      %v1543 = vadd.f32 %v1390, %v1542
      %v1544 = vpop.f32.mrb[0].mxu0
      %v1545 = vadd.f32 %v1392, %v1544
      %1546 = vdwg.mxu0
      %v1547 = vld [vmem:[%s2] sm:$0x3]
      %v1549 = vlaneseq
      %v1550 = vshrl.u32 %v1549, 7
      %v1551 = vsub.s32 0, %v1550
      %v1552 = vrot.slane %v1547, %v1551
      %v1553 = vlaneseq
      %v1554 = vshrl.u32 %v1553, 7
      %v1555 = vsub.s32 1, %v1554
      %v1556 = vrot.slane %v1547, %v1555
      %v1559 = vadd.f32 %v1513, %v1552
      %v1560 = vadd.f32 %v1515, %v1556
      %v1561 = vadd.f32 %v1519, %v1552
      %v1562 = vadd.f32 %v1521, %v1556
      %v1563 = vadd.f32 %v1525, %v1552
      %v1564 = vadd.f32 %v1527, %v1556
      %v1565 = vadd.f32 %v1531, %v1552
      %v1566 = vadd.f32 %v1533, %v1556
      %v1567 = vadd.f32 %v1537, %v1552
      %v1568 = vadd.f32 %v1539, %v1556
      %v1569 = vadd.f32 %v1543, %v1552
      %v1570 = vadd.f32 %v1545, %v1556
      %1583 = vrot.lane.b32.xlu0 %v1559, 120
      %v1584 = vpop.permute.xlu0 %1583
      %1585 = vrot.lane.b32.xlu0 %v1560, 120
      %v1586 = vpop.permute.xlu0 %1585
      %1587 = vrot.lane.b32.xlu0 %v1561, 120
      %v1588 = vpop.permute.xlu0 %1587
      %1589 = vrot.lane.b32.xlu0 %v1562, 120
      %v1590 = vpop.permute.xlu0 %1589
      %1591 = vrot.lane.b32.xlu0 %v1563, 120
      %v1592 = vpop.permute.xlu0 %1591
      %1593 = vrot.lane.b32.xlu0 %v1564, 120
      %v1594 = vpop.permute.xlu0 %1593
      %1595 = vrot.lane.b32.xlu0 %v1565, 120
      %v1596 = vpop.permute.xlu0 %1595
      %1597 = vrot.lane.b32.xlu0 %v1566, 120
      %v1598 = vpop.permute.xlu0 %1597
      %1599 = vrot.lane.b32.xlu0 %v1567, 120
      %v1600 = vpop.permute.xlu0 %1599
      %1601 = vrot.lane.b32.xlu0 %v1568, 120
      %v1602 = vpop.permute.xlu0 %1601
      %1603 = vrot.lane.b32.xlu0 %v1569, 120
      %v1604 = vpop.permute.xlu0 %1603
      %1605 = vrot.lane.b32.xlu0 %v1570, 120
      %v1606 = vpop.permute.xlu0 %1605
      %vm1607 = vcmask 982016
      %v1608 = vsel %vm1607, %v1584, %v1586
      %v1609 = vsel %vm1607, %v1588, %v1590
      %v1610 = vsel %vm1607, %v1592, %v1594
      %v1611 = vsel %vm1607, %v1596, %v1598
      %v1612 = vsel %vm1607, %v1600, %v1602
      %v1613 = vsel %vm1607, %v1604, %v1606
      %vm1626 = vcmask 1048512
      %1627 = vst.msk [vmem:[%s170] sm:$0xff] %vm1626, %v1584
      %vm1628 = vcmask 1014784
      %1629 = vst.msk [vmem:[%s170 + $0x8] sm:$0xff] %vm1628, %v1608
      %1630 = vst.msk [vmem:[%s170 + $0x10] sm:$0xff] %vm1626, %v1588
      %1631 = vst.msk [vmem:[%s170 + $0x18] sm:$0xff] %vm1628, %v1609
      %1632 = vst.msk [vmem:[%s170 + $0x20] sm:$0xff] %vm1626, %v1592
      %1633 = vst.msk [vmem:[%s170 + $0x28] sm:$0xff] %vm1628, %v1610
      %1634 = vst.msk [vmem:[%s170 + $0x30] sm:$0xff] %vm1626, %v1596
      %1635 = vst.msk [vmem:[%s170 + $0x38] sm:$0xff] %vm1628, %v1611
      %1636 = vst.msk [vmem:[%s170 + $0x40] sm:$0xff] %vm1626, %v1600
      %1637 = vst.msk [vmem:[%s170 + $0x48] sm:$0xff] %vm1628, %v1612
      %vm1638 = vcmask 1042368
      %1639 = vst.msk [vmem:[%s170 + $0x50] sm:$0x3] %vm1638, %v1604
      %vm1640 = vcmask 1008640
      %1641 = vst.msk [vmem:[%s170 + $0x58] sm:$0x3] %vm1640, %v1613
      %v1642 = vld [vmem:[%s769] sm:$0xff]
      %v1643 = vld [vmem:[%s769 + $0x8] sm:$0xff]
      %v1644 = vld [vmem:[%s769 + $0x10] sm:$0xff]
      %v1645 = vld [vmem:[%s769 + $0x18] sm:$0xff]
      %v1646 = vld [vmem:[%s769 + $0x20] sm:$0xff]
      %v1647 = vld [vmem:[%s769 + $0x28] sm:$0xff]
      %v1648 = vld [vmem:[%s769 + $0x30] sm:$0xff]
      %v1649 = vld [vmem:[%s769 + $0x38] sm:$0xff]
      %v1650 = vld [vmem:[%s769 + $0x40] sm:$0xff]
      %v1651 = vld [vmem:[%s769 + $0x48] sm:$0xff]
      %v1652 = vld [vmem:[%s769 + $0x50] sm:$0xff]
      %v1653 = vld [vmem:[%s769 + $0x58] sm:$0xff]
      %v1654 = vld [vmem:[%s769 + $0x60] sm:$0xff]
      %v1655 = vld [vmem:[%s769 + $0x68] sm:$0xff]
      %v1656 = vld [vmem:[%s769 + $0x70] sm:$0xff]
      %v1657 = vld [vmem:[%s769 + $0x78] sm:$0xff]
      %v1658 = vld [vmem:[%s769 + $0x80] sm:$0xff]
      %v1659 = vld [vmem:[%s769 + $0x88] sm:$0xff]
      %v1660 = vld [vmem:[%s769 + $0x90] sm:$0xff]
      %v1661 = vld [vmem:[%s769 + $0x98] sm:$0xff]
      %v1662 = vld [vmem:[%s769 + $0xa0] sm:$0xff]
      %v1663 = vld [vmem:[%s769 + $0xa8] sm:$0xff]
      %v1664 = vld [vmem:[%s769 + $0xb0] sm:$0xff]
      %v1665 = vld [vmem:[%s769 + $0xb8] sm:$0xff]
      %v1666 = vld [vmem:[%s769 + $0xc0] sm:$0xff]
      %v1667 = vld [vmem:[%s769 + $0xc8] sm:$0xff]
      %v1668 = vld [vmem:[%s769 + $0xd0] sm:$0xff]
      %v1669 = vld [vmem:[%s769 + $0xd8] sm:$0xff]
      %v1670 = vld [vmem:[%s769 + $0xe0] sm:$0xff]
      %v1671 = vld [vmem:[%s769 + $0xe8] sm:$0xff]
      %v1672 = vld [vmem:[%s769 + $0xf0] sm:$0xff]
      %v1673 = vld [vmem:[%s769 + $0xf8] sm:$0xff]
      %v1674 = vld [vmem:[%s769 + $0x100] sm:$0xff]
      %v1675 = vld [vmem:[%s769 + $0x108] sm:$0xff]
      %v1676 = vld [vmem:[%s769 + $0x110] sm:$0xff]
      %v1677 = vld [vmem:[%s769 + $0x118] sm:$0xff]
      %v1678 = vld [vmem:[%s769 + $0x120] sm:$0xff]
      %v1679 = vld [vmem:[%s769 + $0x128] sm:$0xff]
      %v1680 = vld [vmem:[%s769 + $0x130] sm:$0xff]
      %v1681 = vld [vmem:[%s769 + $0x138] sm:$0xff]
      %v1682 = vld [vmem:[%s769 + $0x140] sm:$0xff]
      %v1683 = vld [vmem:[%s769 + $0x148] sm:$0xff]
      %v1684 = vld [vmem:[%s769 + $0x150] sm:$0xff]
      %v1685 = vld [vmem:[%s769 + $0x158] sm:$0xff]
      %v1686 = vld [vmem:[%s769 + $0x160] sm:$0xff]
      %v1687 = vld [vmem:[%s769 + $0x168] sm:$0xff]
      %v1688 = vld [vmem:[%s816] sm:$0xff]
      %v1689 = vld [vmem:[%s816 + $0x8] sm:$0xff]
      %v1690 = vld [vmem:[%s816 + $0x10] sm:$0xff]
      %v1691 = vld [vmem:[%s816 + $0x18] sm:$0xff]
      %v1692 = vld [vmem:[%s816 + $0x20] sm:$0xff]
      %v1693 = vld [vmem:[%s816 + $0x28] sm:$0xff]
      %v1694 = vld [vmem:[%s816 + $0x30] sm:$0xff]
      %v1695 = vld [vmem:[%s816 + $0x38] sm:$0xff]
      %v1696 = vld [vmem:[%s816 + $0x40] sm:$0xff]
      %v1697 = vld [vmem:[%s816 + $0x48] sm:$0xff]
      %v1698 = vld [vmem:[%s816 + $0x50] sm:$0xff]
      %v1699 = vld [vmem:[%s816 + $0x58] sm:$0xff]
      %v1700 = vld [vmem:[%s816 + $0x60] sm:$0xff]
      %v1701 = vld [vmem:[%s816 + $0x68] sm:$0xff]
      %v1702 = vld [vmem:[%s816 + $0x70] sm:$0xff]
      %v1703 = vld [vmem:[%s816 + $0x78] sm:$0xff]
      %v1704 = vld [vmem:[%s816 + $0x80] sm:$0xff]
      %v1705 = vld [vmem:[%s816 + $0x88] sm:$0xff]
      %v1706 = vld [vmem:[%s816 + $0x90] sm:$0xff]
      %v1707 = vld [vmem:[%s816 + $0x98] sm:$0xff]
      %v1708 = vld [vmem:[%s816 + $0xa0] sm:$0xff]
      %v1709 = vld [vmem:[%s816 + $0xa8] sm:$0xff]
      %v1710 = vld [vmem:[%s816 + $0xb0] sm:$0xff]
      %v1711 = vld [vmem:[%s816 + $0xb8] sm:$0xff]
      %v1712 = vld [vmem:[%s816 + $0xc0] sm:$0xff]
      %v1713 = vld [vmem:[%s816 + $0xc8] sm:$0xff]
      %v1714 = vld [vmem:[%s816 + $0xd0] sm:$0xff]
      %v1715 = vld [vmem:[%s816 + $0xd8] sm:$0xff]
      %v1716 = vld [vmem:[%s816 + $0xe0] sm:$0xff]
      %v1717 = vld [vmem:[%s816 + $0xe8] sm:$0xff]
      %v1718 = vld [vmem:[%s816 + $0xf0] sm:$0xff]
      %v1719 = vld [vmem:[%s816 + $0xf8] sm:$0xff]
      %v1720 = vld [vmem:[%s816 + $0x100] sm:$0xff]
      %v1721 = vld [vmem:[%s816 + $0x108] sm:$0xff]
      %v1722 = vld [vmem:[%s816 + $0x110] sm:$0xff]
      %v1723 = vld [vmem:[%s816 + $0x118] sm:$0xff]
      %v1724 = vld [vmem:[%s816 + $0x120] sm:$0xff]
      %v1725 = vld [vmem:[%s816 + $0x128] sm:$0xff]
      %v1726 = vld [vmem:[%s816 + $0x130] sm:$0xff]
      %v1727 = vld [vmem:[%s816 + $0x138] sm:$0xff]
      %v1728 = vld [vmem:[%s816 + $0x140] sm:$0xff]
      %v1729 = vld [vmem:[%s816 + $0x148] sm:$0xff]
      %v1730 = vld [vmem:[%s816 + $0x150] sm:$0xff]
      %v1731 = vld [vmem:[%s816 + $0x158] sm:$0xff]
      %v1732 = vld [vmem:[%s816 + $0x160] sm:$0xff]
      %v1733 = vld [vmem:[%s816 + $0x168] sm:$0xff]
      %1734 = vmatprep.subr.mxu0 %v1689
      %1735 = vmatpush1.msra.mxu0 %v1688
      %1736 = vmatprep.subr.mxu0 %v1691
      %1737 = vmatpush1.msra.mxu0 %v1690
      %1738 = vmatprep.subr.mxu0 %v1693
      %1739 = vmatpush1.msra.mxu0 %v1692
      %1740 = vmatprep.subr.mxu0 %v1695
      %1741 = vmatpush1.msra.mxu0 %v1694
      %1742 = vmatprep.subr.mxu0 %v1697
      %1743 = vmatpush1.msra.mxu0 %v1696
      %1744 = vmatprep.subr.mxu0 %v1699
      %1745 = vmatpush1.msra.mxu0 %v1698
      %1746 = vmatprep.subr.mxu0 %v1701
      %1747 = vmatpush1.msra.mxu0 %v1700
      %1748 = vmatprep.subr.mxu0 %v1703
      %1749 = vmatpush1.msra.mxu0 %v1702
      %1750 = vmatprep.subr.mxu0 %v1705
      %1751 = vmatpush1.msra.mxu0 %v1704
      %1752 = vmatprep.subr.mxu0 %v1707
      %1753 = vmatpush1.msra.mxu0 %v1706
      %1754 = vmatprep.subr.mxu0 %v1709
      %1755 = vmatpush1.msra.mxu0 %v1708
      %1756 = vmatprep.subr.mxu0 %v1711
      %1757 = vmatpush1.msra.mxu0 %v1710
      %1758 = vmatprep.subr.mxu0 %v1713
      %1759 = vmatpush1.msra.mxu0 %v1712
      %1760 = vmatprep.subr.mxu0 %v1715
      %1761 = vmatpush1.msra.mxu0 %v1714
      %1762 = vmatprep.subr.mxu0 %v1717
      %1763 = vmatpush1.msra.mxu0 %v1716
      %1764 = vmatprep.subr.mxu0 %v1719
      %1765 = vmatpush1.msra.mxu0 %v1718
      %1766 = vmatprep.subr.mxu0 %v1721
      %1767 = vmatpush1.msra.mxu0 %v1720
      %1768 = vmatprep.subr.mxu0 %v1723
      %1769 = vmatpush1.msra.mxu0 %v1722
      %1770 = vmatprep.subr.mxu0 %v1725
      %1771 = vmatpush1.msra.mxu0 %v1724
      %1772 = vmatprep.subr.mxu0 %v1727
      %1773 = vmatpush1.msra.mxu0 %v1726
      %1774 = vmatprep.subr.mxu0 %v1729
      %1775 = vmatpush1.msra.mxu0 %v1728
      %1776 = vmatprep.subr.mxu0 %v1731
      %1777 = vmatpush1.msra.mxu0 %v1730
      %1778 = vmatprep.subr.mxu0 %v1733
      %1779 = vmatpush1.msra.mxu0 %v1732
      %1780 = vmatprep.subr.mxu0 0.0
      %1781 = vmatpush1.msra.mxu0 0.0
      %1782 = vmatprep.subr.mxu0 0.0
      %1783 = vmatpush1.msra.mxu0 0.0
      %1784 = vmatprep.subr.mxu0 0.0
      %1785 = vmatpush1.msra.mxu0 0.0
      %1786 = vmatprep.subr.mxu0 0.0
      %1787 = vmatpush1.msra.mxu0 0.0
      %1788 = vmatprep.subr.mxu0 0.0
      %1789 = vmatpush1.msra.mxu0 0.0
      %1790 = vmatprep.subr.mxu0 0.0
      %1791 = vmatpush1.msra.mxu0 0.0
      %1792 = vmatprep.subr.mxu0 0.0
      %1793 = vmatpush1.msra.mxu0 0.0
      %1794 = vmatprep.subr.mxu0 0.0
      %1795 = vmatpush1.msra.mxu0 0.0
      %1796 = vmatprep.subr.mxu0 0.0
      %1797 = vmatpush1.msra.mxu0 0.0
      %1798 = vmatprep.mubr.f32.mxu0 %v1281
      %1799 = vmatmul.mubr.f32.gmra.mrb[0].mxu0 %v1269
      %v1800 = vpop.f32.mrb[0].mxu0
      %v1801 = vadd.f32 0.0, %v1800
      %v1802 = vpop.f32.mrb[0].mxu0
      %v1803 = vadd.f32 0.0, %v1802
      %1804 = vmatprep.mubr.f32.mxu0 %v1283
      %1805 = vmatmul.mubr.f32.gmra.mrb[0].mxu0 %v1270
      %v1806 = vpop.f32.mrb[0].mxu0
      %v1807 = vadd.f32 0.0, %v1806
      %v1808 = vpop.f32.mrb[0].mxu0
      %v1809 = vadd.f32 0.0, %v1808
      %1810 = vmatprep.mubr.f32.mxu0 %v1285
      %1811 = vmatmul.mubr.f32.gmra.mrb[0].mxu0 %v1271
      %v1812 = vpop.f32.mrb[0].mxu0
      %v1813 = vadd.f32 0.0, %v1812
      %v1814 = vpop.f32.mrb[0].mxu0
      %v1815 = vadd.f32 0.0, %v1814
      %1816 = vmatprep.mubr.f32.mxu0 %v1287
      %1817 = vmatmul.mubr.f32.gmra.mrb[0].mxu0 %v1272
      %v1818 = vpop.f32.mrb[0].mxu0
      %v1819 = vadd.f32 0.0, %v1818
      %v1820 = vpop.f32.mrb[0].mxu0
      %v1821 = vadd.f32 0.0, %v1820
      %1822 = vmatprep.mubr.f32.mxu0 %v1289
      %1823 = vmatmul.mubr.f32.gmra.mrb[0].mxu0 %v1273
      %v1824 = vpop.f32.mrb[0].mxu0
      %v1825 = vadd.f32 0.0, %v1824
      %v1826 = vpop.f32.mrb[0].mxu0
      %v1827 = vadd.f32 0.0, %v1826
      %1828 = vmatprep.mubr.f32.mxu0 %v1291
      %1829 = vmatmul.mubr.f32.gmra.mrb[0].mxu0 %v1274
      %v1830 = vpop.f32.mrb[0].mxu0
      %v1831 = vadd.f32 0.0, %v1830
      %v1832 = vpop.f32.mrb[0].mxu0
      %v1833 = vadd.f32 0.0, %v1832
      %1834 = vdwg.mxu0
      %1835 = vmatprep.subr.mxu0 %v1643
      %1836 = vmatpush1.msra.mxu0 %v1642
      %1837 = vmatprep.subr.mxu0 %v1645
      %1838 = vmatpush1.msra.mxu0 %v1644
      %1839 = vmatprep.subr.mxu0 %v1647
      %1840 = vmatpush1.msra.mxu0 %v1646
      %1841 = vmatprep.subr.mxu0 %v1649
      %1842 = vmatpush1.msra.mxu0 %v1648
      %1843 = vmatprep.subr.mxu0 %v1651
      %1844 = vmatpush1.msra.mxu0 %v1650
      %1845 = vmatprep.subr.mxu0 %v1653
      %1846 = vmatpush1.msra.mxu0 %v1652
      %1847 = vmatprep.subr.mxu0 %v1655
      %1848 = vmatpush1.msra.mxu0 %v1654
      %1849 = vmatprep.subr.mxu0 %v1657
      %1850 = vmatpush1.msra.mxu0 %v1656
      %1851 = vmatprep.subr.mxu0 %v1659
      %1852 = vmatpush1.msra.mxu0 %v1658
      %1853 = vmatprep.subr.mxu0 %v1661
      %1854 = vmatpush1.msra.mxu0 %v1660
      %1855 = vmatprep.subr.mxu0 %v1663
      %1856 = vmatpush1.msra.mxu0 %v1662
      %1857 = vmatprep.subr.mxu0 %v1665
      %1858 = vmatpush1.msra.mxu0 %v1664
      %1859 = vmatprep.subr.mxu0 %v1667
      %1860 = vmatpush1.msra.mxu0 %v1666
      %1861 = vmatprep.subr.mxu0 %v1669
      %1862 = vmatpush1.msra.mxu0 %v1668
      %1863 = vmatprep.subr.mxu0 %v1671
      %1864 = vmatpush1.msra.mxu0 %v1670
      %1865 = vmatprep.subr.mxu0 %v1673
      %1866 = vmatpush1.msra.mxu0 %v1672
      %1867 = vmatprep.subr.mxu0 %v1675
      %1868 = vmatpush1.msra.mxu0 %v1674
      %1869 = vmatprep.subr.mxu0 %v1677
      %1870 = vmatpush1.msra.mxu0 %v1676
      %1871 = vmatprep.subr.mxu0 %v1679
      %1872 = vmatpush1.msra.mxu0 %v1678
      %1873 = vmatprep.subr.mxu0 %v1681
      %1874 = vmatpush1.msra.mxu0 %v1680
      %1875 = vmatprep.subr.mxu0 %v1683
      %1876 = vmatpush1.msra.mxu0 %v1682
      %1877 = vmatprep.subr.mxu0 %v1685
      %1878 = vmatpush1.msra.mxu0 %v1684
      %1879 = vmatprep.subr.mxu0 %v1687
      %1880 = vmatpush1.msra.mxu0 %v1686
      %1881 = vmatprep.subr.mxu0 0.0
      %1882 = vmatpush1.msra.mxu0 0.0
      %1883 = vmatprep.subr.mxu0 0.0
      %1884 = vmatpush1.msra.mxu0 0.0
      %1885 = vmatprep.subr.mxu0 0.0
      %1886 = vmatpush1.msra.mxu0 0.0
      %1887 = vmatprep.subr.mxu0 0.0
      %1888 = vmatpush1.msra.mxu0 0.0
      %1889 = vmatprep.subr.mxu0 0.0
      %1890 = vmatpush1.msra.mxu0 0.0
      %1891 = vmatprep.subr.mxu0 0.0
      %1892 = vmatpush1.msra.mxu0 0.0
      %1893 = vmatprep.subr.mxu0 0.0
      %1894 = vmatpush1.msra.mxu0 0.0
      %1895 = vmatprep.subr.mxu0 0.0
      %1896 = vmatpush1.msra.mxu0 0.0
      %1897 = vmatprep.subr.mxu0 0.0
      %1898 = vmatpush1.msra.mxu0 0.0
      %1899 = vmatprep.mubr.f32.mxu0 %v1434
      %1900 = vmatmul.mubr.f32.gmra.mrb[0].mxu0 %v1422
      %v1901 = vpop.f32.mrb[0].mxu0
      %v1902 = vadd.f32 %v1801, %v1901
      %v1903 = vpop.f32.mrb[0].mxu0
      %v1904 = vadd.f32 %v1803, %v1903
      %1905 = vmatprep.mubr.f32.mxu0 %v1436
      %1906 = vmatmul.mubr.f32.gmra.mrb[0].mxu0 %v1423
      %v1907 = vpop.f32.mrb[0].mxu0
      %v1908 = vadd.f32 %v1807, %v1907
      %v1909 = vpop.f32.mrb[0].mxu0
      %v1910 = vadd.f32 %v1809, %v1909
      %1911 = vmatprep.mubr.f32.mxu0 %v1438
      %1912 = vmatmul.mubr.f32.gmra.mrb[0].mxu0 %v1424
      %v1913 = vpop.f32.mrb[0].mxu0
      %v1914 = vadd.f32 %v1813, %v1913
      %v1915 = vpop.f32.mrb[0].mxu0
      %v1916 = vadd.f32 %v1815, %v1915
      %1917 = vmatprep.mubr.f32.mxu0 %v1440
      %1918 = vmatmul.mubr.f32.gmra.mrb[0].mxu0 %v1425
      %v1919 = vpop.f32.mrb[0].mxu0
      %v1920 = vadd.f32 %v1819, %v1919
      %v1921 = vpop.f32.mrb[0].mxu0
      %v1922 = vadd.f32 %v1821, %v1921
      %1923 = vmatprep.mubr.f32.mxu0 %v1442
      %1924 = vmatmul.mubr.f32.gmra.mrb[0].mxu0 %v1426
      %v1925 = vpop.f32.mrb[0].mxu0
      %v1926 = vadd.f32 %v1825, %v1925
      %v1927 = vpop.f32.mrb[0].mxu0
      %v1928 = vadd.f32 %v1827, %v1927
      %1929 = vmatprep.mubr.f32.mxu0 %v1444
      %1930 = vmatmul.mubr.f32.gmra.mrb[0].mxu0 %v1427
      %v1931 = vpop.f32.mrb[0].mxu0
      %v1932 = vadd.f32 %v1831, %v1931
      %v1933 = vpop.f32.mrb[0].mxu0
      %v1934 = vadd.f32 %v1833, %v1933
      %1935 = vdwg.mxu0
      %v1936 = vld [vmem:[%s2] sm:$0x3]
      %v1938 = vlaneseq
      %v1939 = vshrl.u32 %v1938, 7
      %v1940 = vsub.s32 0, %v1939
      %v1941 = vrot.slane %v1936, %v1940
      %v1942 = vlaneseq
      %v1943 = vshrl.u32 %v1942, 7
      %v1944 = vsub.s32 1, %v1943
      %v1945 = vrot.slane %v1936, %v1944
      %v1948 = vadd.f32 %v1902, %v1941
      %v1949 = vadd.f32 %v1904, %v1945
      %v1950 = vadd.f32 %v1908, %v1941
      %v1951 = vadd.f32 %v1910, %v1945
      %v1952 = vadd.f32 %v1914, %v1941
      %v1953 = vadd.f32 %v1916, %v1945
      %v1954 = vadd.f32 %v1920, %v1941
      %v1955 = vadd.f32 %v1922, %v1945
      %v1956 = vadd.f32 %v1926, %v1941
      %v1957 = vadd.f32 %v1928, %v1945
      %v1958 = vadd.f32 %v1932, %v1941
      %v1959 = vadd.f32 %v1934, %v1945
      %1972 = vrot.lane.b32.xlu0 %v1948, 120
      %v1973 = vpop.permute.xlu0 %1972
      %1974 = vrot.lane.b32.xlu0 %v1949, 120
      %v1975 = vpop.permute.xlu0 %1974
      %1976 = vrot.lane.b32.xlu0 %v1950, 120
      %v1977 = vpop.permute.xlu0 %1976
      %1978 = vrot.lane.b32.xlu0 %v1951, 120
      %v1979 = vpop.permute.xlu0 %1978
      %1980 = vrot.lane.b32.xlu0 %v1952, 120
      %v1981 = vpop.permute.xlu0 %1980
      %1982 = vrot.lane.b32.xlu0 %v1953, 120
      %v1983 = vpop.permute.xlu0 %1982
      %1984 = vrot.lane.b32.xlu0 %v1954, 120
      %v1985 = vpop.permute.xlu0 %1984
      %1986 = vrot.lane.b32.xlu0 %v1955, 120
      %v1987 = vpop.permute.xlu0 %1986
      %1988 = vrot.lane.b32.xlu0 %v1956, 120
      %v1989 = vpop.permute.xlu0 %1988
      %1990 = vrot.lane.b32.xlu0 %v1957, 120
      %v1991 = vpop.permute.xlu0 %1990
      %1992 = vrot.lane.b32.xlu0 %v1958, 120
      %v1993 = vpop.permute.xlu0 %1992
      %1994 = vrot.lane.b32.xlu0 %v1959, 120
      %v1995 = vpop.permute.xlu0 %1994
      %v1996 = vsel %vm1607, %v1973, %v1975
      %v1997 = vsel %vm1607, %v1977, %v1979
      %v1998 = vsel %vm1607, %v1981, %v1983
      %v1999 = vsel %vm1607, %v1985, %v1987
      %v2000 = vsel %vm1607, %v1989, %v1991
      %v2001 = vsel %vm1607, %v1993, %v1995
      %2014 = vst.msk [vmem:[%s1089] sm:$0xff] %vm1626, %v1973
      %2015 = vst.msk [vmem:[%s1089 + $0x8] sm:$0xff] %vm1628, %v1996
      %2016 = vst.msk [vmem:[%s1089 + $0x10] sm:$0xff] %vm1626, %v1977
      %2017 = vst.msk [vmem:[%s1089 + $0x18] sm:$0xff] %vm1628, %v1997
      %2018 = vst.msk [vmem:[%s1089 + $0x20] sm:$0xff] %vm1626, %v1981
      %2019 = vst.msk [vmem:[%s1089 + $0x28] sm:$0xff] %vm1628, %v1998
      %2020 = vst.msk [vmem:[%s1089 + $0x30] sm:$0xff] %vm1626, %v1985
      %2021 = vst.msk [vmem:[%s1089 + $0x38] sm:$0xff] %vm1628, %v1999
      %2022 = vst.msk [vmem:[%s1089 + $0x40] sm:$0xff] %vm1626, %v1989
      %2023 = vst.msk [vmem:[%s1089 + $0x48] sm:$0xff] %vm1628, %v2000
      %2024 = vst.msk [vmem:[%s1089 + $0x50] sm:$0x3] %vm1638, %v1993
      %2025 = vst.msk [vmem:[%s1089 + $0x58] sm:$0x3] %vm1640, %v2001
      %p2026 = scmp.lt.s32.totalorder %s14, 1
      %s2027 = scalar_select %p2026, %s14, 1
      %s2028 = smul.addr %s2027, 24
      %s2029 = smul.addr %s2028, 8
      %s2030 = scalar_lea.vmem %s3, %s2029
      // Predicated region
      $region33: #{decoder_forward.5} parent=31 // pred_check
        %p2031 = pneg %p100
      $region34: #{decoder_forward.5} parent=31 // pred_check_branch
        %2033 = sbr.rel (%p2031) target = $region36
      $region35: #{decoder_forward.5} parent=31 // pred_region
        _
      $region36: #{decoder_forward.5} parent=31 // pred_fallthru
        _
    $region32: #{decoder_forward.5} parent=5 // pred_fallthru
      _
    %p2034 = scmp.le.s32.totalorder 2, %s9
    // Predicated region
    $region37: #{decoder_forward.5} parent=5 // pred_check
      %p2035 = pneg %p2034
    $region38: #{decoder_forward.5} parent=5 // pred_check_branch
      %2037 = sbr.rel (%p2035) target = $region40
    $region39: #{decoder_forward.5} parent=5 // pred_region
      %s2038 = ssub.s32 %s9, 2
      // Predicated region
      $region41: #{decoder_forward.5} parent=39 // pred_check
        %p2039 = pneg %p106
      $region42: #{decoder_forward.5} parent=39 // pred_check_branch
        %2041 = sbr.rel (%p2039) target = $region44
      $region43: #{decoder_forward.5} parent=39 // pred_region
        %p2042 = scmp.lt.s32.totalorder %s15, 1
        %s2043 = scalar_select %p2042, %s15, 1
        %s2044 = smul.addr %s2043, 24
        %s2045 = smul.addr %s2044, 8
        %s2046 = scalar_lea.vmem %s3, %s2045
      $region44: #{decoder_forward.5} parent=39 // pred_fallthru
        _
    $region40: #{decoder_forward.5} parent=5 // pred_fallthru
      _
  $region6: #{decoder_forward.5} parent=0 // loop_footer
    %s13 = sadd.s32 1, %s9
  $region7: #{decoder_forward.5} parent=0 // loop_footer_branch
    %8 = sbr.rel target = $region3
  $region8: #{decoder_forward.5} parent=0 // loop_exit
    _

</llo_original>
